<compile_context>
chip_gen: v7x
topology: tpu7x:2x2x1
jax: 0.10.0
libtpu: 0.0.40
codegen_flags: <defaults>
</compile_context>

<pallas_src>
import jax
import jax.numpy as jnp
import numpy as np
from jax import lax
from jax.experimental import pallas as pl
from jax.experimental.pallas import tpu as pltpu

_DOT_DTYPE = jnp.float32  # set to jnp.bfloat16 on v6e/v7x at large batch (fp32 accumulation kept)
_GUARD = 16               # guard rows around the shift buffer (>= max tap shift of 9)


# ----------------------- in-kernel building blocks (Python helpers traced into the kernel) ---

def _conv3x3_relu(pad_ref, msk_ref, w_ref, b_ref, *, M, W, Cin, Cout):
    """3x3 'same' conv + bias + ReLU.  The input activation must already sit in
    pad_ref[_GUARD:_GUARD+M, :Cin] (rows = batch*H*W in (n, y, x) order, lanes =
    channels).  Out-of-image taps are zeroed by the precomputed mask columns, so
    whatever lies in the guard / trailing rows is irrelevant.  Returns (M, Cout) f32."""
    acc = None
    for dy in range(3):
        for dx in range(3):
            k = dy * 3 + dx
            s = (dy - 1) * W + (dx - 1)                       # row shift of this tap
            win = pad_ref[_GUARD + s:_GUARD + s + M, 0:Cin]   # (M, Cin)
            if k != 4:                                        # centre tap needs no mask
                win = win * msk_ref[:, k:k + 1]
            wk = w_ref[k]                                     # (Cin, Cout)
            if Cin == 1:
                term = (win.astype(_DOT_DTYPE) * wk.astype(_DOT_DTYPE)).astype(jnp.float32)
            else:
                term = jnp.dot(win.astype(_DOT_DTYPE), wk.astype(_DOT_DTYPE),
                               preferred_element_type=jnp.float32)
            acc = term if acc is None else acc + term
    return jnp.maximum(acc + b_ref[...], 0.0)


def _maxpool_rows(pad_ref, act, *, M, W, C):
    """Fused 2x2/stride-2 maxpool epilogue: elementwise max of the 4 corners of
    every 2x2 window.  Only rows at even (y, x) positions hold the pooled value
    afterwards; the caller selects them."""
    pad_ref[_GUARD:_GUARD + M, 0:C] = act
    out = act
    for s in (1, W, W + 1):
        out = jnp.maximum(out, pad_ref[_GUARD + s:_GUARD + s + M, 0:C])
    return out


def _build_kernel(bt):
    """Fused SimpleVGG forward for one batch tile of `bt` 8x8 single-channel images."""
    M1 = bt * 64   # stage-1 rows (bt * 8 * 8)
    M2 = bt * 16   # stage-2 rows (bt * 4 * 4)
    G = _GUARD

    def kernel(x_ref,
               w1_ref, b1_ref, w2_ref, b2_ref, w3_ref, b3_ref,
               w4_ref, b4_ref, w5_ref, b5_ref,
               msk1_ref, msk2_ref, s1_ref,
               fw1_ref, fb1_ref, fw2_ref, fb2_ref,
               out_ref, pad_ref, fcin_ref):
        # Not strictly required (every out-of-window tap is masked) — cheap insurance.
        pad_ref[...] = jnp.zeros_like(pad_ref)

        # ---- stage 1: conv(1->8) -> conv(8->8) -> 2x2 maxpool (8x8 -> 4x4) ----
        pad_ref[G:G + M1, 0:1] = x_ref[...]
        a = _conv3x3_relu(pad_ref, msk1_ref, w1_ref, b1_ref, M=M1, W=8, Cin=1, Cout=8)
        pad_ref[G:G + M1, 0:8] = a
        a = _conv3x3_relu(pad_ref, msk1_ref, w2_ref, b2_ref, M=M1, W=8, Cin=8, Cout=8)
        mf = _maxpool_rows(pad_ref, a, M=M1, W=8, C=8)
        # Select the pooled rows (one (16,64)@(64,8) 0/1-select matmul per image)
        # and write them straight back as the stage-2 input.
        for n in range(bt):
            pooled = jnp.dot(s1_ref[...].astype(_DOT_DTYPE),
                             mf[n * 64:(n + 1) * 64, :].astype(_DOT_DTYPE),
                             preferred_element_type=jnp.float32)          # (16, 8)
            pad_ref[G + n * 16:G + (n + 1) * 16, 0:8] = pooled

        # ---- stage 2: conv(8->10) -> conv(10->16) -> conv(16->16) -> maxpool (4x4 -> 2x2) ----
        a = _conv3x3_relu(pad_ref, msk2_ref, w3_ref, b3_ref, M=M2, W=4, Cin=8, Cout=10)
        pad_ref[G:G + M2, 0:10] = a
        a = _conv3x3_relu(pad_ref, msk2_ref, w4_ref, b4_ref, M=M2, W=4, Cin=10, Cout=16)
        pad_ref[G:G + M2, 0:16] = a
        a = _conv3x3_relu(pad_ref, msk2_ref, w5_ref, b5_ref, M=M2, W=4, Cin=16, Cout=16)
        mf = _maxpool_rows(pad_ref, a, M=M2, W=4, C=16)

        # ---- flatten: torch's NCHW channel-major order is folded into the fc1
        # weight permutation done once at prep time; here we just lay the 4
        # pooled spatial positions side by side per sample.
        for q, off in enumerate((0, 2, 8, 10)):   # (y2, x2) = (0,0), (0,1), (1,0), (1,1)
            for n in range(bt):
                fcin_ref[n:n + 1, 16 * q:16 * (q + 1)] = mf[n * 16 + off:n * 16 + off + 1, :]

        # ---- FC head: fc(64->100) + ReLU, fc(100->10) ----
        h = jnp.dot(fcin_ref[...].astype(_DOT_DTYPE), fw1_ref[...].astype(_DOT_DTYPE),
                    preferred_element_type=jnp.float32) + fb1_ref[...]
        h = jnp.maximum(h, 0.0)
        out_ref[...] = jnp.dot(h.astype(_DOT_DTYPE), fw2_ref[...].astype(_DOT_DTYPE),
                               preferred_element_type=jnp.float32) + fb2_ref[...]

    return kernel


# ----------------------- one-time parameter preparation (all transposes hoisted here) ---------

def prepare_kernel_params(p, batch_tile):
    def conv_mat(w):                      # torch (Cout, Cin, 3, 3) -> (9, Cin, Cout)
        cout, cin = w.shape[0], w.shape[1]
        return jnp.transpose(w, (2, 3, 1, 0)).reshape(9, cin, cout)

    def conv_mask(bt, H, W):              # (bt*H*W, 9): 1.0 where tap (dy,dx) is inside the image
        m = np.ones((bt * H * W, 9), np.float32)
        for pidx in range(bt * H * W):
            y = (pidx % (H * W)) // W
            x = pidx % W
            for dy in range(3):
                for dx in range(3):
                    if not (0 <= y + dy - 1 < H and 0 <= x + dx - 1 < W):
                        m[pidx, dy * 3 + dx] = 0.0
        return jnp.asarray(m)

    def pool_select(H, W):                # ((H/2)*(W/2), H*W): picks the top-left row of each window
        s = np.zeros(((H // 2) * (W // 2), H * W), np.float32)
        for y2 in range(H // 2):
            for x2 in range(W // 2):
                s[y2 * (W // 2) + x2, (2 * y2) * W + 2 * x2] = 1.0
        return jnp.asarray(s)

    # fc1: torch computes y = x_flat @ W.T with x_flat in channel-major (c, y2, x2) order.
    # The kernel's flatten order is (q = y2*2+x2, c); fold transpose + permutation in here.
    f1 = p['f1w'].reshape(100, 16, 4)                     # [j, c, q]
    fw1 = jnp.transpose(f1, (2, 1, 0)).reshape(64, 100)   # [q*16 + c, j]

    return {
        'batch_tile': batch_tile,
        'cw1': conv_mat(p['c1w']), 'cb1': p['c1b'].reshape(1, 8),
        'cw2': conv_mat(p['c2w']), 'cb2': p['c2b'].reshape(1, 8),
        'cw3': conv_mat(p['c3w']), 'cb3': p['c3b'].reshape(1, 10),
        'cw4': conv_mat(p['c4w']), 'cb4': p['c4b'].reshape(1, 16),
        'cw5': conv_mat(p['c5w']), 'cb5': p['c5b'].reshape(1, 16),
        'msk1': conv_mask(batch_tile, 8, 8),
        'msk2': conv_mask(batch_tile, 4, 4),
        's1': pool_select(8, 8),
        'fw1': fw1, 'fb1': p['f1b'].reshape(1, 100),
        'fw2': p['f2w'].T, 'fb2': p['f2b'].reshape(1, 10),
    }


# ----------------------- forward wrapper: one pallas_call for the whole network ---------------

def simple_vgg_forward(x_nchw, kp):
    N = x_nchw.shape[0]
    bt = kp['batch_tile']
    assert N % bt == 0 and (N == bt or bt % 8 == 0), \
        "batch tile must divide N (and be a multiple of 8 when tiling the batch)"
    # (N,1,8,8) -> (N*64, 1): rows in (n, y, x) order, single channel on lanes.
    x2d = x_nchw.reshape(N * 64, 1).astype(jnp.float32)

    inputs = [x2d,
              kp['cw1'], kp['cb1'], kp['cw2'], kp['cb2'], kp['cw3'], kp['cb3'],
              kp['cw4'], kp['cb4'], kp['cw5'], kp['cb5'],
              kp['msk1'], kp['msk2'], kp['s1'],
              kp['fw1'], kp['fb1'], kp['fw2'], kp['fb2']]

    def const_spec(a):                    # full block, same index every step -> stays resident
        nd = a.ndim
        return pl.BlockSpec(a.shape, lambda i, nd=nd: (0,) * nd)

    in_specs = ([pl.BlockSpec((bt * 64, 1), lambda i: (i, 0))]
                + [const_spec(a) for a in inputs[1:]])

    return pl.pallas_call(
        _build_kernel(bt),
        out_shape=jax.ShapeDtypeStruct((N, 10), jnp.float32),
        grid=(N // bt,),
        in_specs=in_specs,
        out_specs=pl.BlockSpec((bt, 10), lambda i: (i, 0)),
        scratch_shapes=[pltpu.VMEM((2 * _GUARD + bt * 64, 16), jnp.float32),  # shift buffer
                        pltpu.VMEM((bt, 64), jnp.float32)],                   # FC input
        compiler_params=pltpu.CompilerParams(dimension_semantics=("parallel",)),
    )(*inputs)


# ----------------------- deterministic parameter init (torch-layout, as before) ---------------

def init_params(key):
    def conv_init(k, cout, cin):
        k1, k2 = jax.random.split(k)
        bound = 1.0 / np.sqrt(cin * 9)
        w = jax.random.uniform(k1, (cout, cin, 3, 3), jnp.float32, -bound, bound)
        b = jax.random.uniform(k2, (cout,), jnp.float32, -bound, bound)
        return w, b

    def fc_init(k, cout, cin):
        k1, k2 = jax.random.split(k)
        bound = 1.0 / np.sqrt(cin)
        w = jax.random.uniform(k1, (cout, cin), jnp.float32, -bound, bound)
        b = jax.random.uniform(k2, (cout,), jnp.float32, -bound, bound)
        return w, b

    keys = jax.random.split(key, 7)
    p = {}
    p['c1w'], p['c1b'] = conv_init(keys[0], 8, 1)
    p['c2w'], p['c2b'] = conv_init(keys[1], 8, 8)
    p['c3w'], p['c3b'] = conv_init(keys[2], 10, 8)
    p['c4w'], p['c4b'] = conv_init(keys[3], 16, 10)
    p['c5w'], p['c5b'] = conv_init(keys[4], 16, 16)
    p['f1w'], p['f1b'] = fc_init(keys[5], 100, 64)
    p['f2w'], p['f2b'] = fc_init(keys[6], 10, 100)
    return p


# ----------------------- pure-JAX reference (verification only) -------------------------------

def _conv_ref(x_nhwc, w_oihw, b):
    out = lax.conv_general_dilated(
        x_nhwc, jnp.transpose(w_oihw, (2, 3, 1, 0)),
        window_strides=(1, 1), padding=((1, 1), (1, 1)),
        dimension_numbers=('NHWC', 'HWIO', 'NHWC'))
    return jnp.maximum(out + b, 0.0)


def _pool_ref(x):
    return lax.reduce_window(x, -jnp.inf, lax.max, (1, 2, 2, 1), (1, 2, 2, 1), 'VALID')


def forward_ref(x_nchw, p):
    x = jnp.transpose(x_nchw, (0, 2, 3, 1))
    x = _conv_ref(x, p['c1w'], p['c1b'])
    x = _conv_ref(x, p['c2w'], p['c2b'])
    x = _pool_ref(x)
    x = _conv_ref(x, p['c3w'], p['c3b'])
    x = _conv_ref(x, p['c4w'], p['c4b'])
    x = _conv_ref(x, p['c5w'], p['c5b'])
    x = _pool_ref(x)
    N = x.shape[0]
    x = jnp.transpose(x, (0, 3, 1, 2)).reshape(N, -1)
    x = jnp.maximum(x @ p['f1w'].T + p['f1b'], 0.0)
    x = x @ p['f2w'].T + p['f2b']
    return x


# ----------------------- main ------------------------------------------------------------------

if __name__ == "__main__":
    key = jax.random.PRNGKey(0)
    pkey, xkey = jax.random.split(key)
    params = init_params(pkey)

    # NCHW input, 1-channel 8x8 "digit" images (fc head expects 16*2*2 features).
    x = jax.random.normal(xkey, (2, 1, 8, 8), dtype=jnp.float32)

    N = x.shape[0]
    batch_tile = N if (N < 8 or N % 8 != 0) else 8   # whole batch in one step at this size
    kparams = prepare_kernel_params(params, batch_tile)

    run = jax.jit(lambda xx: simple_vgg_forward(xx, kparams))
    out = jax.block_until_ready(run(x))
    assert out.shape == (2, 10)

    ref = forward_ref(x, params)
    np.testing.assert_allclose(np.asarray(out), np.asarray(ref), rtol=1e-4, atol=1e-4)

    print("KERNEL_OK")
</pallas_src>

<mosaic_0001>
module attributes {stable_mosaic.version = 11 : i64} {
  func.func @kernel(%arg0: i32, %arg1: memref<128x1xf32, #tpu.memory_space<vmem>>, %arg2: memref<9x1x8xf32, #tpu.memory_space<vmem>>, %arg3: memref<1x8xf32, #tpu.memory_space<vmem>>, %arg4: memref<9x8x8xf32, #tpu.memory_space<vmem>>, %arg5: memref<1x8xf32, #tpu.memory_space<vmem>>, %arg6: memref<9x8x10xf32, #tpu.memory_space<vmem>>, %arg7: memref<1x10xf32, #tpu.memory_space<vmem>>, %arg8: memref<9x10x16xf32, #tpu.memory_space<vmem>>, %arg9: memref<1x16xf32, #tpu.memory_space<vmem>>, %arg10: memref<9x16x16xf32, #tpu.memory_space<vmem>>, %arg11: memref<1x16xf32, #tpu.memory_space<vmem>>, %arg12: memref<128x9xf32, #tpu.memory_space<vmem>>, %arg13: memref<32x9xf32, #tpu.memory_space<vmem>>, %arg14: memref<16x64xf32, #tpu.memory_space<vmem>>, %arg15: memref<64x100xf32, #tpu.memory_space<vmem>>, %arg16: memref<1x100xf32, #tpu.memory_space<vmem>>, %arg17: memref<100x10xf32, #tpu.memory_space<vmem>>, %arg18: memref<1x10xf32, #tpu.memory_space<vmem>>, %arg19: memref<2x10xf32, #tpu.memory_space<vmem>>, %arg20: memref<160x16xf32, #tpu.memory_space<vmem>>, %arg21: memref<2x64xf32, #tpu.memory_space<vmem>>) attributes {dimension_semantics = [#tpu.dimension_semantics<parallel>], iteration_bounds = array<i64: 1>, scalar_prefetch = 0 : i64, scratch_operands = 2 : i64, tpu.core_type = #tpu.core_type<tc>, window_params = [{transform_indices = @transform_0, window_bounds = array<i64: 128, 1>}, {pipeline_mode = #tpu.pipeline_mode<synchronous>, transform_indices = @transform_1, window_bounds = array<i64: 9, 1, 8>}, {pipeline_mode = #tpu.pipeline_mode<synchronous>, transform_indices = @transform_2, window_bounds = array<i64: 1, 8>}, {pipeline_mode = #tpu.pipeline_mode<synchronous>, transform_indices = @transform_3, window_bounds = array<i64: 9, 8, 8>}, {pipeline_mode = #tpu.pipeline_mode<synchronous>, transform_indices = @transform_4, window_bounds = array<i64: 1, 8>}, {pipeline_mode = #tpu.pipeline_mode<synchronous>, transform_indices = @transform_5, window_bounds = array<i64: 9, 8, 10>}, {pipeline_mode = #tpu.pipeline_mode<synchronous>, transform_indices = @transform_6, window_bounds = array<i64: 1, 10>}, {pipeline_mode = #tpu.pipeline_mode<synchronous>, transform_indices = @transform_7, window_bounds = array<i64: 9, 10, 16>}, {pipeline_mode = #tpu.pipeline_mode<synchronous>, transform_indices = @transform_8, window_bounds = array<i64: 1, 16>}, {pipeline_mode = #tpu.pipeline_mode<synchronous>, transform_indices = @transform_9, window_bounds = array<i64: 9, 16, 16>}, {pipeline_mode = #tpu.pipeline_mode<synchronous>, transform_indices = @transform_10, window_bounds = array<i64: 1, 16>}, {pipeline_mode = #tpu.pipeline_mode<synchronous>, transform_indices = @transform_11, window_bounds = array<i64: 128, 9>}, {pipeline_mode = #tpu.pipeline_mode<synchronous>, transform_indices = @transform_12, window_bounds = array<i64: 32, 9>}, {pipeline_mode = #tpu.pipeline_mode<synchronous>, transform_indices = @transform_13, window_bounds = array<i64: 16, 64>}, {pipeline_mode = #tpu.pipeline_mode<synchronous>, transform_indices = @transform_14, window_bounds = array<i64: 64, 100>}, {pipeline_mode = #tpu.pipeline_mode<synchronous>, transform_indices = @transform_15, window_bounds = array<i64: 1, 100>}, {pipeline_mode = #tpu.pipeline_mode<synchronous>, transform_indices = @transform_16, window_bounds = array<i64: 100, 10>}, {pipeline_mode = #tpu.pipeline_mode<synchronous>, transform_indices = @transform_17, window_bounds = array<i64: 1, 10>}, {transform_indices = @transform_18, window_bounds = array<i64: 2, 10>}]} {
    %cst = arith.constant 0.000000e+00 : f32
    %0 = vector.broadcast %cst : f32 to vector<160x16xf32>
    %c0 = arith.constant 0 : index
    %c0_0 = arith.constant 0 : index
    %1 = vector.load %arg20[%c0, %c0_0] : memref<160x16xf32, #tpu.memory_space<vmem>>, vector<160x16xf32>
    tpu.vector_store %arg20[%c0, %c0_0], %0 {strides = array<i32>} : memref<160x16xf32, #tpu.memory_space<vmem>>, vector<160x16xf32>,
    %c0_1 = arith.constant 0 : index
    %c0_2 = arith.constant 0 : index
    %2 = vector.load %arg1[%c0_1, %c0_2] : memref<128x1xf32, #tpu.memory_space<vmem>>, vector<128x1xf32>
    %c16 = arith.constant 16 : index
    %c0_3 = arith.constant 0 : index
    %3 = vector.load %arg20[%c16, %c0_3] : memref<160x16xf32, #tpu.memory_space<vmem>>, vector<128x1xf32>
    tpu.vector_store %arg20[%c16, %c0_3], %2 {strides = array<i32>} : memref<160x16xf32, #tpu.memory_space<vmem>>, vector<128x1xf32>,
    %c7 = arith.constant 7 : index
    %c0_4 = arith.constant 0 : index
    %4 = vector.load %arg20[%c7, %c0_4] : memref<160x16xf32, #tpu.memory_space<vmem>>, vector<128x1xf32>
    %c0_5 = arith.constant 0 : index
    %c0_6 = arith.constant 0 : index
    %5 = vector.load %arg12[%c0_5, %c0_6] : memref<128x9xf32, #tpu.memory_space<vmem>>, vector<128x1xf32>
    %6 = arith.mulf %4, %5 : vector<128x1xf32>
    %c0_7 = arith.constant 0 : index
    %c0_8 = arith.constant 0 : index
    %c0_9 = arith.constant 0 : index
    %7 = vector.load %arg2[%c0_7, %c0_8, %c0_9] : memref<9x1x8xf32, #tpu.memory_space<vmem>>, vector<1x1x8xf32>
    %8 = vector.shape_cast %7 : vector<1x1x8xf32> to vector<1x8xf32>
    %9 = vector.broadcast %6 : vector<128x1xf32> to vector<128x8xf32>
    %10 = vector.broadcast %8 : vector<1x8xf32> to vector<128x8xf32>
    %11 = arith.mulf %9, %10 : vector<128x8xf32>
    %c8 = arith.constant 8 : index
    %c0_10 = arith.constant 0 : index
    %12 = vector.load %arg20[%c8, %c0_10] : memref<160x16xf32, #tpu.memory_space<vmem>>, vector<128x1xf32>
    %c0_11 = arith.constant 0 : index
    %c1 = arith.constant 1 : index
    %13 = vector.load %arg12[%c0_11, %c1] : memref<128x9xf32, #tpu.memory_space<vmem>>, vector<128x1xf32>
    %14 = arith.mulf %12, %13 : vector<128x1xf32>
    %c1_12 = arith.constant 1 : index
    %c0_13 = arith.constant 0 : index
    %c0_14 = arith.constant 0 : index
    %15 = vector.load %arg2[%c1_12, %c0_13, %c0_14] : memref<9x1x8xf32, #tpu.memory_space<vmem>>, vector<1x1x8xf32>
    %16 = vector.shape_cast %15 : vector<1x1x8xf32> to vector<1x8xf32>
    %17 = vector.broadcast %14 : vector<128x1xf32> to vector<128x8xf32>
    %18 = vector.broadcast %16 : vector<1x8xf32> to vector<128x8xf32>
    %19 = arith.mulf %17, %18 : vector<128x8xf32>
    %20 = arith.addf %11, %19 : vector<128x8xf32>
    %c9 = arith.constant 9 : index
    %c0_15 = arith.constant 0 : index
    %21 = vector.load %arg20[%c9, %c0_15] : memref<160x16xf32, #tpu.memory_space<vmem>>, vector<128x1xf32>
    %c0_16 = arith.constant 0 : index
    %c2 = arith.constant 2 : index
    %22 = vector.load %arg12[%c0_16, %c2] : memref<128x9xf32, #tpu.memory_space<vmem>>, vector<128x1xf32>
    %23 = arith.mulf %21, %22 : vector<128x1xf32>
    %c2_17 = arith.constant 2 : index
    %c0_18 = arith.constant 0 : index
    %c0_19 = arith.constant 0 : index
    %24 = vector.load %arg2[%c2_17, %c0_18, %c0_19] : memref<9x1x8xf32, #tpu.memory_space<vmem>>, vector<1x1x8xf32>
    %25 = vector.shape_cast %24 : vector<1x1x8xf32> to vector<1x8xf32>
    %26 = vector.broadcast %23 : vector<128x1xf32> to vector<128x8xf32>
    %27 = vector.broadcast %25 : vector<1x8xf32> to vector<128x8xf32>
    %28 = arith.mulf %26, %27 : vector<128x8xf32>
    %29 = arith.addf %20, %28 : vector<128x8xf32>
    %c15 = arith.constant 15 : index
    %c0_20 = arith.constant 0 : index
    %30 = vector.load %arg20[%c15, %c0_20] : memref<160x16xf32, #tpu.memory_space<vmem>>, vector<128x1xf32>
    %c0_21 = arith.constant 0 : index
    %c3 = arith.constant 3 : index
    %31 = vector.load %arg12[%c0_21, %c3] : memref<128x9xf32, #tpu.memory_space<vmem>>, vector<128x1xf32>
    %32 = arith.mulf %30, %31 : vector<128x1xf32>
    %c3_22 = arith.constant 3 : index
    %c0_23 = arith.constant 0 : index
    %c0_24 = arith.constant 0 : index
    %33 = vector.load %arg2[%c3_22, %c0_23, %c0_24] : memref<9x1x8xf32, #tpu.memory_space<vmem>>, vector<1x1x8xf32>
    %34 = vector.shape_cast %33 : vector<1x1x8xf32> to vector<1x8xf32>
    %35 = vector.broadcast %32 : vector<128x1xf32> to vector<128x8xf32>
    %36 = vector.broadcast %34 : vector<1x8xf32> to vector<128x8xf32>
    %37 = arith.mulf %35, %36 : vector<128x8xf32>
    %38 = arith.addf %29, %37 : vector<128x8xf32>
    %c16_25 = arith.constant 16 : index
    %c0_26 = arith.constant 0 : index
    %39 = vector.load %arg20[%c16_25, %c0_26] : memref<160x16xf32, #tpu.memory_space<vmem>>, vector<128x1xf32>
    %c4 = arith.constant 4 : index
    %c0_27 = arith.constant 0 : index
    %c0_28 = arith.constant 0 : index
    %40 = vector.load %arg2[%c4, %c0_27, %c0_28] : memref<9x1x8xf32, #tpu.memory_space<vmem>>, vector<1x1x8xf32>
    %41 = vector.shape_cast %40 : vector<1x1x8xf32> to vector<1x8xf32>
    %42 = vector.broadcast %39 : vector<128x1xf32> to vector<128x8xf32>
    %43 = vector.broadcast %41 : vector<1x8xf32> to vector<128x8xf32>
    %44 = arith.mulf %42, %43 : vector<128x8xf32>
    %45 = arith.addf %38, %44 : vector<128x8xf32>
    %c17 = arith.constant 17 : index
    %c0_29 = arith.constant 0 : index
    %46 = vector.load %arg20[%c17, %c0_29] : memref<160x16xf32, #tpu.memory_space<vmem>>, vector<128x1xf32>
    %c0_30 = arith.constant 0 : index
    %c5 = arith.constant 5 : index
    %47 = vector.load %arg12[%c0_30, %c5] : memref<128x9xf32, #tpu.memory_space<vmem>>, vector<128x1xf32>
    %48 = arith.mulf %46, %47 : vector<128x1xf32>
    %c5_31 = arith.constant 5 : index
    %c0_32 = arith.constant 0 : index
    %c0_33 = arith.constant 0 : index
    %49 = vector.load %arg2[%c5_31, %c0_32, %c0_33] : memref<9x1x8xf32, #tpu.memory_space<vmem>>, vector<1x1x8xf32>
    %50 = vector.shape_cast %49 : vector<1x1x8xf32> to vector<1x8xf32>
    %51 = vector.broadcast %48 : vector<128x1xf32> to vector<128x8xf32>
    %52 = vector.broadcast %50 : vector<1x8xf32> to vector<128x8xf32>
    %53 = arith.mulf %51, %52 : vector<128x8xf32>
    %54 = arith.addf %45, %53 : vector<128x8xf32>
    %c23 = arith.constant 23 : index
    %c0_34 = arith.constant 0 : index
    %55 = vector.load %arg20[%c23, %c0_34] : memref<160x16xf32, #tpu.memory_space<vmem>>, vector<128x1xf32>
    %c0_35 = arith.constant 0 : index
    %c6 = arith.constant 6 : index
    %56 = vector.load %arg12[%c0_35, %c6] : memref<128x9xf32, #tpu.memory_space<vmem>>, vector<128x1xf32>
    %57 = arith.mulf %55, %56 : vector<128x1xf32>
    %c6_36 = arith.constant 6 : index
    %c0_37 = arith.constant 0 : index
    %c0_38 = arith.constant 0 : index
    %58 = vector.load %arg2[%c6_36, %c0_37, %c0_38] : memref<9x1x8xf32, #tpu.memory_space<vmem>>, vector<1x1x8xf32>
    %59 = vector.shape_cast %58 : vector<1x1x8xf32> to vector<1x8xf32>
    %60 = vector.broadcast %57 : vector<128x1xf32> to vector<128x8xf32>
    %61 = vector.broadcast %59 : vector<1x8xf32> to vector<128x8xf32>
    %62 = arith.mulf %60, %61 : vector<128x8xf32>
    %63 = arith.addf %54, %62 : vector<128x8xf32>
    %c24 = arith.constant 24 : index
    %c0_39 = arith.constant 0 : index
    %64 = vector.load %arg20[%c24, %c0_39] : memref<160x16xf32, #tpu.memory_space<vmem>>, vector<128x1xf32>
    %c0_40 = arith.constant 0 : index
    %c7_41 = arith.constant 7 : index
    %65 = vector.load %arg12[%c0_40, %c7_41] : memref<128x9xf32, #tpu.memory_space<vmem>>, vector<128x1xf32>
    %66 = arith.mulf %64, %65 : vector<128x1xf32>
    %c7_42 = arith.constant 7 : index
    %c0_43 = arith.constant 0 : index
    %c0_44 = arith.constant 0 : index
    %67 = vector.load %arg2[%c7_42, %c0_43, %c0_44] : memref<9x1x8xf32, #tpu.memory_space<vmem>>, vector<1x1x8xf32>
    %68 = vector.shape_cast %67 : vector<1x1x8xf32> to vector<1x8xf32>
    %69 = vector.broadcast %66 : vector<128x1xf32> to vector<128x8xf32>
    %70 = vector.broadcast %68 : vector<1x8xf32> to vector<128x8xf32>
    %71 = arith.mulf %69, %70 : vector<128x8xf32>
    %72 = arith.addf %63, %71 : vector<128x8xf32>
    %c25 = arith.constant 25 : index
    %c0_45 = arith.constant 0 : index
    %73 = vector.load %arg20[%c25, %c0_45] : memref<160x16xf32, #tpu.memory_space<vmem>>, vector<128x1xf32>
    %c0_46 = arith.constant 0 : index
    %c8_47 = arith.constant 8 : index
    %74 = vector.load %arg12[%c0_46, %c8_47] : memref<128x9xf32, #tpu.memory_space<vmem>>, vector<128x1xf32>
    %75 = arith.mulf %73, %74 : vector<128x1xf32>
    %c8_48 = arith.constant 8 : index
    %c0_49 = arith.constant 0 : index
    %c0_50 = arith.constant 0 : index
    %76 = vector.load %arg2[%c8_48, %c0_49, %c0_50] : memref<9x1x8xf32, #tpu.memory_space<vmem>>, vector<1x1x8xf32>
    %77 = vector.shape_cast %76 : vector<1x1x8xf32> to vector<1x8xf32>
    %78 = vector.broadcast %75 : vector<128x1xf32> to vector<128x8xf32>
    %79 = vector.broadcast %77 : vector<1x8xf32> to vector<128x8xf32>
    %80 = arith.mulf %78, %79 : vector<128x8xf32>
    %81 = arith.addf %72, %80 : vector<128x8xf32>
    %c0_51 = arith.constant 0 : index
    %c0_52 = arith.constant 0 : index
    %82 = vector.load %arg3[%c0_51, %c0_52] : memref<1x8xf32, #tpu.memory_space<vmem>>, vector<1x8xf32>
    %83 = vector.broadcast %82 : vector<1x8xf32> to vector<128x8xf32>
    %84 = arith.addf %81, %83 : vector<128x8xf32>
    %cst_53 = arith.constant 0.000000e+00 : f32
    %85 = vector.broadcast %cst_53 : f32 to vector<128x8xf32>
    %86 = arith.maximumf %84, %85 : vector<128x8xf32>
    %c16_54 = arith.constant 16 : index
    %c0_55 = arith.constant 0 : index
    %87 = vector.load %arg20[%c16_54, %c0_55] : memref<160x16xf32, #tpu.memory_space<vmem>>, vector<128x8xf32>
    tpu.vector_store %arg20[%c16_54, %c0_55], %86 {strides = array<i32>} : memref<160x16xf32, #tpu.memory_space<vmem>>, vector<128x8xf32>,
    %c7_56 = arith.constant 7 : index
    %c0_57 = arith.constant 0 : index
    %88 = vector.load %arg20[%c7_56, %c0_57] : memref<160x16xf32, #tpu.memory_space<vmem>>, vector<128x8xf32>
    %c0_58 = arith.constant 0 : index
    %c0_59 = arith.constant 0 : index
    %89 = vector.load %arg12[%c0_58, %c0_59] : memref<128x9xf32, #tpu.memory_space<vmem>>, vector<128x1xf32>
    %90 = vector.broadcast %89 : vector<128x1xf32> to vector<128x8xf32>
    %91 = arith.mulf %88, %90 : vector<128x8xf32>
    %c0_60 = arith.constant 0 : index
    %c0_61 = arith.constant 0 : index
    %c0_62 = arith.constant 0 : index
    %92 = vector.load %arg4[%c0_60, %c0_61, %c0_62] : memref<9x8x8xf32, #tpu.memory_space<vmem>>, vector<1x8x8xf32>
    %93 = vector.shape_cast %92 : vector<1x8x8xf32> to vector<8x8xf32>
    %cst_63 = arith.constant dense<0.000000e+00> : vector<128x8xf32>
    %94 = tpu.matmul %91, %93, %cst_63 {dimension_numbers = #tpu.dot_dimension_numbers<[1], [0], [0], [1], [0, 0, 1, 1], [], []>} : vector<128x8xf32>, vector<8x8xf32>, vector<128x8xf32> -> vector<128x8xf32>
    %c8_64 = arith.constant 8 : index
    %c0_65 = arith.constant 0 : index
    %95 = vector.load %arg20[%c8_64, %c0_65] : memref<160x16xf32, #tpu.memory_space<vmem>>, vector<128x8xf32>
    %c0_66 = arith.constant 0 : index
    %c1_67 = arith.constant 1 : index
    %96 = vector.load %arg12[%c0_66, %c1_67] : memref<128x9xf32, #tpu.memory_space<vmem>>, vector<128x1xf32>
    %97 = vector.broadcast %96 : vector<128x1xf32> to vector<128x8xf32>
    %98 = arith.mulf %95, %97 : vector<128x8xf32>
    %c1_68 = arith.constant 1 : index
    %c0_69 = arith.constant 0 : index
    %c0_70 = arith.constant 0 : index
    %99 = vector.load %arg4[%c1_68, %c0_69, %c0_70] : memref<9x8x8xf32, #tpu.memory_space<vmem>>, vector<1x8x8xf32>
    %100 = vector.shape_cast %99 : vector<1x8x8xf32> to vector<8x8xf32>
    %cst_71 = arith.constant dense<0.000000e+00> : vector<128x8xf32>
    %101 = tpu.matmul %98, %100, %cst_71 {dimension_numbers = #tpu.dot_dimension_numbers<[1], [0], [0], [1], [0, 0, 1, 1], [], []>} : vector<128x8xf32>, vector<8x8xf32>, vector<128x8xf32> -> vector<128x8xf32>
    %102 = arith.addf %94, %101 : vector<128x8xf32>
    %c9_72 = arith.constant 9 : index
    %c0_73 = arith.constant 0 : index
    %103 = vector.load %arg20[%c9_72, %c0_73] : memref<160x16xf32, #tpu.memory_space<vmem>>, vector<128x8xf32>
    %c0_74 = arith.constant 0 : index
    %c2_75 = arith.constant 2 : index
    %104 = vector.load %arg12[%c0_74, %c2_75] : memref<128x9xf32, #tpu.memory_space<vmem>>, vector<128x1xf32>
    %105 = vector.broadcast %104 : vector<128x1xf32> to vector<128x8xf32>
    %106 = arith.mulf %103, %105 : vector<128x8xf32>
    %c2_76 = arith.constant 2 : index
    %c0_77 = arith.constant 0 : index
    %c0_78 = arith.constant 0 : index
    %107 = vector.load %arg4[%c2_76, %c0_77, %c0_78] : memref<9x8x8xf32, #tpu.memory_space<vmem>>, vector<1x8x8xf32>
    %108 = vector.shape_cast %107 : vector<1x8x8xf32> to vector<8x8xf32>
    %cst_79 = arith.constant dense<0.000000e+00> : vector<128x8xf32>
    %109 = tpu.matmul %106, %108, %cst_79 {dimension_numbers = #tpu.dot_dimension_numbers<[1], [0], [0], [1], [0, 0, 1, 1], [], []>} : vector<128x8xf32>, vector<8x8xf32>, vector<128x8xf32> -> vector<128x8xf32>
    %110 = arith.addf %102, %109 : vector<128x8xf32>
    %c15_80 = arith.constant 15 : index
    %c0_81 = arith.constant 0 : index
    %111 = vector.load %arg20[%c15_80, %c0_81] : memref<160x16xf32, #tpu.memory_space<vmem>>, vector<128x8xf32>
    %c0_82 = arith.constant 0 : index
    %c3_83 = arith.constant 3 : index
    %112 = vector.load %arg12[%c0_82, %c3_83] : memref<128x9xf32, #tpu.memory_space<vmem>>, vector<128x1xf32>
    %113 = vector.broadcast %112 : vector<128x1xf32> to vector<128x8xf32>
    %114 = arith.mulf %111, %113 : vector<128x8xf32>
    %c3_84 = arith.constant 3 : index
    %c0_85 = arith.constant 0 : index
    %c0_86 = arith.constant 0 : index
    %115 = vector.load %arg4[%c3_84, %c0_85, %c0_86] : memref<9x8x8xf32, #tpu.memory_space<vmem>>, vector<1x8x8xf32>
    %116 = vector.shape_cast %115 : vector<1x8x8xf32> to vector<8x8xf32>
    %cst_87 = arith.constant dense<0.000000e+00> : vector<128x8xf32>
    %117 = tpu.matmul %114, %116, %cst_87 {dimension_numbers = #tpu.dot_dimension_numbers<[1], [0], [0], [1], [0, 0, 1, 1], [], []>} : vector<128x8xf32>, vector<8x8xf32>, vector<128x8xf32> -> vector<128x8xf32>
    %118 = arith.addf %110, %117 : vector<128x8xf32>
    %c16_88 = arith.constant 16 : index
    %c0_89 = arith.constant 0 : index
    %119 = vector.load %arg20[%c16_88, %c0_89] : memref<160x16xf32, #tpu.memory_space<vmem>>, vector<128x8xf32>
    %c4_90 = arith.constant 4 : index
    %c0_91 = arith.constant 0 : index
    %c0_92 = arith.constant 0 : index
    %120 = vector.load %arg4[%c4_90, %c0_91, %c0_92] : memref<9x8x8xf32, #tpu.memory_space<vmem>>, vector<1x8x8xf32>
    %121 = vector.shape_cast %120 : vector<1x8x8xf32> to vector<8x8xf32>
    %cst_93 = arith.constant dense<0.000000e+00> : vector<128x8xf32>
    %122 = tpu.matmul %119, %121, %cst_93 {dimension_numbers = #tpu.dot_dimension_numbers<[1], [0], [0], [1], [0, 0, 1, 1], [], []>} : vector<128x8xf32>, vector<8x8xf32>, vector<128x8xf32> -> vector<128x8xf32>
    %123 = arith.addf %118, %122 : vector<128x8xf32>
    %c17_94 = arith.constant 17 : index
    %c0_95 = arith.constant 0 : index
    %124 = vector.load %arg20[%c17_94, %c0_95] : memref<160x16xf32, #tpu.memory_space<vmem>>, vector<128x8xf32>
    %c0_96 = arith.constant 0 : index
    %c5_97 = arith.constant 5 : index
    %125 = vector.load %arg12[%c0_96, %c5_97] : memref<128x9xf32, #tpu.memory_space<vmem>>, vector<128x1xf32>
    %126 = vector.broadcast %125 : vector<128x1xf32> to vector<128x8xf32>
    %127 = arith.mulf %124, %126 : vector<128x8xf32>
    %c5_98 = arith.constant 5 : index
    %c0_99 = arith.constant 0 : index
    %c0_100 = arith.constant 0 : index
    %128 = vector.load %arg4[%c5_98, %c0_99, %c0_100] : memref<9x8x8xf32, #tpu.memory_space<vmem>>, vector<1x8x8xf32>
    %129 = vector.shape_cast %128 : vector<1x8x8xf32> to vector<8x8xf32>
    %cst_101 = arith.constant dense<0.000000e+00> : vector<128x8xf32>
    %130 = tpu.matmul %127, %129, %cst_101 {dimension_numbers = #tpu.dot_dimension_numbers<[1], [0], [0], [1], [0, 0, 1, 1], [], []>} : vector<128x8xf32>, vector<8x8xf32>, vector<128x8xf32> -> vector<128x8xf32>
    %131 = arith.addf %123, %130 : vector<128x8xf32>
    %c23_102 = arith.constant 23 : index
    %c0_103 = arith.constant 0 : index
    %132 = vector.load %arg20[%c23_102, %c0_103] : memref<160x16xf32, #tpu.memory_space<vmem>>, vector<128x8xf32>
    %c0_104 = arith.constant 0 : index
    %c6_105 = arith.constant 6 : index
    %133 = vector.load %arg12[%c0_104, %c6_105] : memref<128x9xf32, #tpu.memory_space<vmem>>, vector<128x1xf32>
    %134 = vector.broadcast %133 : vector<128x1xf32> to vector<128x8xf32>
    %135 = arith.mulf %132, %134 : vector<128x8xf32>
    %c6_106 = arith.constant 6 : index
    %c0_107 = arith.constant 0 : index
    %c0_108 = arith.constant 0 : index
    %136 = vector.load %arg4[%c6_106, %c0_107, %c0_108] : memref<9x8x8xf32, #tpu.memory_space<vmem>>, vector<1x8x8xf32>
    %137 = vector.shape_cast %136 : vector<1x8x8xf32> to vector<8x8xf32>
    %cst_109 = arith.constant dense<0.000000e+00> : vector<128x8xf32>
    %138 = tpu.matmul %135, %137, %cst_109 {dimension_numbers = #tpu.dot_dimension_numbers<[1], [0], [0], [1], [0, 0, 1, 1], [], []>} : vector<128x8xf32>, vector<8x8xf32>, vector<128x8xf32> -> vector<128x8xf32>
    %139 = arith.addf %131, %138 : vector<128x8xf32>
    %c24_110 = arith.constant 24 : index
    %c0_111 = arith.constant 0 : index
    %140 = vector.load %arg20[%c24_110, %c0_111] : memref<160x16xf32, #tpu.memory_space<vmem>>, vector<128x8xf32>
    %c0_112 = arith.constant 0 : index
    %c7_113 = arith.constant 7 : index
    %141 = vector.load %arg12[%c0_112, %c7_113] : memref<128x9xf32, #tpu.memory_space<vmem>>, vector<128x1xf32>
    %142 = vector.broadcast %141 : vector<128x1xf32> to vector<128x8xf32>
    %143 = arith.mulf %140, %142 : vector<128x8xf32>
    %c7_114 = arith.constant 7 : index
    %c0_115 = arith.constant 0 : index
    %c0_116 = arith.constant 0 : index
    %144 = vector.load %arg4[%c7_114, %c0_115, %c0_116] : memref<9x8x8xf32, #tpu.memory_space<vmem>>, vector<1x8x8xf32>
    %145 = vector.shape_cast %144 : vector<1x8x8xf32> to vector<8x8xf32>
    %cst_117 = arith.constant dense<0.000000e+00> : vector<128x8xf32>
    %146 = tpu.matmul %143, %145, %cst_117 {dimension_numbers = #tpu.dot_dimension_numbers<[1], [0], [0], [1], [0, 0, 1, 1], [], []>} : vector<128x8xf32>, vector<8x8xf32>, vector<128x8xf32> -> vector<128x8xf32>
    %147 = arith.addf %139, %146 : vector<128x8xf32>
    %c25_118 = arith.constant 25 : index
    %c0_119 = arith.constant 0 : index
    %148 = vector.load %arg20[%c25_118, %c0_119] : memref<160x16xf32, #tpu.memory_space<vmem>>, vector<128x8xf32>
    %c0_120 = arith.constant 0 : index
    %c8_121 = arith.constant 8 : index
    %149 = vector.load %arg12[%c0_120, %c8_121] : memref<128x9xf32, #tpu.memory_space<vmem>>, vector<128x1xf32>
    %150 = vector.broadcast %149 : vector<128x1xf32> to vector<128x8xf32>
    %151 = arith.mulf %148, %150 : vector<128x8xf32>
    %c8_122 = arith.constant 8 : index
    %c0_123 = arith.constant 0 : index
    %c0_124 = arith.constant 0 : index
    %152 = vector.load %arg4[%c8_122, %c0_123, %c0_124] : memref<9x8x8xf32, #tpu.memory_space<vmem>>, vector<1x8x8xf32>
    %153 = vector.shape_cast %152 : vector<1x8x8xf32> to vector<8x8xf32>
    %cst_125 = arith.constant dense<0.000000e+00> : vector<128x8xf32>
    %154 = tpu.matmul %151, %153, %cst_125 {dimension_numbers = #tpu.dot_dimension_numbers<[1], [0], [0], [1], [0, 0, 1, 1], [], []>} : vector<128x8xf32>, vector<8x8xf32>, vector<128x8xf32> -> vector<128x8xf32>
    %155 = arith.addf %147, %154 : vector<128x8xf32>
    %c0_126 = arith.constant 0 : index
    %c0_127 = arith.constant 0 : index
    %156 = vector.load %arg5[%c0_126, %c0_127] : memref<1x8xf32, #tpu.memory_space<vmem>>, vector<1x8xf32>
    %157 = vector.broadcast %156 : vector<1x8xf32> to vector<128x8xf32>
    %158 = arith.addf %155, %157 : vector<128x8xf32>
    %cst_128 = arith.constant 0.000000e+00 : f32
    %159 = vector.broadcast %cst_128 : f32 to vector<128x8xf32>
    %160 = arith.maximumf %158, %159 : vector<128x8xf32>
    %c16_129 = arith.constant 16 : index
    %c0_130 = arith.constant 0 : index
    %161 = vector.load %arg20[%c16_129, %c0_130] : memref<160x16xf32, #tpu.memory_space<vmem>>, vector<128x8xf32>
    tpu.vector_store %arg20[%c16_129, %c0_130], %160 {strides = array<i32>} : memref<160x16xf32, #tpu.memory_space<vmem>>, vector<128x8xf32>,
    %c17_131 = arith.constant 17 : index
    %c0_132 = arith.constant 0 : index
    %162 = vector.load %arg20[%c17_131, %c0_132] : memref<160x16xf32, #tpu.memory_space<vmem>>, vector<128x8xf32>
    %163 = arith.maximumf %160, %162 : vector<128x8xf32>
    %c24_133 = arith.constant 24 : index
    %c0_134 = arith.constant 0 : index
    %164 = vector.load %arg20[%c24_133, %c0_134] : memref<160x16xf32, #tpu.memory_space<vmem>>, vector<128x8xf32>
    %165 = arith.maximumf %163, %164 : vector<128x8xf32>
    %c25_135 = arith.constant 25 : index
    %c0_136 = arith.constant 0 : index
    %166 = vector.load %arg20[%c25_135, %c0_136] : memref<160x16xf32, #tpu.memory_space<vmem>>, vector<128x8xf32>
    %167 = arith.maximumf %165, %166 : vector<128x8xf32>
    %c0_137 = arith.constant 0 : index
    %c0_138 = arith.constant 0 : index
    %168 = vector.load %arg14[%c0_137, %c0_138] : memref<16x64xf32, #tpu.memory_space<vmem>>, vector<16x64xf32>
    %169 = vector.extract_strided_slice %167 {offsets = [0, 0], sizes = [64, 8], strides = [1, 1]} : vector<128x8xf32> to vector<64x8xf32>
    %cst_139 = arith.constant dense<0.000000e+00> : vector<16x8xf32>
    %170 = tpu.matmul %168, %169, %cst_139 {dimension_numbers = #tpu.dot_dimension_numbers<[1], [0], [0], [1], [0, 0, 1, 1], [], []>} : vector<16x64xf32>, vector<64x8xf32>, vector<16x8xf32> -> vector<16x8xf32>
    %c16_140 = arith.constant 16 : index
    %c0_141 = arith.constant 0 : index
    %171 = vector.load %arg20[%c16_140, %c0_141] : memref<160x16xf32, #tpu.memory_space<vmem>>, vector<16x8xf32>
    tpu.vector_store %arg20[%c16_140, %c0_141], %170 {strides = array<i32>} : memref<160x16xf32, #tpu.memory_space<vmem>>, vector<16x8xf32>,
    %c0_142 = arith.constant 0 : index
    %c0_143 = arith.constant 0 : index
    %172 = vector.load %arg14[%c0_142, %c0_143] : memref<16x64xf32, #tpu.memory_space<vmem>>, vector<16x64xf32>
    %173 = vector.extract_strided_slice %167 {offsets = [64, 0], sizes = [64, 8], strides = [1, 1]} : vector<128x8xf32> to vector<64x8xf32>
    %cst_144 = arith.constant dense<0.000000e+00> : vector<16x8xf32>
    %174 = tpu.matmul %172, %173, %cst_144 {dimension_numbers = #tpu.dot_dimension_numbers<[1], [0], [0], [1], [0, 0, 1, 1], [], []>} : vector<16x64xf32>, vector<64x8xf32>, vector<16x8xf32> -> vector<16x8xf32>
    %c32 = arith.constant 32 : index
    %c0_145 = arith.constant 0 : index
    %175 = vector.load %arg20[%c32, %c0_145] : memref<160x16xf32, #tpu.memory_space<vmem>>, vector<16x8xf32>
    tpu.vector_store %arg20[%c32, %c0_145], %174 {strides = array<i32>} : memref<160x16xf32, #tpu.memory_space<vmem>>, vector<16x8xf32>,
    %c11 = arith.constant 11 : index
    %c0_146 = arith.constant 0 : index
    %176 = vector.load %arg20[%c11, %c0_146] : memref<160x16xf32, #tpu.memory_space<vmem>>, vector<32x8xf32>
    %c0_147 = arith.constant 0 : index
    %c0_148 = arith.constant 0 : index
    %177 = vector.load %arg13[%c0_147, %c0_148] : memref<32x9xf32, #tpu.memory_space<vmem>>, vector<32x1xf32>
    %178 = vector.broadcast %177 : vector<32x1xf32> to vector<32x8xf32>
    %179 = arith.mulf %176, %178 : vector<32x8xf32>
    %c0_149 = arith.constant 0 : index
    %c0_150 = arith.constant 0 : index
    %c0_151 = arith.constant 0 : index
    %180 = vector.load %arg6[%c0_149, %c0_150, %c0_151] : memref<9x8x10xf32, #tpu.memory_space<vmem>>, vector<1x8x10xf32>
    %181 = vector.shape_cast %180 : vector<1x8x10xf32> to vector<8x10xf32>
    %cst_152 = arith.constant dense<0.000000e+00> : vector<32x10xf32>
    %182 = tpu.matmul %179, %181, %cst_152 {dimension_numbers = #tpu.dot_dimension_numbers<[1], [0], [0], [1], [0, 0, 1, 1], [], []>} : vector<32x8xf32>, vector<8x10xf32>, vector<32x10xf32> -> vector<32x10xf32>
    %c12 = arith.constant 12 : index
    %c0_153 = arith.constant 0 : index
    %183 = vector.load %arg20[%c12, %c0_153] : memref<160x16xf32, #tpu.memory_space<vmem>>, vector<32x8xf32>
    %c0_154 = arith.constant 0 : index
    %c1_155 = arith.constant 1 : index
    %184 = vector.load %arg13[%c0_154, %c1_155] : memref<32x9xf32, #tpu.memory_space<vmem>>, vector<32x1xf32>
    %185 = vector.broadcast %184 : vector<32x1xf32> to vector<32x8xf32>
    %186 = arith.mulf %183, %185 : vector<32x8xf32>
    %c1_156 = arith.constant 1 : index
    %c0_157 = arith.constant 0 : index
    %c0_158 = arith.constant 0 : index
    %187 = vector.load %arg6[%c1_156, %c0_157, %c0_158] : memref<9x8x10xf32, #tpu.memory_space<vmem>>, vector<1x8x10xf32>
    %188 = vector.shape_cast %187 : vector<1x8x10xf32> to vector<8x10xf32>
    %cst_159 = arith.constant dense<0.000000e+00> : vector<32x10xf32>
    %189 = tpu.matmul %186, %188, %cst_159 {dimension_numbers = #tpu.dot_dimension_numbers<[1], [0], [0], [1], [0, 0, 1, 1], [], []>} : vector<32x8xf32>, vector<8x10xf32>, vector<32x10xf32> -> vector<32x10xf32>
    %190 = arith.addf %182, %189 : vector<32x10xf32>
    %c13 = arith.constant 13 : index
    %c0_160 = arith.constant 0 : index
    %191 = vector.load %arg20[%c13, %c0_160] : memref<160x16xf32, #tpu.memory_space<vmem>>, vector<32x8xf32>
    %c0_161 = arith.constant 0 : index
    %c2_162 = arith.constant 2 : index
    %192 = vector.load %arg13[%c0_161, %c2_162] : memref<32x9xf32, #tpu.memory_space<vmem>>, vector<32x1xf32>
    %193 = vector.broadcast %192 : vector<32x1xf32> to vector<32x8xf32>
    %194 = arith.mulf %191, %193 : vector<32x8xf32>
    %c2_163 = arith.constant 2 : index
    %c0_164 = arith.constant 0 : index
    %c0_165 = arith.constant 0 : index
    %195 = vector.load %arg6[%c2_163, %c0_164, %c0_165] : memref<9x8x10xf32, #tpu.memory_space<vmem>>, vector<1x8x10xf32>
    %196 = vector.shape_cast %195 : vector<1x8x10xf32> to vector<8x10xf32>
    %cst_166 = arith.constant dense<0.000000e+00> : vector<32x10xf32>
    %197 = tpu.matmul %194, %196, %cst_166 {dimension_numbers = #tpu.dot_dimension_numbers<[1], [0], [0], [1], [0, 0, 1, 1], [], []>} : vector<32x8xf32>, vector<8x10xf32>, vector<32x10xf32> -> vector<32x10xf32>
    %198 = arith.addf %190, %197 : vector<32x10xf32>
    %c15_167 = arith.constant 15 : index
    %c0_168 = arith.constant 0 : index
    %199 = vector.load %arg20[%c15_167, %c0_168] : memref<160x16xf32, #tpu.memory_space<vmem>>, vector<32x8xf32>
    %c0_169 = arith.constant 0 : index
    %c3_170 = arith.constant 3 : index
    %200 = vector.load %arg13[%c0_169, %c3_170] : memref<32x9xf32, #tpu.memory_space<vmem>>, vector<32x1xf32>
    %201 = vector.broadcast %200 : vector<32x1xf32> to vector<32x8xf32>
    %202 = arith.mulf %199, %201 : vector<32x8xf32>
    %c3_171 = arith.constant 3 : index
    %c0_172 = arith.constant 0 : index
    %c0_173 = arith.constant 0 : index
    %203 = vector.load %arg6[%c3_171, %c0_172, %c0_173] : memref<9x8x10xf32, #tpu.memory_space<vmem>>, vector<1x8x10xf32>
    %204 = vector.shape_cast %203 : vector<1x8x10xf32> to vector<8x10xf32>
    %cst_174 = arith.constant dense<0.000000e+00> : vector<32x10xf32>
    %205 = tpu.matmul %202, %204, %cst_174 {dimension_numbers = #tpu.dot_dimension_numbers<[1], [0], [0], [1], [0, 0, 1, 1], [], []>} : vector<32x8xf32>, vector<8x10xf32>, vector<32x10xf32> -> vector<32x10xf32>
    %206 = arith.addf %198, %205 : vector<32x10xf32>
    %c16_175 = arith.constant 16 : index
    %c0_176 = arith.constant 0 : index
    %207 = vector.load %arg20[%c16_175, %c0_176] : memref<160x16xf32, #tpu.memory_space<vmem>>, vector<32x8xf32>
    %c4_177 = arith.constant 4 : index
    %c0_178 = arith.constant 0 : index
    %c0_179 = arith.constant 0 : index
    %208 = vector.load %arg6[%c4_177, %c0_178, %c0_179] : memref<9x8x10xf32, #tpu.memory_space<vmem>>, vector<1x8x10xf32>
    %209 = vector.shape_cast %208 : vector<1x8x10xf32> to vector<8x10xf32>
    %cst_180 = arith.constant dense<0.000000e+00> : vector<32x10xf32>
    %210 = tpu.matmul %207, %209, %cst_180 {dimension_numbers = #tpu.dot_dimension_numbers<[1], [0], [0], [1], [0, 0, 1, 1], [], []>} : vector<32x8xf32>, vector<8x10xf32>, vector<32x10xf32> -> vector<32x10xf32>
    %211 = arith.addf %206, %210 : vector<32x10xf32>
    %c17_181 = arith.constant 17 : index
    %c0_182 = arith.constant 0 : index
    %212 = vector.load %arg20[%c17_181, %c0_182] : memref<160x16xf32, #tpu.memory_space<vmem>>, vector<32x8xf32>
    %c0_183 = arith.constant 0 : index
    %c5_184 = arith.constant 5 : index
    %213 = vector.load %arg13[%c0_183, %c5_184] : memref<32x9xf32, #tpu.memory_space<vmem>>, vector<32x1xf32>
    %214 = vector.broadcast %213 : vector<32x1xf32> to vector<32x8xf32>
    %215 = arith.mulf %212, %214 : vector<32x8xf32>
    %c5_185 = arith.constant 5 : index
    %c0_186 = arith.constant 0 : index
    %c0_187 = arith.constant 0 : index
    %216 = vector.load %arg6[%c5_185, %c0_186, %c0_187] : memref<9x8x10xf32, #tpu.memory_space<vmem>>, vector<1x8x10xf32>
    %217 = vector.shape_cast %216 : vector<1x8x10xf32> to vector<8x10xf32>
    %cst_188 = arith.constant dense<0.000000e+00> : vector<32x10xf32>
    %218 = tpu.matmul %215, %217, %cst_188 {dimension_numbers = #tpu.dot_dimension_numbers<[1], [0], [0], [1], [0, 0, 1, 1], [], []>} : vector<32x8xf32>, vector<8x10xf32>, vector<32x10xf32> -> vector<32x10xf32>
    %219 = arith.addf %211, %218 : vector<32x10xf32>
    %c19 = arith.constant 19 : index
    %c0_189 = arith.constant 0 : index
    %220 = vector.load %arg20[%c19, %c0_189] : memref<160x16xf32, #tpu.memory_space<vmem>>, vector<32x8xf32>
    %c0_190 = arith.constant 0 : index
    %c6_191 = arith.constant 6 : index
    %221 = vector.load %arg13[%c0_190, %c6_191] : memref<32x9xf32, #tpu.memory_space<vmem>>, vector<32x1xf32>
    %222 = vector.broadcast %221 : vector<32x1xf32> to vector<32x8xf32>
    %223 = arith.mulf %220, %222 : vector<32x8xf32>
    %c6_192 = arith.constant 6 : index
    %c0_193 = arith.constant 0 : index
    %c0_194 = arith.constant 0 : index
    %224 = vector.load %arg6[%c6_192, %c0_193, %c0_194] : memref<9x8x10xf32, #tpu.memory_space<vmem>>, vector<1x8x10xf32>
    %225 = vector.shape_cast %224 : vector<1x8x10xf32> to vector<8x10xf32>
    %cst_195 = arith.constant dense<0.000000e+00> : vector<32x10xf32>
    %226 = tpu.matmul %223, %225, %cst_195 {dimension_numbers = #tpu.dot_dimension_numbers<[1], [0], [0], [1], [0, 0, 1, 1], [], []>} : vector<32x8xf32>, vector<8x10xf32>, vector<32x10xf32> -> vector<32x10xf32>
    %227 = arith.addf %219, %226 : vector<32x10xf32>
    %c20 = arith.constant 20 : index
    %c0_196 = arith.constant 0 : index
    %228 = vector.load %arg20[%c20, %c0_196] : memref<160x16xf32, #tpu.memory_space<vmem>>, vector<32x8xf32>
    %c0_197 = arith.constant 0 : index
    %c7_198 = arith.constant 7 : index
    %229 = vector.load %arg13[%c0_197, %c7_198] : memref<32x9xf32, #tpu.memory_space<vmem>>, vector<32x1xf32>
    %230 = vector.broadcast %229 : vector<32x1xf32> to vector<32x8xf32>
    %231 = arith.mulf %228, %230 : vector<32x8xf32>
    %c7_199 = arith.constant 7 : index
    %c0_200 = arith.constant 0 : index
    %c0_201 = arith.constant 0 : index
    %232 = vector.load %arg6[%c7_199, %c0_200, %c0_201] : memref<9x8x10xf32, #tpu.memory_space<vmem>>, vector<1x8x10xf32>
    %233 = vector.shape_cast %232 : vector<1x8x10xf32> to vector<8x10xf32>
    %cst_202 = arith.constant dense<0.000000e+00> : vector<32x10xf32>
    %234 = tpu.matmul %231, %233, %cst_202 {dimension_numbers = #tpu.dot_dimension_numbers<[1], [0], [0], [1], [0, 0, 1, 1], [], []>} : vector<32x8xf32>, vector<8x10xf32>, vector<32x10xf32> -> vector<32x10xf32>
    %235 = arith.addf %227, %234 : vector<32x10xf32>
    %c21 = arith.constant 21 : index
    %c0_203 = arith.constant 0 : index
    %236 = vector.load %arg20[%c21, %c0_203] : memref<160x16xf32, #tpu.memory_space<vmem>>, vector<32x8xf32>
    %c0_204 = arith.constant 0 : index
    %c8_205 = arith.constant 8 : index
    %237 = vector.load %arg13[%c0_204, %c8_205] : memref<32x9xf32, #tpu.memory_space<vmem>>, vector<32x1xf32>
    %238 = vector.broadcast %237 : vector<32x1xf32> to vector<32x8xf32>
    %239 = arith.mulf %236, %238 : vector<32x8xf32>
    %c8_206 = arith.constant 8 : index
    %c0_207 = arith.constant 0 : index
    %c0_208 = arith.constant 0 : index
    %240 = vector.load %arg6[%c8_206, %c0_207, %c0_208] : memref<9x8x10xf32, #tpu.memory_space<vmem>>, vector<1x8x10xf32>
    %241 = vector.shape_cast %240 : vector<1x8x10xf32> to vector<8x10xf32>
    %cst_209 = arith.constant dense<0.000000e+00> : vector<32x10xf32>
    %242 = tpu.matmul %239, %241, %cst_209 {dimension_numbers = #tpu.dot_dimension_numbers<[1], [0], [0], [1], [0, 0, 1, 1], [], []>} : vector<32x8xf32>, vector<8x10xf32>, vector<32x10xf32> -> vector<32x10xf32>
    %243 = arith.addf %235, %242 : vector<32x10xf32>
    %c0_210 = arith.constant 0 : index
    %c0_211 = arith.constant 0 : index
    %244 = vector.load %arg7[%c0_210, %c0_211] : memref<1x10xf32, #tpu.memory_space<vmem>>, vector<1x10xf32>
    %245 = vector.broadcast %244 : vector<1x10xf32> to vector<32x10xf32>
    %246 = arith.addf %243, %245 : vector<32x10xf32>
    %cst_212 = arith.constant 0.000000e+00 : f32
    %247 = vector.broadcast %cst_212 : f32 to vector<32x10xf32>
    %248 = arith.maximumf %246, %247 : vector<32x10xf32>
    %c16_213 = arith.constant 16 : index
    %c0_214 = arith.constant 0 : index
    %249 = vector.load %arg20[%c16_213, %c0_214] : memref<160x16xf32, #tpu.memory_space<vmem>>, vector<32x10xf32>
    tpu.vector_store %arg20[%c16_213, %c0_214], %248 {strides = array<i32>} : memref<160x16xf32, #tpu.memory_space<vmem>>, vector<32x10xf32>,
    %c11_215 = arith.constant 11 : index
    %c0_216 = arith.constant 0 : index
    %250 = vector.load %arg20[%c11_215, %c0_216] : memref<160x16xf32, #tpu.memory_space<vmem>>, vector<32x10xf32>
    %c0_217 = arith.constant 0 : index
    %c0_218 = arith.constant 0 : index
    %251 = vector.load %arg13[%c0_217, %c0_218] : memref<32x9xf32, #tpu.memory_space<vmem>>, vector<32x1xf32>
    %252 = vector.broadcast %251 : vector<32x1xf32> to vector<32x10xf32>
    %253 = arith.mulf %250, %252 : vector<32x10xf32>
    %c0_219 = arith.constant 0 : index
    %c0_220 = arith.constant 0 : index
    %c0_221 = arith.constant 0 : index
    %254 = vector.load %arg8[%c0_219, %c0_220, %c0_221] : memref<9x10x16xf32, #tpu.memory_space<vmem>>, vector<1x10x16xf32>
    %255 = vector.shape_cast %254 : vector<1x10x16xf32> to vector<10x16xf32>
    %cst_222 = arith.constant dense<0.000000e+00> : vector<32x16xf32>
    %256 = tpu.matmul %253, %255, %cst_222 {dimension_numbers = #tpu.dot_dimension_numbers<[1], [0], [0], [1], [0, 0, 1, 1], [], []>} : vector<32x10xf32>, vector<10x16xf32>, vector<32x16xf32> -> vector<32x16xf32>
    %c12_223 = arith.constant 12 : index
    %c0_224 = arith.constant 0 : index
    %257 = vector.load %arg20[%c12_223, %c0_224] : memref<160x16xf32, #tpu.memory_space<vmem>>, vector<32x10xf32>
    %c0_225 = arith.constant 0 : index
    %c1_226 = arith.constant 1 : index
    %258 = vector.load %arg13[%c0_225, %c1_226] : memref<32x9xf32, #tpu.memory_space<vmem>>, vector<32x1xf32>
    %259 = vector.broadcast %258 : vector<32x1xf32> to vector<32x10xf32>
    %260 = arith.mulf %257, %259 : vector<32x10xf32>
    %c1_227 = arith.constant 1 : index
    %c0_228 = arith.constant 0 : index
    %c0_229 = arith.constant 0 : index
    %261 = vector.load %arg8[%c1_227, %c0_228, %c0_229] : memref<9x10x16xf32, #tpu.memory_space<vmem>>, vector<1x10x16xf32>
    %262 = vector.shape_cast %261 : vector<1x10x16xf32> to vector<10x16xf32>
    %cst_230 = arith.constant dense<0.000000e+00> : vector<32x16xf32>
    %263 = tpu.matmul %260, %262, %cst_230 {dimension_numbers = #tpu.dot_dimension_numbers<[1], [0], [0], [1], [0, 0, 1, 1], [], []>} : vector<32x10xf32>, vector<10x16xf32>, vector<32x16xf32> -> vector<32x16xf32>
    %264 = arith.addf %256, %263 : vector<32x16xf32>
    %c13_231 = arith.constant 13 : index
    %c0_232 = arith.constant 0 : index
    %265 = vector.load %arg20[%c13_231, %c0_232] : memref<160x16xf32, #tpu.memory_space<vmem>>, vector<32x10xf32>
    %c0_233 = arith.constant 0 : index
    %c2_234 = arith.constant 2 : index
    %266 = vector.load %arg13[%c0_233, %c2_234] : memref<32x9xf32, #tpu.memory_space<vmem>>, vector<32x1xf32>
    %267 = vector.broadcast %266 : vector<32x1xf32> to vector<32x10xf32>
    %268 = arith.mulf %265, %267 : vector<32x10xf32>
    %c2_235 = arith.constant 2 : index
    %c0_236 = arith.constant 0 : index
    %c0_237 = arith.constant 0 : index
    %269 = vector.load %arg8[%c2_235, %c0_236, %c0_237] : memref<9x10x16xf32, #tpu.memory_space<vmem>>, vector<1x10x16xf32>
    %270 = vector.shape_cast %269 : vector<1x10x16xf32> to vector<10x16xf32>
    %cst_238 = arith.constant dense<0.000000e+00> : vector<32x16xf32>
    %271 = tpu.matmul %268, %270, %cst_238 {dimension_numbers = #tpu.dot_dimension_numbers<[1], [0], [0], [1], [0, 0, 1, 1], [], []>} : vector<32x10xf32>, vector<10x16xf32>, vector<32x16xf32> -> vector<32x16xf32>
    %272 = arith.addf %264, %271 : vector<32x16xf32>
    %c15_239 = arith.constant 15 : index
    %c0_240 = arith.constant 0 : index
    %273 = vector.load %arg20[%c15_239, %c0_240] : memref<160x16xf32, #tpu.memory_space<vmem>>, vector<32x10xf32>
    %c0_241 = arith.constant 0 : index
    %c3_242 = arith.constant 3 : index
    %274 = vector.load %arg13[%c0_241, %c3_242] : memref<32x9xf32, #tpu.memory_space<vmem>>, vector<32x1xf32>
    %275 = vector.broadcast %274 : vector<32x1xf32> to vector<32x10xf32>
    %276 = arith.mulf %273, %275 : vector<32x10xf32>
    %c3_243 = arith.constant 3 : index
    %c0_244 = arith.constant 0 : index
    %c0_245 = arith.constant 0 : index
    %277 = vector.load %arg8[%c3_243, %c0_244, %c0_245] : memref<9x10x16xf32, #tpu.memory_space<vmem>>, vector<1x10x16xf32>
    %278 = vector.shape_cast %277 : vector<1x10x16xf32> to vector<10x16xf32>
    %cst_246 = arith.constant dense<0.000000e+00> : vector<32x16xf32>
    %279 = tpu.matmul %276, %278, %cst_246 {dimension_numbers = #tpu.dot_dimension_numbers<[1], [0], [0], [1], [0, 0, 1, 1], [], []>} : vector<32x10xf32>, vector<10x16xf32>, vector<32x16xf32> -> vector<32x16xf32>
    %280 = arith.addf %272, %279 : vector<32x16xf32>
    %c16_247 = arith.constant 16 : index
    %c0_248 = arith.constant 0 : index
    %281 = vector.load %arg20[%c16_247, %c0_248] : memref<160x16xf32, #tpu.memory_space<vmem>>, vector<32x10xf32>
    %c4_249 = arith.constant 4 : index
    %c0_250 = arith.constant 0 : index
    %c0_251 = arith.constant 0 : index
    %282 = vector.load %arg8[%c4_249, %c0_250, %c0_251] : memref<9x10x16xf32, #tpu.memory_space<vmem>>, vector<1x10x16xf32>
    %283 = vector.shape_cast %282 : vector<1x10x16xf32> to vector<10x16xf32>
    %cst_252 = arith.constant dense<0.000000e+00> : vector<32x16xf32>
    %284 = tpu.matmul %281, %283, %cst_252 {dimension_numbers = #tpu.dot_dimension_numbers<[1], [0], [0], [1], [0, 0, 1, 1], [], []>} : vector<32x10xf32>, vector<10x16xf32>, vector<32x16xf32> -> vector<32x16xf32>
    %285 = arith.addf %280, %284 : vector<32x16xf32>
    %c17_253 = arith.constant 17 : index
    %c0_254 = arith.constant 0 : index
    %286 = vector.load %arg20[%c17_253, %c0_254] : memref<160x16xf32, #tpu.memory_space<vmem>>, vector<32x10xf32>
    %c0_255 = arith.constant 0 : index
    %c5_256 = arith.constant 5 : index
    %287 = vector.load %arg13[%c0_255, %c5_256] : memref<32x9xf32, #tpu.memory_space<vmem>>, vector<32x1xf32>
    %288 = vector.broadcast %287 : vector<32x1xf32> to vector<32x10xf32>
    %289 = arith.mulf %286, %288 : vector<32x10xf32>
    %c5_257 = arith.constant 5 : index
    %c0_258 = arith.constant 0 : index
    %c0_259 = arith.constant 0 : index
    %290 = vector.load %arg8[%c5_257, %c0_258, %c0_259] : memref<9x10x16xf32, #tpu.memory_space<vmem>>, vector<1x10x16xf32>
    %291 = vector.shape_cast %290 : vector<1x10x16xf32> to vector<10x16xf32>
    %cst_260 = arith.constant dense<0.000000e+00> : vector<32x16xf32>
    %292 = tpu.matmul %289, %291, %cst_260 {dimension_numbers = #tpu.dot_dimension_numbers<[1], [0], [0], [1], [0, 0, 1, 1], [], []>} : vector<32x10xf32>, vector<10x16xf32>, vector<32x16xf32> -> vector<32x16xf32>
    %293 = arith.addf %285, %292 : vector<32x16xf32>
    %c19_261 = arith.constant 19 : index
    %c0_262 = arith.constant 0 : index
    %294 = vector.load %arg20[%c19_261, %c0_262] : memref<160x16xf32, #tpu.memory_space<vmem>>, vector<32x10xf32>
    %c0_263 = arith.constant 0 : index
    %c6_264 = arith.constant 6 : index
    %295 = vector.load %arg13[%c0_263, %c6_264] : memref<32x9xf32, #tpu.memory_space<vmem>>, vector<32x1xf32>
    %296 = vector.broadcast %295 : vector<32x1xf32> to vector<32x10xf32>
    %297 = arith.mulf %294, %296 : vector<32x10xf32>
    %c6_265 = arith.constant 6 : index
    %c0_266 = arith.constant 0 : index
    %c0_267 = arith.constant 0 : index
    %298 = vector.load %arg8[%c6_265, %c0_266, %c0_267] : memref<9x10x16xf32, #tpu.memory_space<vmem>>, vector<1x10x16xf32>
    %299 = vector.shape_cast %298 : vector<1x10x16xf32> to vector<10x16xf32>
    %cst_268 = arith.constant dense<0.000000e+00> : vector<32x16xf32>
    %300 = tpu.matmul %297, %299, %cst_268 {dimension_numbers = #tpu.dot_dimension_numbers<[1], [0], [0], [1], [0, 0, 1, 1], [], []>} : vector<32x10xf32>, vector<10x16xf32>, vector<32x16xf32> -> vector<32x16xf32>
    %301 = arith.addf %293, %300 : vector<32x16xf32>
    %c20_269 = arith.constant 20 : index
    %c0_270 = arith.constant 0 : index
    %302 = vector.load %arg20[%c20_269, %c0_270] : memref<160x16xf32, #tpu.memory_space<vmem>>, vector<32x10xf32>
    %c0_271 = arith.constant 0 : index
    %c7_272 = arith.constant 7 : index
    %303 = vector.load %arg13[%c0_271, %c7_272] : memref<32x9xf32, #tpu.memory_space<vmem>>, vector<32x1xf32>
    %304 = vector.broadcast %303 : vector<32x1xf32> to vector<32x10xf32>
    %305 = arith.mulf %302, %304 : vector<32x10xf32>
    %c7_273 = arith.constant 7 : index
    %c0_274 = arith.constant 0 : index
    %c0_275 = arith.constant 0 : index
    %306 = vector.load %arg8[%c7_273, %c0_274, %c0_275] : memref<9x10x16xf32, #tpu.memory_space<vmem>>, vector<1x10x16xf32>
    %307 = vector.shape_cast %306 : vector<1x10x16xf32> to vector<10x16xf32>
    %cst_276 = arith.constant dense<0.000000e+00> : vector<32x16xf32>
    %308 = tpu.matmul %305, %307, %cst_276 {dimension_numbers = #tpu.dot_dimension_numbers<[1], [0], [0], [1], [0, 0, 1, 1], [], []>} : vector<32x10xf32>, vector<10x16xf32>, vector<32x16xf32> -> vector<32x16xf32>
    %309 = arith.addf %301, %308 : vector<32x16xf32>
    %c21_277 = arith.constant 21 : index
    %c0_278 = arith.constant 0 : index
    %310 = vector.load %arg20[%c21_277, %c0_278] : memref<160x16xf32, #tpu.memory_space<vmem>>, vector<32x10xf32>
    %c0_279 = arith.constant 0 : index
    %c8_280 = arith.constant 8 : index
    %311 = vector.load %arg13[%c0_279, %c8_280] : memref<32x9xf32, #tpu.memory_space<vmem>>, vector<32x1xf32>
    %312 = vector.broadcast %311 : vector<32x1xf32> to vector<32x10xf32>
    %313 = arith.mulf %310, %312 : vector<32x10xf32>
    %c8_281 = arith.constant 8 : index
    %c0_282 = arith.constant 0 : index
    %c0_283 = arith.constant 0 : index
    %314 = vector.load %arg8[%c8_281, %c0_282, %c0_283] : memref<9x10x16xf32, #tpu.memory_space<vmem>>, vector<1x10x16xf32>
    %315 = vector.shape_cast %314 : vector<1x10x16xf32> to vector<10x16xf32>
    %cst_284 = arith.constant dense<0.000000e+00> : vector<32x16xf32>
    %316 = tpu.matmul %313, %315, %cst_284 {dimension_numbers = #tpu.dot_dimension_numbers<[1], [0], [0], [1], [0, 0, 1, 1], [], []>} : vector<32x10xf32>, vector<10x16xf32>, vector<32x16xf32> -> vector<32x16xf32>
    %317 = arith.addf %309, %316 : vector<32x16xf32>
    %c0_285 = arith.constant 0 : index
    %c0_286 = arith.constant 0 : index
    %318 = vector.load %arg9[%c0_285, %c0_286] : memref<1x16xf32, #tpu.memory_space<vmem>>, vector<1x16xf32>
    %319 = vector.broadcast %318 : vector<1x16xf32> to vector<32x16xf32>
    %320 = arith.addf %317, %319 : vector<32x16xf32>
    %cst_287 = arith.constant 0.000000e+00 : f32
    %321 = vector.broadcast %cst_287 : f32 to vector<32x16xf32>
    %322 = arith.maximumf %320, %321 : vector<32x16xf32>
    %c16_288 = arith.constant 16 : index
    %c0_289 = arith.constant 0 : index
    %323 = vector.load %arg20[%c16_288, %c0_289] : memref<160x16xf32, #tpu.memory_space<vmem>>, vector<32x16xf32>
    tpu.vector_store %arg20[%c16_288, %c0_289], %322 {strides = array<i32>} : memref<160x16xf32, #tpu.memory_space<vmem>>, vector<32x16xf32>,
    %c11_290 = arith.constant 11 : index
    %c0_291 = arith.constant 0 : index
    %324 = vector.load %arg20[%c11_290, %c0_291] : memref<160x16xf32, #tpu.memory_space<vmem>>, vector<32x16xf32>
    %c0_292 = arith.constant 0 : index
    %c0_293 = arith.constant 0 : index
    %325 = vector.load %arg13[%c0_292, %c0_293] : memref<32x9xf32, #tpu.memory_space<vmem>>, vector<32x1xf32>
    %326 = vector.broadcast %325 : vector<32x1xf32> to vector<32x16xf32>
    %327 = arith.mulf %324, %326 : vector<32x16xf32>
    %c0_294 = arith.constant 0 : index
    %c0_295 = arith.constant 0 : index
    %c0_296 = arith.constant 0 : index
    %328 = vector.load %arg10[%c0_294, %c0_295, %c0_296] : memref<9x16x16xf32, #tpu.memory_space<vmem>>, vector<1x16x16xf32>
    %329 = vector.shape_cast %328 : vector<1x16x16xf32> to vector<16x16xf32>
    %cst_297 = arith.constant dense<0.000000e+00> : vector<32x16xf32>
    %330 = tpu.matmul %327, %329, %cst_297 {dimension_numbers = #tpu.dot_dimension_numbers<[1], [0], [0], [1], [0, 0, 1, 1], [], []>} : vector<32x16xf32>, vector<16x16xf32>, vector<32x16xf32> -> vector<32x16xf32>
    %c12_298 = arith.constant 12 : index
    %c0_299 = arith.constant 0 : index
    %331 = vector.load %arg20[%c12_298, %c0_299] : memref<160x16xf32, #tpu.memory_space<vmem>>, vector<32x16xf32>
    %c0_300 = arith.constant 0 : index
    %c1_301 = arith.constant 1 : index
    %332 = vector.load %arg13[%c0_300, %c1_301] : memref<32x9xf32, #tpu.memory_space<vmem>>, vector<32x1xf32>
    %333 = vector.broadcast %332 : vector<32x1xf32> to vector<32x16xf32>
    %334 = arith.mulf %331, %333 : vector<32x16xf32>
    %c1_302 = arith.constant 1 : index
    %c0_303 = arith.constant 0 : index
    %c0_304 = arith.constant 0 : index
    %335 = vector.load %arg10[%c1_302, %c0_303, %c0_304] : memref<9x16x16xf32, #tpu.memory_space<vmem>>, vector<1x16x16xf32>
    %336 = vector.shape_cast %335 : vector<1x16x16xf32> to vector<16x16xf32>
    %cst_305 = arith.constant dense<0.000000e+00> : vector<32x16xf32>
    %337 = tpu.matmul %334, %336, %cst_305 {dimension_numbers = #tpu.dot_dimension_numbers<[1], [0], [0], [1], [0, 0, 1, 1], [], []>} : vector<32x16xf32>, vector<16x16xf32>, vector<32x16xf32> -> vector<32x16xf32>
    %338 = arith.addf %330, %337 : vector<32x16xf32>
    %c13_306 = arith.constant 13 : index
    %c0_307 = arith.constant 0 : index
    %339 = vector.load %arg20[%c13_306, %c0_307] : memref<160x16xf32, #tpu.memory_space<vmem>>, vector<32x16xf32>
    %c0_308 = arith.constant 0 : index
    %c2_309 = arith.constant 2 : index
    %340 = vector.load %arg13[%c0_308, %c2_309] : memref<32x9xf32, #tpu.memory_space<vmem>>, vector<32x1xf32>
    %341 = vector.broadcast %340 : vector<32x1xf32> to vector<32x16xf32>
    %342 = arith.mulf %339, %341 : vector<32x16xf32>
    %c2_310 = arith.constant 2 : index
    %c0_311 = arith.constant 0 : index
    %c0_312 = arith.constant 0 : index
    %343 = vector.load %arg10[%c2_310, %c0_311, %c0_312] : memref<9x16x16xf32, #tpu.memory_space<vmem>>, vector<1x16x16xf32>
    %344 = vector.shape_cast %343 : vector<1x16x16xf32> to vector<16x16xf32>
    %cst_313 = arith.constant dense<0.000000e+00> : vector<32x16xf32>
    %345 = tpu.matmul %342, %344, %cst_313 {dimension_numbers = #tpu.dot_dimension_numbers<[1], [0], [0], [1], [0, 0, 1, 1], [], []>} : vector<32x16xf32>, vector<16x16xf32>, vector<32x16xf32> -> vector<32x16xf32>
    %346 = arith.addf %338, %345 : vector<32x16xf32>
    %c15_314 = arith.constant 15 : index
    %c0_315 = arith.constant 0 : index
    %347 = vector.load %arg20[%c15_314, %c0_315] : memref<160x16xf32, #tpu.memory_space<vmem>>, vector<32x16xf32>
    %c0_316 = arith.constant 0 : index
    %c3_317 = arith.constant 3 : index
    %348 = vector.load %arg13[%c0_316, %c3_317] : memref<32x9xf32, #tpu.memory_space<vmem>>, vector<32x1xf32>
    %349 = vector.broadcast %348 : vector<32x1xf32> to vector<32x16xf32>
    %350 = arith.mulf %347, %349 : vector<32x16xf32>
    %c3_318 = arith.constant 3 : index
    %c0_319 = arith.constant 0 : index
    %c0_320 = arith.constant 0 : index
    %351 = vector.load %arg10[%c3_318, %c0_319, %c0_320] : memref<9x16x16xf32, #tpu.memory_space<vmem>>, vector<1x16x16xf32>
    %352 = vector.shape_cast %351 : vector<1x16x16xf32> to vector<16x16xf32>
    %cst_321 = arith.constant dense<0.000000e+00> : vector<32x16xf32>
    %353 = tpu.matmul %350, %352, %cst_321 {dimension_numbers = #tpu.dot_dimension_numbers<[1], [0], [0], [1], [0, 0, 1, 1], [], []>} : vector<32x16xf32>, vector<16x16xf32>, vector<32x16xf32> -> vector<32x16xf32>
    %354 = arith.addf %346, %353 : vector<32x16xf32>
    %c16_322 = arith.constant 16 : index
    %c0_323 = arith.constant 0 : index
    %355 = vector.load %arg20[%c16_322, %c0_323] : memref<160x16xf32, #tpu.memory_space<vmem>>, vector<32x16xf32>
    %c4_324 = arith.constant 4 : index
    %c0_325 = arith.constant 0 : index
    %c0_326 = arith.constant 0 : index
    %356 = vector.load %arg10[%c4_324, %c0_325, %c0_326] : memref<9x16x16xf32, #tpu.memory_space<vmem>>, vector<1x16x16xf32>
    %357 = vector.shape_cast %356 : vector<1x16x16xf32> to vector<16x16xf32>
    %cst_327 = arith.constant dense<0.000000e+00> : vector<32x16xf32>
    %358 = tpu.matmul %355, %357, %cst_327 {dimension_numbers = #tpu.dot_dimension_numbers<[1], [0], [0], [1], [0, 0, 1, 1], [], []>} : vector<32x16xf32>, vector<16x16xf32>, vector<32x16xf32> -> vector<32x16xf32>
    %359 = arith.addf %354, %358 : vector<32x16xf32>
    %c17_328 = arith.constant 17 : index
    %c0_329 = arith.constant 0 : index
    %360 = vector.load %arg20[%c17_328, %c0_329] : memref<160x16xf32, #tpu.memory_space<vmem>>, vector<32x16xf32>
    %c0_330 = arith.constant 0 : index
    %c5_331 = arith.constant 5 : index
    %361 = vector.load %arg13[%c0_330, %c5_331] : memref<32x9xf32, #tpu.memory_space<vmem>>, vector<32x1xf32>
    %362 = vector.broadcast %361 : vector<32x1xf32> to vector<32x16xf32>
    %363 = arith.mulf %360, %362 : vector<32x16xf32>
    %c5_332 = arith.constant 5 : index
    %c0_333 = arith.constant 0 : index
    %c0_334 = arith.constant 0 : index
    %364 = vector.load %arg10[%c5_332, %c0_333, %c0_334] : memref<9x16x16xf32, #tpu.memory_space<vmem>>, vector<1x16x16xf32>
    %365 = vector.shape_cast %364 : vector<1x16x16xf32> to vector<16x16xf32>
    %cst_335 = arith.constant dense<0.000000e+00> : vector<32x16xf32>
    %366 = tpu.matmul %363, %365, %cst_335 {dimension_numbers = #tpu.dot_dimension_numbers<[1], [0], [0], [1], [0, 0, 1, 1], [], []>} : vector<32x16xf32>, vector<16x16xf32>, vector<32x16xf32> -> vector<32x16xf32>
    %367 = arith.addf %359, %366 : vector<32x16xf32>
    %c19_336 = arith.constant 19 : index
    %c0_337 = arith.constant 0 : index
    %368 = vector.load %arg20[%c19_336, %c0_337] : memref<160x16xf32, #tpu.memory_space<vmem>>, vector<32x16xf32>
    %c0_338 = arith.constant 0 : index
    %c6_339 = arith.constant 6 : index
    %369 = vector.load %arg13[%c0_338, %c6_339] : memref<32x9xf32, #tpu.memory_space<vmem>>, vector<32x1xf32>
    %370 = vector.broadcast %369 : vector<32x1xf32> to vector<32x16xf32>
    %371 = arith.mulf %368, %370 : vector<32x16xf32>
    %c6_340 = arith.constant 6 : index
    %c0_341 = arith.constant 0 : index
    %c0_342 = arith.constant 0 : index
    %372 = vector.load %arg10[%c6_340, %c0_341, %c0_342] : memref<9x16x16xf32, #tpu.memory_space<vmem>>, vector<1x16x16xf32>
    %373 = vector.shape_cast %372 : vector<1x16x16xf32> to vector<16x16xf32>
    %cst_343 = arith.constant dense<0.000000e+00> : vector<32x16xf32>
    %374 = tpu.matmul %371, %373, %cst_343 {dimension_numbers = #tpu.dot_dimension_numbers<[1], [0], [0], [1], [0, 0, 1, 1], [], []>} : vector<32x16xf32>, vector<16x16xf32>, vector<32x16xf32> -> vector<32x16xf32>
    %375 = arith.addf %367, %374 : vector<32x16xf32>
    %c20_344 = arith.constant 20 : index
    %c0_345 = arith.constant 0 : index
    %376 = vector.load %arg20[%c20_344, %c0_345] : memref<160x16xf32, #tpu.memory_space<vmem>>, vector<32x16xf32>
    %c0_346 = arith.constant 0 : index
    %c7_347 = arith.constant 7 : index
    %377 = vector.load %arg13[%c0_346, %c7_347] : memref<32x9xf32, #tpu.memory_space<vmem>>, vector<32x1xf32>
    %378 = vector.broadcast %377 : vector<32x1xf32> to vector<32x16xf32>
    %379 = arith.mulf %376, %378 : vector<32x16xf32>
    %c7_348 = arith.constant 7 : index
    %c0_349 = arith.constant 0 : index
    %c0_350 = arith.constant 0 : index
    %380 = vector.load %arg10[%c7_348, %c0_349, %c0_350] : memref<9x16x16xf32, #tpu.memory_space<vmem>>, vector<1x16x16xf32>
    %381 = vector.shape_cast %380 : vector<1x16x16xf32> to vector<16x16xf32>
    %cst_351 = arith.constant dense<0.000000e+00> : vector<32x16xf32>
    %382 = tpu.matmul %379, %381, %cst_351 {dimension_numbers = #tpu.dot_dimension_numbers<[1], [0], [0], [1], [0, 0, 1, 1], [], []>} : vector<32x16xf32>, vector<16x16xf32>, vector<32x16xf32> -> vector<32x16xf32>
    %383 = arith.addf %375, %382 : vector<32x16xf32>
    %c21_352 = arith.constant 21 : index
    %c0_353 = arith.constant 0 : index
    %384 = vector.load %arg20[%c21_352, %c0_353] : memref<160x16xf32, #tpu.memory_space<vmem>>, vector<32x16xf32>
    %c0_354 = arith.constant 0 : index
    %c8_355 = arith.constant 8 : index
    %385 = vector.load %arg13[%c0_354, %c8_355] : memref<32x9xf32, #tpu.memory_space<vmem>>, vector<32x1xf32>
    %386 = vector.broadcast %385 : vector<32x1xf32> to vector<32x16xf32>
    %387 = arith.mulf %384, %386 : vector<32x16xf32>
    %c8_356 = arith.constant 8 : index
    %c0_357 = arith.constant 0 : index
    %c0_358 = arith.constant 0 : index
    %388 = vector.load %arg10[%c8_356, %c0_357, %c0_358] : memref<9x16x16xf32, #tpu.memory_space<vmem>>, vector<1x16x16xf32>
    %389 = vector.shape_cast %388 : vector<1x16x16xf32> to vector<16x16xf32>
    %cst_359 = arith.constant dense<0.000000e+00> : vector<32x16xf32>
    %390 = tpu.matmul %387, %389, %cst_359 {dimension_numbers = #tpu.dot_dimension_numbers<[1], [0], [0], [1], [0, 0, 1, 1], [], []>} : vector<32x16xf32>, vector<16x16xf32>, vector<32x16xf32> -> vector<32x16xf32>
    %391 = arith.addf %383, %390 : vector<32x16xf32>
    %c0_360 = arith.constant 0 : index
    %c0_361 = arith.constant 0 : index
    %392 = vector.load %arg11[%c0_360, %c0_361] : memref<1x16xf32, #tpu.memory_space<vmem>>, vector<1x16xf32>
    %393 = vector.broadcast %392 : vector<1x16xf32> to vector<32x16xf32>
    %394 = arith.addf %391, %393 : vector<32x16xf32>
    %cst_362 = arith.constant 0.000000e+00 : f32
    %395 = vector.broadcast %cst_362 : f32 to vector<32x16xf32>
    %396 = arith.maximumf %394, %395 : vector<32x16xf32>
    %c16_363 = arith.constant 16 : index
    %c0_364 = arith.constant 0 : index
    %397 = vector.load %arg20[%c16_363, %c0_364] : memref<160x16xf32, #tpu.memory_space<vmem>>, vector<32x16xf32>
    tpu.vector_store %arg20[%c16_363, %c0_364], %396 {strides = array<i32>} : memref<160x16xf32, #tpu.memory_space<vmem>>, vector<32x16xf32>,
    %c17_365 = arith.constant 17 : index
    %c0_366 = arith.constant 0 : index
    %398 = vector.load %arg20[%c17_365, %c0_366] : memref<160x16xf32, #tpu.memory_space<vmem>>, vector<32x16xf32>
    %399 = arith.maximumf %396, %398 : vector<32x16xf32>
    %c20_367 = arith.constant 20 : index
    %c0_368 = arith.constant 0 : index
    %400 = vector.load %arg20[%c20_367, %c0_368] : memref<160x16xf32, #tpu.memory_space<vmem>>, vector<32x16xf32>
    %401 = arith.maximumf %399, %400 : vector<32x16xf32>
    %c21_369 = arith.constant 21 : index
    %c0_370 = arith.constant 0 : index
    %402 = vector.load %arg20[%c21_369, %c0_370] : memref<160x16xf32, #tpu.memory_space<vmem>>, vector<32x16xf32>
    %403 = arith.maximumf %401, %402 : vector<32x16xf32>
    %404 = vector.extract_strided_slice %403 {offsets = [0, 0], sizes = [1, 16], strides = [1, 1]} : vector<32x16xf32> to vector<1x16xf32>
    %c0_371 = arith.constant 0 : index
    %c0_372 = arith.constant 0 : index
    %405 = vector.load %arg21[%c0_371, %c0_372] : memref<2x64xf32, #tpu.memory_space<vmem>>, vector<1x16xf32>
    tpu.vector_store %arg21[%c0_371, %c0_372], %404 {strides = array<i32>} : memref<2x64xf32, #tpu.memory_space<vmem>>, vector<1x16xf32>,
    %406 = vector.extract_strided_slice %403 {offsets = [16, 0], sizes = [1, 16], strides = [1, 1]} : vector<32x16xf32> to vector<1x16xf32>
    %c1_373 = arith.constant 1 : index
    %c0_374 = arith.constant 0 : index
    %407 = vector.load %arg21[%c1_373, %c0_374] : memref<2x64xf32, #tpu.memory_space<vmem>>, vector<1x16xf32>
    tpu.vector_store %arg21[%c1_373, %c0_374], %406 {strides = array<i32>} : memref<2x64xf32, #tpu.memory_space<vmem>>, vector<1x16xf32>,
    %408 = vector.extract_strided_slice %403 {offsets = [2, 0], sizes = [1, 16], strides = [1, 1]} : vector<32x16xf32> to vector<1x16xf32>
    %c0_375 = arith.constant 0 : index
    %c16_376 = arith.constant 16 : index
    %409 = vector.load %arg21[%c0_375, %c16_376] : memref<2x64xf32, #tpu.memory_space<vmem>>, vector<1x16xf32>
    tpu.vector_store %arg21[%c0_375, %c16_376], %408 {strides = array<i32>} : memref<2x64xf32, #tpu.memory_space<vmem>>, vector<1x16xf32>,
    %410 = vector.extract_strided_slice %403 {offsets = [18, 0], sizes = [1, 16], strides = [1, 1]} : vector<32x16xf32> to vector<1x16xf32>
    %c1_377 = arith.constant 1 : index
    %c16_378 = arith.constant 16 : index
    %411 = vector.load %arg21[%c1_377, %c16_378] : memref<2x64xf32, #tpu.memory_space<vmem>>, vector<1x16xf32>
    tpu.vector_store %arg21[%c1_377, %c16_378], %410 {strides = array<i32>} : memref<2x64xf32, #tpu.memory_space<vmem>>, vector<1x16xf32>,
    %412 = vector.extract_strided_slice %403 {offsets = [8, 0], sizes = [1, 16], strides = [1, 1]} : vector<32x16xf32> to vector<1x16xf32>
    %c0_379 = arith.constant 0 : index
    %c32_380 = arith.constant 32 : index
    %413 = vector.load %arg21[%c0_379, %c32_380] : memref<2x64xf32, #tpu.memory_space<vmem>>, vector<1x16xf32>
    tpu.vector_store %arg21[%c0_379, %c32_380], %412 {strides = array<i32>} : memref<2x64xf32, #tpu.memory_space<vmem>>, vector<1x16xf32>,
    %414 = vector.extract_strided_slice %403 {offsets = [24, 0], sizes = [1, 16], strides = [1, 1]} : vector<32x16xf32> to vector<1x16xf32>
    %c1_381 = arith.constant 1 : index
    %c32_382 = arith.constant 32 : index
    %415 = vector.load %arg21[%c1_381, %c32_382] : memref<2x64xf32, #tpu.memory_space<vmem>>, vector<1x16xf32>
    tpu.vector_store %arg21[%c1_381, %c32_382], %414 {strides = array<i32>} : memref<2x64xf32, #tpu.memory_space<vmem>>, vector<1x16xf32>,
    %416 = vector.extract_strided_slice %403 {offsets = [10, 0], sizes = [1, 16], strides = [1, 1]} : vector<32x16xf32> to vector<1x16xf32>
    %c0_383 = arith.constant 0 : index
    %c48 = arith.constant 48 : index
    %417 = vector.load %arg21[%c0_383, %c48] : memref<2x64xf32, #tpu.memory_space<vmem>>, vector<1x16xf32>
    tpu.vector_store %arg21[%c0_383, %c48], %416 {strides = array<i32>} : memref<2x64xf32, #tpu.memory_space<vmem>>, vector<1x16xf32>,
    %418 = vector.extract_strided_slice %403 {offsets = [26, 0], sizes = [1, 16], strides = [1, 1]} : vector<32x16xf32> to vector<1x16xf32>
    %c1_384 = arith.constant 1 : index
    %c48_385 = arith.constant 48 : index
    %419 = vector.load %arg21[%c1_384, %c48_385] : memref<2x64xf32, #tpu.memory_space<vmem>>, vector<1x16xf32>
    tpu.vector_store %arg21[%c1_384, %c48_385], %418 {strides = array<i32>} : memref<2x64xf32, #tpu.memory_space<vmem>>, vector<1x16xf32>,
    %c0_386 = arith.constant 0 : index
    %c0_387 = arith.constant 0 : index
    %420 = vector.load %arg21[%c0_386, %c0_387] : memref<2x64xf32, #tpu.memory_space<vmem>>, vector<2x64xf32>
    %c0_388 = arith.constant 0 : index
    %c0_389 = arith.constant 0 : index
    %421 = vector.load %arg15[%c0_388, %c0_389] : memref<64x100xf32, #tpu.memory_space<vmem>>, vector<64x100xf32>
    %cst_390 = arith.constant dense<0.000000e+00> : vector<2x100xf32>
    %422 = tpu.matmul %420, %421, %cst_390 {dimension_numbers = #tpu.dot_dimension_numbers<[1], [0], [0], [1], [0, 0, 1, 1], [], []>} : vector<2x64xf32>, vector<64x100xf32>, vector<2x100xf32> -> vector<2x100xf32>
    %c0_391 = arith.constant 0 : index
    %c0_392 = arith.constant 0 : index
    %423 = vector.load %arg16[%c0_391, %c0_392] : memref<1x100xf32, #tpu.memory_space<vmem>>, vector<1x100xf32>
    %424 = vector.broadcast %423 : vector<1x100xf32> to vector<2x100xf32>
    %425 = arith.addf %422, %424 : vector<2x100xf32>
    %cst_393 = arith.constant 0.000000e+00 : f32
    %426 = vector.broadcast %cst_393 : f32 to vector<2x100xf32>
    %427 = arith.maximumf %425, %426 : vector<2x100xf32>
    %c0_394 = arith.constant 0 : index
    %c0_395 = arith.constant 0 : index
    %428 = vector.load %arg17[%c0_394, %c0_395] : memref<100x10xf32, #tpu.memory_space<vmem>>, vector<100x10xf32>
    %cst_396 = arith.constant dense<0.000000e+00> : vector<2x10xf32>
    %429 = tpu.matmul %427, %428, %cst_396 {dimension_numbers = #tpu.dot_dimension_numbers<[1], [0], [0], [1], [0, 0, 1, 1], [], []>} : vector<2x100xf32>, vector<100x10xf32>, vector<2x10xf32> -> vector<2x10xf32>
    %c0_397 = arith.constant 0 : index
    %c0_398 = arith.constant 0 : index
    %430 = vector.load %arg18[%c0_397, %c0_398] : memref<1x10xf32, #tpu.memory_space<vmem>>, vector<1x10xf32>
    %431 = vector.broadcast %430 : vector<1x10xf32> to vector<2x10xf32>
    %432 = arith.addf %429, %431 : vector<2x10xf32>
    %c0_399 = arith.constant 0 : index
    %c0_400 = arith.constant 0 : index
    %433 = vector.load %arg19[%c0_399, %c0_400] : memref<2x10xf32, #tpu.memory_space<vmem>>, vector<2x10xf32>
    tpu.vector_store %arg19[%c0_399, %c0_400], %432 {strides = array<i32>} : memref<2x10xf32, #tpu.memory_space<vmem>>, vector<2x10xf32>,
    return
  }
  func.func @transform_0(%arg0: i32) -> (i32, i32) {
    %c0_i32 = arith.constant 0 : i32
    %c0_i32_0 = arith.constant 0 : i32
    return %arg0, %c0_i32 : i32, i32
  }
  func.func @transform_1(%arg0: i32) -> (i32, i32, i32) {
    %c0_i32 = arith.constant 0 : i32
    %c0_i32_0 = arith.constant 0 : i32
    %c0_i32_1 = arith.constant 0 : i32
    %c0_i32_2 = arith.constant 0 : i32
    return %c0_i32, %c0_i32_0, %c0_i32_1 : i32, i32, i32
  }
  func.func @transform_2(%arg0: i32) -> (i32, i32) {
    %c0_i32 = arith.constant 0 : i32
    %c0_i32_0 = arith.constant 0 : i32
    %c0_i32_1 = arith.constant 0 : i32
    return %c0_i32, %c0_i32_0 : i32, i32
  }
  func.func @transform_3(%arg0: i32) -> (i32, i32, i32) {
    %c0_i32 = arith.constant 0 : i32
    %c0_i32_0 = arith.constant 0 : i32
    %c0_i32_1 = arith.constant 0 : i32
    %c0_i32_2 = arith.constant 0 : i32
    return %c0_i32, %c0_i32_0, %c0_i32_1 : i32, i32, i32
  }
  func.func @transform_4(%arg0: i32) -> (i32, i32) {
    %c0_i32 = arith.constant 0 : i32
    %c0_i32_0 = arith.constant 0 : i32
    %c0_i32_1 = arith.constant 0 : i32
    return %c0_i32, %c0_i32_0 : i32, i32
  }
  func.func @transform_5(%arg0: i32) -> (i32, i32, i32) {
    %c0_i32 = arith.constant 0 : i32
    %c0_i32_0 = arith.constant 0 : i32
    %c0_i32_1 = arith.constant 0 : i32
    %c0_i32_2 = arith.constant 0 : i32
    return %c0_i32, %c0_i32_0, %c0_i32_1 : i32, i32, i32
  }
  func.func @transform_6(%arg0: i32) -> (i32, i32) {
    %c0_i32 = arith.constant 0 : i32
    %c0_i32_0 = arith.constant 0 : i32
    %c0_i32_1 = arith.constant 0 : i32
    return %c0_i32, %c0_i32_0 : i32, i32
  }
  func.func @transform_7(%arg0: i32) -> (i32, i32, i32) {
    %c0_i32 = arith.constant 0 : i32
    %c0_i32_0 = arith.constant 0 : i32
    %c0_i32_1 = arith.constant 0 : i32
    %c0_i32_2 = arith.constant 0 : i32
    return %c0_i32, %c0_i32_0, %c0_i32_1 : i32, i32, i32
  }
  func.func @transform_8(%arg0: i32) -> (i32, i32) {
    %c0_i32 = arith.constant 0 : i32
    %c0_i32_0 = arith.constant 0 : i32
    %c0_i32_1 = arith.constant 0 : i32
    return %c0_i32, %c0_i32_0 : i32, i32
  }
  func.func @transform_9(%arg0: i32) -> (i32, i32, i32) {
    %c0_i32 = arith.constant 0 : i32
    %c0_i32_0 = arith.constant 0 : i32
    %c0_i32_1 = arith.constant 0 : i32
    %c0_i32_2 = arith.constant 0 : i32
    return %c0_i32, %c0_i32_0, %c0_i32_1 : i32, i32, i32
  }
  func.func @transform_10(%arg0: i32) -> (i32, i32) {
    %c0_i32 = arith.constant 0 : i32
    %c0_i32_0 = arith.constant 0 : i32
    %c0_i32_1 = arith.constant 0 : i32
    return %c0_i32, %c0_i32_0 : i32, i32
  }
  func.func @transform_11(%arg0: i32) -> (i32, i32) {
    %c0_i32 = arith.constant 0 : i32
    %c0_i32_0 = arith.constant 0 : i32
    %c0_i32_1 = arith.constant 0 : i32
    return %c0_i32, %c0_i32_0 : i32, i32
  }
  func.func @transform_12(%arg0: i32) -> (i32, i32) {
    %c0_i32 = arith.constant 0 : i32
    %c0_i32_0 = arith.constant 0 : i32
    %c0_i32_1 = arith.constant 0 : i32
    return %c0_i32, %c0_i32_0 : i32, i32
  }
  func.func @transform_13(%arg0: i32) -> (i32, i32) {
    %c0_i32 = arith.constant 0 : i32
    %c0_i32_0 = arith.constant 0 : i32
    %c0_i32_1 = arith.constant 0 : i32
    return %c0_i32, %c0_i32_0 : i32, i32
  }
  func.func @transform_14(%arg0: i32) -> (i32, i32) {
    %c0_i32 = arith.constant 0 : i32
    %c0_i32_0 = arith.constant 0 : i32
    %c0_i32_1 = arith.constant 0 : i32
    return %c0_i32, %c0_i32_0 : i32, i32
  }
  func.func @transform_15(%arg0: i32) -> (i32, i32) {
    %c0_i32 = arith.constant 0 : i32
    %c0_i32_0 = arith.constant 0 : i32
    %c0_i32_1 = arith.constant 0 : i32
    return %c0_i32, %c0_i32_0 : i32, i32
  }
  func.func @transform_16(%arg0: i32) -> (i32, i32) {
    %c0_i32 = arith.constant 0 : i32
    %c0_i32_0 = arith.constant 0 : i32
    %c0_i32_1 = arith.constant 0 : i32
    return %c0_i32, %c0_i32_0 : i32, i32
  }
  func.func @transform_17(%arg0: i32) -> (i32, i32) {
    %c0_i32 = arith.constant 0 : i32
    %c0_i32_0 = arith.constant 0 : i32
    %c0_i32_1 = arith.constant 0 : i32
    return %c0_i32, %c0_i32_0 : i32, i32
  }
  func.func @transform_18(%arg0: i32) -> (i32, i32) {
    %c0_i32 = arith.constant 0 : i32
    %c0_i32_0 = arith.constant 0 : i32
    return %arg0, %c0_i32 : i32, i32
  }
}

</mosaic_0001>

<llo_original>
// kernel: _lambda_.1
$region0: #{_lambda_.1}
  #allocation0 [shape = 'u32[]', space=smem, size = 0x4, offset = 0x4, fixed_abs, tag = 'smem constant byte address 0x4 - core index']
  #allocation1 [shape = 'u32[144,128]{1,0:T(1,128)}', space=vmem, size = 0x12000, scoped, tag = 'internal scratch']
  #allocation2 [shape = 'f32[160,16]{1,0:T(8,128)}', space=vmem, size = 0x14000, scoped, tag = 'scratch operand']
  #allocation3 [shape = 'f32[2,64]{1,0:T(2,128)}', space=vmem, size = 0x400, scoped, tag = 'scratch operand']
  %s0 = inlined_call_operand.vmem [shape: f32[128,1], index: 0, kind: input, shape index: {}]
  %s1 = inlined_call_operand.hbm [shape: f32[9,1,8], index: 1, kind: input, shape index: {}]
  %s2 = inlined_call_operand.hbm [shape: f32[1,8], index: 2, kind: input, shape index: {}]
  %s3 = inlined_call_operand.hbm [shape: f32[9,8,8], index: 3, kind: input, shape index: {}]
  %s4 = inlined_call_operand.hbm [shape: f32[1,8], index: 4, kind: input, shape index: {}]
  %s5 = inlined_call_operand.hbm [shape: f32[9,8,10], index: 5, kind: input, shape index: {}]
  %s6 = inlined_call_operand.hbm [shape: f32[1,10], index: 6, kind: input, shape index: {}]
  %s7 = inlined_call_operand.hbm [shape: f32[9,10,16], index: 7, kind: input, shape index: {}]
  %s8 = inlined_call_operand.hbm [shape: f32[1,16], index: 8, kind: input, shape index: {}]
  %s9 = inlined_call_operand.vmem [shape: f32[9,16,16], index: 9, kind: input, shape index: {}]
  %s10 = inlined_call_operand.hbm [shape: f32[1,16], index: 10, kind: input, shape index: {}]
  %s11 = inlined_call_operand.hbm [shape: f32[128,9], index: 11, kind: input, shape index: {}]
  %s12 = inlined_call_operand.vmem [shape: f32[32,9], index: 12, kind: input, shape index: {}]
  %s13 = inlined_call_operand.vmem [shape: f32[16,64], index: 13, kind: input, shape index: {}]
  %s14 = inlined_call_operand.hbm [shape: f32[64,100], index: 14, kind: input, shape index: {}]
  %s15 = inlined_call_operand.vmem [shape: f32[1,100], index: 15, kind: input, shape index: {}]
  %s16 = inlined_call_operand.hbm [shape: f32[100,10], index: 16, kind: input, shape index: {}]
  %s17 = inlined_call_operand.vmem [shape: f32[1,10], index: 17, kind: input, shape index: {}]
  %s18 = inlined_call_operand.hbm [shape: f32[2,10], index: 18, kind: output, shape index: {}]
  %s19 = sld [smem:[#allocation0]]
  $region130: #{_lambda_.1} parent=0
    _
  %s21 = ssub.s32 1, %s19
  %s22 = scalar_select 0, %s21, %s19
  $region1: #{_lambda_.1} parent=0
    #allocation4 [shape = 'u8[4608]{0}', space=vmem, size = 0x1400, scoped, tag = 'input window, operand 1, single buffered']
    #allocation5 [shape = 's32[1]{0}', space=sflag, size = 0x4, scoped, tag = 'scoped memory for _lambda_.1']
    #allocation6 [shape = 's32[1]{0}', space=sflag, size = 0x4, scoped, tag = 'scoped memory for _lambda_.1']
    #allocation7 [shape = 'u8[512]{0}', space=vmem, size = 0x400, scoped, tag = 'input window, operand 2, single buffered']
    #allocation8 [shape = 's32[1]{0}', space=sflag, size = 0x4, scoped, tag = 'scoped memory for _lambda_.1']
    #allocation9 [shape = 'u8[36864]{0}', space=vmem, size = 0x9000, scoped, tag = 'input window, operand 3, single buffered']
    #allocation10 [shape = 'u8[512]{0}', space=vmem, size = 0x400, scoped, tag = 'input window, operand 4, single buffered']
    #allocation11 [shape = 's32[1]{0}', space=sflag, size = 0x4, scoped, tag = 'scoped memory for _lambda_.1']
    #allocation12 [shape = 'u8[36864]{0}', space=vmem, size = 0x9000, scoped, tag = 'input window, operand 5, single buffered']
    #allocation13 [shape = 'u8[512]{0}', space=vmem, size = 0x400, scoped, tag = 'input window, operand 6, single buffered']
    #allocation14 [shape = 's32[1]{0}', space=sflag, size = 0x4, scoped, tag = 'scoped memory for _lambda_.1']
    #allocation15 [shape = 'u8[73728]{0}', space=vmem, size = 0x12000, scoped, tag = 'input window, operand 7, single buffered']
    #allocation16 [shape = 'u8[512]{0}', space=vmem, size = 0x400, scoped, tag = 'input window, operand 8, single buffered']
    #allocation17 [shape = 's32[1]{0}', space=sflag, size = 0x4, scoped, tag = 'scoped memory for _lambda_.1']
    #allocation18 [shape = 'u8[512]{0}', space=vmem, size = 0x400, scoped, tag = 'input window, operand 10, single buffered']
    #allocation19 [shape = 'u8[65536]{0}', space=vmem, size = 0x10000, scoped, tag = 'input window, operand 11, single buffered']
    #allocation20 [shape = 's32[1]{0}', space=sflag, size = 0x4, scoped, tag = 'scoped memory for _lambda_.1']
    #allocation21 [shape = 'u8[32768]{0}', space=vmem, size = 0x8000, scoped, tag = 'input window, operand 14, single buffered']
    #allocation22 [shape = 'u8[53248]{0}', space=vmem, size = 0xd000, scoped, tag = 'input window, operand 16, single buffered']
    #allocation23 [shape = 's32[1]{0}', space=sflag, size = 0x4, scoped, tag = 'scoped memory for _lambda_.1']
    #allocation24 [shape = 'u8[1024]{0}', space=vmem, size = 0x400, scoped, tag = 'output window, operand 0, single buffered']
    %23 = vsyncpa [#allocation5], 0
    %24 = vsyncpa [#allocation8], 0
    %25 = vsyncpa [#allocation11], 0
    %26 = vsyncpa [#allocation14], 0
    %27 = vsyncpa [#allocation17], 0
    %28 = vsyncpa [#allocation20], 0
    %29 = vsyncpa [#allocation23], 0
    %30 = vsyncpa [#allocation6], 0
    // Predicated region
    $region2: #{_lambda_.1} parent=1 // pred_check
      _
    $region3: #{_lambda_.1} parent=1 // pred_check_branch
      %32 = sbr.rel (0) target = $region5
    $region4: #{_lambda_.1} parent=1 // pred_region
      _
    $region5: #{_lambda_.1} parent=1 // pred_fallthru
      _
    // Predicated region
    $region6: #{_lambda_.1} parent=1 // pred_check
      _
    $region7: #{_lambda_.1} parent=1 // pred_check_branch
      %34 = sbr.rel (0) target = $region9
    $region8: #{_lambda_.1} parent=1 // pred_region
      %s36 = ssub.s32 144, 144
      %37 = vsyncadd [#allocation5], %s36
      %s38 = sshll.u32 [#allocation4], 4
      %s39 = int_to_ptr.vmem [resolvable:$true] %s38
      %44 = dma.hbm_to_vmem [thread:$0]  %s1, 144, %s39, [#allocation5], 16, 16, 1
    $region9: #{_lambda_.1} parent=1 // pred_fallthru
      _
    // Predicated region
    $region10: #{_lambda_.1} parent=1 // pred_check
      _
    $region11: #{_lambda_.1} parent=1 // pred_check_branch
      %46 = sbr.rel (0) target = $region13
    $region12: #{_lambda_.1} parent=1 // pred_region
      %s48 = ssub.s32 16, 16
      %49 = vsyncadd [#allocation8], %s48
      %s51 = sshll.u32 [#allocation7], 4
      %s52 = int_to_ptr.vmem [resolvable:$true] %s51
      %54 = dma.hbm_to_vmem [thread:$0]  %s2, 16, %s52, [#allocation8]
    $region13: #{_lambda_.1} parent=1 // pred_fallthru
      _
    // Predicated region
    $region14: #{_lambda_.1} parent=1 // pred_check
      _
    $region15: #{_lambda_.1} parent=1 // pred_check_branch
      %56 = sbr.rel (0) target = $region17
    $region16: #{_lambda_.1} parent=1 // pred_region
      %s58 = ssub.s32 1152, 1152
      %59 = vsyncadd [#allocation8], %s58
      %s60 = sshll.u32 [#allocation9], 4
      %s61 = int_to_ptr.vmem [resolvable:$true] %s60
      %66 = dma.hbm_to_vmem [thread:$0]  %s3, 1152, %s61, [#allocation8], 128, 128, 8
    $region17: #{_lambda_.1} parent=1 // pred_fallthru
      _
    // Predicated region
    $region18: #{_lambda_.1} parent=1 // pred_check
      _
    $region19: #{_lambda_.1} parent=1 // pred_check_branch
      %68 = sbr.rel (0) target = $region21
    $region20: #{_lambda_.1} parent=1 // pred_region
      %s70 = ssub.s32 16, 16
      %71 = vsyncadd [#allocation11], %s70
      %s73 = sshll.u32 [#allocation10], 4
      %s74 = int_to_ptr.vmem [resolvable:$true] %s73
      %76 = dma.hbm_to_vmem [thread:$0]  %s4, 16, %s74, [#allocation11]
    $region21: #{_lambda_.1} parent=1 // pred_fallthru
      _
    // Predicated region
    $region22: #{_lambda_.1} parent=1 // pred_check
      _
    $region23: #{_lambda_.1} parent=1 // pred_check_branch
      %78 = sbr.rel (0) target = $region25
    $region24: #{_lambda_.1} parent=1 // pred_region
      %s80 = ssub.s32 1152, 1152
      %81 = vsyncadd [#allocation11], %s80
      %s82 = sshll.u32 [#allocation12], 4
      %s83 = int_to_ptr.vmem [resolvable:$true] %s82
      %88 = dma.hbm_to_vmem [thread:$0]  %s5, 1152, %s83, [#allocation11], 128, 128, 8
    $region25: #{_lambda_.1} parent=1 // pred_fallthru
      _
    // Predicated region
    $region26: #{_lambda_.1} parent=1 // pred_check
      _
    $region27: #{_lambda_.1} parent=1 // pred_check_branch
      %90 = sbr.rel (0) target = $region29
    $region28: #{_lambda_.1} parent=1 // pred_region
      %s92 = ssub.s32 16, 16
      %93 = vsyncadd [#allocation14], %s92
      %s95 = sshll.u32 [#allocation13], 4
      %s96 = int_to_ptr.vmem [resolvable:$true] %s95
      %98 = dma.hbm_to_vmem [thread:$0]  %s6, 16, %s96, [#allocation14]
    $region29: #{_lambda_.1} parent=1 // pred_fallthru
      _
    // Predicated region
    $region30: #{_lambda_.1} parent=1 // pred_check
      _
    $region31: #{_lambda_.1} parent=1 // pred_check_branch
      %100 = sbr.rel (0) target = $region33
    $region32: #{_lambda_.1} parent=1 // pred_region
      %s102 = ssub.s32 2304, 2304
      %103 = vsyncadd [#allocation14], %s102
      %s104 = sshll.u32 [#allocation15], 4
      %s105 = int_to_ptr.vmem [resolvable:$true] %s104
      %110 = dma.hbm_to_vmem [thread:$0]  %s7, 2304, %s105, [#allocation14], 128, 128, 8
    $region33: #{_lambda_.1} parent=1 // pred_fallthru
      _
    // Predicated region
    $region34: #{_lambda_.1} parent=1 // pred_check
      _
    $region35: #{_lambda_.1} parent=1 // pred_check_branch
      %112 = sbr.rel (0) target = $region37
    $region36: #{_lambda_.1} parent=1 // pred_region
      %s114 = ssub.s32 16, 16
      %115 = vsyncadd [#allocation17], %s114
      %s117 = sshll.u32 [#allocation16], 4
      %s118 = int_to_ptr.vmem [resolvable:$true] %s117
      %120 = dma.hbm_to_vmem [thread:$0]  %s8, 16, %s118, [#allocation17]
    $region37: #{_lambda_.1} parent=1 // pred_fallthru
      _
    // Predicated region
    $region38: #{_lambda_.1} parent=1 // pred_check
      _
    $region39: #{_lambda_.1} parent=1 // pred_check_branch
      %122 = sbr.rel (0) target = $region41
    $region40: #{_lambda_.1} parent=1 // pred_region
      _
    $region41: #{_lambda_.1} parent=1 // pred_fallthru
      _
    // Predicated region
    $region42: #{_lambda_.1} parent=1 // pred_check
      _
    $region43: #{_lambda_.1} parent=1 // pred_check_branch
      %124 = sbr.rel (0) target = $region45
    $region44: #{_lambda_.1} parent=1 // pred_region
      %s126 = ssub.s32 16, 16
      %127 = vsyncadd [#allocation17], %s126
      %s129 = sshll.u32 [#allocation18], 4
      %s130 = int_to_ptr.vmem [resolvable:$true] %s129
      %132 = dma.hbm_to_vmem [thread:$0]  %s10, 16, %s130, [#allocation17]
    $region45: #{_lambda_.1} parent=1 // pred_fallthru
      _
    // Predicated region
    $region46: #{_lambda_.1} parent=1 // pred_check
      _
    $region47: #{_lambda_.1} parent=1 // pred_check_branch
      %134 = sbr.rel (0) target = $region49
    $region48: #{_lambda_.1} parent=1 // pred_region
      %s136 = ssub.s32 2048, 2048
      %137 = vsyncadd [#allocation20], %s136
      %s138 = sshll.u32 [#allocation19], 4
      %s139 = int_to_ptr.vmem [resolvable:$true] %s138
      %144 = dma.hbm_to_vmem [thread:$0]  %s11, 2048, %s139, [#allocation20], 128, 128, 8
    $region49: #{_lambda_.1} parent=1 // pred_fallthru
      _
    // Predicated region
    $region50: #{_lambda_.1} parent=1 // pred_check
      _
    $region51: #{_lambda_.1} parent=1 // pred_check_branch
      %146 = sbr.rel (0) target = $region53
    $region52: #{_lambda_.1} parent=1 // pred_region
      _
    $region53: #{_lambda_.1} parent=1 // pred_fallthru
      _
    // Predicated region
    $region54: #{_lambda_.1} parent=1 // pred_check
      _
    $region55: #{_lambda_.1} parent=1 // pred_check_branch
      %148 = sbr.rel (0) target = $region57
    $region56: #{_lambda_.1} parent=1 // pred_region
      _
    $region57: #{_lambda_.1} parent=1 // pred_fallthru
      _
    // Predicated region
    $region58: #{_lambda_.1} parent=1 // pred_check
      _
    $region59: #{_lambda_.1} parent=1 // pred_check_branch
      %150 = sbr.rel (0) target = $region61
    $region60: #{_lambda_.1} parent=1 // pred_region
      %s152 = ssub.s32 1024, 1024
      %153 = vsyncadd [#allocation20], %s152
      %s154 = sshll.u32 [#allocation21], 4
      %s155 = int_to_ptr.vmem [resolvable:$true] %s154
      %160 = dma.hbm_to_vmem [thread:$0]  %s14, 1024, %s155, [#allocation20], 128, 128, 8
    $region61: #{_lambda_.1} parent=1 // pred_fallthru
      _
    // Predicated region
    $region62: #{_lambda_.1} parent=1 // pred_check
      _
    $region63: #{_lambda_.1} parent=1 // pred_check_branch
      %162 = sbr.rel (0) target = $region65
    $region64: #{_lambda_.1} parent=1 // pred_region
      _
    $region65: #{_lambda_.1} parent=1 // pred_fallthru
      _
    // Predicated region
    $region66: #{_lambda_.1} parent=1 // pred_check
      _
    $region67: #{_lambda_.1} parent=1 // pred_check_branch
      %164 = sbr.rel (0) target = $region69
    $region68: #{_lambda_.1} parent=1 // pred_region
      %s166 = ssub.s32 1664, 1664
      %167 = vsyncadd [#allocation23], %s166
      %s168 = sshll.u32 [#allocation22], 4
      %s169 = int_to_ptr.vmem [resolvable:$true] %s168
      %174 = dma.hbm_to_vmem [thread:$0]  %s16, 1664, %s169, [#allocation23], 128, 128, 8
    $region69: #{_lambda_.1} parent=1 // pred_fallthru
      _
    // Predicated region
    $region70: #{_lambda_.1} parent=1 // pred_check
      _
    $region71: #{_lambda_.1} parent=1 // pred_check_branch
      %176 = sbr.rel (0) target = $region73
    $region72: #{_lambda_.1} parent=1 // pred_region
      _
    $region73: #{_lambda_.1} parent=1 // pred_fallthru
      _
    // Predicated region
    $region74: #{_lambda_.1} parent=1 // pred_check
      _
    $region75: #{_lambda_.1} parent=1 // pred_check_branch
      %178 = sbr.rel (0) target = $region77
    $region76: #{_lambda_.1} parent=1 // pred_region
      %179 = dma.done [#allocation5], 144
    $region77: #{_lambda_.1} parent=1 // pred_fallthru
      _
    // Predicated region
    $region78: #{_lambda_.1} parent=1 // pred_check
      _
    $region79: #{_lambda_.1} parent=1 // pred_check_branch
      %181 = sbr.rel (0) target = $region81
    $region80: #{_lambda_.1} parent=1 // pred_region
      %182 = dma.done [#allocation8], 16
    $region81: #{_lambda_.1} parent=1 // pred_fallthru
      _
    // Predicated region
    $region82: #{_lambda_.1} parent=1 // pred_check
      _
    $region83: #{_lambda_.1} parent=1 // pred_check_branch
      %184 = sbr.rel (0) target = $region85
    $region84: #{_lambda_.1} parent=1 // pred_region
      %185 = dma.done [#allocation8], 1152
    $region85: #{_lambda_.1} parent=1 // pred_fallthru
      _
    // Predicated region
    $region86: #{_lambda_.1} parent=1 // pred_check
      _
    $region87: #{_lambda_.1} parent=1 // pred_check_branch
      %187 = sbr.rel (0) target = $region89
    $region88: #{_lambda_.1} parent=1 // pred_region
      %188 = dma.done [#allocation11], 16
    $region89: #{_lambda_.1} parent=1 // pred_fallthru
      _
    // Predicated region
    $region90: #{_lambda_.1} parent=1 // pred_check
      _
    $region91: #{_lambda_.1} parent=1 // pred_check_branch
      %190 = sbr.rel (0) target = $region93
    $region92: #{_lambda_.1} parent=1 // pred_region
      %191 = dma.done [#allocation11], 1152
    $region93: #{_lambda_.1} parent=1 // pred_fallthru
      _
    // Predicated region
    $region94: #{_lambda_.1} parent=1 // pred_check
      _
    $region95: #{_lambda_.1} parent=1 // pred_check_branch
      %193 = sbr.rel (0) target = $region97
    $region96: #{_lambda_.1} parent=1 // pred_region
      %194 = dma.done [#allocation14], 16
    $region97: #{_lambda_.1} parent=1 // pred_fallthru
      _
    // Predicated region
    $region98: #{_lambda_.1} parent=1 // pred_check
      _
    $region99: #{_lambda_.1} parent=1 // pred_check_branch
      %196 = sbr.rel (0) target = $region101
    $region100: #{_lambda_.1} parent=1 // pred_region
      %197 = dma.done [#allocation14], 2304
    $region101: #{_lambda_.1} parent=1 // pred_fallthru
      _
    // Predicated region
    $region102: #{_lambda_.1} parent=1 // pred_check
      _
    $region103: #{_lambda_.1} parent=1 // pred_check_branch
      %199 = sbr.rel (0) target = $region105
    $region104: #{_lambda_.1} parent=1 // pred_region
      %200 = dma.done [#allocation17], 16
    $region105: #{_lambda_.1} parent=1 // pred_fallthru
      _
    // Predicated region
    $region106: #{_lambda_.1} parent=1 // pred_check
      _
    $region107: #{_lambda_.1} parent=1 // pred_check_branch
      %202 = sbr.rel (0) target = $region109
    $region108: #{_lambda_.1} parent=1 // pred_region
      %203 = dma.done [#allocation17], 16
    $region109: #{_lambda_.1} parent=1 // pred_fallthru
      _
    // Predicated region
    $region110: #{_lambda_.1} parent=1 // pred_check
      _
    $region111: #{_lambda_.1} parent=1 // pred_check_branch
      %205 = sbr.rel (0) target = $region113
    $region112: #{_lambda_.1} parent=1 // pred_region
      %206 = dma.done [#allocation20], 2048
    $region113: #{_lambda_.1} parent=1 // pred_fallthru
      _
    // Predicated region
    $region114: #{_lambda_.1} parent=1 // pred_check
      _
    $region115: #{_lambda_.1} parent=1 // pred_check_branch
      %208 = sbr.rel (0) target = $region117
    $region116: #{_lambda_.1} parent=1 // pred_region
      %209 = dma.done [#allocation20], 1024
    $region117: #{_lambda_.1} parent=1 // pred_fallthru
      _
    // Predicated region
    $region118: #{_lambda_.1} parent=1 // pred_check
      _
    $region119: #{_lambda_.1} parent=1 // pred_check_branch
      %211 = sbr.rel (0) target = $region121
    $region120: #{_lambda_.1} parent=1 // pred_region
      %212 = dma.done [#allocation23], 1664
    $region121: #{_lambda_.1} parent=1 // pred_fallthru
      _
    %vm213 = vcmask 130048
    %214 = vst.msk [vmem:[#allocation2] sm:$0xff] %vm213, 0.0
    %215 = vst.msk [vmem:[#allocation2 + $0x8] sm:$0xff] %vm213, 0.0
    %216 = vst.msk [vmem:[#allocation2 + $0x10] sm:$0xff] %vm213, 0.0
    %217 = vst.msk [vmem:[#allocation2 + $0x18] sm:$0xff] %vm213, 0.0
    %218 = vst.msk [vmem:[#allocation2 + $0x20] sm:$0xff] %vm213, 0.0
    %219 = vst.msk [vmem:[#allocation2 + $0x28] sm:$0xff] %vm213, 0.0
    %220 = vst.msk [vmem:[#allocation2 + $0x30] sm:$0xff] %vm213, 0.0
    %221 = vst.msk [vmem:[#allocation2 + $0x38] sm:$0xff] %vm213, 0.0
    %222 = vst.msk [vmem:[#allocation2 + $0x40] sm:$0xff] %vm213, 0.0
    %223 = vst.msk [vmem:[#allocation2 + $0x48] sm:$0xff] %vm213, 0.0
    %224 = vst.msk [vmem:[#allocation2 + $0x50] sm:$0xff] %vm213, 0.0
    %225 = vst.msk [vmem:[#allocation2 + $0x58] sm:$0xff] %vm213, 0.0
    %226 = vst.msk [vmem:[#allocation2 + $0x60] sm:$0xff] %vm213, 0.0
    %227 = vst.msk [vmem:[#allocation2 + $0x68] sm:$0xff] %vm213, 0.0
    %228 = vst.msk [vmem:[#allocation2 + $0x70] sm:$0xff] %vm213, 0.0
    %229 = vst.msk [vmem:[#allocation2 + $0x78] sm:$0xff] %vm213, 0.0
    %230 = vst.msk [vmem:[#allocation2 + $0x80] sm:$0xff] %vm213, 0.0
    %231 = vst.msk [vmem:[#allocation2 + $0x88] sm:$0xff] %vm213, 0.0
    %232 = vst.msk [vmem:[#allocation2 + $0x90] sm:$0xff] %vm213, 0.0
    %233 = vst.msk [vmem:[#allocation2 + $0x98] sm:$0xff] %vm213, 0.0
    %v234 = vld [vmem:[%s0] sm:$0xff]
    %v235 = vld [vmem:[%s0 + $0x8] sm:$0xff]
    %v236 = vld [vmem:[%s0 + $0x10] sm:$0xff]
    %v237 = vld [vmem:[%s0 + $0x18] sm:$0xff]
    %v238 = vld [vmem:[%s0 + $0x20] sm:$0xff]
    %v239 = vld [vmem:[%s0 + $0x28] sm:$0xff]
    %v240 = vld [vmem:[%s0 + $0x30] sm:$0xff]
    %v241 = vld [vmem:[%s0 + $0x38] sm:$0xff]
    %v242 = vld [vmem:[%s0 + $0x40] sm:$0xff]
    %v243 = vld [vmem:[%s0 + $0x48] sm:$0xff]
    %v244 = vld [vmem:[%s0 + $0x50] sm:$0xff]
    %v245 = vld [vmem:[%s0 + $0x58] sm:$0xff]
    %v246 = vld [vmem:[%s0 + $0x60] sm:$0xff]
    %v247 = vld [vmem:[%s0 + $0x68] sm:$0xff]
    %v248 = vld [vmem:[%s0 + $0x70] sm:$0xff]
    %v249 = vld [vmem:[%s0 + $0x78] sm:$0xff]
    %vm250 = vcmask 7168
    %251 = vst.msk [vmem:[#allocation2 + $0x10] sm:$0xff] %vm250, %v234
    %252 = vst.msk [vmem:[#allocation2 + $0x18] sm:$0xff] %vm250, %v235
    %253 = vst.msk [vmem:[#allocation2 + $0x20] sm:$0xff] %vm250, %v236
    %254 = vst.msk [vmem:[#allocation2 + $0x28] sm:$0xff] %vm250, %v237
    %255 = vst.msk [vmem:[#allocation2 + $0x30] sm:$0xff] %vm250, %v238
    %256 = vst.msk [vmem:[#allocation2 + $0x38] sm:$0xff] %vm250, %v239
    %257 = vst.msk [vmem:[#allocation2 + $0x40] sm:$0xff] %vm250, %v240
    %258 = vst.msk [vmem:[#allocation2 + $0x48] sm:$0xff] %vm250, %v241
    %259 = vst.msk [vmem:[#allocation2 + $0x50] sm:$0xff] %vm250, %v242
    %260 = vst.msk [vmem:[#allocation2 + $0x58] sm:$0xff] %vm250, %v243
    %261 = vst.msk [vmem:[#allocation2 + $0x60] sm:$0xff] %vm250, %v244
    %262 = vst.msk [vmem:[#allocation2 + $0x68] sm:$0xff] %vm250, %v245
    %263 = vst.msk [vmem:[#allocation2 + $0x70] sm:$0xff] %vm250, %v246
    %264 = vst.msk [vmem:[#allocation2 + $0x78] sm:$0xff] %vm250, %v247
    %265 = vst.msk [vmem:[#allocation2 + $0x80] sm:$0xff] %vm250, %v248
    %266 = vst.msk [vmem:[#allocation2 + $0x88] sm:$0xff] %vm250, %v249
    %v267 = vld [vmem:[#allocation2 + $0x7] sm:$0xff]
    %v268 = vld [vmem:[#allocation2 + $0xf] sm:$0xff]
    %v269 = vld [vmem:[#allocation2 + $0x17] sm:$0xff]
    %v270 = vld [vmem:[#allocation2 + $0x1f] sm:$0xff]
    %v271 = vld [vmem:[#allocation2 + $0x27] sm:$0xff]
    %v272 = vld [vmem:[#allocation2 + $0x2f] sm:$0xff]
    %v273 = vld [vmem:[#allocation2 + $0x37] sm:$0xff]
    %v274 = vld [vmem:[#allocation2 + $0x3f] sm:$0xff]
    %v275 = vld [vmem:[#allocation2 + $0x47] sm:$0xff]
    %v276 = vld [vmem:[#allocation2 + $0x4f] sm:$0xff]
    %v277 = vld [vmem:[#allocation2 + $0x57] sm:$0xff]
    %v278 = vld [vmem:[#allocation2 + $0x5f] sm:$0xff]
    %v279 = vld [vmem:[#allocation2 + $0x67] sm:$0xff]
    %v280 = vld [vmem:[#allocation2 + $0x6f] sm:$0xff]
    %v281 = vld [vmem:[#allocation2 + $0x77] sm:$0xff]
    %v282 = vld [vmem:[#allocation2 + $0x7f] sm:$0xff]
    %v283 = vld [vmem:[#allocation19] sm:$0xff]
    %v284 = vld [vmem:[#allocation19 + $0x8] sm:$0xff]
    %v285 = vld [vmem:[#allocation19 + $0x10] sm:$0xff]
    %v286 = vld [vmem:[#allocation19 + $0x18] sm:$0xff]
    %v287 = vld [vmem:[#allocation19 + $0x20] sm:$0xff]
    %v288 = vld [vmem:[#allocation19 + $0x28] sm:$0xff]
    %v289 = vld [vmem:[#allocation19 + $0x30] sm:$0xff]
    %v290 = vld [vmem:[#allocation19 + $0x38] sm:$0xff]
    %v291 = vld [vmem:[#allocation19 + $0x40] sm:$0xff]
    %v292 = vld [vmem:[#allocation19 + $0x48] sm:$0xff]
    %v293 = vld [vmem:[#allocation19 + $0x50] sm:$0xff]
    %v294 = vld [vmem:[#allocation19 + $0x58] sm:$0xff]
    %v295 = vld [vmem:[#allocation19 + $0x60] sm:$0xff]
    %v296 = vld [vmem:[#allocation19 + $0x68] sm:$0xff]
    %v297 = vld [vmem:[#allocation19 + $0x70] sm:$0xff]
    %v298 = vld [vmem:[#allocation19 + $0x78] sm:$0xff]
    %v299 = vmul.f32 %v267, %v283
    %v300 = vmul.f32 %v268, %v284
    %v301 = vmul.f32 %v269, %v285
    %v302 = vmul.f32 %v270, %v286
    %v303 = vmul.f32 %v271, %v287
    %v304 = vmul.f32 %v272, %v288
    %v305 = vmul.f32 %v273, %v289
    %v306 = vmul.f32 %v274, %v290
    %v307 = vmul.f32 %v275, %v291
    %v308 = vmul.f32 %v276, %v292
    %v309 = vmul.f32 %v277, %v293
    %v310 = vmul.f32 %v278, %v294
    %v311 = vmul.f32 %v279, %v295
    %v312 = vmul.f32 %v280, %v296
    %v313 = vmul.f32 %v281, %v297
    %v314 = vmul.f32 %v282, %v298
    %v315 = vld [vmem:[#allocation4] sm:$0x1]
    %317 = vset.pattern.permute.xlu0 0
    %318 = vperm.xlu0 %317, %v299
    %v319 = vpop.permute.xlu0 %318
    %322 = vset.pattern.permute.xlu0 0
    %323 = vperm.xlu0 %322, %v300
    %v324 = vpop.permute.xlu0 %323
    %327 = vset.pattern.permute.xlu0 0
    %328 = vperm.xlu0 %327, %v301
    %v329 = vpop.permute.xlu0 %328
    %332 = vset.pattern.permute.xlu0 0
    %333 = vperm.xlu0 %332, %v302
    %v334 = vpop.permute.xlu0 %333
    %337 = vset.pattern.permute.xlu0 0
    %338 = vperm.xlu0 %337, %v303
    %v339 = vpop.permute.xlu0 %338
    %342 = vset.pattern.permute.xlu0 0
    %343 = vperm.xlu0 %342, %v304
    %v344 = vpop.permute.xlu0 %343
    %347 = vset.pattern.permute.xlu0 0
    %348 = vperm.xlu0 %347, %v305
    %v349 = vpop.permute.xlu0 %348
    %352 = vset.pattern.permute.xlu0 0
    %353 = vperm.xlu0 %352, %v306
    %v354 = vpop.permute.xlu0 %353
    %357 = vset.pattern.permute.xlu0 0
    %358 = vperm.xlu0 %357, %v307
    %v359 = vpop.permute.xlu0 %358
    %362 = vset.pattern.permute.xlu0 0
    %363 = vperm.xlu0 %362, %v308
    %v364 = vpop.permute.xlu0 %363
    %367 = vset.pattern.permute.xlu0 0
    %368 = vperm.xlu0 %367, %v309
    %v369 = vpop.permute.xlu0 %368
    %372 = vset.pattern.permute.xlu0 0
    %373 = vperm.xlu0 %372, %v310
    %v374 = vpop.permute.xlu0 %373
    %377 = vset.pattern.permute.xlu0 0
    %378 = vperm.xlu0 %377, %v311
    %v379 = vpop.permute.xlu0 %378
    %382 = vset.pattern.permute.xlu0 0
    %383 = vperm.xlu0 %382, %v312
    %v384 = vpop.permute.xlu0 %383
    %387 = vset.pattern.permute.xlu0 0
    %388 = vperm.xlu0 %387, %v313
    %v389 = vpop.permute.xlu0 %388
    %392 = vset.pattern.permute.xlu0 0
    %393 = vperm.xlu0 %392, %v314
    %v394 = vpop.permute.xlu0 %393
    %v397 = vlaneseq
    %v398 = vshrl.u32 %v397, 7
    %v399 = vsub.s32 0, %v398
    %v400 = vrot.slane %v315, %v399
    %v402 = vmul.f32 %v319, %v400
    %v403 = vmul.f32 %v324, %v400
    %v404 = vmul.f32 %v329, %v400
    %v405 = vmul.f32 %v334, %v400
    %v406 = vmul.f32 %v339, %v400
    %v407 = vmul.f32 %v344, %v400
    %v408 = vmul.f32 %v349, %v400
    %v409 = vmul.f32 %v354, %v400
    %v410 = vmul.f32 %v359, %v400
    %v411 = vmul.f32 %v364, %v400
    %v412 = vmul.f32 %v369, %v400
    %v413 = vmul.f32 %v374, %v400
    %v414 = vmul.f32 %v379, %v400
    %v415 = vmul.f32 %v384, %v400
    %v416 = vmul.f32 %v389, %v400
    %v417 = vmul.f32 %v394, %v400
    %v418 = vld [vmem:[#allocation2 + $0x8] sm:$0xff]
    %v419 = vld [vmem:[#allocation2 + $0x10] sm:$0xff]
    %v420 = vld [vmem:[#allocation2 + $0x18] sm:$0xff]
    %v421 = vld [vmem:[#allocation2 + $0x20] sm:$0xff]
    %v422 = vld [vmem:[#allocation2 + $0x28] sm:$0xff]
    %v423 = vld [vmem:[#allocation2 + $0x30] sm:$0xff]
    %v424 = vld [vmem:[#allocation2 + $0x38] sm:$0xff]
    %v425 = vld [vmem:[#allocation2 + $0x40] sm:$0xff]
    %v426 = vld [vmem:[#allocation2 + $0x48] sm:$0xff]
    %v427 = vld [vmem:[#allocation2 + $0x50] sm:$0xff]
    %v428 = vld [vmem:[#allocation2 + $0x58] sm:$0xff]
    %v429 = vld [vmem:[#allocation2 + $0x60] sm:$0xff]
    %v430 = vld [vmem:[#allocation2 + $0x68] sm:$0xff]
    %v431 = vld [vmem:[#allocation2 + $0x70] sm:$0xff]
    %v432 = vld [vmem:[#allocation2 + $0x78] sm:$0xff]
    %v433 = vld [vmem:[#allocation2 + $0x80] sm:$0xff]
    %450 = vrot.lane.b32.xlu0 %v283, 127
    %v451 = vpop.permute.xlu0 %450
    %452 = vrot.lane.b32.xlu0 %v284, 127
    %v453 = vpop.permute.xlu0 %452
    %454 = vrot.lane.b32.xlu0 %v285, 127
    %v455 = vpop.permute.xlu0 %454
    %456 = vrot.lane.b32.xlu0 %v286, 127
    %v457 = vpop.permute.xlu0 %456
    %458 = vrot.lane.b32.xlu0 %v287, 127
    %v459 = vpop.permute.xlu0 %458
    %460 = vrot.lane.b32.xlu0 %v288, 127
    %v461 = vpop.permute.xlu0 %460
    %462 = vrot.lane.b32.xlu0 %v289, 127
    %v463 = vpop.permute.xlu0 %462
    %464 = vrot.lane.b32.xlu0 %v290, 127
    %v465 = vpop.permute.xlu0 %464
    %466 = vrot.lane.b32.xlu0 %v291, 127
    %v467 = vpop.permute.xlu0 %466
    %468 = vrot.lane.b32.xlu0 %v292, 127
    %v469 = vpop.permute.xlu0 %468
    %470 = vrot.lane.b32.xlu0 %v293, 127
    %v471 = vpop.permute.xlu0 %470
    %472 = vrot.lane.b32.xlu0 %v294, 127
    %v473 = vpop.permute.xlu0 %472
    %474 = vrot.lane.b32.xlu0 %v295, 127
    %v475 = vpop.permute.xlu0 %474
    %476 = vrot.lane.b32.xlu0 %v296, 127
    %v477 = vpop.permute.xlu0 %476
    %478 = vrot.lane.b32.xlu0 %v297, 127
    %v479 = vpop.permute.xlu0 %478
    %480 = vrot.lane.b32.xlu0 %v298, 127
    %v481 = vpop.permute.xlu0 %480
    %v498 = vmul.f32 %v418, %v451
    %v499 = vmul.f32 %v419, %v453
    %v500 = vmul.f32 %v420, %v455
    %v501 = vmul.f32 %v421, %v457
    %v502 = vmul.f32 %v422, %v459
    %v503 = vmul.f32 %v423, %v461
    %v504 = vmul.f32 %v424, %v463
    %v505 = vmul.f32 %v425, %v465
    %v506 = vmul.f32 %v426, %v467
    %v507 = vmul.f32 %v427, %v469
    %v508 = vmul.f32 %v428, %v471
    %v509 = vmul.f32 %v429, %v473
    %v510 = vmul.f32 %v430, %v475
    %v511 = vmul.f32 %v431, %v477
    %v512 = vmul.f32 %v432, %v479
    %v513 = vmul.f32 %v433, %v481
    %s514 = scalar_lea.vmem [#allocation4], 1
    %v515 = vld [vmem:[%s514] sm:$0x1]
    %517 = vset.pattern.permute.xlu0 0
    %518 = vperm.xlu0 %517, %v498
    %v519 = vpop.permute.xlu0 %518
    %522 = vset.pattern.permute.xlu0 0
    %523 = vperm.xlu0 %522, %v499
    %v524 = vpop.permute.xlu0 %523
    %527 = vset.pattern.permute.xlu0 0
    %528 = vperm.xlu0 %527, %v500
    %v529 = vpop.permute.xlu0 %528
    %532 = vset.pattern.permute.xlu0 0
    %533 = vperm.xlu0 %532, %v501
    %v534 = vpop.permute.xlu0 %533
    %537 = vset.pattern.permute.xlu0 0
    %538 = vperm.xlu0 %537, %v502
    %v539 = vpop.permute.xlu0 %538
    %542 = vset.pattern.permute.xlu0 0
    %543 = vperm.xlu0 %542, %v503
    %v544 = vpop.permute.xlu0 %543
    %547 = vset.pattern.permute.xlu0 0
    %548 = vperm.xlu0 %547, %v504
    %v549 = vpop.permute.xlu0 %548
    %552 = vset.pattern.permute.xlu0 0
    %553 = vperm.xlu0 %552, %v505
    %v554 = vpop.permute.xlu0 %553
    %557 = vset.pattern.permute.xlu0 0
    %558 = vperm.xlu0 %557, %v506
    %v559 = vpop.permute.xlu0 %558
    %562 = vset.pattern.permute.xlu0 0
    %563 = vperm.xlu0 %562, %v507
    %v564 = vpop.permute.xlu0 %563
    %567 = vset.pattern.permute.xlu0 0
    %568 = vperm.xlu0 %567, %v508
    %v569 = vpop.permute.xlu0 %568
    %572 = vset.pattern.permute.xlu0 0
    %573 = vperm.xlu0 %572, %v509
    %v574 = vpop.permute.xlu0 %573
    %577 = vset.pattern.permute.xlu0 0
    %578 = vperm.xlu0 %577, %v510
    %v579 = vpop.permute.xlu0 %578
    %582 = vset.pattern.permute.xlu0 0
    %583 = vperm.xlu0 %582, %v511
    %v584 = vpop.permute.xlu0 %583
    %587 = vset.pattern.permute.xlu0 0
    %588 = vperm.xlu0 %587, %v512
    %v589 = vpop.permute.xlu0 %588
    %592 = vset.pattern.permute.xlu0 0
    %593 = vperm.xlu0 %592, %v513
    %v594 = vpop.permute.xlu0 %593
    %v597 = vlaneseq
    %v598 = vshrl.u32 %v597, 7
    %v599 = vsub.s32 0, %v598
    %v600 = vrot.slane %v515, %v599
    %v602 = vmul.f32 %v519, %v600
    %v603 = vmul.f32 %v524, %v600
    %v604 = vmul.f32 %v529, %v600
    %v605 = vmul.f32 %v534, %v600
    %v606 = vmul.f32 %v539, %v600
    %v607 = vmul.f32 %v544, %v600
    %v608 = vmul.f32 %v549, %v600
    %v609 = vmul.f32 %v554, %v600
    %v610 = vmul.f32 %v559, %v600
    %v611 = vmul.f32 %v564, %v600
    %v612 = vmul.f32 %v569, %v600
    %v613 = vmul.f32 %v574, %v600
    %v614 = vmul.f32 %v579, %v600
    %v615 = vmul.f32 %v584, %v600
    %v616 = vmul.f32 %v589, %v600
    %v617 = vmul.f32 %v594, %v600
    %v618 = vadd.f32 %v402, %v602
    %v619 = vadd.f32 %v403, %v603
    %v620 = vadd.f32 %v404, %v604
    %v621 = vadd.f32 %v405, %v605
    %v622 = vadd.f32 %v406, %v606
    %v623 = vadd.f32 %v407, %v607
    %v624 = vadd.f32 %v408, %v608
    %v625 = vadd.f32 %v409, %v609
    %v626 = vadd.f32 %v410, %v610
    %v627 = vadd.f32 %v411, %v611
    %v628 = vadd.f32 %v412, %v612
    %v629 = vadd.f32 %v413, %v613
    %v630 = vadd.f32 %v414, %v614
    %v631 = vadd.f32 %v415, %v615
    %v632 = vadd.f32 %v416, %v616
    %v633 = vadd.f32 %v417, %v617
    %v634 = vld [vmem:[#allocation2 + $0x9] sm:$0xff]
    %v635 = vld [vmem:[#allocation2 + $0x11] sm:$0xff]
    %v636 = vld [vmem:[#allocation2 + $0x19] sm:$0xff]
    %v637 = vld [vmem:[#allocation2 + $0x21] sm:$0xff]
    %v638 = vld [vmem:[#allocation2 + $0x29] sm:$0xff]
    %v639 = vld [vmem:[#allocation2 + $0x31] sm:$0xff]
    %v640 = vld [vmem:[#allocation2 + $0x39] sm:$0xff]
    %v641 = vld [vmem:[#allocation2 + $0x41] sm:$0xff]
    %v642 = vld [vmem:[#allocation2 + $0x49] sm:$0xff]
    %v643 = vld [vmem:[#allocation2 + $0x51] sm:$0xff]
    %v644 = vld [vmem:[#allocation2 + $0x59] sm:$0xff]
    %v645 = vld [vmem:[#allocation2 + $0x61] sm:$0xff]
    %v646 = vld [vmem:[#allocation2 + $0x69] sm:$0xff]
    %v647 = vld [vmem:[#allocation2 + $0x71] sm:$0xff]
    %v648 = vld [vmem:[#allocation2 + $0x79] sm:$0xff]
    %v649 = vld [vmem:[#allocation2 + $0x81] sm:$0xff]
    %650 = vrot.lane.b32.xlu0 %v283, 126
    %v651 = vpop.permute.xlu0 %650
    %652 = vrot.lane.b32.xlu0 %v284, 126
    %v653 = vpop.permute.xlu0 %652
    %654 = vrot.lane.b32.xlu0 %v285, 126
    %v655 = vpop.permute.xlu0 %654
    %656 = vrot.lane.b32.xlu0 %v286, 126
    %v657 = vpop.permute.xlu0 %656
    %658 = vrot.lane.b32.xlu0 %v287, 126
    %v659 = vpop.permute.xlu0 %658
    %660 = vrot.lane.b32.xlu0 %v288, 126
    %v661 = vpop.permute.xlu0 %660
    %662 = vrot.lane.b32.xlu0 %v289, 126
    %v663 = vpop.permute.xlu0 %662
    %664 = vrot.lane.b32.xlu0 %v290, 126
    %v665 = vpop.permute.xlu0 %664
    %666 = vrot.lane.b32.xlu0 %v291, 126
    %v667 = vpop.permute.xlu0 %666
    %668 = vrot.lane.b32.xlu0 %v292, 126
    %v669 = vpop.permute.xlu0 %668
    %670 = vrot.lane.b32.xlu0 %v293, 126
    %v671 = vpop.permute.xlu0 %670
    %672 = vrot.lane.b32.xlu0 %v294, 126
    %v673 = vpop.permute.xlu0 %672
    %674 = vrot.lane.b32.xlu0 %v295, 126
    %v675 = vpop.permute.xlu0 %674
    %676 = vrot.lane.b32.xlu0 %v296, 126
    %v677 = vpop.permute.xlu0 %676
    %678 = vrot.lane.b32.xlu0 %v297, 126
    %v679 = vpop.permute.xlu0 %678
    %680 = vrot.lane.b32.xlu0 %v298, 126
    %v681 = vpop.permute.xlu0 %680
    %v698 = vmul.f32 %v634, %v651
    %v699 = vmul.f32 %v635, %v653
    %v700 = vmul.f32 %v636, %v655
    %v701 = vmul.f32 %v637, %v657
    %v702 = vmul.f32 %v638, %v659
    %v703 = vmul.f32 %v639, %v661
    %v704 = vmul.f32 %v640, %v663
    %v705 = vmul.f32 %v641, %v665
    %v706 = vmul.f32 %v642, %v667
    %v707 = vmul.f32 %v643, %v669
    %v708 = vmul.f32 %v644, %v671
    %v709 = vmul.f32 %v645, %v673
    %v710 = vmul.f32 %v646, %v675
    %v711 = vmul.f32 %v647, %v677
    %v712 = vmul.f32 %v648, %v679
    %v713 = vmul.f32 %v649, %v681
    %s714 = scalar_lea.vmem [#allocation4], 2
    %v715 = vld [vmem:[%s714] sm:$0x1]
    %717 = vset.pattern.permute.xlu0 0
    %718 = vperm.xlu0 %717, %v698
    %v719 = vpop.permute.xlu0 %718
    %722 = vset.pattern.permute.xlu0 0
    %723 = vperm.xlu0 %722, %v699
    %v724 = vpop.permute.xlu0 %723
    %727 = vset.pattern.permute.xlu0 0
    %728 = vperm.xlu0 %727, %v700
    %v729 = vpop.permute.xlu0 %728
    %732 = vset.pattern.permute.xlu0 0
    %733 = vperm.xlu0 %732, %v701
    %v734 = vpop.permute.xlu0 %733
    %737 = vset.pattern.permute.xlu0 0
    %738 = vperm.xlu0 %737, %v702
    %v739 = vpop.permute.xlu0 %738
    %742 = vset.pattern.permute.xlu0 0
    %743 = vperm.xlu0 %742, %v703
    %v744 = vpop.permute.xlu0 %743
    %747 = vset.pattern.permute.xlu0 0
    %748 = vperm.xlu0 %747, %v704
    %v749 = vpop.permute.xlu0 %748
    %752 = vset.pattern.permute.xlu0 0
    %753 = vperm.xlu0 %752, %v705
    %v754 = vpop.permute.xlu0 %753
    %757 = vset.pattern.permute.xlu0 0
    %758 = vperm.xlu0 %757, %v706
    %v759 = vpop.permute.xlu0 %758
    %762 = vset.pattern.permute.xlu0 0
    %763 = vperm.xlu0 %762, %v707
    %v764 = vpop.permute.xlu0 %763
    %767 = vset.pattern.permute.xlu0 0
    %768 = vperm.xlu0 %767, %v708
    %v769 = vpop.permute.xlu0 %768
    %772 = vset.pattern.permute.xlu0 0
    %773 = vperm.xlu0 %772, %v709
    %v774 = vpop.permute.xlu0 %773
    %777 = vset.pattern.permute.xlu0 0
    %778 = vperm.xlu0 %777, %v710
    %v779 = vpop.permute.xlu0 %778
    %782 = vset.pattern.permute.xlu0 0
    %783 = vperm.xlu0 %782, %v711
    %v784 = vpop.permute.xlu0 %783
    %787 = vset.pattern.permute.xlu0 0
    %788 = vperm.xlu0 %787, %v712
    %v789 = vpop.permute.xlu0 %788
    %792 = vset.pattern.permute.xlu0 0
    %793 = vperm.xlu0 %792, %v713
    %v794 = vpop.permute.xlu0 %793
    %v797 = vlaneseq
    %v798 = vshrl.u32 %v797, 7
    %v799 = vsub.s32 0, %v798
    %v800 = vrot.slane %v715, %v799
    %v802 = vmul.f32 %v719, %v800
    %v803 = vmul.f32 %v724, %v800
    %v804 = vmul.f32 %v729, %v800
    %v805 = vmul.f32 %v734, %v800
    %v806 = vmul.f32 %v739, %v800
    %v807 = vmul.f32 %v744, %v800
    %v808 = vmul.f32 %v749, %v800
    %v809 = vmul.f32 %v754, %v800
    %v810 = vmul.f32 %v759, %v800
    %v811 = vmul.f32 %v764, %v800
    %v812 = vmul.f32 %v769, %v800
    %v813 = vmul.f32 %v774, %v800
    %v814 = vmul.f32 %v779, %v800
    %v815 = vmul.f32 %v784, %v800
    %v816 = vmul.f32 %v789, %v800
    %v817 = vmul.f32 %v794, %v800
    %v818 = vadd.f32 %v618, %v802
    %v819 = vadd.f32 %v619, %v803
    %v820 = vadd.f32 %v620, %v804
    %v821 = vadd.f32 %v621, %v805
    %v822 = vadd.f32 %v622, %v806
    %v823 = vadd.f32 %v623, %v807
    %v824 = vadd.f32 %v624, %v808
    %v825 = vadd.f32 %v625, %v809
    %v826 = vadd.f32 %v626, %v810
    %v827 = vadd.f32 %v627, %v811
    %v828 = vadd.f32 %v628, %v812
    %v829 = vadd.f32 %v629, %v813
    %v830 = vadd.f32 %v630, %v814
    %v831 = vadd.f32 %v631, %v815
    %v832 = vadd.f32 %v632, %v816
    %v833 = vadd.f32 %v633, %v817
    %v834 = vld [vmem:[#allocation2 + $0xf] sm:$0xff]
    %v835 = vld [vmem:[#allocation2 + $0x17] sm:$0xff]
    %v836 = vld [vmem:[#allocation2 + $0x1f] sm:$0xff]
    %v837 = vld [vmem:[#allocation2 + $0x27] sm:$0xff]
    %v838 = vld [vmem:[#allocation2 + $0x2f] sm:$0xff]
    %v839 = vld [vmem:[#allocation2 + $0x37] sm:$0xff]
    %v840 = vld [vmem:[#allocation2 + $0x3f] sm:$0xff]
    %v841 = vld [vmem:[#allocation2 + $0x47] sm:$0xff]
    %v842 = vld [vmem:[#allocation2 + $0x4f] sm:$0xff]
    %v843 = vld [vmem:[#allocation2 + $0x57] sm:$0xff]
    %v844 = vld [vmem:[#allocation2 + $0x5f] sm:$0xff]
    %v845 = vld [vmem:[#allocation2 + $0x67] sm:$0xff]
    %v846 = vld [vmem:[#allocation2 + $0x6f] sm:$0xff]
    %v847 = vld [vmem:[#allocation2 + $0x77] sm:$0xff]
    %v848 = vld [vmem:[#allocation2 + $0x7f] sm:$0xff]
    %v849 = vld [vmem:[#allocation2 + $0x87] sm:$0xff]
    %850 = vrot.lane.b32.xlu0 %v283, 125
    %v851 = vpop.permute.xlu0 %850
    %852 = vrot.lane.b32.xlu0 %v284, 125
    %v853 = vpop.permute.xlu0 %852
    %854 = vrot.lane.b32.xlu0 %v285, 125
    %v855 = vpop.permute.xlu0 %854
    %856 = vrot.lane.b32.xlu0 %v286, 125
    %v857 = vpop.permute.xlu0 %856
    %858 = vrot.lane.b32.xlu0 %v287, 125
    %v859 = vpop.permute.xlu0 %858
    %860 = vrot.lane.b32.xlu0 %v288, 125
    %v861 = vpop.permute.xlu0 %860
    %862 = vrot.lane.b32.xlu0 %v289, 125
    %v863 = vpop.permute.xlu0 %862
    %864 = vrot.lane.b32.xlu0 %v290, 125
    %v865 = vpop.permute.xlu0 %864
    %866 = vrot.lane.b32.xlu0 %v291, 125
    %v867 = vpop.permute.xlu0 %866
    %868 = vrot.lane.b32.xlu0 %v292, 125
    %v869 = vpop.permute.xlu0 %868
    %870 = vrot.lane.b32.xlu0 %v293, 125
    %v871 = vpop.permute.xlu0 %870
    %872 = vrot.lane.b32.xlu0 %v294, 125
    %v873 = vpop.permute.xlu0 %872
    %874 = vrot.lane.b32.xlu0 %v295, 125
    %v875 = vpop.permute.xlu0 %874
    %876 = vrot.lane.b32.xlu0 %v296, 125
    %v877 = vpop.permute.xlu0 %876
    %878 = vrot.lane.b32.xlu0 %v297, 125
    %v879 = vpop.permute.xlu0 %878
    %880 = vrot.lane.b32.xlu0 %v298, 125
    %v881 = vpop.permute.xlu0 %880
    %v898 = vmul.f32 %v834, %v851
    %v899 = vmul.f32 %v835, %v853
    %v900 = vmul.f32 %v836, %v855
    %v901 = vmul.f32 %v837, %v857
    %v902 = vmul.f32 %v838, %v859
    %v903 = vmul.f32 %v839, %v861
    %v904 = vmul.f32 %v840, %v863
    %v905 = vmul.f32 %v841, %v865
    %v906 = vmul.f32 %v842, %v867
    %v907 = vmul.f32 %v843, %v869
    %v908 = vmul.f32 %v844, %v871
    %v909 = vmul.f32 %v845, %v873
    %v910 = vmul.f32 %v846, %v875
    %v911 = vmul.f32 %v847, %v877
    %v912 = vmul.f32 %v848, %v879
    %v913 = vmul.f32 %v849, %v881
    %s914 = scalar_lea.vmem [#allocation4], 3
    %v915 = vld [vmem:[%s914] sm:$0x1]
    %917 = vset.pattern.permute.xlu0 0
    %918 = vperm.xlu0 %917, %v898
    %v919 = vpop.permute.xlu0 %918
    %922 = vset.pattern.permute.xlu0 0
    %923 = vperm.xlu0 %922, %v899
    %v924 = vpop.permute.xlu0 %923
    %927 = vset.pattern.permute.xlu0 0
    %928 = vperm.xlu0 %927, %v900
    %v929 = vpop.permute.xlu0 %928
    %932 = vset.pattern.permute.xlu0 0
    %933 = vperm.xlu0 %932, %v901
    %v934 = vpop.permute.xlu0 %933
    %937 = vset.pattern.permute.xlu0 0
    %938 = vperm.xlu0 %937, %v902
    %v939 = vpop.permute.xlu0 %938
    %942 = vset.pattern.permute.xlu0 0
    %943 = vperm.xlu0 %942, %v903
    %v944 = vpop.permute.xlu0 %943
    %947 = vset.pattern.permute.xlu0 0
    %948 = vperm.xlu0 %947, %v904
    %v949 = vpop.permute.xlu0 %948
    %952 = vset.pattern.permute.xlu0 0
    %953 = vperm.xlu0 %952, %v905
    %v954 = vpop.permute.xlu0 %953
    %957 = vset.pattern.permute.xlu0 0
    %958 = vperm.xlu0 %957, %v906
    %v959 = vpop.permute.xlu0 %958
    %962 = vset.pattern.permute.xlu0 0
    %963 = vperm.xlu0 %962, %v907
    %v964 = vpop.permute.xlu0 %963
    %967 = vset.pattern.permute.xlu0 0
    %968 = vperm.xlu0 %967, %v908
    %v969 = vpop.permute.xlu0 %968
    %972 = vset.pattern.permute.xlu0 0
    %973 = vperm.xlu0 %972, %v909
    %v974 = vpop.permute.xlu0 %973
    %977 = vset.pattern.permute.xlu0 0
    %978 = vperm.xlu0 %977, %v910
    %v979 = vpop.permute.xlu0 %978
    %982 = vset.pattern.permute.xlu0 0
    %983 = vperm.xlu0 %982, %v911
    %v984 = vpop.permute.xlu0 %983
    %987 = vset.pattern.permute.xlu0 0
    %988 = vperm.xlu0 %987, %v912
    %v989 = vpop.permute.xlu0 %988
    %992 = vset.pattern.permute.xlu0 0
    %993 = vperm.xlu0 %992, %v913
    %v994 = vpop.permute.xlu0 %993
    %v997 = vlaneseq
    %v998 = vshrl.u32 %v997, 7
    %v999 = vsub.s32 0, %v998
    %v1000 = vrot.slane %v915, %v999
    %v1002 = vmul.f32 %v919, %v1000
    %v1003 = vmul.f32 %v924, %v1000
    %v1004 = vmul.f32 %v929, %v1000
    %v1005 = vmul.f32 %v934, %v1000
    %v1006 = vmul.f32 %v939, %v1000
    %v1007 = vmul.f32 %v944, %v1000
    %v1008 = vmul.f32 %v949, %v1000
    %v1009 = vmul.f32 %v954, %v1000
    %v1010 = vmul.f32 %v959, %v1000
    %v1011 = vmul.f32 %v964, %v1000
    %v1012 = vmul.f32 %v969, %v1000
    %v1013 = vmul.f32 %v974, %v1000
    %v1014 = vmul.f32 %v979, %v1000
    %v1015 = vmul.f32 %v984, %v1000
    %v1016 = vmul.f32 %v989, %v1000
    %v1017 = vmul.f32 %v994, %v1000
    %v1018 = vadd.f32 %v818, %v1002
    %v1019 = vadd.f32 %v819, %v1003
    %v1020 = vadd.f32 %v820, %v1004
    %v1021 = vadd.f32 %v821, %v1005
    %v1022 = vadd.f32 %v822, %v1006
    %v1023 = vadd.f32 %v823, %v1007
    %v1024 = vadd.f32 %v824, %v1008
    %v1025 = vadd.f32 %v825, %v1009
    %v1026 = vadd.f32 %v826, %v1010
    %v1027 = vadd.f32 %v827, %v1011
    %v1028 = vadd.f32 %v828, %v1012
    %v1029 = vadd.f32 %v829, %v1013
    %v1030 = vadd.f32 %v830, %v1014
    %v1031 = vadd.f32 %v831, %v1015
    %v1032 = vadd.f32 %v832, %v1016
    %v1033 = vadd.f32 %v833, %v1017
    %v1034 = vld [vmem:[#allocation2 + $0x10] sm:$0xff]
    %v1035 = vld [vmem:[#allocation2 + $0x18] sm:$0xff]
    %v1036 = vld [vmem:[#allocation2 + $0x20] sm:$0xff]
    %v1037 = vld [vmem:[#allocation2 + $0x28] sm:$0xff]
    %v1038 = vld [vmem:[#allocation2 + $0x30] sm:$0xff]
    %v1039 = vld [vmem:[#allocation2 + $0x38] sm:$0xff]
    %v1040 = vld [vmem:[#allocation2 + $0x40] sm:$0xff]
    %v1041 = vld [vmem:[#allocation2 + $0x48] sm:$0xff]
    %v1042 = vld [vmem:[#allocation2 + $0x50] sm:$0xff]
    %v1043 = vld [vmem:[#allocation2 + $0x58] sm:$0xff]
    %v1044 = vld [vmem:[#allocation2 + $0x60] sm:$0xff]
    %v1045 = vld [vmem:[#allocation2 + $0x68] sm:$0xff]
    %v1046 = vld [vmem:[#allocation2 + $0x70] sm:$0xff]
    %v1047 = vld [vmem:[#allocation2 + $0x78] sm:$0xff]
    %v1048 = vld [vmem:[#allocation2 + $0x80] sm:$0xff]
    %v1049 = vld [vmem:[#allocation2 + $0x88] sm:$0xff]
    %s1050 = scalar_lea.vmem [#allocation4], 4
    %v1051 = vld [vmem:[%s1050] sm:$0x1]
    %1053 = vset.pattern.permute.xlu0 0
    %1054 = vperm.xlu0 %1053, %v1034
    %v1055 = vpop.permute.xlu0 %1054
    %1058 = vset.pattern.permute.xlu0 0
    %1059 = vperm.xlu0 %1058, %v1035
    %v1060 = vpop.permute.xlu0 %1059
    %1063 = vset.pattern.permute.xlu0 0
    %1064 = vperm.xlu0 %1063, %v1036
    %v1065 = vpop.permute.xlu0 %1064
    %1068 = vset.pattern.permute.xlu0 0
    %1069 = vperm.xlu0 %1068, %v1037
    %v1070 = vpop.permute.xlu0 %1069
    %1073 = vset.pattern.permute.xlu0 0
    %1074 = vperm.xlu0 %1073, %v1038
    %v1075 = vpop.permute.xlu0 %1074
    %1078 = vset.pattern.permute.xlu0 0
    %1079 = vperm.xlu0 %1078, %v1039
    %v1080 = vpop.permute.xlu0 %1079
    %1083 = vset.pattern.permute.xlu0 0
    %1084 = vperm.xlu0 %1083, %v1040
    %v1085 = vpop.permute.xlu0 %1084
    %1088 = vset.pattern.permute.xlu0 0
    %1089 = vperm.xlu0 %1088, %v1041
    %v1090 = vpop.permute.xlu0 %1089
    %1093 = vset.pattern.permute.xlu0 0
    %1094 = vperm.xlu0 %1093, %v1042
    %v1095 = vpop.permute.xlu0 %1094
    %1098 = vset.pattern.permute.xlu0 0
    %1099 = vperm.xlu0 %1098, %v1043
    %v1100 = vpop.permute.xlu0 %1099
    %1103 = vset.pattern.permute.xlu0 0
    %1104 = vperm.xlu0 %1103, %v1044
    %v1105 = vpop.permute.xlu0 %1104
    %1108 = vset.pattern.permute.xlu0 0
    %1109 = vperm.xlu0 %1108, %v1045
    %v1110 = vpop.permute.xlu0 %1109
    %1113 = vset.pattern.permute.xlu0 0
    %1114 = vperm.xlu0 %1113, %v1046
    %v1115 = vpop.permute.xlu0 %1114
    %1118 = vset.pattern.permute.xlu0 0
    %1119 = vperm.xlu0 %1118, %v1047
    %v1120 = vpop.permute.xlu0 %1119
    %1123 = vset.pattern.permute.xlu0 0
    %1124 = vperm.xlu0 %1123, %v1048
    %v1125 = vpop.permute.xlu0 %1124
    %1128 = vset.pattern.permute.xlu0 0
    %1129 = vperm.xlu0 %1128, %v1049
    %v1130 = vpop.permute.xlu0 %1129
    %v1133 = vlaneseq
    %v1134 = vshrl.u32 %v1133, 7
    %v1135 = vsub.s32 0, %v1134
    %v1136 = vrot.slane %v1051, %v1135
    %v1138 = vmul.f32 %v1055, %v1136
    %v1139 = vmul.f32 %v1060, %v1136
    %v1140 = vmul.f32 %v1065, %v1136
    %v1141 = vmul.f32 %v1070, %v1136
    %v1142 = vmul.f32 %v1075, %v1136
    %v1143 = vmul.f32 %v1080, %v1136
    %v1144 = vmul.f32 %v1085, %v1136
    %v1145 = vmul.f32 %v1090, %v1136
    %v1146 = vmul.f32 %v1095, %v1136
    %v1147 = vmul.f32 %v1100, %v1136
    %v1148 = vmul.f32 %v1105, %v1136
    %v1149 = vmul.f32 %v1110, %v1136
    %v1150 = vmul.f32 %v1115, %v1136
    %v1151 = vmul.f32 %v1120, %v1136
    %v1152 = vmul.f32 %v1125, %v1136
    %v1153 = vmul.f32 %v1130, %v1136
    %v1154 = vadd.f32 %v1018, %v1138
    %v1155 = vadd.f32 %v1019, %v1139
    %v1156 = vadd.f32 %v1020, %v1140
    %v1157 = vadd.f32 %v1021, %v1141
    %v1158 = vadd.f32 %v1022, %v1142
    %v1159 = vadd.f32 %v1023, %v1143
    %v1160 = vadd.f32 %v1024, %v1144
    %v1161 = vadd.f32 %v1025, %v1145
    %v1162 = vadd.f32 %v1026, %v1146
    %v1163 = vadd.f32 %v1027, %v1147
    %v1164 = vadd.f32 %v1028, %v1148
    %v1165 = vadd.f32 %v1029, %v1149
    %v1166 = vadd.f32 %v1030, %v1150
    %v1167 = vadd.f32 %v1031, %v1151
    %v1168 = vadd.f32 %v1032, %v1152
    %v1169 = vadd.f32 %v1033, %v1153
    %v1170 = vld [vmem:[#allocation2 + $0x11] sm:$0xff]
    %v1171 = vld [vmem:[#allocation2 + $0x19] sm:$0xff]
    %v1172 = vld [vmem:[#allocation2 + $0x21] sm:$0xff]
    %v1173 = vld [vmem:[#allocation2 + $0x29] sm:$0xff]
    %v1174 = vld [vmem:[#allocation2 + $0x31] sm:$0xff]
    %v1175 = vld [vmem:[#allocation2 + $0x39] sm:$0xff]
    %v1176 = vld [vmem:[#allocation2 + $0x41] sm:$0xff]
    %v1177 = vld [vmem:[#allocation2 + $0x49] sm:$0xff]
    %v1178 = vld [vmem:[#allocation2 + $0x51] sm:$0xff]
    %v1179 = vld [vmem:[#allocation2 + $0x59] sm:$0xff]
    %v1180 = vld [vmem:[#allocation2 + $0x61] sm:$0xff]
    %v1181 = vld [vmem:[#allocation2 + $0x69] sm:$0xff]
    %v1182 = vld [vmem:[#allocation2 + $0x71] sm:$0xff]
    %v1183 = vld [vmem:[#allocation2 + $0x79] sm:$0xff]
    %v1184 = vld [vmem:[#allocation2 + $0x81] sm:$0xff]
    %v1185 = vld [vmem:[#allocation2 + $0x89] sm:$0xff]
    %1186 = vrot.lane.b32.xlu0 %v283, 123
    %v1187 = vpop.permute.xlu0 %1186
    %1188 = vrot.lane.b32.xlu0 %v284, 123
    %v1189 = vpop.permute.xlu0 %1188
    %1190 = vrot.lane.b32.xlu0 %v285, 123
    %v1191 = vpop.permute.xlu0 %1190
    %1192 = vrot.lane.b32.xlu0 %v286, 123
    %v1193 = vpop.permute.xlu0 %1192
    %1194 = vrot.lane.b32.xlu0 %v287, 123
    %v1195 = vpop.permute.xlu0 %1194
    %1196 = vrot.lane.b32.xlu0 %v288, 123
    %v1197 = vpop.permute.xlu0 %1196
    %1198 = vrot.lane.b32.xlu0 %v289, 123
    %v1199 = vpop.permute.xlu0 %1198
    %1200 = vrot.lane.b32.xlu0 %v290, 123
    %v1201 = vpop.permute.xlu0 %1200
    %1202 = vrot.lane.b32.xlu0 %v291, 123
    %v1203 = vpop.permute.xlu0 %1202
    %1204 = vrot.lane.b32.xlu0 %v292, 123
    %v1205 = vpop.permute.xlu0 %1204
    %1206 = vrot.lane.b32.xlu0 %v293, 123
    %v1207 = vpop.permute.xlu0 %1206
    %1208 = vrot.lane.b32.xlu0 %v294, 123
    %v1209 = vpop.permute.xlu0 %1208
    %1210 = vrot.lane.b32.xlu0 %v295, 123
    %v1211 = vpop.permute.xlu0 %1210
    %1212 = vrot.lane.b32.xlu0 %v296, 123
    %v1213 = vpop.permute.xlu0 %1212
    %1214 = vrot.lane.b32.xlu0 %v297, 123
    %v1215 = vpop.permute.xlu0 %1214
    %1216 = vrot.lane.b32.xlu0 %v298, 123
    %v1217 = vpop.permute.xlu0 %1216
    %v1234 = vmul.f32 %v1170, %v1187
    %v1235 = vmul.f32 %v1171, %v1189
    %v1236 = vmul.f32 %v1172, %v1191
    %v1237 = vmul.f32 %v1173, %v1193
    %v1238 = vmul.f32 %v1174, %v1195
    %v1239 = vmul.f32 %v1175, %v1197
    %v1240 = vmul.f32 %v1176, %v1199
    %v1241 = vmul.f32 %v1177, %v1201
    %v1242 = vmul.f32 %v1178, %v1203
    %v1243 = vmul.f32 %v1179, %v1205
    %v1244 = vmul.f32 %v1180, %v1207
    %v1245 = vmul.f32 %v1181, %v1209
    %v1246 = vmul.f32 %v1182, %v1211
    %v1247 = vmul.f32 %v1183, %v1213
    %v1248 = vmul.f32 %v1184, %v1215
    %v1249 = vmul.f32 %v1185, %v1217
    %s1250 = scalar_lea.vmem [#allocation4], 5
    %v1251 = vld [vmem:[%s1250] sm:$0x1]
    %1253 = vset.pattern.permute.xlu0 0
    %1254 = vperm.xlu0 %1253, %v1234
    %v1255 = vpop.permute.xlu0 %1254
    %1258 = vset.pattern.permute.xlu0 0
    %1259 = vperm.xlu0 %1258, %v1235
    %v1260 = vpop.permute.xlu0 %1259
    %1263 = vset.pattern.permute.xlu0 0
    %1264 = vperm.xlu0 %1263, %v1236
    %v1265 = vpop.permute.xlu0 %1264
    %1268 = vset.pattern.permute.xlu0 0
    %1269 = vperm.xlu0 %1268, %v1237
    %v1270 = vpop.permute.xlu0 %1269
    %1273 = vset.pattern.permute.xlu0 0
    %1274 = vperm.xlu0 %1273, %v1238
    %v1275 = vpop.permute.xlu0 %1274
    %1278 = vset.pattern.permute.xlu0 0
    %1279 = vperm.xlu0 %1278, %v1239
    %v1280 = vpop.permute.xlu0 %1279
    %1283 = vset.pattern.permute.xlu0 0
    %1284 = vperm.xlu0 %1283, %v1240
    %v1285 = vpop.permute.xlu0 %1284
    %1288 = vset.pattern.permute.xlu0 0
    %1289 = vperm.xlu0 %1288, %v1241
    %v1290 = vpop.permute.xlu0 %1289
    %1293 = vset.pattern.permute.xlu0 0
    %1294 = vperm.xlu0 %1293, %v1242
    %v1295 = vpop.permute.xlu0 %1294
    %1298 = vset.pattern.permute.xlu0 0
    %1299 = vperm.xlu0 %1298, %v1243
    %v1300 = vpop.permute.xlu0 %1299
    %1303 = vset.pattern.permute.xlu0 0
    %1304 = vperm.xlu0 %1303, %v1244
    %v1305 = vpop.permute.xlu0 %1304
    %1308 = vset.pattern.permute.xlu0 0
    %1309 = vperm.xlu0 %1308, %v1245
    %v1310 = vpop.permute.xlu0 %1309
    %1313 = vset.pattern.permute.xlu0 0
    %1314 = vperm.xlu0 %1313, %v1246
    %v1315 = vpop.permute.xlu0 %1314
    %1318 = vset.pattern.permute.xlu0 0
    %1319 = vperm.xlu0 %1318, %v1247
    %v1320 = vpop.permute.xlu0 %1319
    %1323 = vset.pattern.permute.xlu0 0
    %1324 = vperm.xlu0 %1323, %v1248
    %v1325 = vpop.permute.xlu0 %1324
    %1328 = vset.pattern.permute.xlu0 0
    %1329 = vperm.xlu0 %1328, %v1249
    %v1330 = vpop.permute.xlu0 %1329
    %v1333 = vlaneseq
    %v1334 = vshrl.u32 %v1333, 7
    %v1335 = vsub.s32 0, %v1334
    %v1336 = vrot.slane %v1251, %v1335
    %v1338 = vmul.f32 %v1255, %v1336
    %v1339 = vmul.f32 %v1260, %v1336
    %v1340 = vmul.f32 %v1265, %v1336
    %v1341 = vmul.f32 %v1270, %v1336
    %v1342 = vmul.f32 %v1275, %v1336
    %v1343 = vmul.f32 %v1280, %v1336
    %v1344 = vmul.f32 %v1285, %v1336
    %v1345 = vmul.f32 %v1290, %v1336
    %v1346 = vmul.f32 %v1295, %v1336
    %v1347 = vmul.f32 %v1300, %v1336
    %v1348 = vmul.f32 %v1305, %v1336
    %v1349 = vmul.f32 %v1310, %v1336
    %v1350 = vmul.f32 %v1315, %v1336
    %v1351 = vmul.f32 %v1320, %v1336
    %v1352 = vmul.f32 %v1325, %v1336
    %v1353 = vmul.f32 %v1330, %v1336
    %v1354 = vadd.f32 %v1154, %v1338
    %v1355 = vadd.f32 %v1155, %v1339
    %v1356 = vadd.f32 %v1156, %v1340
    %v1357 = vadd.f32 %v1157, %v1341
    %v1358 = vadd.f32 %v1158, %v1342
    %v1359 = vadd.f32 %v1159, %v1343
    %v1360 = vadd.f32 %v1160, %v1344
    %v1361 = vadd.f32 %v1161, %v1345
    %v1362 = vadd.f32 %v1162, %v1346
    %v1363 = vadd.f32 %v1163, %v1347
    %v1364 = vadd.f32 %v1164, %v1348
    %v1365 = vadd.f32 %v1165, %v1349
    %v1366 = vadd.f32 %v1166, %v1350
    %v1367 = vadd.f32 %v1167, %v1351
    %v1368 = vadd.f32 %v1168, %v1352
    %v1369 = vadd.f32 %v1169, %v1353
    %v1370 = vld [vmem:[#allocation2 + $0x17] sm:$0xff]
    %v1371 = vld [vmem:[#allocation2 + $0x1f] sm:$0xff]
    %v1372 = vld [vmem:[#allocation2 + $0x27] sm:$0xff]
    %v1373 = vld [vmem:[#allocation2 + $0x2f] sm:$0xff]
    %v1374 = vld [vmem:[#allocation2 + $0x37] sm:$0xff]
    %v1375 = vld [vmem:[#allocation2 + $0x3f] sm:$0xff]
    %v1376 = vld [vmem:[#allocation2 + $0x47] sm:$0xff]
    %v1377 = vld [vmem:[#allocation2 + $0x4f] sm:$0xff]
    %v1378 = vld [vmem:[#allocation2 + $0x57] sm:$0xff]
    %v1379 = vld [vmem:[#allocation2 + $0x5f] sm:$0xff]
    %v1380 = vld [vmem:[#allocation2 + $0x67] sm:$0xff]
    %v1381 = vld [vmem:[#allocation2 + $0x6f] sm:$0xff]
    %v1382 = vld [vmem:[#allocation2 + $0x77] sm:$0xff]
    %v1383 = vld [vmem:[#allocation2 + $0x7f] sm:$0xff]
    %v1384 = vld [vmem:[#allocation2 + $0x87] sm:$0xff]
    %v1385 = vld [vmem:[#allocation2 + $0x8f] sm:$0xff]
    %1386 = vrot.lane.b32.xlu0 %v283, 122
    %v1387 = vpop.permute.xlu0 %1386
    %1388 = vrot.lane.b32.xlu0 %v284, 122
    %v1389 = vpop.permute.xlu0 %1388
    %1390 = vrot.lane.b32.xlu0 %v285, 122
    %v1391 = vpop.permute.xlu0 %1390
    %1392 = vrot.lane.b32.xlu0 %v286, 122
    %v1393 = vpop.permute.xlu0 %1392
    %1394 = vrot.lane.b32.xlu0 %v287, 122
    %v1395 = vpop.permute.xlu0 %1394
    %1396 = vrot.lane.b32.xlu0 %v288, 122
    %v1397 = vpop.permute.xlu0 %1396
    %1398 = vrot.lane.b32.xlu0 %v289, 122
    %v1399 = vpop.permute.xlu0 %1398
    %1400 = vrot.lane.b32.xlu0 %v290, 122
    %v1401 = vpop.permute.xlu0 %1400
    %1402 = vrot.lane.b32.xlu0 %v291, 122
    %v1403 = vpop.permute.xlu0 %1402
    %1404 = vrot.lane.b32.xlu0 %v292, 122
    %v1405 = vpop.permute.xlu0 %1404
    %1406 = vrot.lane.b32.xlu0 %v293, 122
    %v1407 = vpop.permute.xlu0 %1406
    %1408 = vrot.lane.b32.xlu0 %v294, 122
    %v1409 = vpop.permute.xlu0 %1408
    %1410 = vrot.lane.b32.xlu0 %v295, 122
    %v1411 = vpop.permute.xlu0 %1410
    %1412 = vrot.lane.b32.xlu0 %v296, 122
    %v1413 = vpop.permute.xlu0 %1412
    %1414 = vrot.lane.b32.xlu0 %v297, 122
    %v1415 = vpop.permute.xlu0 %1414
    %1416 = vrot.lane.b32.xlu0 %v298, 122
    %v1417 = vpop.permute.xlu0 %1416
    %v1434 = vmul.f32 %v1370, %v1387
    %v1435 = vmul.f32 %v1371, %v1389
    %v1436 = vmul.f32 %v1372, %v1391
    %v1437 = vmul.f32 %v1373, %v1393
    %v1438 = vmul.f32 %v1374, %v1395
    %v1439 = vmul.f32 %v1375, %v1397
    %v1440 = vmul.f32 %v1376, %v1399
    %v1441 = vmul.f32 %v1377, %v1401
    %v1442 = vmul.f32 %v1378, %v1403
    %v1443 = vmul.f32 %v1379, %v1405
    %v1444 = vmul.f32 %v1380, %v1407
    %v1445 = vmul.f32 %v1381, %v1409
    %v1446 = vmul.f32 %v1382, %v1411
    %v1447 = vmul.f32 %v1383, %v1413
    %v1448 = vmul.f32 %v1384, %v1415
    %v1449 = vmul.f32 %v1385, %v1417
    %s1450 = scalar_lea.vmem [#allocation4], 6
    %v1451 = vld [vmem:[%s1450] sm:$0x1]
    %1453 = vset.pattern.permute.xlu0 0
    %1454 = vperm.xlu0 %1453, %v1434
    %v1455 = vpop.permute.xlu0 %1454
    %1458 = vset.pattern.permute.xlu0 0
    %1459 = vperm.xlu0 %1458, %v1435
    %v1460 = vpop.permute.xlu0 %1459
    %1463 = vset.pattern.permute.xlu0 0
    %1464 = vperm.xlu0 %1463, %v1436
    %v1465 = vpop.permute.xlu0 %1464
    %1468 = vset.pattern.permute.xlu0 0
    %1469 = vperm.xlu0 %1468, %v1437
    %v1470 = vpop.permute.xlu0 %1469
    %1473 = vset.pattern.permute.xlu0 0
    %1474 = vperm.xlu0 %1473, %v1438
    %v1475 = vpop.permute.xlu0 %1474
    %1478 = vset.pattern.permute.xlu0 0
    %1479 = vperm.xlu0 %1478, %v1439
    %v1480 = vpop.permute.xlu0 %1479
    %1483 = vset.pattern.permute.xlu0 0
    %1484 = vperm.xlu0 %1483, %v1440
    %v1485 = vpop.permute.xlu0 %1484
    %1488 = vset.pattern.permute.xlu0 0
    %1489 = vperm.xlu0 %1488, %v1441
    %v1490 = vpop.permute.xlu0 %1489
    %1493 = vset.pattern.permute.xlu0 0
    %1494 = vperm.xlu0 %1493, %v1442
    %v1495 = vpop.permute.xlu0 %1494
    %1498 = vset.pattern.permute.xlu0 0
    %1499 = vperm.xlu0 %1498, %v1443
    %v1500 = vpop.permute.xlu0 %1499
    %1503 = vset.pattern.permute.xlu0 0
    %1504 = vperm.xlu0 %1503, %v1444
    %v1505 = vpop.permute.xlu0 %1504
    %1508 = vset.pattern.permute.xlu0 0
    %1509 = vperm.xlu0 %1508, %v1445
    %v1510 = vpop.permute.xlu0 %1509
    %1513 = vset.pattern.permute.xlu0 0
    %1514 = vperm.xlu0 %1513, %v1446
    %v1515 = vpop.permute.xlu0 %1514
    %1518 = vset.pattern.permute.xlu0 0
    %1519 = vperm.xlu0 %1518, %v1447
    %v1520 = vpop.permute.xlu0 %1519
    %1523 = vset.pattern.permute.xlu0 0
    %1524 = vperm.xlu0 %1523, %v1448
    %v1525 = vpop.permute.xlu0 %1524
    %1528 = vset.pattern.permute.xlu0 0
    %1529 = vperm.xlu0 %1528, %v1449
    %v1530 = vpop.permute.xlu0 %1529
    %v1533 = vlaneseq
    %v1534 = vshrl.u32 %v1533, 7
    %v1535 = vsub.s32 0, %v1534
    %v1536 = vrot.slane %v1451, %v1535
    %v1538 = vmul.f32 %v1455, %v1536
    %v1539 = vmul.f32 %v1460, %v1536
    %v1540 = vmul.f32 %v1465, %v1536
    %v1541 = vmul.f32 %v1470, %v1536
    %v1542 = vmul.f32 %v1475, %v1536
    %v1543 = vmul.f32 %v1480, %v1536
    %v1544 = vmul.f32 %v1485, %v1536
    %v1545 = vmul.f32 %v1490, %v1536
    %v1546 = vmul.f32 %v1495, %v1536
    %v1547 = vmul.f32 %v1500, %v1536
    %v1548 = vmul.f32 %v1505, %v1536
    %v1549 = vmul.f32 %v1510, %v1536
    %v1550 = vmul.f32 %v1515, %v1536
    %v1551 = vmul.f32 %v1520, %v1536
    %v1552 = vmul.f32 %v1525, %v1536
    %v1553 = vmul.f32 %v1530, %v1536
    %v1554 = vadd.f32 %v1354, %v1538
    %v1555 = vadd.f32 %v1355, %v1539
    %v1556 = vadd.f32 %v1356, %v1540
    %v1557 = vadd.f32 %v1357, %v1541
    %v1558 = vadd.f32 %v1358, %v1542
    %v1559 = vadd.f32 %v1359, %v1543
    %v1560 = vadd.f32 %v1360, %v1544
    %v1561 = vadd.f32 %v1361, %v1545
    %v1562 = vadd.f32 %v1362, %v1546
    %v1563 = vadd.f32 %v1363, %v1547
    %v1564 = vadd.f32 %v1364, %v1548
    %v1565 = vadd.f32 %v1365, %v1549
    %v1566 = vadd.f32 %v1366, %v1550
    %v1567 = vadd.f32 %v1367, %v1551
    %v1568 = vadd.f32 %v1368, %v1552
    %v1569 = vadd.f32 %v1369, %v1553
    %v1570 = vld [vmem:[#allocation2 + $0x18] sm:$0xff]
    %v1571 = vld [vmem:[#allocation2 + $0x20] sm:$0xff]
    %v1572 = vld [vmem:[#allocation2 + $0x28] sm:$0xff]
    %v1573 = vld [vmem:[#allocation2 + $0x30] sm:$0xff]
    %v1574 = vld [vmem:[#allocation2 + $0x38] sm:$0xff]
    %v1575 = vld [vmem:[#allocation2 + $0x40] sm:$0xff]
    %v1576 = vld [vmem:[#allocation2 + $0x48] sm:$0xff]
    %v1577 = vld [vmem:[#allocation2 + $0x50] sm:$0xff]
    %v1578 = vld [vmem:[#allocation2 + $0x58] sm:$0xff]
    %v1579 = vld [vmem:[#allocation2 + $0x60] sm:$0xff]
    %v1580 = vld [vmem:[#allocation2 + $0x68] sm:$0xff]
    %v1581 = vld [vmem:[#allocation2 + $0x70] sm:$0xff]
    %v1582 = vld [vmem:[#allocation2 + $0x78] sm:$0xff]
    %v1583 = vld [vmem:[#allocation2 + $0x80] sm:$0xff]
    %v1584 = vld [vmem:[#allocation2 + $0x88] sm:$0xff]
    %v1585 = vld [vmem:[#allocation2 + $0x90] sm:$0xff]
    %1586 = vrot.lane.b32.xlu0 %v283, 121
    %v1587 = vpop.permute.xlu0 %1586
    %1588 = vrot.lane.b32.xlu0 %v284, 121
    %v1589 = vpop.permute.xlu0 %1588
    %1590 = vrot.lane.b32.xlu0 %v285, 121
    %v1591 = vpop.permute.xlu0 %1590
    %1592 = vrot.lane.b32.xlu0 %v286, 121
    %v1593 = vpop.permute.xlu0 %1592
    %1594 = vrot.lane.b32.xlu0 %v287, 121
    %v1595 = vpop.permute.xlu0 %1594
    %1596 = vrot.lane.b32.xlu0 %v288, 121
    %v1597 = vpop.permute.xlu0 %1596
    %1598 = vrot.lane.b32.xlu0 %v289, 121
    %v1599 = vpop.permute.xlu0 %1598
    %1600 = vrot.lane.b32.xlu0 %v290, 121
    %v1601 = vpop.permute.xlu0 %1600
    %1602 = vrot.lane.b32.xlu0 %v291, 121
    %v1603 = vpop.permute.xlu0 %1602
    %1604 = vrot.lane.b32.xlu0 %v292, 121
    %v1605 = vpop.permute.xlu0 %1604
    %1606 = vrot.lane.b32.xlu0 %v293, 121
    %v1607 = vpop.permute.xlu0 %1606
    %1608 = vrot.lane.b32.xlu0 %v294, 121
    %v1609 = vpop.permute.xlu0 %1608
    %1610 = vrot.lane.b32.xlu0 %v295, 121
    %v1611 = vpop.permute.xlu0 %1610
    %1612 = vrot.lane.b32.xlu0 %v296, 121
    %v1613 = vpop.permute.xlu0 %1612
    %1614 = vrot.lane.b32.xlu0 %v297, 121
    %v1615 = vpop.permute.xlu0 %1614
    %1616 = vrot.lane.b32.xlu0 %v298, 121
    %v1617 = vpop.permute.xlu0 %1616
    %v1634 = vmul.f32 %v1570, %v1587
    %v1635 = vmul.f32 %v1571, %v1589
    %v1636 = vmul.f32 %v1572, %v1591
    %v1637 = vmul.f32 %v1573, %v1593
    %v1638 = vmul.f32 %v1574, %v1595
    %v1639 = vmul.f32 %v1575, %v1597
    %v1640 = vmul.f32 %v1576, %v1599
    %v1641 = vmul.f32 %v1577, %v1601
    %v1642 = vmul.f32 %v1578, %v1603
    %v1643 = vmul.f32 %v1579, %v1605
    %v1644 = vmul.f32 %v1580, %v1607
    %v1645 = vmul.f32 %v1581, %v1609
    %v1646 = vmul.f32 %v1582, %v1611
    %v1647 = vmul.f32 %v1583, %v1613
    %v1648 = vmul.f32 %v1584, %v1615
    %v1649 = vmul.f32 %v1585, %v1617
    %s1650 = scalar_lea.vmem [#allocation4], 7
    %v1651 = vld [vmem:[%s1650] sm:$0x1]
    %1653 = vset.pattern.permute.xlu0 0
    %1654 = vperm.xlu0 %1653, %v1634
    %v1655 = vpop.permute.xlu0 %1654
    %1658 = vset.pattern.permute.xlu0 0
    %1659 = vperm.xlu0 %1658, %v1635
    %v1660 = vpop.permute.xlu0 %1659
    %1663 = vset.pattern.permute.xlu0 0
    %1664 = vperm.xlu0 %1663, %v1636
    %v1665 = vpop.permute.xlu0 %1664
    %1668 = vset.pattern.permute.xlu0 0
    %1669 = vperm.xlu0 %1668, %v1637
    %v1670 = vpop.permute.xlu0 %1669
    %1673 = vset.pattern.permute.xlu0 0
    %1674 = vperm.xlu0 %1673, %v1638
    %v1675 = vpop.permute.xlu0 %1674
    %1678 = vset.pattern.permute.xlu0 0
    %1679 = vperm.xlu0 %1678, %v1639
    %v1680 = vpop.permute.xlu0 %1679
    %1683 = vset.pattern.permute.xlu0 0
    %1684 = vperm.xlu0 %1683, %v1640
    %v1685 = vpop.permute.xlu0 %1684
    %1688 = vset.pattern.permute.xlu0 0
    %1689 = vperm.xlu0 %1688, %v1641
    %v1690 = vpop.permute.xlu0 %1689
    %1693 = vset.pattern.permute.xlu0 0
    %1694 = vperm.xlu0 %1693, %v1642
    %v1695 = vpop.permute.xlu0 %1694
    %1698 = vset.pattern.permute.xlu0 0
    %1699 = vperm.xlu0 %1698, %v1643
    %v1700 = vpop.permute.xlu0 %1699
    %1703 = vset.pattern.permute.xlu0 0
    %1704 = vperm.xlu0 %1703, %v1644
    %v1705 = vpop.permute.xlu0 %1704
    %1708 = vset.pattern.permute.xlu0 0
    %1709 = vperm.xlu0 %1708, %v1645
    %v1710 = vpop.permute.xlu0 %1709
    %1713 = vset.pattern.permute.xlu0 0
    %1714 = vperm.xlu0 %1713, %v1646
    %v1715 = vpop.permute.xlu0 %1714
    %1718 = vset.pattern.permute.xlu0 0
    %1719 = vperm.xlu0 %1718, %v1647
    %v1720 = vpop.permute.xlu0 %1719
    %1723 = vset.pattern.permute.xlu0 0
    %1724 = vperm.xlu0 %1723, %v1648
    %v1725 = vpop.permute.xlu0 %1724
    %1728 = vset.pattern.permute.xlu0 0
    %1729 = vperm.xlu0 %1728, %v1649
    %v1730 = vpop.permute.xlu0 %1729
    %v1733 = vlaneseq
    %v1734 = vshrl.u32 %v1733, 7
    %v1735 = vsub.s32 0, %v1734
    %v1736 = vrot.slane %v1651, %v1735
    %v1738 = vmul.f32 %v1655, %v1736
    %v1739 = vmul.f32 %v1660, %v1736
    %v1740 = vmul.f32 %v1665, %v1736
    %v1741 = vmul.f32 %v1670, %v1736
    %v1742 = vmul.f32 %v1675, %v1736
    %v1743 = vmul.f32 %v1680, %v1736
    %v1744 = vmul.f32 %v1685, %v1736
    %v1745 = vmul.f32 %v1690, %v1736
    %v1746 = vmul.f32 %v1695, %v1736
    %v1747 = vmul.f32 %v1700, %v1736
    %v1748 = vmul.f32 %v1705, %v1736
    %v1749 = vmul.f32 %v1710, %v1736
    %v1750 = vmul.f32 %v1715, %v1736
    %v1751 = vmul.f32 %v1720, %v1736
    %v1752 = vmul.f32 %v1725, %v1736
    %v1753 = vmul.f32 %v1730, %v1736
    %v1754 = vadd.f32 %v1554, %v1738
    %v1755 = vadd.f32 %v1555, %v1739
    %v1756 = vadd.f32 %v1556, %v1740
    %v1757 = vadd.f32 %v1557, %v1741
    %v1758 = vadd.f32 %v1558, %v1742
    %v1759 = vadd.f32 %v1559, %v1743
    %v1760 = vadd.f32 %v1560, %v1744
    %v1761 = vadd.f32 %v1561, %v1745
    %v1762 = vadd.f32 %v1562, %v1746
    %v1763 = vadd.f32 %v1563, %v1747
    %v1764 = vadd.f32 %v1564, %v1748
    %v1765 = vadd.f32 %v1565, %v1749
    %v1766 = vadd.f32 %v1566, %v1750
    %v1767 = vadd.f32 %v1567, %v1751
    %v1768 = vadd.f32 %v1568, %v1752
    %v1769 = vadd.f32 %v1569, %v1753
    %v1770 = vld [vmem:[#allocation2 + $0x19] sm:$0xff]
    %v1771 = vld [vmem:[#allocation2 + $0x21] sm:$0xff]
    %v1772 = vld [vmem:[#allocation2 + $0x29] sm:$0xff]
    %v1773 = vld [vmem:[#allocation2 + $0x31] sm:$0xff]
    %v1774 = vld [vmem:[#allocation2 + $0x39] sm:$0xff]
    %v1775 = vld [vmem:[#allocation2 + $0x41] sm:$0xff]
    %v1776 = vld [vmem:[#allocation2 + $0x49] sm:$0xff]
    %v1777 = vld [vmem:[#allocation2 + $0x51] sm:$0xff]
    %v1778 = vld [vmem:[#allocation2 + $0x59] sm:$0xff]
    %v1779 = vld [vmem:[#allocation2 + $0x61] sm:$0xff]
    %v1780 = vld [vmem:[#allocation2 + $0x69] sm:$0xff]
    %v1781 = vld [vmem:[#allocation2 + $0x71] sm:$0xff]
    %v1782 = vld [vmem:[#allocation2 + $0x79] sm:$0xff]
    %v1783 = vld [vmem:[#allocation2 + $0x81] sm:$0xff]
    %v1784 = vld [vmem:[#allocation2 + $0x89] sm:$0xff]
    %v1785 = vld [vmem:[#allocation2 + $0x91] sm:$0xff]
    %1786 = vrot.lane.b32.xlu0 %v283, 120
    %v1787 = vpop.permute.xlu0 %1786
    %1788 = vrot.lane.b32.xlu0 %v284, 120
    %v1789 = vpop.permute.xlu0 %1788
    %1790 = vrot.lane.b32.xlu0 %v285, 120
    %v1791 = vpop.permute.xlu0 %1790
    %1792 = vrot.lane.b32.xlu0 %v286, 120
    %v1793 = vpop.permute.xlu0 %1792
    %1794 = vrot.lane.b32.xlu0 %v287, 120
    %v1795 = vpop.permute.xlu0 %1794
    %1796 = vrot.lane.b32.xlu0 %v288, 120
    %v1797 = vpop.permute.xlu0 %1796
    %1798 = vrot.lane.b32.xlu0 %v289, 120
    %v1799 = vpop.permute.xlu0 %1798
    %1800 = vrot.lane.b32.xlu0 %v290, 120
    %v1801 = vpop.permute.xlu0 %1800
    %1802 = vrot.lane.b32.xlu0 %v291, 120
    %v1803 = vpop.permute.xlu0 %1802
    %1804 = vrot.lane.b32.xlu0 %v292, 120
    %v1805 = vpop.permute.xlu0 %1804
    %1806 = vrot.lane.b32.xlu0 %v293, 120
    %v1807 = vpop.permute.xlu0 %1806
    %1808 = vrot.lane.b32.xlu0 %v294, 120
    %v1809 = vpop.permute.xlu0 %1808
    %1810 = vrot.lane.b32.xlu0 %v295, 120
    %v1811 = vpop.permute.xlu0 %1810
    %1812 = vrot.lane.b32.xlu0 %v296, 120
    %v1813 = vpop.permute.xlu0 %1812
    %1814 = vrot.lane.b32.xlu0 %v297, 120
    %v1815 = vpop.permute.xlu0 %1814
    %1816 = vrot.lane.b32.xlu0 %v298, 120
    %v1817 = vpop.permute.xlu0 %1816
    %v1834 = vmul.f32 %v1770, %v1787
    %v1835 = vmul.f32 %v1771, %v1789
    %v1836 = vmul.f32 %v1772, %v1791
    %v1837 = vmul.f32 %v1773, %v1793
    %v1838 = vmul.f32 %v1774, %v1795
    %v1839 = vmul.f32 %v1775, %v1797
    %v1840 = vmul.f32 %v1776, %v1799
    %v1841 = vmul.f32 %v1777, %v1801
    %v1842 = vmul.f32 %v1778, %v1803
    %v1843 = vmul.f32 %v1779, %v1805
    %v1844 = vmul.f32 %v1780, %v1807
    %v1845 = vmul.f32 %v1781, %v1809
    %v1846 = vmul.f32 %v1782, %v1811
    %v1847 = vmul.f32 %v1783, %v1813
    %v1848 = vmul.f32 %v1784, %v1815
    %v1849 = vmul.f32 %v1785, %v1817
    %s1850 = scalar_lea.vmem [#allocation4], 8
    %v1851 = vld [vmem:[%s1850] sm:$0x1]
    %1853 = vset.pattern.permute.xlu0 0
    %1854 = vperm.xlu0 %1853, %v1834
    %v1855 = vpop.permute.xlu0 %1854
    %1858 = vset.pattern.permute.xlu0 0
    %1859 = vperm.xlu0 %1858, %v1835
    %v1860 = vpop.permute.xlu0 %1859
    %1863 = vset.pattern.permute.xlu0 0
    %1864 = vperm.xlu0 %1863, %v1836
    %v1865 = vpop.permute.xlu0 %1864
    %1868 = vset.pattern.permute.xlu0 0
    %1869 = vperm.xlu0 %1868, %v1837
    %v1870 = vpop.permute.xlu0 %1869
    %1873 = vset.pattern.permute.xlu0 0
    %1874 = vperm.xlu0 %1873, %v1838
    %v1875 = vpop.permute.xlu0 %1874
    %1878 = vset.pattern.permute.xlu0 0
    %1879 = vperm.xlu0 %1878, %v1839
    %v1880 = vpop.permute.xlu0 %1879
    %1883 = vset.pattern.permute.xlu0 0
    %1884 = vperm.xlu0 %1883, %v1840
    %v1885 = vpop.permute.xlu0 %1884
    %1888 = vset.pattern.permute.xlu0 0
    %1889 = vperm.xlu0 %1888, %v1841
    %v1890 = vpop.permute.xlu0 %1889
    %1893 = vset.pattern.permute.xlu0 0
    %1894 = vperm.xlu0 %1893, %v1842
    %v1895 = vpop.permute.xlu0 %1894
    %1898 = vset.pattern.permute.xlu0 0
    %1899 = vperm.xlu0 %1898, %v1843
    %v1900 = vpop.permute.xlu0 %1899
    %1903 = vset.pattern.permute.xlu0 0
    %1904 = vperm.xlu0 %1903, %v1844
    %v1905 = vpop.permute.xlu0 %1904
    %1908 = vset.pattern.permute.xlu0 0
    %1909 = vperm.xlu0 %1908, %v1845
    %v1910 = vpop.permute.xlu0 %1909
    %1913 = vset.pattern.permute.xlu0 0
    %1914 = vperm.xlu0 %1913, %v1846
    %v1915 = vpop.permute.xlu0 %1914
    %1918 = vset.pattern.permute.xlu0 0
    %1919 = vperm.xlu0 %1918, %v1847
    %v1920 = vpop.permute.xlu0 %1919
    %1923 = vset.pattern.permute.xlu0 0
    %1924 = vperm.xlu0 %1923, %v1848
    %v1925 = vpop.permute.xlu0 %1924
    %1928 = vset.pattern.permute.xlu0 0
    %1929 = vperm.xlu0 %1928, %v1849
    %v1930 = vpop.permute.xlu0 %1929
    %v1933 = vlaneseq
    %v1934 = vshrl.u32 %v1933, 7
    %v1935 = vsub.s32 0, %v1934
    %v1936 = vrot.slane %v1851, %v1935
    %v1938 = vmul.f32 %v1855, %v1936
    %v1939 = vmul.f32 %v1860, %v1936
    %v1940 = vmul.f32 %v1865, %v1936
    %v1941 = vmul.f32 %v1870, %v1936
    %v1942 = vmul.f32 %v1875, %v1936
    %v1943 = vmul.f32 %v1880, %v1936
    %v1944 = vmul.f32 %v1885, %v1936
    %v1945 = vmul.f32 %v1890, %v1936
    %v1946 = vmul.f32 %v1895, %v1936
    %v1947 = vmul.f32 %v1900, %v1936
    %v1948 = vmul.f32 %v1905, %v1936
    %v1949 = vmul.f32 %v1910, %v1936
    %v1950 = vmul.f32 %v1915, %v1936
    %v1951 = vmul.f32 %v1920, %v1936
    %v1952 = vmul.f32 %v1925, %v1936
    %v1953 = vmul.f32 %v1930, %v1936
    %v1954 = vadd.f32 %v1754, %v1938
    %v1955 = vadd.f32 %v1755, %v1939
    %v1956 = vadd.f32 %v1756, %v1940
    %v1957 = vadd.f32 %v1757, %v1941
    %v1958 = vadd.f32 %v1758, %v1942
    %v1959 = vadd.f32 %v1759, %v1943
    %v1960 = vadd.f32 %v1760, %v1944
    %v1961 = vadd.f32 %v1761, %v1945
    %v1962 = vadd.f32 %v1762, %v1946
    %v1963 = vadd.f32 %v1763, %v1947
    %v1964 = vadd.f32 %v1764, %v1948
    %v1965 = vadd.f32 %v1765, %v1949
    %v1966 = vadd.f32 %v1766, %v1950
    %v1967 = vadd.f32 %v1767, %v1951
    %v1968 = vadd.f32 %v1768, %v1952
    %v1969 = vadd.f32 %v1769, %v1953
    %v1970 = vld [vmem:[#allocation7] sm:$0x1]
    %v1972 = vlaneseq
    %v1973 = vshrl.u32 %v1972, 7
    %v1974 = vsub.s32 0, %v1973
    %v1975 = vrot.slane %v1970, %v1974
    %v1977 = vadd.f32 %v1954, %v1975
    %v1978 = vadd.f32 %v1955, %v1975
    %v1979 = vadd.f32 %v1956, %v1975
    %v1980 = vadd.f32 %v1957, %v1975
    %v1981 = vadd.f32 %v1958, %v1975
    %v1982 = vadd.f32 %v1959, %v1975
    %v1983 = vadd.f32 %v1960, %v1975
    %v1984 = vadd.f32 %v1961, %v1975
    %v1985 = vadd.f32 %v1962, %v1975
    %v1986 = vadd.f32 %v1963, %v1975
    %v1987 = vadd.f32 %v1964, %v1975
    %v1988 = vadd.f32 %v1965, %v1975
    %v1989 = vadd.f32 %v1966, %v1975
    %v1990 = vadd.f32 %v1967, %v1975
    %v1991 = vadd.f32 %v1968, %v1975
    %v1992 = vadd.f32 %v1969, %v1975
    %v1993 = vmax.f32 %v1977, 0.0
    %v1994 = vmax.f32 %v1978, 0.0
    %v1995 = vmax.f32 %v1979, 0.0
    %v1996 = vmax.f32 %v1980, 0.0
    %v1997 = vmax.f32 %v1981, 0.0
    %v1998 = vmax.f32 %v1982, 0.0
    %v1999 = vmax.f32 %v1983, 0.0
    %v2000 = vmax.f32 %v1984, 0.0
    %v2001 = vmax.f32 %v1985, 0.0
    %v2002 = vmax.f32 %v1986, 0.0
    %v2003 = vmax.f32 %v1987, 0.0
    %v2004 = vmax.f32 %v1988, 0.0
    %v2005 = vmax.f32 %v1989, 0.0
    %v2006 = vmax.f32 %v1990, 0.0
    %v2007 = vmax.f32 %v1991, 0.0
    %v2008 = vmax.f32 %v1992, 0.0
    %vm2009 = vcmask 64512
    %2010 = vst.msk [vmem:[#allocation2 + $0x10] sm:$0xff] %vm2009, %v1993
    %2011 = vst.msk [vmem:[#allocation2 + $0x18] sm:$0xff] %vm2009, %v1994
    %2012 = vst.msk [vmem:[#allocation2 + $0x20] sm:$0xff] %vm2009, %v1995
    %2013 = vst.msk [vmem:[#allocation2 + $0x28] sm:$0xff] %vm2009, %v1996
    %2014 = vst.msk [vmem:[#allocation2 + $0x30] sm:$0xff] %vm2009, %v1997
    %2015 = vst.msk [vmem:[#allocation2 + $0x38] sm:$0xff] %vm2009, %v1998
    %2016 = vst.msk [vmem:[#allocation2 + $0x40] sm:$0xff] %vm2009, %v1999
    %2017 = vst.msk [vmem:[#allocation2 + $0x48] sm:$0xff] %vm2009, %v2000
    %2018 = vst.msk [vmem:[#allocation2 + $0x50] sm:$0xff] %vm2009, %v2001
    %2019 = vst.msk [vmem:[#allocation2 + $0x58] sm:$0xff] %vm2009, %v2002
    %2020 = vst.msk [vmem:[#allocation2 + $0x60] sm:$0xff] %vm2009, %v2003
    %2021 = vst.msk [vmem:[#allocation2 + $0x68] sm:$0xff] %vm2009, %v2004
    %2022 = vst.msk [vmem:[#allocation2 + $0x70] sm:$0xff] %vm2009, %v2005
    %2023 = vst.msk [vmem:[#allocation2 + $0x78] sm:$0xff] %vm2009, %v2006
    %2024 = vst.msk [vmem:[#allocation2 + $0x80] sm:$0xff] %vm2009, %v2007
    %2025 = vst.msk [vmem:[#allocation2 + $0x88] sm:$0xff] %vm2009, %v2008
    %v2026 = vld [vmem:[#allocation2 + $0x7] sm:$0xff]
    %v2027 = vld [vmem:[#allocation2 + $0xf] sm:$0xff]
    %v2028 = vld [vmem:[#allocation2 + $0x17] sm:$0xff]
    %v2029 = vld [vmem:[#allocation2 + $0x1f] sm:$0xff]
    %v2030 = vld [vmem:[#allocation2 + $0x27] sm:$0xff]
    %v2031 = vld [vmem:[#allocation2 + $0x2f] sm:$0xff]
    %v2032 = vld [vmem:[#allocation2 + $0x37] sm:$0xff]
    %v2033 = vld [vmem:[#allocation2 + $0x3f] sm:$0xff]
    %v2034 = vld [vmem:[#allocation2 + $0x47] sm:$0xff]
    %v2035 = vld [vmem:[#allocation2 + $0x4f] sm:$0xff]
    %v2036 = vld [vmem:[#allocation2 + $0x57] sm:$0xff]
    %v2037 = vld [vmem:[#allocation2 + $0x5f] sm:$0xff]
    %v2038 = vld [vmem:[#allocation2 + $0x67] sm:$0xff]
    %v2039 = vld [vmem:[#allocation2 + $0x6f] sm:$0xff]
    %v2040 = vld [vmem:[#allocation2 + $0x77] sm:$0xff]
    %v2041 = vld [vmem:[#allocation2 + $0x7f] sm:$0xff]
    %v2042 = vld [vmem:[#allocation19] sm:$0xff]
    %v2043 = vld [vmem:[#allocation19 + $0x8] sm:$0xff]
    %v2044 = vld [vmem:[#allocation19 + $0x10] sm:$0xff]
    %v2045 = vld [vmem:[#allocation19 + $0x18] sm:$0xff]
    %v2046 = vld [vmem:[#allocation19 + $0x20] sm:$0xff]
    %v2047 = vld [vmem:[#allocation19 + $0x28] sm:$0xff]
    %v2048 = vld [vmem:[#allocation19 + $0x30] sm:$0xff]
    %v2049 = vld [vmem:[#allocation19 + $0x38] sm:$0xff]
    %v2050 = vld [vmem:[#allocation19 + $0x40] sm:$0xff]
    %v2051 = vld [vmem:[#allocation19 + $0x48] sm:$0xff]
    %v2052 = vld [vmem:[#allocation19 + $0x50] sm:$0xff]
    %v2053 = vld [vmem:[#allocation19 + $0x58] sm:$0xff]
    %v2054 = vld [vmem:[#allocation19 + $0x60] sm:$0xff]
    %v2055 = vld [vmem:[#allocation19 + $0x68] sm:$0xff]
    %v2056 = vld [vmem:[#allocation19 + $0x70] sm:$0xff]
    %v2057 = vld [vmem:[#allocation19 + $0x78] sm:$0xff]
    %2059 = vset.pattern.permute.xlu0 0
    %2060 = vperm.xlu0 %2059, %v2042
    %v2061 = vpop.permute.xlu0 %2060
    %2064 = vset.pattern.permute.xlu0 0
    %2065 = vperm.xlu0 %2064, %v2043
    %v2066 = vpop.permute.xlu0 %2065
    %2069 = vset.pattern.permute.xlu0 0
    %2070 = vperm.xlu0 %2069, %v2044
    %v2071 = vpop.permute.xlu0 %2070
    %2074 = vset.pattern.permute.xlu0 0
    %2075 = vperm.xlu0 %2074, %v2045
    %v2076 = vpop.permute.xlu0 %2075
    %2079 = vset.pattern.permute.xlu0 0
    %2080 = vperm.xlu0 %2079, %v2046
    %v2081 = vpop.permute.xlu0 %2080
    %2084 = vset.pattern.permute.xlu0 0
    %2085 = vperm.xlu0 %2084, %v2047
    %v2086 = vpop.permute.xlu0 %2085
    %2089 = vset.pattern.permute.xlu0 0
    %2090 = vperm.xlu0 %2089, %v2048
    %v2091 = vpop.permute.xlu0 %2090
    %2094 = vset.pattern.permute.xlu0 0
    %2095 = vperm.xlu0 %2094, %v2049
    %v2096 = vpop.permute.xlu0 %2095
    %2099 = vset.pattern.permute.xlu0 0
    %2100 = vperm.xlu0 %2099, %v2050
    %v2101 = vpop.permute.xlu0 %2100
    %2104 = vset.pattern.permute.xlu0 0
    %2105 = vperm.xlu0 %2104, %v2051
    %v2106 = vpop.permute.xlu0 %2105
    %2109 = vset.pattern.permute.xlu0 0
    %2110 = vperm.xlu0 %2109, %v2052
    %v2111 = vpop.permute.xlu0 %2110
    %2114 = vset.pattern.permute.xlu0 0
    %2115 = vperm.xlu0 %2114, %v2053
    %v2116 = vpop.permute.xlu0 %2115
    %2119 = vset.pattern.permute.xlu0 0
    %2120 = vperm.xlu0 %2119, %v2054
    %v2121 = vpop.permute.xlu0 %2120
    %2124 = vset.pattern.permute.xlu0 0
    %2125 = vperm.xlu0 %2124, %v2055
    %v2126 = vpop.permute.xlu0 %2125
    %2129 = vset.pattern.permute.xlu0 0
    %2130 = vperm.xlu0 %2129, %v2056
    %v2131 = vpop.permute.xlu0 %2130
    %2134 = vset.pattern.permute.xlu0 0
    %2135 = vperm.xlu0 %2134, %v2057
    %v2136 = vpop.permute.xlu0 %2135
    %v2138 = vmul.f32 %v2026, %v2061
    %v2139 = vmul.f32 %v2027, %v2066
    %v2140 = vmul.f32 %v2028, %v2071
    %v2141 = vmul.f32 %v2029, %v2076
    %v2142 = vmul.f32 %v2030, %v2081
    %v2143 = vmul.f32 %v2031, %v2086
    %v2144 = vmul.f32 %v2032, %v2091
    %v2145 = vmul.f32 %v2033, %v2096
    %v2146 = vmul.f32 %v2034, %v2101
    %v2147 = vmul.f32 %v2035, %v2106
    %v2148 = vmul.f32 %v2036, %v2111
    %v2149 = vmul.f32 %v2037, %v2116
    %v2150 = vmul.f32 %v2038, %v2121
    %v2151 = vmul.f32 %v2039, %v2126
    %v2152 = vmul.f32 %v2040, %v2131
    %v2153 = vmul.f32 %v2041, %v2136
    %v2154 = vld [vmem:[#allocation9] sm:$0xff]
    %v2155 = vld [vmem:[#allocation2 + $0x8] sm:$0xff]
    %v2156 = vld [vmem:[#allocation2 + $0x10] sm:$0xff]
    %v2157 = vld [vmem:[#allocation2 + $0x18] sm:$0xff]
    %v2158 = vld [vmem:[#allocation2 + $0x20] sm:$0xff]
    %v2159 = vld [vmem:[#allocation2 + $0x28] sm:$0xff]
    %v2160 = vld [vmem:[#allocation2 + $0x30] sm:$0xff]
    %v2161 = vld [vmem:[#allocation2 + $0x38] sm:$0xff]
    %v2162 = vld [vmem:[#allocation2 + $0x40] sm:$0xff]
    %v2163 = vld [vmem:[#allocation2 + $0x48] sm:$0xff]
    %v2164 = vld [vmem:[#allocation2 + $0x50] sm:$0xff]
    %v2165 = vld [vmem:[#allocation2 + $0x58] sm:$0xff]
    %v2166 = vld [vmem:[#allocation2 + $0x60] sm:$0xff]
    %v2167 = vld [vmem:[#allocation2 + $0x68] sm:$0xff]
    %v2168 = vld [vmem:[#allocation2 + $0x70] sm:$0xff]
    %v2169 = vld [vmem:[#allocation2 + $0x78] sm:$0xff]
    %v2170 = vld [vmem:[#allocation2 + $0x80] sm:$0xff]
    %2171 = vset.pattern.permute.xlu0 1
    %2172 = vperm.xlu0 %2171, %v2042
    %v2173 = vpop.permute.xlu0 %2172
    %2175 = vset.pattern.permute.xlu0 1
    %2176 = vperm.xlu0 %2175, %v2043
    %v2177 = vpop.permute.xlu0 %2176
    %2179 = vset.pattern.permute.xlu0 1
    %2180 = vperm.xlu0 %2179, %v2044
    %v2181 = vpop.permute.xlu0 %2180
    %2183 = vset.pattern.permute.xlu0 1
    %2184 = vperm.xlu0 %2183, %v2045
    %v2185 = vpop.permute.xlu0 %2184
    %2187 = vset.pattern.permute.xlu0 1
    %2188 = vperm.xlu0 %2187, %v2046
    %v2189 = vpop.permute.xlu0 %2188
    %2191 = vset.pattern.permute.xlu0 1
    %2192 = vperm.xlu0 %2191, %v2047
    %v2193 = vpop.permute.xlu0 %2192
    %2195 = vset.pattern.permute.xlu0 1
    %2196 = vperm.xlu0 %2195, %v2048
    %v2197 = vpop.permute.xlu0 %2196
    %2199 = vset.pattern.permute.xlu0 1
    %2200 = vperm.xlu0 %2199, %v2049
    %v2201 = vpop.permute.xlu0 %2200
    %2203 = vset.pattern.permute.xlu0 1
    %2204 = vperm.xlu0 %2203, %v2050
    %v2205 = vpop.permute.xlu0 %2204
    %2207 = vset.pattern.permute.xlu0 1
    %2208 = vperm.xlu0 %2207, %v2051
    %v2209 = vpop.permute.xlu0 %2208
    %2211 = vset.pattern.permute.xlu0 1
    %2212 = vperm.xlu0 %2211, %v2052
    %v2213 = vpop.permute.xlu0 %2212
    %2215 = vset.pattern.permute.xlu0 1
    %2216 = vperm.xlu0 %2215, %v2053
    %v2217 = vpop.permute.xlu0 %2216
    %2219 = vset.pattern.permute.xlu0 1
    %2220 = vperm.xlu0 %2219, %v2054
    %v2221 = vpop.permute.xlu0 %2220
    %2223 = vset.pattern.permute.xlu0 1
    %2224 = vperm.xlu0 %2223, %v2055
    %v2225 = vpop.permute.xlu0 %2224
    %2227 = vset.pattern.permute.xlu0 1
    %2228 = vperm.xlu0 %2227, %v2056
    %v2229 = vpop.permute.xlu0 %2228
    %2231 = vset.pattern.permute.xlu0 1
    %2232 = vperm.xlu0 %2231, %v2057
    %v2233 = vpop.permute.xlu0 %2232
    %v2235 = vmul.f32 %v2155, %v2173
    %v2236 = vmul.f32 %v2156, %v2177
    %v2237 = vmul.f32 %v2157, %v2181
    %v2238 = vmul.f32 %v2158, %v2185
    %v2239 = vmul.f32 %v2159, %v2189
    %v2240 = vmul.f32 %v2160, %v2193
    %v2241 = vmul.f32 %v2161, %v2197
    %v2242 = vmul.f32 %v2162, %v2201
    %v2243 = vmul.f32 %v2163, %v2205
    %v2244 = vmul.f32 %v2164, %v2209
    %v2245 = vmul.f32 %v2165, %v2213
    %v2246 = vmul.f32 %v2166, %v2217
    %v2247 = vmul.f32 %v2167, %v2221
    %v2248 = vmul.f32 %v2168, %v2225
    %v2249 = vmul.f32 %v2169, %v2229
    %v2250 = vmul.f32 %v2170, %v2233
    %s2251 = scalar_lea.vmem [#allocation9], 8
    %v2252 = vld [vmem:[%s2251] sm:$0xff]
    %v2254 = vsel %vm2009, %v2235, 0
    %v2257 = vsel %vm2009, %v2236, 0
    %v2260 = vsel %vm2009, %v2237, 0
    %v2263 = vsel %vm2009, %v2238, 0
    %v2266 = vsel %vm2009, %v2239, 0
    %v2269 = vsel %vm2009, %v2240, 0
    %v2272 = vsel %vm2009, %v2241, 0
    %v2275 = vsel %vm2009, %v2242, 0
    %v2278 = vsel %vm2009, %v2243, 0
    %v2281 = vsel %vm2009, %v2244, 0
    %v2284 = vsel %vm2009, %v2245, 0
    %v2287 = vsel %vm2009, %v2246, 0
    %v2290 = vsel %vm2009, %v2247, 0
    %v2293 = vsel %vm2009, %v2248, 0
    %v2296 = vsel %vm2009, %v2249, 0
    %v2299 = vsel %vm2009, %v2250, 0
    %2301 = vmatprep.subr.mxu0 0.0
    %2302 = vmatpush1.msra.mxu0 %v2252
    %2303 = vmatprep.subr.mxu0 0.0
    %2304 = vmatpush1.msra.mxu0 0.0
    %2305 = vmatprep.subr.mxu0 0.0
    %2306 = vmatpush1.msra.mxu0 0.0
    %2307 = vmatprep.subr.mxu0 0.0
    %2308 = vmatpush1.msra.mxu0 0.0
    %2309 = vmatprep.subr.mxu0 0.0
    %2310 = vmatpush1.msra.mxu0 0.0
    %2311 = vmatprep.subr.mxu0 0.0
    %2312 = vmatpush1.msra.mxu0 0.0
    %2313 = vmatprep.subr.mxu0 0.0
    %2314 = vmatpush1.msra.mxu0 0.0
    %2315 = vmatprep.subr.mxu0 0.0
    %2316 = vmatpush1.msra.mxu0 0.0
    %2317 = vmatprep.subr.mxu0 0.0
    %2318 = vmatpush1.msra.mxu0 0.0
    %2319 = vmatprep.subr.mxu0 0.0
    %2320 = vmatpush1.msra.mxu0 0.0
    %2321 = vmatprep.subr.mxu0 0.0
    %2322 = vmatpush1.msra.mxu0 0.0
    %2323 = vmatprep.subr.mxu0 0.0
    %2324 = vmatpush1.msra.mxu0 0.0
    %2325 = vmatprep.subr.mxu0 0.0
    %2326 = vmatpush1.msra.mxu0 0.0
    %2327 = vmatprep.subr.mxu0 0.0
    %2328 = vmatpush1.msra.mxu0 0.0
    %2329 = vmatprep.subr.mxu0 0.0
    %2330 = vmatpush1.msra.mxu0 0.0
    %2331 = vmatprep.subr.mxu0 0.0
    %2332 = vmatpush1.msra.mxu0 0.0
    %2333 = vmatprep.subr.mxu0 0.0
    %2334 = vmatpush1.msra.mxu0 0.0
    %2335 = vmatprep.subr.mxu0 0.0
    %2336 = vmatpush1.msra.mxu0 0.0
    %2337 = vmatprep.subr.mxu0 0.0
    %2338 = vmatpush1.msra.mxu0 0.0
    %2339 = vmatprep.subr.mxu0 0.0
    %2340 = vmatpush1.msra.mxu0 0.0
    %2341 = vmatprep.subr.mxu0 0.0
    %2342 = vmatpush1.msra.mxu0 0.0
    %2343 = vmatprep.subr.mxu0 0.0
    %2344 = vmatpush1.msra.mxu0 0.0
    %2345 = vmatprep.subr.mxu0 0.0
    %2346 = vmatpush1.msra.mxu0 0.0
    %2347 = vmatprep.subr.mxu0 0.0
    %2348 = vmatpush1.msra.mxu0 0.0
    %2349 = vmatprep.subr.mxu0 0.0
    %2350 = vmatpush1.msra.mxu0 0.0
    %2351 = vmatprep.subr.mxu0 0.0
    %2352 = vmatpush1.msra.mxu0 0.0
    %2353 = vmatprep.subr.mxu0 0.0
    %2354 = vmatpush1.msra.mxu0 0.0
    %2355 = vmatprep.subr.mxu0 0.0
    %2356 = vmatpush1.msra.mxu0 0.0
    %2357 = vmatprep.subr.mxu0 0.0
    %2358 = vmatpush1.msra.mxu0 0.0
    %2359 = vmatprep.subr.mxu0 0.0
    %2360 = vmatpush1.msra.mxu0 0.0
    %2361 = vmatprep.subr.mxu0 0.0
    %2362 = vmatpush1.msra.mxu0 0.0
    %2363 = vmatprep.subr.mxu0 0.0
    %2364 = vmatpush1.msra.mxu0 0.0
    %2365 = vmatprep.mubr.f32.mxu0 0.0
    %2366 = vmatmul.mubr.f32.gmra.mrb[0].mxu0 %v2254
    %v2367 = vpop.f32.mrb[0].mxu0
    %v2368 = vadd.f32 0.0, %v2367
    %v2369 = vpop.f32.mrb[0].mxu0
    %2370 = vmatprep.mubr.f32.mxu0 0.0
    %2371 = vmatmul.mubr.f32.gmra.mrb[0].mxu0 %v2257
    %v2372 = vpop.f32.mrb[0].mxu0
    %v2373 = vadd.f32 0.0, %v2372
    %v2374 = vpop.f32.mrb[0].mxu0
    %2375 = vmatprep.mubr.f32.mxu0 0.0
    %2376 = vmatmul.mubr.f32.gmra.mrb[0].mxu0 %v2260
    %v2377 = vpop.f32.mrb[0].mxu0
    %v2378 = vadd.f32 0.0, %v2377
    %v2379 = vpop.f32.mrb[0].mxu0
    %2380 = vmatprep.mubr.f32.mxu0 0.0
    %2381 = vmatmul.mubr.f32.gmra.mrb[0].mxu0 %v2263
    %v2382 = vpop.f32.mrb[0].mxu0
    %v2383 = vadd.f32 0.0, %v2382
    %v2384 = vpop.f32.mrb[0].mxu0
    %2385 = vmatprep.mubr.f32.mxu0 0.0
    %2386 = vmatmul.mubr.f32.gmra.mrb[0].mxu0 %v2266
    %v2387 = vpop.f32.mrb[0].mxu0
    %v2388 = vadd.f32 0.0, %v2387
    %v2389 = vpop.f32.mrb[0].mxu0
    %2390 = vmatprep.mubr.f32.mxu0 0.0
    %2391 = vmatmul.mubr.f32.gmra.mrb[0].mxu0 %v2269
    %v2392 = vpop.f32.mrb[0].mxu0
    %v2393 = vadd.f32 0.0, %v2392
    %v2394 = vpop.f32.mrb[0].mxu0
    %2395 = vmatprep.mubr.f32.mxu0 0.0
    %2396 = vmatmul.mubr.f32.gmra.mrb[0].mxu0 %v2272
    %v2397 = vpop.f32.mrb[0].mxu0
    %v2398 = vadd.f32 0.0, %v2397
    %v2399 = vpop.f32.mrb[0].mxu0
    %2400 = vmatprep.mubr.f32.mxu0 0.0
    %2401 = vmatmul.mubr.f32.gmra.mrb[0].mxu0 %v2275
    %v2402 = vpop.f32.mrb[0].mxu0
    %v2403 = vadd.f32 0.0, %v2402
    %v2404 = vpop.f32.mrb[0].mxu0
    %2405 = vmatprep.mubr.f32.mxu0 0.0
    %2406 = vmatmul.mubr.f32.gmra.mrb[0].mxu0 %v2278
    %v2407 = vpop.f32.mrb[0].mxu0
    %v2408 = vadd.f32 0.0, %v2407
    %v2409 = vpop.f32.mrb[0].mxu0
    %2410 = vmatprep.mubr.f32.mxu0 0.0
    %2411 = vmatmul.mubr.f32.gmra.mrb[0].mxu0 %v2281
    %v2412 = vpop.f32.mrb[0].mxu0
    %v2413 = vadd.f32 0.0, %v2412
    %v2414 = vpop.f32.mrb[0].mxu0
    %2415 = vmatprep.mubr.f32.mxu0 0.0
    %2416 = vmatmul.mubr.f32.gmra.mrb[0].mxu0 %v2284
    %v2417 = vpop.f32.mrb[0].mxu0
    %v2418 = vadd.f32 0.0, %v2417
    %v2419 = vpop.f32.mrb[0].mxu0
    %2420 = vmatprep.mubr.f32.mxu0 0.0
    %2421 = vmatmul.mubr.f32.gmra.mrb[0].mxu0 %v2287
    %v2422 = vpop.f32.mrb[0].mxu0
    %v2423 = vadd.f32 0.0, %v2422
    %v2424 = vpop.f32.mrb[0].mxu0
    %2425 = vmatprep.mubr.f32.mxu0 0.0
    %2426 = vmatmul.mubr.f32.gmra.mrb[0].mxu0 %v2290
    %v2427 = vpop.f32.mrb[0].mxu0
    %v2428 = vadd.f32 0.0, %v2427
    %v2429 = vpop.f32.mrb[0].mxu0
    %2430 = vmatprep.mubr.f32.mxu0 0.0
    %2431 = vmatmul.mubr.f32.gmra.mrb[0].mxu0 %v2293
    %v2432 = vpop.f32.mrb[0].mxu0
    %v2433 = vadd.f32 0.0, %v2432
    %v2434 = vpop.f32.mrb[0].mxu0
    %2435 = vmatprep.mubr.f32.mxu0 0.0
    %2436 = vmatmul.mubr.f32.gmra.mrb[0].mxu0 %v2296
    %v2437 = vpop.f32.mrb[0].mxu0
    %v2438 = vadd.f32 0.0, %v2437
    %v2439 = vpop.f32.mrb[0].mxu0
    %2440 = vmatprep.mubr.f32.mxu0 0.0
    %2441 = vmatmul.mubr.f32.gmra.mrb[0].mxu0 %v2299
    %v2442 = vpop.f32.mrb[0].mxu0
    %v2443 = vadd.f32 0.0, %v2442
    %v2444 = vpop.f32.mrb[0].mxu0
    %2445 = vdwg.mxu0
    %v2447 = vsel %vm2009, %v2138, 0
    %v2450 = vsel %vm2009, %v2139, 0
    %v2453 = vsel %vm2009, %v2140, 0
    %v2456 = vsel %vm2009, %v2141, 0
    %v2459 = vsel %vm2009, %v2142, 0
    %v2462 = vsel %vm2009, %v2143, 0
    %v2465 = vsel %vm2009, %v2144, 0
    %v2468 = vsel %vm2009, %v2145, 0
    %v2471 = vsel %vm2009, %v2146, 0
    %v2474 = vsel %vm2009, %v2147, 0
    %v2477 = vsel %vm2009, %v2148, 0
    %v2480 = vsel %vm2009, %v2149, 0
    %v2483 = vsel %vm2009, %v2150, 0
    %v2486 = vsel %vm2009, %v2151, 0
    %v2489 = vsel %vm2009, %v2152, 0
    %v2492 = vsel %vm2009, %v2153, 0
    %2494 = vmatprep.subr.mxu0 0.0
    %2495 = vmatpush1.msra.mxu0 %v2154
    %2496 = vmatprep.subr.mxu0 0.0
    %2497 = vmatpush1.msra.mxu0 0.0
    %2498 = vmatprep.subr.mxu0 0.0
    %2499 = vmatpush1.msra.mxu0 0.0
    %2500 = vmatprep.subr.mxu0 0.0
    %2501 = vmatpush1.msra.mxu0 0.0
    %2502 = vmatprep.subr.mxu0 0.0
    %2503 = vmatpush1.msra.mxu0 0.0
    %2504 = vmatprep.subr.mxu0 0.0
    %2505 = vmatpush1.msra.mxu0 0.0
    %2506 = vmatprep.subr.mxu0 0.0
    %2507 = vmatpush1.msra.mxu0 0.0
    %2508 = vmatprep.subr.mxu0 0.0
    %2509 = vmatpush1.msra.mxu0 0.0
    %2510 = vmatprep.subr.mxu0 0.0
    %2511 = vmatpush1.msra.mxu0 0.0
    %2512 = vmatprep.subr.mxu0 0.0
    %2513 = vmatpush1.msra.mxu0 0.0
    %2514 = vmatprep.subr.mxu0 0.0
    %2515 = vmatpush1.msra.mxu0 0.0
    %2516 = vmatprep.subr.mxu0 0.0
    %2517 = vmatpush1.msra.mxu0 0.0
    %2518 = vmatprep.subr.mxu0 0.0
    %2519 = vmatpush1.msra.mxu0 0.0
    %2520 = vmatprep.subr.mxu0 0.0
    %2521 = vmatpush1.msra.mxu0 0.0
    %2522 = vmatprep.subr.mxu0 0.0
    %2523 = vmatpush1.msra.mxu0 0.0
    %2524 = vmatprep.subr.mxu0 0.0
    %2525 = vmatpush1.msra.mxu0 0.0
    %2526 = vmatprep.subr.mxu0 0.0
    %2527 = vmatpush1.msra.mxu0 0.0
    %2528 = vmatprep.subr.mxu0 0.0
    %2529 = vmatpush1.msra.mxu0 0.0
    %2530 = vmatprep.subr.mxu0 0.0
    %2531 = vmatpush1.msra.mxu0 0.0
    %2532 = vmatprep.subr.mxu0 0.0
    %2533 = vmatpush1.msra.mxu0 0.0
    %2534 = vmatprep.subr.mxu0 0.0
    %2535 = vmatpush1.msra.mxu0 0.0
    %2536 = vmatprep.subr.mxu0 0.0
    %2537 = vmatpush1.msra.mxu0 0.0
    %2538 = vmatprep.subr.mxu0 0.0
    %2539 = vmatpush1.msra.mxu0 0.0
    %2540 = vmatprep.subr.mxu0 0.0
    %2541 = vmatpush1.msra.mxu0 0.0
    %2542 = vmatprep.subr.mxu0 0.0
    %2543 = vmatpush1.msra.mxu0 0.0
    %2544 = vmatprep.subr.mxu0 0.0
    %2545 = vmatpush1.msra.mxu0 0.0
    %2546 = vmatprep.subr.mxu0 0.0
    %2547 = vmatpush1.msra.mxu0 0.0
    %2548 = vmatprep.subr.mxu0 0.0
    %2549 = vmatpush1.msra.mxu0 0.0
    %2550 = vmatprep.subr.mxu0 0.0
    %2551 = vmatpush1.msra.mxu0 0.0
    %2552 = vmatprep.subr.mxu0 0.0
    %2553 = vmatpush1.msra.mxu0 0.0
    %2554 = vmatprep.subr.mxu0 0.0
    %2555 = vmatpush1.msra.mxu0 0.0
    %2556 = vmatprep.subr.mxu0 0.0
    %2557 = vmatpush1.msra.mxu0 0.0
    %2558 = vmatprep.mubr.f32.mxu0 0.0
    %2559 = vmatmul.mubr.f32.gmra.mrb[0].mxu0 %v2447
    %v2560 = vpop.f32.mrb[0].mxu0
    %v2561 = vadd.f32 %v2368, %v2560
    %v2562 = vpop.f32.mrb[0].mxu0
    %2563 = vmatprep.mubr.f32.mxu0 0.0
    %2564 = vmatmul.mubr.f32.gmra.mrb[0].mxu0 %v2450
    %v2565 = vpop.f32.mrb[0].mxu0
    %v2566 = vadd.f32 %v2373, %v2565
    %v2567 = vpop.f32.mrb[0].mxu0
    %2568 = vmatprep.mubr.f32.mxu0 0.0
    %2569 = vmatmul.mubr.f32.gmra.mrb[0].mxu0 %v2453
    %v2570 = vpop.f32.mrb[0].mxu0
    %v2571 = vadd.f32 %v2378, %v2570
    %v2572 = vpop.f32.mrb[0].mxu0
    %2573 = vmatprep.mubr.f32.mxu0 0.0
    %2574 = vmatmul.mubr.f32.gmra.mrb[0].mxu0 %v2456
    %v2575 = vpop.f32.mrb[0].mxu0
    %v2576 = vadd.f32 %v2383, %v2575
    %v2577 = vpop.f32.mrb[0].mxu0
    %2578 = vmatprep.mubr.f32.mxu0 0.0
    %2579 = vmatmul.mubr.f32.gmra.mrb[0].mxu0 %v2459
    %v2580 = vpop.f32.mrb[0].mxu0
    %v2581 = vadd.f32 %v2388, %v2580
    %v2582 = vpop.f32.mrb[0].mxu0
    %2583 = vmatprep.mubr.f32.mxu0 0.0
    %2584 = vmatmul.mubr.f32.gmra.mrb[0].mxu0 %v2462
    %v2585 = vpop.f32.mrb[0].mxu0
    %v2586 = vadd.f32 %v2393, %v2585
    %v2587 = vpop.f32.mrb[0].mxu0
    %2588 = vmatprep.mubr.f32.mxu0 0.0
    %2589 = vmatmul.mubr.f32.gmra.mrb[0].mxu0 %v2465
    %v2590 = vpop.f32.mrb[0].mxu0
    %v2591 = vadd.f32 %v2398, %v2590
    %v2592 = vpop.f32.mrb[0].mxu0
    %2593 = vmatprep.mubr.f32.mxu0 0.0
    %2594 = vmatmul.mubr.f32.gmra.mrb[0].mxu0 %v2468
    %v2595 = vpop.f32.mrb[0].mxu0
    %v2596 = vadd.f32 %v2403, %v2595
    %v2597 = vpop.f32.mrb[0].mxu0
    %2598 = vmatprep.mubr.f32.mxu0 0.0
    %2599 = vmatmul.mubr.f32.gmra.mrb[0].mxu0 %v2471
    %v2600 = vpop.f32.mrb[0].mxu0
    %v2601 = vadd.f32 %v2408, %v2600
    %v2602 = vpop.f32.mrb[0].mxu0
    %2603 = vmatprep.mubr.f32.mxu0 0.0
    %2604 = vmatmul.mubr.f32.gmra.mrb[0].mxu0 %v2474
    %v2605 = vpop.f32.mrb[0].mxu0
    %v2606 = vadd.f32 %v2413, %v2605
    %v2607 = vpop.f32.mrb[0].mxu0
    %2608 = vmatprep.mubr.f32.mxu0 0.0
    %2609 = vmatmul.mubr.f32.gmra.mrb[0].mxu0 %v2477
    %v2610 = vpop.f32.mrb[0].mxu0
    %v2611 = vadd.f32 %v2418, %v2610
    %v2612 = vpop.f32.mrb[0].mxu0
    %2613 = vmatprep.mubr.f32.mxu0 0.0
    %2614 = vmatmul.mubr.f32.gmra.mrb[0].mxu0 %v2480
    %v2615 = vpop.f32.mrb[0].mxu0
    %v2616 = vadd.f32 %v2423, %v2615
    %v2617 = vpop.f32.mrb[0].mxu0
    %2618 = vmatprep.mubr.f32.mxu0 0.0
    %2619 = vmatmul.mubr.f32.gmra.mrb[0].mxu0 %v2483
    %v2620 = vpop.f32.mrb[0].mxu0
    %v2621 = vadd.f32 %v2428, %v2620
    %v2622 = vpop.f32.mrb[0].mxu0
    %2623 = vmatprep.mubr.f32.mxu0 0.0
    %2624 = vmatmul.mubr.f32.gmra.mrb[0].mxu0 %v2486
    %v2625 = vpop.f32.mrb[0].mxu0
    %v2626 = vadd.f32 %v2433, %v2625
    %v2627 = vpop.f32.mrb[0].mxu0
    %2628 = vmatprep.mubr.f32.mxu0 0.0
    %2629 = vmatmul.mubr.f32.gmra.mrb[0].mxu0 %v2489
    %v2630 = vpop.f32.mrb[0].mxu0
    %v2631 = vadd.f32 %v2438, %v2630
    %v2632 = vpop.f32.mrb[0].mxu0
    %2633 = vmatprep.mubr.f32.mxu0 0.0
    %2634 = vmatmul.mubr.f32.gmra.mrb[0].mxu0 %v2492
    %v2635 = vpop.f32.mrb[0].mxu0
    %v2636 = vadd.f32 %v2443, %v2635
    %v2637 = vpop.f32.mrb[0].mxu0
    %2638 = vdwg.mxu0
    %v2639 = vld [vmem:[#allocation2 + $0x9] sm:$0xff]
    %v2640 = vld [vmem:[#allocation2 + $0x11] sm:$0xff]
    %v2641 = vld [vmem:[#allocation2 + $0x19] sm:$0xff]
    %v2642 = vld [vmem:[#allocation2 + $0x21] sm:$0xff]
    %v2643 = vld [vmem:[#allocation2 + $0x29] sm:$0xff]
    %v2644 = vld [vmem:[#allocation2 + $0x31] sm:$0xff]
    %v2645 = vld [vmem:[#allocation2 + $0x39] sm:$0xff]
    %v2646 = vld [vmem:[#allocation2 + $0x41] sm:$0xff]
    %v2647 = vld [vmem:[#allocation2 + $0x49] sm:$0xff]
    %v2648 = vld [vmem:[#allocation2 + $0x51] sm:$0xff]
    %v2649 = vld [vmem:[#allocation2 + $0x59] sm:$0xff]
    %v2650 = vld [vmem:[#allocation2 + $0x61] sm:$0xff]
    %v2651 = vld [vmem:[#allocation2 + $0x69] sm:$0xff]
    %v2652 = vld [vmem:[#allocation2 + $0x71] sm:$0xff]
    %v2653 = vld [vmem:[#allocation2 + $0x79] sm:$0xff]
    %v2654 = vld [vmem:[#allocation2 + $0x81] sm:$0xff]
    %2655 = vset.pattern.permute.xlu0 2
    %2656 = vperm.xlu0 %2655, %v2042
    %v2657 = vpop.permute.xlu0 %2656
    %2659 = vset.pattern.permute.xlu0 2
    %2660 = vperm.xlu0 %2659, %v2043
    %v2661 = vpop.permute.xlu0 %2660
    %2663 = vset.pattern.permute.xlu0 2
    %2664 = vperm.xlu0 %2663, %v2044
    %v2665 = vpop.permute.xlu0 %2664
    %2667 = vset.pattern.permute.xlu0 2
    %2668 = vperm.xlu0 %2667, %v2045
    %v2669 = vpop.permute.xlu0 %2668
    %2671 = vset.pattern.permute.xlu0 2
    %2672 = vperm.xlu0 %2671, %v2046
    %v2673 = vpop.permute.xlu0 %2672
    %2675 = vset.pattern.permute.xlu0 2
    %2676 = vperm.xlu0 %2675, %v2047
    %v2677 = vpop.permute.xlu0 %2676
    %2679 = vset.pattern.permute.xlu0 2
    %2680 = vperm.xlu0 %2679, %v2048
    %v2681 = vpop.permute.xlu0 %2680
    %2683 = vset.pattern.permute.xlu0 2
    %2684 = vperm.xlu0 %2683, %v2049
    %v2685 = vpop.permute.xlu0 %2684
    %2687 = vset.pattern.permute.xlu0 2
    %2688 = vperm.xlu0 %2687, %v2050
    %v2689 = vpop.permute.xlu0 %2688
    %2691 = vset.pattern.permute.xlu0 2
    %2692 = vperm.xlu0 %2691, %v2051
    %v2693 = vpop.permute.xlu0 %2692
    %2695 = vset.pattern.permute.xlu0 2
    %2696 = vperm.xlu0 %2695, %v2052
    %v2697 = vpop.permute.xlu0 %2696
    %2699 = vset.pattern.permute.xlu0 2
    %2700 = vperm.xlu0 %2699, %v2053
    %v2701 = vpop.permute.xlu0 %2700
    %2703 = vset.pattern.permute.xlu0 2
    %2704 = vperm.xlu0 %2703, %v2054
    %v2705 = vpop.permute.xlu0 %2704
    %2707 = vset.pattern.permute.xlu0 2
    %2708 = vperm.xlu0 %2707, %v2055
    %v2709 = vpop.permute.xlu0 %2708
    %2711 = vset.pattern.permute.xlu0 2
    %2712 = vperm.xlu0 %2711, %v2056
    %v2713 = vpop.permute.xlu0 %2712
    %2715 = vset.pattern.permute.xlu0 2
    %2716 = vperm.xlu0 %2715, %v2057
    %v2717 = vpop.permute.xlu0 %2716
    %v2719 = vmul.f32 %v2639, %v2657
    %v2720 = vmul.f32 %v2640, %v2661
    %v2721 = vmul.f32 %v2641, %v2665
    %v2722 = vmul.f32 %v2642, %v2669
    %v2723 = vmul.f32 %v2643, %v2673
    %v2724 = vmul.f32 %v2644, %v2677
    %v2725 = vmul.f32 %v2645, %v2681
    %v2726 = vmul.f32 %v2646, %v2685
    %v2727 = vmul.f32 %v2647, %v2689
    %v2728 = vmul.f32 %v2648, %v2693
    %v2729 = vmul.f32 %v2649, %v2697
    %v2730 = vmul.f32 %v2650, %v2701
    %v2731 = vmul.f32 %v2651, %v2705
    %v2732 = vmul.f32 %v2652, %v2709
    %v2733 = vmul.f32 %v2653, %v2713
    %v2734 = vmul.f32 %v2654, %v2717
    %s2735 = scalar_lea.vmem [#allocation9], 16
    %v2736 = vld [vmem:[%s2735] sm:$0xff]
    %v2738 = vsel %vm2009, %v2719, 0
    %v2741 = vsel %vm2009, %v2720, 0
    %v2744 = vsel %vm2009, %v2721, 0
    %v2747 = vsel %vm2009, %v2722, 0
    %v2750 = vsel %vm2009, %v2723, 0
    %v2753 = vsel %vm2009, %v2724, 0
    %v2756 = vsel %vm2009, %v2725, 0
    %v2759 = vsel %vm2009, %v2726, 0
    %v2762 = vsel %vm2009, %v2727, 0
    %v2765 = vsel %vm2009, %v2728, 0
    %v2768 = vsel %vm2009, %v2729, 0
    %v2771 = vsel %vm2009, %v2730, 0
    %v2774 = vsel %vm2009, %v2731, 0
    %v2777 = vsel %vm2009, %v2732, 0
    %v2780 = vsel %vm2009, %v2733, 0
    %v2783 = vsel %vm2009, %v2734, 0
    %2785 = vmatprep.subr.mxu0 0.0
    %2786 = vmatpush1.msra.mxu0 %v2736
    %2787 = vmatprep.subr.mxu0 0.0
    %2788 = vmatpush1.msra.mxu0 0.0
    %2789 = vmatprep.subr.mxu0 0.0
    %2790 = vmatpush1.msra.mxu0 0.0
    %2791 = vmatprep.subr.mxu0 0.0
    %2792 = vmatpush1.msra.mxu0 0.0
    %2793 = vmatprep.subr.mxu0 0.0
    %2794 = vmatpush1.msra.mxu0 0.0
    %2795 = vmatprep.subr.mxu0 0.0
    %2796 = vmatpush1.msra.mxu0 0.0
    %2797 = vmatprep.subr.mxu0 0.0
    %2798 = vmatpush1.msra.mxu0 0.0
    %2799 = vmatprep.subr.mxu0 0.0
    %2800 = vmatpush1.msra.mxu0 0.0
    %2801 = vmatprep.subr.mxu0 0.0
    %2802 = vmatpush1.msra.mxu0 0.0
    %2803 = vmatprep.subr.mxu0 0.0
    %2804 = vmatpush1.msra.mxu0 0.0
    %2805 = vmatprep.subr.mxu0 0.0
    %2806 = vmatpush1.msra.mxu0 0.0
    %2807 = vmatprep.subr.mxu0 0.0
    %2808 = vmatpush1.msra.mxu0 0.0
    %2809 = vmatprep.subr.mxu0 0.0
    %2810 = vmatpush1.msra.mxu0 0.0
    %2811 = vmatprep.subr.mxu0 0.0
    %2812 = vmatpush1.msra.mxu0 0.0
    %2813 = vmatprep.subr.mxu0 0.0
    %2814 = vmatpush1.msra.mxu0 0.0
    %2815 = vmatprep.subr.mxu0 0.0
    %2816 = vmatpush1.msra.mxu0 0.0
    %2817 = vmatprep.subr.mxu0 0.0
    %2818 = vmatpush1.msra.mxu0 0.0
    %2819 = vmatprep.subr.mxu0 0.0
    %2820 = vmatpush1.msra.mxu0 0.0
    %2821 = vmatprep.subr.mxu0 0.0
    %2822 = vmatpush1.msra.mxu0 0.0
    %2823 = vmatprep.subr.mxu0 0.0
    %2824 = vmatpush1.msra.mxu0 0.0
    %2825 = vmatprep.subr.mxu0 0.0
    %2826 = vmatpush1.msra.mxu0 0.0
    %2827 = vmatprep.subr.mxu0 0.0
    %2828 = vmatpush1.msra.mxu0 0.0
    %2829 = vmatprep.subr.mxu0 0.0
    %2830 = vmatpush1.msra.mxu0 0.0
    %2831 = vmatprep.subr.mxu0 0.0
    %2832 = vmatpush1.msra.mxu0 0.0
    %2833 = vmatprep.subr.mxu0 0.0
    %2834 = vmatpush1.msra.mxu0 0.0
    %2835 = vmatprep.subr.mxu0 0.0
    %2836 = vmatpush1.msra.mxu0 0.0
    %2837 = vmatprep.subr.mxu0 0.0
    %2838 = vmatpush1.msra.mxu0 0.0
    %2839 = vmatprep.subr.mxu0 0.0
    %2840 = vmatpush1.msra.mxu0 0.0
    %2841 = vmatprep.subr.mxu0 0.0
    %2842 = vmatpush1.msra.mxu0 0.0
    %2843 = vmatprep.subr.mxu0 0.0
    %2844 = vmatpush1.msra.mxu0 0.0
    %2845 = vmatprep.subr.mxu0 0.0
    %2846 = vmatpush1.msra.mxu0 0.0
    %2847 = vmatprep.subr.mxu0 0.0
    %2848 = vmatpush1.msra.mxu0 0.0
    %2849 = vmatprep.mubr.f32.mxu0 0.0
    %2850 = vmatmul.mubr.f32.gmra.mrb[0].mxu0 %v2738
    %v2851 = vpop.f32.mrb[0].mxu0
    %v2852 = vadd.f32 0.0, %v2851
    %v2853 = vpop.f32.mrb[0].mxu0
    %2854 = vmatprep.mubr.f32.mxu0 0.0
    %2855 = vmatmul.mubr.f32.gmra.mrb[0].mxu0 %v2741
    %v2856 = vpop.f32.mrb[0].mxu0
    %v2857 = vadd.f32 0.0, %v2856
    %v2858 = vpop.f32.mrb[0].mxu0
    %2859 = vmatprep.mubr.f32.mxu0 0.0
    %2860 = vmatmul.mubr.f32.gmra.mrb[0].mxu0 %v2744
    %v2861 = vpop.f32.mrb[0].mxu0
    %v2862 = vadd.f32 0.0, %v2861
    %v2863 = vpop.f32.mrb[0].mxu0
    %2864 = vmatprep.mubr.f32.mxu0 0.0
    %2865 = vmatmul.mubr.f32.gmra.mrb[0].mxu0 %v2747
    %v2866 = vpop.f32.mrb[0].mxu0
    %v2867 = vadd.f32 0.0, %v2866
    %v2868 = vpop.f32.mrb[0].mxu0
    %2869 = vmatprep.mubr.f32.mxu0 0.0
    %2870 = vmatmul.mubr.f32.gmra.mrb[0].mxu0 %v2750
    %v2871 = vpop.f32.mrb[0].mxu0
    %v2872 = vadd.f32 0.0, %v2871
    %v2873 = vpop.f32.mrb[0].mxu0
    %2874 = vmatprep.mubr.f32.mxu0 0.0
    %2875 = vmatmul.mubr.f32.gmra.mrb[0].mxu0 %v2753
    %v2876 = vpop.f32.mrb[0].mxu0
    %v2877 = vadd.f32 0.0, %v2876
    %v2878 = vpop.f32.mrb[0].mxu0
    %2879 = vmatprep.mubr.f32.mxu0 0.0
    %2880 = vmatmul.mubr.f32.gmra.mrb[0].mxu0 %v2756
    %v2881 = vpop.f32.mrb[0].mxu0
    %v2882 = vadd.f32 0.0, %v2881
    %v2883 = vpop.f32.mrb[0].mxu0
    %2884 = vmatprep.mubr.f32.mxu0 0.0
    %2885 = vmatmul.mubr.f32.gmra.mrb[0].mxu0 %v2759
    %v2886 = vpop.f32.mrb[0].mxu0
    %v2887 = vadd.f32 0.0, %v2886
    %v2888 = vpop.f32.mrb[0].mxu0
    %2889 = vmatprep.mubr.f32.mxu0 0.0
    %2890 = vmatmul.mubr.f32.gmra.mrb[0].mxu0 %v2762
    %v2891 = vpop.f32.mrb[0].mxu0
    %v2892 = vadd.f32 0.0, %v2891
    %v2893 = vpop.f32.mrb[0].mxu0
    %2894 = vmatprep.mubr.f32.mxu0 0.0
    %2895 = vmatmul.mubr.f32.gmra.mrb[0].mxu0 %v2765
    %v2896 = vpop.f32.mrb[0].mxu0
    %v2897 = vadd.f32 0.0, %v2896
    %v2898 = vpop.f32.mrb[0].mxu0
    %2899 = vmatprep.mubr.f32.mxu0 0.0
    %2900 = vmatmul.mubr.f32.gmra.mrb[0].mxu0 %v2768
    %v2901 = vpop.f32.mrb[0].mxu0
    %v2902 = vadd.f32 0.0, %v2901
    %v2903 = vpop.f32.mrb[0].mxu0
    %2904 = vmatprep.mubr.f32.mxu0 0.0
    %2905 = vmatmul.mubr.f32.gmra.mrb[0].mxu0 %v2771
    %v2906 = vpop.f32.mrb[0].mxu0
    %v2907 = vadd.f32 0.0, %v2906
    %v2908 = vpop.f32.mrb[0].mxu0
    %2909 = vmatprep.mubr.f32.mxu0 0.0
    %2910 = vmatmul.mubr.f32.gmra.mrb[0].mxu0 %v2774
    %v2911 = vpop.f32.mrb[0].mxu0
    %v2912 = vadd.f32 0.0, %v2911
    %v2913 = vpop.f32.mrb[0].mxu0
    %2914 = vmatprep.mubr.f32.mxu0 0.0
    %2915 = vmatmul.mubr.f32.gmra.mrb[0].mxu0 %v2777
    %v2916 = vpop.f32.mrb[0].mxu0
    %v2917 = vadd.f32 0.0, %v2916
    %v2918 = vpop.f32.mrb[0].mxu0
    %2919 = vmatprep.mubr.f32.mxu0 0.0
    %2920 = vmatmul.mubr.f32.gmra.mrb[0].mxu0 %v2780
    %v2921 = vpop.f32.mrb[0].mxu0
    %v2922 = vadd.f32 0.0, %v2921
    %v2923 = vpop.f32.mrb[0].mxu0
    %2924 = vmatprep.mubr.f32.mxu0 0.0
    %2925 = vmatmul.mubr.f32.gmra.mrb[0].mxu0 %v2783
    %v2926 = vpop.f32.mrb[0].mxu0
    %v2927 = vadd.f32 0.0, %v2926
    %v2928 = vpop.f32.mrb[0].mxu0
    %2929 = vdwg.mxu0
    %v2930 = vadd.f32 %v2561, %v2852
    %v2931 = vadd.f32 %v2566, %v2857
    %v2932 = vadd.f32 %v2571, %v2862
    %v2933 = vadd.f32 %v2576, %v2867
    %v2934 = vadd.f32 %v2581, %v2872
    %v2935 = vadd.f32 %v2586, %v2877
    %v2936 = vadd.f32 %v2591, %v2882
    %v2937 = vadd.f32 %v2596, %v2887
    %v2938 = vadd.f32 %v2601, %v2892
    %v2939 = vadd.f32 %v2606, %v2897
    %v2940 = vadd.f32 %v2611, %v2902
    %v2941 = vadd.f32 %v2616, %v2907
    %v2942 = vadd.f32 %v2621, %v2912
    %v2943 = vadd.f32 %v2626, %v2917
    %v2944 = vadd.f32 %v2631, %v2922
    %v2945 = vadd.f32 %v2636, %v2927
    %v2946 = vld [vmem:[#allocation2 + $0xf] sm:$0xff]
    %v2947 = vld [vmem:[#allocation2 + $0x17] sm:$0xff]
    %v2948 = vld [vmem:[#allocation2 + $0x1f] sm:$0xff]
    %v2949 = vld [vmem:[#allocation2 + $0x27] sm:$0xff]
    %v2950 = vld [vmem:[#allocation2 + $0x2f] sm:$0xff]
    %v2951 = vld [vmem:[#allocation2 + $0x37] sm:$0xff]
    %v2952 = vld [vmem:[#allocation2 + $0x3f] sm:$0xff]
    %v2953 = vld [vmem:[#allocation2 + $0x47] sm:$0xff]
    %v2954 = vld [vmem:[#allocation2 + $0x4f] sm:$0xff]
    %v2955 = vld [vmem:[#allocation2 + $0x57] sm:$0xff]
    %v2956 = vld [vmem:[#allocation2 + $0x5f] sm:$0xff]
    %v2957 = vld [vmem:[#allocation2 + $0x67] sm:$0xff]
    %v2958 = vld [vmem:[#allocation2 + $0x6f] sm:$0xff]
    %v2959 = vld [vmem:[#allocation2 + $0x77] sm:$0xff]
    %v2960 = vld [vmem:[#allocation2 + $0x7f] sm:$0xff]
    %v2961 = vld [vmem:[#allocation2 + $0x87] sm:$0xff]
    %2962 = vset.pattern.permute.xlu0 3
    %2963 = vperm.xlu0 %2962, %v2042
    %v2964 = vpop.permute.xlu0 %2963
    %2966 = vset.pattern.permute.xlu0 3
    %2967 = vperm.xlu0 %2966, %v2043
    %v2968 = vpop.permute.xlu0 %2967
    %2970 = vset.pattern.permute.xlu0 3
    %2971 = vperm.xlu0 %2970, %v2044
    %v2972 = vpop.permute.xlu0 %2971
    %2974 = vset.pattern.permute.xlu0 3
    %2975 = vperm.xlu0 %2974, %v2045
    %v2976 = vpop.permute.xlu0 %2975
    %2978 = vset.pattern.permute.xlu0 3
    %2979 = vperm.xlu0 %2978, %v2046
    %v2980 = vpop.permute.xlu0 %2979
    %2982 = vset.pattern.permute.xlu0 3
    %2983 = vperm.xlu0 %2982, %v2047
    %v2984 = vpop.permute.xlu0 %2983
    %2986 = vset.pattern.permute.xlu0 3
    %2987 = vperm.xlu0 %2986, %v2048
    %v2988 = vpop.permute.xlu0 %2987
    %2990 = vset.pattern.permute.xlu0 3
    %2991 = vperm.xlu0 %2990, %v2049
    %v2992 = vpop.permute.xlu0 %2991
    %2994 = vset.pattern.permute.xlu0 3
    %2995 = vperm.xlu0 %2994, %v2050
    %v2996 = vpop.permute.xlu0 %2995
    %2998 = vset.pattern.permute.xlu0 3
    %2999 = vperm.xlu0 %2998, %v2051
    %v3000 = vpop.permute.xlu0 %2999
    %3002 = vset.pattern.permute.xlu0 3
    %3003 = vperm.xlu0 %3002, %v2052
    %v3004 = vpop.permute.xlu0 %3003
    %3006 = vset.pattern.permute.xlu0 3
    %3007 = vperm.xlu0 %3006, %v2053
    %v3008 = vpop.permute.xlu0 %3007
    %3010 = vset.pattern.permute.xlu0 3
    %3011 = vperm.xlu0 %3010, %v2054
    %v3012 = vpop.permute.xlu0 %3011
    %3014 = vset.pattern.permute.xlu0 3
    %3015 = vperm.xlu0 %3014, %v2055
    %v3016 = vpop.permute.xlu0 %3015
    %3018 = vset.pattern.permute.xlu0 3
    %3019 = vperm.xlu0 %3018, %v2056
    %v3020 = vpop.permute.xlu0 %3019
    %3022 = vset.pattern.permute.xlu0 3
    %3023 = vperm.xlu0 %3022, %v2057
    %v3024 = vpop.permute.xlu0 %3023
    %v3026 = vmul.f32 %v2946, %v2964
    %v3027 = vmul.f32 %v2947, %v2968
    %v3028 = vmul.f32 %v2948, %v2972
    %v3029 = vmul.f32 %v2949, %v2976
    %v3030 = vmul.f32 %v2950, %v2980
    %v3031 = vmul.f32 %v2951, %v2984
    %v3032 = vmul.f32 %v2952, %v2988
    %v3033 = vmul.f32 %v2953, %v2992
    %v3034 = vmul.f32 %v2954, %v2996
    %v3035 = vmul.f32 %v2955, %v3000
    %v3036 = vmul.f32 %v2956, %v3004
    %v3037 = vmul.f32 %v2957, %v3008
    %v3038 = vmul.f32 %v2958, %v3012
    %v3039 = vmul.f32 %v2959, %v3016
    %v3040 = vmul.f32 %v2960, %v3020
    %v3041 = vmul.f32 %v2961, %v3024
    %s3042 = scalar_lea.vmem [#allocation9], 24
    %v3043 = vld [vmem:[%s3042] sm:$0xff]
    %v3045 = vsel %vm2009, %v3026, 0
    %v3048 = vsel %vm2009, %v3027, 0
    %v3051 = vsel %vm2009, %v3028, 0
    %v3054 = vsel %vm2009, %v3029, 0
    %v3057 = vsel %vm2009, %v3030, 0
    %v3060 = vsel %vm2009, %v3031, 0
    %v3063 = vsel %vm2009, %v3032, 0
    %v3066 = vsel %vm2009, %v3033, 0
    %v3069 = vsel %vm2009, %v3034, 0
    %v3072 = vsel %vm2009, %v3035, 0
    %v3075 = vsel %vm2009, %v3036, 0
    %v3078 = vsel %vm2009, %v3037, 0
    %v3081 = vsel %vm2009, %v3038, 0
    %v3084 = vsel %vm2009, %v3039, 0
    %v3087 = vsel %vm2009, %v3040, 0
    %v3090 = vsel %vm2009, %v3041, 0
    %3092 = vmatprep.subr.mxu0 0.0
    %3093 = vmatpush1.msra.mxu0 %v3043
    %3094 = vmatprep.subr.mxu0 0.0
    %3095 = vmatpush1.msra.mxu0 0.0
    %3096 = vmatprep.subr.mxu0 0.0
    %3097 = vmatpush1.msra.mxu0 0.0
    %3098 = vmatprep.subr.mxu0 0.0
    %3099 = vmatpush1.msra.mxu0 0.0
    %3100 = vmatprep.subr.mxu0 0.0
    %3101 = vmatpush1.msra.mxu0 0.0
    %3102 = vmatprep.subr.mxu0 0.0
    %3103 = vmatpush1.msra.mxu0 0.0
    %3104 = vmatprep.subr.mxu0 0.0
    %3105 = vmatpush1.msra.mxu0 0.0
    %3106 = vmatprep.subr.mxu0 0.0
    %3107 = vmatpush1.msra.mxu0 0.0
    %3108 = vmatprep.subr.mxu0 0.0
    %3109 = vmatpush1.msra.mxu0 0.0
    %3110 = vmatprep.subr.mxu0 0.0
    %3111 = vmatpush1.msra.mxu0 0.0
    %3112 = vmatprep.subr.mxu0 0.0
    %3113 = vmatpush1.msra.mxu0 0.0
    %3114 = vmatprep.subr.mxu0 0.0
    %3115 = vmatpush1.msra.mxu0 0.0
    %3116 = vmatprep.subr.mxu0 0.0
    %3117 = vmatpush1.msra.mxu0 0.0
    %3118 = vmatprep.subr.mxu0 0.0
    %3119 = vmatpush1.msra.mxu0 0.0
    %3120 = vmatprep.subr.mxu0 0.0
    %3121 = vmatpush1.msra.mxu0 0.0
    %3122 = vmatprep.subr.mxu0 0.0
    %3123 = vmatpush1.msra.mxu0 0.0
    %3124 = vmatprep.subr.mxu0 0.0
    %3125 = vmatpush1.msra.mxu0 0.0
    %3126 = vmatprep.subr.mxu0 0.0
    %3127 = vmatpush1.msra.mxu0 0.0
    %3128 = vmatprep.subr.mxu0 0.0
    %3129 = vmatpush1.msra.mxu0 0.0
    %3130 = vmatprep.subr.mxu0 0.0
    %3131 = vmatpush1.msra.mxu0 0.0
    %3132 = vmatprep.subr.mxu0 0.0
    %3133 = vmatpush1.msra.mxu0 0.0
    %3134 = vmatprep.subr.mxu0 0.0
    %3135 = vmatpush1.msra.mxu0 0.0
    %3136 = vmatprep.subr.mxu0 0.0
    %3137 = vmatpush1.msra.mxu0 0.0
    %3138 = vmatprep.subr.mxu0 0.0
    %3139 = vmatpush1.msra.mxu0 0.0
    %3140 = vmatprep.subr.mxu0 0.0
    %3141 = vmatpush1.msra.mxu0 0.0
    %3142 = vmatprep.subr.mxu0 0.0
    %3143 = vmatpush1.msra.mxu0 0.0
    %3144 = vmatprep.subr.mxu0 0.0
    %3145 = vmatpush1.msra.mxu0 0.0
    %3146 = vmatprep.subr.mxu0 0.0
    %3147 = vmatpush1.msra.mxu0 0.0
    %3148 = vmatprep.subr.mxu0 0.0
    %3149 = vmatpush1.msra.mxu0 0.0
    %3150 = vmatprep.subr.mxu0 0.0
    %3151 = vmatpush1.msra.mxu0 0.0
    %3152 = vmatprep.subr.mxu0 0.0
    %3153 = vmatpush1.msra.mxu0 0.0
    %3154 = vmatprep.subr.mxu0 0.0
    %3155 = vmatpush1.msra.mxu0 0.0
    %3156 = vmatprep.mubr.f32.mxu0 0.0
    %3157 = vmatmul.mubr.f32.gmra.mrb[0].mxu0 %v3045
    %v3158 = vpop.f32.mrb[0].mxu0
    %v3159 = vadd.f32 0.0, %v3158
    %v3160 = vpop.f32.mrb[0].mxu0
    %3161 = vmatprep.mubr.f32.mxu0 0.0
    %3162 = vmatmul.mubr.f32.gmra.mrb[0].mxu0 %v3048
    %v3163 = vpop.f32.mrb[0].mxu0
    %v3164 = vadd.f32 0.0, %v3163
    %v3165 = vpop.f32.mrb[0].mxu0
    %3166 = vmatprep.mubr.f32.mxu0 0.0
    %3167 = vmatmul.mubr.f32.gmra.mrb[0].mxu0 %v3051
    %v3168 = vpop.f32.mrb[0].mxu0
    %v3169 = vadd.f32 0.0, %v3168
    %v3170 = vpop.f32.mrb[0].mxu0
    %3171 = vmatprep.mubr.f32.mxu0 0.0
    %3172 = vmatmul.mubr.f32.gmra.mrb[0].mxu0 %v3054
    %v3173 = vpop.f32.mrb[0].mxu0
    %v3174 = vadd.f32 0.0, %v3173
    %v3175 = vpop.f32.mrb[0].mxu0
    %3176 = vmatprep.mubr.f32.mxu0 0.0
    %3177 = vmatmul.mubr.f32.gmra.mrb[0].mxu0 %v3057
    %v3178 = vpop.f32.mrb[0].mxu0
    %v3179 = vadd.f32 0.0, %v3178
    %v3180 = vpop.f32.mrb[0].mxu0
    %3181 = vmatprep.mubr.f32.mxu0 0.0
    %3182 = vmatmul.mubr.f32.gmra.mrb[0].mxu0 %v3060
    %v3183 = vpop.f32.mrb[0].mxu0
    %v3184 = vadd.f32 0.0, %v3183
    %v3185 = vpop.f32.mrb[0].mxu0
    %3186 = vmatprep.mubr.f32.mxu0 0.0
    %3187 = vmatmul.mubr.f32.gmra.mrb[0].mxu0 %v3063
    %v3188 = vpop.f32.mrb[0].mxu0
    %v3189 = vadd.f32 0.0, %v3188
    %v3190 = vpop.f32.mrb[0].mxu0
    %3191 = vmatprep.mubr.f32.mxu0 0.0
    %3192 = vmatmul.mubr.f32.gmra.mrb[0].mxu0 %v3066
    %v3193 = vpop.f32.mrb[0].mxu0
    %v3194 = vadd.f32 0.0, %v3193
    %v3195 = vpop.f32.mrb[0].mxu0
    %3196 = vmatprep.mubr.f32.mxu0 0.0
    %3197 = vmatmul.mubr.f32.gmra.mrb[0].mxu0 %v3069
    %v3198 = vpop.f32.mrb[0].mxu0
    %v3199 = vadd.f32 0.0, %v3198
    %v3200 = vpop.f32.mrb[0].mxu0
    %3201 = vmatprep.mubr.f32.mxu0 0.0
    %3202 = vmatmul.mubr.f32.gmra.mrb[0].mxu0 %v3072
    %v3203 = vpop.f32.mrb[0].mxu0
    %v3204 = vadd.f32 0.0, %v3203
    %v3205 = vpop.f32.mrb[0].mxu0
    %3206 = vmatprep.mubr.f32.mxu0 0.0
    %3207 = vmatmul.mubr.f32.gmra.mrb[0].mxu0 %v3075
    %v3208 = vpop.f32.mrb[0].mxu0
    %v3209 = vadd.f32 0.0, %v3208
    %v3210 = vpop.f32.mrb[0].mxu0
    %3211 = vmatprep.mubr.f32.mxu0 0.0
    %3212 = vmatmul.mubr.f32.gmra.mrb[0].mxu0 %v3078
    %v3213 = vpop.f32.mrb[0].mxu0
    %v3214 = vadd.f32 0.0, %v3213
    %v3215 = vpop.f32.mrb[0].mxu0
    %3216 = vmatprep.mubr.f32.mxu0 0.0
    %3217 = vmatmul.mubr.f32.gmra.mrb[0].mxu0 %v3081
    %v3218 = vpop.f32.mrb[0].mxu0
    %v3219 = vadd.f32 0.0, %v3218
    %v3220 = vpop.f32.mrb[0].mxu0
    %3221 = vmatprep.mubr.f32.mxu0 0.0
    %3222 = vmatmul.mubr.f32.gmra.mrb[0].mxu0 %v3084
    %v3223 = vpop.f32.mrb[0].mxu0
    %v3224 = vadd.f32 0.0, %v3223
    %v3225 = vpop.f32.mrb[0].mxu0
    %3226 = vmatprep.mubr.f32.mxu0 0.0
    %3227 = vmatmul.mubr.f32.gmra.mrb[0].mxu0 %v3087
    %v3228 = vpop.f32.mrb[0].mxu0
    %v3229 = vadd.f32 0.0, %v3228
    %v3230 = vpop.f32.mrb[0].mxu0
    %3231 = vmatprep.mubr.f32.mxu0 0.0
    %3232 = vmatmul.mubr.f32.gmra.mrb[0].mxu0 %v3090
    %v3233 = vpop.f32.mrb[0].mxu0
    %v3234 = vadd.f32 0.0, %v3233
    %v3235 = vpop.f32.mrb[0].mxu0
    %3236 = vdwg.mxu0
    %v3237 = vadd.f32 %v2930, %v3159
    %v3238 = vadd.f32 %v2931, %v3164
    %v3239 = vadd.f32 %v2932, %v3169
    %v3240 = vadd.f32 %v2933, %v3174
    %v3241 = vadd.f32 %v2934, %v3179
    %v3242 = vadd.f32 %v2935, %v3184
    %v3243 = vadd.f32 %v2936, %v3189
    %v3244 = vadd.f32 %v2937, %v3194
    %v3245 = vadd.f32 %v2938, %v3199
    %v3246 = vadd.f32 %v2939, %v3204
    %v3247 = vadd.f32 %v2940, %v3209
    %v3248 = vadd.f32 %v2941, %v3214
    %v3249 = vadd.f32 %v2942, %v3219
    %v3250 = vadd.f32 %v2943, %v3224
    %v3251 = vadd.f32 %v2944, %v3229
    %v3252 = vadd.f32 %v2945, %v3234
    %v3253 = vld [vmem:[#allocation2 + $0x10] sm:$0xff]
    %v3254 = vld [vmem:[#allocation2 + $0x18] sm:$0xff]
    %v3255 = vld [vmem:[#allocation2 + $0x20] sm:$0xff]
    %v3256 = vld [vmem:[#allocation2 + $0x28] sm:$0xff]
    %v3257 = vld [vmem:[#allocation2 + $0x30] sm:$0xff]
    %v3258 = vld [vmem:[#allocation2 + $0x38] sm:$0xff]
    %v3259 = vld [vmem:[#allocation2 + $0x40] sm:$0xff]
    %v3260 = vld [vmem:[#allocation2 + $0x48] sm:$0xff]
    %v3261 = vld [vmem:[#allocation2 + $0x50] sm:$0xff]
    %v3262 = vld [vmem:[#allocation2 + $0x58] sm:$0xff]
    %v3263 = vld [vmem:[#allocation2 + $0x60] sm:$0xff]
    %v3264 = vld [vmem:[#allocation2 + $0x68] sm:$0xff]
    %v3265 = vld [vmem:[#allocation2 + $0x70] sm:$0xff]
    %v3266 = vld [vmem:[#allocation2 + $0x78] sm:$0xff]
    %v3267 = vld [vmem:[#allocation2 + $0x80] sm:$0xff]
    %v3268 = vld [vmem:[#allocation2 + $0x88] sm:$0xff]
    %s3269 = scalar_lea.vmem [#allocation9], 32
    %v3270 = vld [vmem:[%s3269] sm:$0xff]
    %v3272 = vsel %vm2009, %v3253, 0
    %v3275 = vsel %vm2009, %v3254, 0
    %v3278 = vsel %vm2009, %v3255, 0
    %v3281 = vsel %vm2009, %v3256, 0
    %v3284 = vsel %vm2009, %v3257, 0
    %v3287 = vsel %vm2009, %v3258, 0
    %v3290 = vsel %vm2009, %v3259, 0
    %v3293 = vsel %vm2009, %v3260, 0
    %v3296 = vsel %vm2009, %v3261, 0
    %v3299 = vsel %vm2009, %v3262, 0
    %v3302 = vsel %vm2009, %v3263, 0
    %v3305 = vsel %vm2009, %v3264, 0
    %v3308 = vsel %vm2009, %v3265, 0
    %v3311 = vsel %vm2009, %v3266, 0
    %v3314 = vsel %vm2009, %v3267, 0
    %v3317 = vsel %vm2009, %v3268, 0
    %3319 = vmatprep.subr.mxu0 0.0
    %3320 = vmatpush1.msra.mxu0 %v3270
    %3321 = vmatprep.subr.mxu0 0.0
    %3322 = vmatpush1.msra.mxu0 0.0
    %3323 = vmatprep.subr.mxu0 0.0
    %3324 = vmatpush1.msra.mxu0 0.0
    %3325 = vmatprep.subr.mxu0 0.0
    %3326 = vmatpush1.msra.mxu0 0.0
    %3327 = vmatprep.subr.mxu0 0.0
    %3328 = vmatpush1.msra.mxu0 0.0
    %3329 = vmatprep.subr.mxu0 0.0
    %3330 = vmatpush1.msra.mxu0 0.0
    %3331 = vmatprep.subr.mxu0 0.0
    %3332 = vmatpush1.msra.mxu0 0.0
    %3333 = vmatprep.subr.mxu0 0.0
    %3334 = vmatpush1.msra.mxu0 0.0
    %3335 = vmatprep.subr.mxu0 0.0
    %3336 = vmatpush1.msra.mxu0 0.0
    %3337 = vmatprep.subr.mxu0 0.0
    %3338 = vmatpush1.msra.mxu0 0.0
    %3339 = vmatprep.subr.mxu0 0.0
    %3340 = vmatpush1.msra.mxu0 0.0
    %3341 = vmatprep.subr.mxu0 0.0
    %3342 = vmatpush1.msra.mxu0 0.0
    %3343 = vmatprep.subr.mxu0 0.0
    %3344 = vmatpush1.msra.mxu0 0.0
    %3345 = vmatprep.subr.mxu0 0.0
    %3346 = vmatpush1.msra.mxu0 0.0
    %3347 = vmatprep.subr.mxu0 0.0
    %3348 = vmatpush1.msra.mxu0 0.0
    %3349 = vmatprep.subr.mxu0 0.0
    %3350 = vmatpush1.msra.mxu0 0.0
    %3351 = vmatprep.subr.mxu0 0.0
    %3352 = vmatpush1.msra.mxu0 0.0
    %3353 = vmatprep.subr.mxu0 0.0
    %3354 = vmatpush1.msra.mxu0 0.0
    %3355 = vmatprep.subr.mxu0 0.0
    %3356 = vmatpush1.msra.mxu0 0.0
    %3357 = vmatprep.subr.mxu0 0.0
    %3358 = vmatpush1.msra.mxu0 0.0
    %3359 = vmatprep.subr.mxu0 0.0
    %3360 = vmatpush1.msra.mxu0 0.0
    %3361 = vmatprep.subr.mxu0 0.0
    %3362 = vmatpush1.msra.mxu0 0.0
    %3363 = vmatprep.subr.mxu0 0.0
    %3364 = vmatpush1.msra.mxu0 0.0
    %3365 = vmatprep.subr.mxu0 0.0
    %3366 = vmatpush1.msra.mxu0 0.0
    %3367 = vmatprep.subr.mxu0 0.0
    %3368 = vmatpush1.msra.mxu0 0.0
    %3369 = vmatprep.subr.mxu0 0.0
    %3370 = vmatpush1.msra.mxu0 0.0
    %3371 = vmatprep.subr.mxu0 0.0
    %3372 = vmatpush1.msra.mxu0 0.0
    %3373 = vmatprep.subr.mxu0 0.0
    %3374 = vmatpush1.msra.mxu0 0.0
    %3375 = vmatprep.subr.mxu0 0.0
    %3376 = vmatpush1.msra.mxu0 0.0
    %3377 = vmatprep.subr.mxu0 0.0
    %3378 = vmatpush1.msra.mxu0 0.0
    %3379 = vmatprep.subr.mxu0 0.0
    %3380 = vmatpush1.msra.mxu0 0.0
    %3381 = vmatprep.subr.mxu0 0.0
    %3382 = vmatpush1.msra.mxu0 0.0
    %3383 = vmatprep.mubr.f32.mxu0 0.0
    %3384 = vmatmul.mubr.f32.gmra.mrb[0].mxu0 %v3272
    %v3385 = vpop.f32.mrb[0].mxu0
    %v3386 = vadd.f32 0.0, %v3385
    %v3387 = vpop.f32.mrb[0].mxu0
    %3388 = vmatprep.mubr.f32.mxu0 0.0
    %3389 = vmatmul.mubr.f32.gmra.mrb[0].mxu0 %v3275
    %v3390 = vpop.f32.mrb[0].mxu0
    %v3391 = vadd.f32 0.0, %v3390
    %v3392 = vpop.f32.mrb[0].mxu0
    %3393 = vmatprep.mubr.f32.mxu0 0.0
    %3394 = vmatmul.mubr.f32.gmra.mrb[0].mxu0 %v3278
    %v3395 = vpop.f32.mrb[0].mxu0
    %v3396 = vadd.f32 0.0, %v3395
    %v3397 = vpop.f32.mrb[0].mxu0
    %3398 = vmatprep.mubr.f32.mxu0 0.0
    %3399 = vmatmul.mubr.f32.gmra.mrb[0].mxu0 %v3281
    %v3400 = vpop.f32.mrb[0].mxu0
    %v3401 = vadd.f32 0.0, %v3400
    %v3402 = vpop.f32.mrb[0].mxu0
    %3403 = vmatprep.mubr.f32.mxu0 0.0
    %3404 = vmatmul.mubr.f32.gmra.mrb[0].mxu0 %v3284
    %v3405 = vpop.f32.mrb[0].mxu0
    %v3406 = vadd.f32 0.0, %v3405
    %v3407 = vpop.f32.mrb[0].mxu0
    %3408 = vmatprep.mubr.f32.mxu0 0.0
    %3409 = vmatmul.mubr.f32.gmra.mrb[0].mxu0 %v3287
    %v3410 = vpop.f32.mrb[0].mxu0
    %v3411 = vadd.f32 0.0, %v3410
    %v3412 = vpop.f32.mrb[0].mxu0
    %3413 = vmatprep.mubr.f32.mxu0 0.0
    %3414 = vmatmul.mubr.f32.gmra.mrb[0].mxu0 %v3290
    %v3415 = vpop.f32.mrb[0].mxu0
    %v3416 = vadd.f32 0.0, %v3415
    %v3417 = vpop.f32.mrb[0].mxu0
    %3418 = vmatprep.mubr.f32.mxu0 0.0
    %3419 = vmatmul.mubr.f32.gmra.mrb[0].mxu0 %v3293
    %v3420 = vpop.f32.mrb[0].mxu0
    %v3421 = vadd.f32 0.0, %v3420
    %v3422 = vpop.f32.mrb[0].mxu0
    %3423 = vmatprep.mubr.f32.mxu0 0.0
    %3424 = vmatmul.mubr.f32.gmra.mrb[0].mxu0 %v3296
    %v3425 = vpop.f32.mrb[0].mxu0
    %v3426 = vadd.f32 0.0, %v3425
    %v3427 = vpop.f32.mrb[0].mxu0
    %3428 = vmatprep.mubr.f32.mxu0 0.0
    %3429 = vmatmul.mubr.f32.gmra.mrb[0].mxu0 %v3299
    %v3430 = vpop.f32.mrb[0].mxu0
    %v3431 = vadd.f32 0.0, %v3430
    %v3432 = vpop.f32.mrb[0].mxu0
    %3433 = vmatprep.mubr.f32.mxu0 0.0
    %3434 = vmatmul.mubr.f32.gmra.mrb[0].mxu0 %v3302
    %v3435 = vpop.f32.mrb[0].mxu0
    %v3436 = vadd.f32 0.0, %v3435
    %v3437 = vpop.f32.mrb[0].mxu0
    %3438 = vmatprep.mubr.f32.mxu0 0.0
    %3439 = vmatmul.mubr.f32.gmra.mrb[0].mxu0 %v3305
    %v3440 = vpop.f32.mrb[0].mxu0
    %v3441 = vadd.f32 0.0, %v3440
    %v3442 = vpop.f32.mrb[0].mxu0
    %3443 = vmatprep.mubr.f32.mxu0 0.0
    %3444 = vmatmul.mubr.f32.gmra.mrb[0].mxu0 %v3308
    %v3445 = vpop.f32.mrb[0].mxu0
    %v3446 = vadd.f32 0.0, %v3445
    %v3447 = vpop.f32.mrb[0].mxu0
    %3448 = vmatprep.mubr.f32.mxu0 0.0
    %3449 = vmatmul.mubr.f32.gmra.mrb[0].mxu0 %v3311
    %v3450 = vpop.f32.mrb[0].mxu0
    %v3451 = vadd.f32 0.0, %v3450
    %v3452 = vpop.f32.mrb[0].mxu0
    %3453 = vmatprep.mubr.f32.mxu0 0.0
    %3454 = vmatmul.mubr.f32.gmra.mrb[0].mxu0 %v3314
    %v3455 = vpop.f32.mrb[0].mxu0
    %v3456 = vadd.f32 0.0, %v3455
    %v3457 = vpop.f32.mrb[0].mxu0
    %3458 = vmatprep.mubr.f32.mxu0 0.0
    %3459 = vmatmul.mubr.f32.gmra.mrb[0].mxu0 %v3317
    %v3460 = vpop.f32.mrb[0].mxu0
    %v3461 = vadd.f32 0.0, %v3460
    %v3462 = vpop.f32.mrb[0].mxu0
    %3463 = vdwg.mxu0
    %v3464 = vadd.f32 %v3237, %v3386
    %v3465 = vadd.f32 %v3238, %v3391
    %v3466 = vadd.f32 %v3239, %v3396
    %v3467 = vadd.f32 %v3240, %v3401
    %v3468 = vadd.f32 %v3241, %v3406
    %v3469 = vadd.f32 %v3242, %v3411
    %v3470 = vadd.f32 %v3243, %v3416
    %v3471 = vadd.f32 %v3244, %v3421
    %v3472 = vadd.f32 %v3245, %v3426
    %v3473 = vadd.f32 %v3246, %v3431
    %v3474 = vadd.f32 %v3247, %v3436
    %v3475 = vadd.f32 %v3248, %v3441
    %v3476 = vadd.f32 %v3249, %v3446
    %v3477 = vadd.f32 %v3250, %v3451
    %v3478 = vadd.f32 %v3251, %v3456
    %v3479 = vadd.f32 %v3252, %v3461
    %v3480 = vld [vmem:[#allocation2 + $0x11] sm:$0xff]
    %v3481 = vld [vmem:[#allocation2 + $0x19] sm:$0xff]
    %v3482 = vld [vmem:[#allocation2 + $0x21] sm:$0xff]
    %v3483 = vld [vmem:[#allocation2 + $0x29] sm:$0xff]
    %v3484 = vld [vmem:[#allocation2 + $0x31] sm:$0xff]
    %v3485 = vld [vmem:[#allocation2 + $0x39] sm:$0xff]
    %v3486 = vld [vmem:[#allocation2 + $0x41] sm:$0xff]
    %v3487 = vld [vmem:[#allocation2 + $0x49] sm:$0xff]
    %v3488 = vld [vmem:[#allocation2 + $0x51] sm:$0xff]
    %v3489 = vld [vmem:[#allocation2 + $0x59] sm:$0xff]
    %v3490 = vld [vmem:[#allocation2 + $0x61] sm:$0xff]
    %v3491 = vld [vmem:[#allocation2 + $0x69] sm:$0xff]
    %v3492 = vld [vmem:[#allocation2 + $0x71] sm:$0xff]
    %v3493 = vld [vmem:[#allocation2 + $0x79] sm:$0xff]
    %v3494 = vld [vmem:[#allocation2 + $0x81] sm:$0xff]
    %v3495 = vld [vmem:[#allocation2 + $0x89] sm:$0xff]
    %3496 = vset.pattern.permute.xlu0 5
    %3497 = vperm.xlu0 %3496, %v2042
    %v3498 = vpop.permute.xlu0 %3497
    %3500 = vset.pattern.permute.xlu0 5
    %3501 = vperm.xlu0 %3500, %v2043
    %v3502 = vpop.permute.xlu0 %3501
    %3504 = vset.pattern.permute.xlu0 5
    %3505 = vperm.xlu0 %3504, %v2044
    %v3506 = vpop.permute.xlu0 %3505
    %3508 = vset.pattern.permute.xlu0 5
    %3509 = vperm.xlu0 %3508, %v2045
    %v3510 = vpop.permute.xlu0 %3509
    %3512 = vset.pattern.permute.xlu0 5
    %3513 = vperm.xlu0 %3512, %v2046
    %v3514 = vpop.permute.xlu0 %3513
    %3516 = vset.pattern.permute.xlu0 5
    %3517 = vperm.xlu0 %3516, %v2047
    %v3518 = vpop.permute.xlu0 %3517
    %3520 = vset.pattern.permute.xlu0 5
    %3521 = vperm.xlu0 %3520, %v2048
    %v3522 = vpop.permute.xlu0 %3521
    %3524 = vset.pattern.permute.xlu0 5
    %3525 = vperm.xlu0 %3524, %v2049
    %v3526 = vpop.permute.xlu0 %3525
    %3528 = vset.pattern.permute.xlu0 5
    %3529 = vperm.xlu0 %3528, %v2050
    %v3530 = vpop.permute.xlu0 %3529
    %3532 = vset.pattern.permute.xlu0 5
    %3533 = vperm.xlu0 %3532, %v2051
    %v3534 = vpop.permute.xlu0 %3533
    %3536 = vset.pattern.permute.xlu0 5
    %3537 = vperm.xlu0 %3536, %v2052
    %v3538 = vpop.permute.xlu0 %3537
    %3540 = vset.pattern.permute.xlu0 5
    %3541 = vperm.xlu0 %3540, %v2053
    %v3542 = vpop.permute.xlu0 %3541
    %3544 = vset.pattern.permute.xlu0 5
    %3545 = vperm.xlu0 %3544, %v2054
    %v3546 = vpop.permute.xlu0 %3545
    %3548 = vset.pattern.permute.xlu0 5
    %3549 = vperm.xlu0 %3548, %v2055
    %v3550 = vpop.permute.xlu0 %3549
    %3552 = vset.pattern.permute.xlu0 5
    %3553 = vperm.xlu0 %3552, %v2056
    %v3554 = vpop.permute.xlu0 %3553
    %3556 = vset.pattern.permute.xlu0 5
    %3557 = vperm.xlu0 %3556, %v2057
    %v3558 = vpop.permute.xlu0 %3557
    %v3560 = vmul.f32 %v3480, %v3498
    %v3561 = vmul.f32 %v3481, %v3502
    %v3562 = vmul.f32 %v3482, %v3506
    %v3563 = vmul.f32 %v3483, %v3510
    %v3564 = vmul.f32 %v3484, %v3514
    %v3565 = vmul.f32 %v3485, %v3518
    %v3566 = vmul.f32 %v3486, %v3522
    %v3567 = vmul.f32 %v3487, %v3526
    %v3568 = vmul.f32 %v3488, %v3530
    %v3569 = vmul.f32 %v3489, %v3534
    %v3570 = vmul.f32 %v3490, %v3538
    %v3571 = vmul.f32 %v3491, %v3542
    %v3572 = vmul.f32 %v3492, %v3546
    %v3573 = vmul.f32 %v3493, %v3550
    %v3574 = vmul.f32 %v3494, %v3554
    %v3575 = vmul.f32 %v3495, %v3558
    %s3576 = scalar_lea.vmem [#allocation9], 40
    %v3577 = vld [vmem:[%s3576] sm:$0xff]
    %v3579 = vsel %vm2009, %v3560, 0
    %v3582 = vsel %vm2009, %v3561, 0
    %v3585 = vsel %vm2009, %v3562, 0
    %v3588 = vsel %vm2009, %v3563, 0
    %v3591 = vsel %vm2009, %v3564, 0
    %v3594 = vsel %vm2009, %v3565, 0
    %v3597 = vsel %vm2009, %v3566, 0
    %v3600 = vsel %vm2009, %v3567, 0
    %v3603 = vsel %vm2009, %v3568, 0
    %v3606 = vsel %vm2009, %v3569, 0
    %v3609 = vsel %vm2009, %v3570, 0
    %v3612 = vsel %vm2009, %v3571, 0
    %v3615 = vsel %vm2009, %v3572, 0
    %v3618 = vsel %vm2009, %v3573, 0
    %v3621 = vsel %vm2009, %v3574, 0
    %v3624 = vsel %vm2009, %v3575, 0
    %3626 = vmatprep.subr.mxu0 0.0
    %3627 = vmatpush1.msra.mxu0 %v3577
    %3628 = vmatprep.subr.mxu0 0.0
    %3629 = vmatpush1.msra.mxu0 0.0
    %3630 = vmatprep.subr.mxu0 0.0
    %3631 = vmatpush1.msra.mxu0 0.0
    %3632 = vmatprep.subr.mxu0 0.0
    %3633 = vmatpush1.msra.mxu0 0.0
    %3634 = vmatprep.subr.mxu0 0.0
    %3635 = vmatpush1.msra.mxu0 0.0
    %3636 = vmatprep.subr.mxu0 0.0
    %3637 = vmatpush1.msra.mxu0 0.0
    %3638 = vmatprep.subr.mxu0 0.0
    %3639 = vmatpush1.msra.mxu0 0.0
    %3640 = vmatprep.subr.mxu0 0.0
    %3641 = vmatpush1.msra.mxu0 0.0
    %3642 = vmatprep.subr.mxu0 0.0
    %3643 = vmatpush1.msra.mxu0 0.0
    %3644 = vmatprep.subr.mxu0 0.0
    %3645 = vmatpush1.msra.mxu0 0.0
    %3646 = vmatprep.subr.mxu0 0.0
    %3647 = vmatpush1.msra.mxu0 0.0
    %3648 = vmatprep.subr.mxu0 0.0
    %3649 = vmatpush1.msra.mxu0 0.0
    %3650 = vmatprep.subr.mxu0 0.0
    %3651 = vmatpush1.msra.mxu0 0.0
    %3652 = vmatprep.subr.mxu0 0.0
    %3653 = vmatpush1.msra.mxu0 0.0
    %3654 = vmatprep.subr.mxu0 0.0
    %3655 = vmatpush1.msra.mxu0 0.0
    %3656 = vmatprep.subr.mxu0 0.0
    %3657 = vmatpush1.msra.mxu0 0.0
    %3658 = vmatprep.subr.mxu0 0.0
    %3659 = vmatpush1.msra.mxu0 0.0
    %3660 = vmatprep.subr.mxu0 0.0
    %3661 = vmatpush1.msra.mxu0 0.0
    %3662 = vmatprep.subr.mxu0 0.0
    %3663 = vmatpush1.msra.mxu0 0.0
    %3664 = vmatprep.subr.mxu0 0.0
    %3665 = vmatpush1.msra.mxu0 0.0
    %3666 = vmatprep.subr.mxu0 0.0
    %3667 = vmatpush1.msra.mxu0 0.0
    %3668 = vmatprep.subr.mxu0 0.0
    %3669 = vmatpush1.msra.mxu0 0.0
    %3670 = vmatprep.subr.mxu0 0.0
    %3671 = vmatpush1.msra.mxu0 0.0
    %3672 = vmatprep.subr.mxu0 0.0
    %3673 = vmatpush1.msra.mxu0 0.0
    %3674 = vmatprep.subr.mxu0 0.0
    %3675 = vmatpush1.msra.mxu0 0.0
    %3676 = vmatprep.subr.mxu0 0.0
    %3677 = vmatpush1.msra.mxu0 0.0
    %3678 = vmatprep.subr.mxu0 0.0
    %3679 = vmatpush1.msra.mxu0 0.0
    %3680 = vmatprep.subr.mxu0 0.0
    %3681 = vmatpush1.msra.mxu0 0.0
    %3682 = vmatprep.subr.mxu0 0.0
    %3683 = vmatpush1.msra.mxu0 0.0
    %3684 = vmatprep.subr.mxu0 0.0
    %3685 = vmatpush1.msra.mxu0 0.0
    %3686 = vmatprep.subr.mxu0 0.0
    %3687 = vmatpush1.msra.mxu0 0.0
    %3688 = vmatprep.subr.mxu0 0.0
    %3689 = vmatpush1.msra.mxu0 0.0
    %3690 = vmatprep.mubr.f32.mxu0 0.0
    %3691 = vmatmul.mubr.f32.gmra.mrb[0].mxu0 %v3579
    %v3692 = vpop.f32.mrb[0].mxu0
    %v3693 = vadd.f32 0.0, %v3692
    %v3694 = vpop.f32.mrb[0].mxu0
    %3695 = vmatprep.mubr.f32.mxu0 0.0
    %3696 = vmatmul.mubr.f32.gmra.mrb[0].mxu0 %v3582
    %v3697 = vpop.f32.mrb[0].mxu0
    %v3698 = vadd.f32 0.0, %v3697
    %v3699 = vpop.f32.mrb[0].mxu0
    %3700 = vmatprep.mubr.f32.mxu0 0.0
    %3701 = vmatmul.mubr.f32.gmra.mrb[0].mxu0 %v3585
    %v3702 = vpop.f32.mrb[0].mxu0
    %v3703 = vadd.f32 0.0, %v3702
    %v3704 = vpop.f32.mrb[0].mxu0
    %3705 = vmatprep.mubr.f32.mxu0 0.0
    %3706 = vmatmul.mubr.f32.gmra.mrb[0].mxu0 %v3588
    %v3707 = vpop.f32.mrb[0].mxu0
    %v3708 = vadd.f32 0.0, %v3707
    %v3709 = vpop.f32.mrb[0].mxu0
    %3710 = vmatprep.mubr.f32.mxu0 0.0
    %3711 = vmatmul.mubr.f32.gmra.mrb[0].mxu0 %v3591
    %v3712 = vpop.f32.mrb[0].mxu0
    %v3713 = vadd.f32 0.0, %v3712
    %v3714 = vpop.f32.mrb[0].mxu0
    %3715 = vmatprep.mubr.f32.mxu0 0.0
    %3716 = vmatmul.mubr.f32.gmra.mrb[0].mxu0 %v3594
    %v3717 = vpop.f32.mrb[0].mxu0
    %v3718 = vadd.f32 0.0, %v3717
    %v3719 = vpop.f32.mrb[0].mxu0
    %3720 = vmatprep.mubr.f32.mxu0 0.0
    %3721 = vmatmul.mubr.f32.gmra.mrb[0].mxu0 %v3597
    %v3722 = vpop.f32.mrb[0].mxu0
    %v3723 = vadd.f32 0.0, %v3722
    %v3724 = vpop.f32.mrb[0].mxu0
    %3725 = vmatprep.mubr.f32.mxu0 0.0
    %3726 = vmatmul.mubr.f32.gmra.mrb[0].mxu0 %v3600
    %v3727 = vpop.f32.mrb[0].mxu0
    %v3728 = vadd.f32 0.0, %v3727
    %v3729 = vpop.f32.mrb[0].mxu0
    %3730 = vmatprep.mubr.f32.mxu0 0.0
    %3731 = vmatmul.mubr.f32.gmra.mrb[0].mxu0 %v3603
    %v3732 = vpop.f32.mrb[0].mxu0
    %v3733 = vadd.f32 0.0, %v3732
    %v3734 = vpop.f32.mrb[0].mxu0
    %3735 = vmatprep.mubr.f32.mxu0 0.0
    %3736 = vmatmul.mubr.f32.gmra.mrb[0].mxu0 %v3606
    %v3737 = vpop.f32.mrb[0].mxu0
    %v3738 = vadd.f32 0.0, %v3737
    %v3739 = vpop.f32.mrb[0].mxu0
    %3740 = vmatprep.mubr.f32.mxu0 0.0
    %3741 = vmatmul.mubr.f32.gmra.mrb[0].mxu0 %v3609
    %v3742 = vpop.f32.mrb[0].mxu0
    %v3743 = vadd.f32 0.0, %v3742
    %v3744 = vpop.f32.mrb[0].mxu0
    %3745 = vmatprep.mubr.f32.mxu0 0.0
    %3746 = vmatmul.mubr.f32.gmra.mrb[0].mxu0 %v3612
    %v3747 = vpop.f32.mrb[0].mxu0
    %v3748 = vadd.f32 0.0, %v3747
    %v3749 = vpop.f32.mrb[0].mxu0
    %3750 = vmatprep.mubr.f32.mxu0 0.0
    %3751 = vmatmul.mubr.f32.gmra.mrb[0].mxu0 %v3615
    %v3752 = vpop.f32.mrb[0].mxu0
    %v3753 = vadd.f32 0.0, %v3752
    %v3754 = vpop.f32.mrb[0].mxu0
    %3755 = vmatprep.mubr.f32.mxu0 0.0
    %3756 = vmatmul.mubr.f32.gmra.mrb[0].mxu0 %v3618
    %v3757 = vpop.f32.mrb[0].mxu0
    %v3758 = vadd.f32 0.0, %v3757
    %v3759 = vpop.f32.mrb[0].mxu0
    %3760 = vmatprep.mubr.f32.mxu0 0.0
    %3761 = vmatmul.mubr.f32.gmra.mrb[0].mxu0 %v3621
    %v3762 = vpop.f32.mrb[0].mxu0
    %v3763 = vadd.f32 0.0, %v3762
    %v3764 = vpop.f32.mrb[0].mxu0
    %3765 = vmatprep.mubr.f32.mxu0 0.0
    %3766 = vmatmul.mubr.f32.gmra.mrb[0].mxu0 %v3624
    %v3767 = vpop.f32.mrb[0].mxu0
    %v3768 = vadd.f32 0.0, %v3767
    %v3769 = vpop.f32.mrb[0].mxu0
    %3770 = vdwg.mxu0
    %v3771 = vadd.f32 %v3464, %v3693
    %v3772 = vadd.f32 %v3465, %v3698
    %v3773 = vadd.f32 %v3466, %v3703
    %v3774 = vadd.f32 %v3467, %v3708
    %v3775 = vadd.f32 %v3468, %v3713
    %v3776 = vadd.f32 %v3469, %v3718
    %v3777 = vadd.f32 %v3470, %v3723
    %v3778 = vadd.f32 %v3471, %v3728
    %v3779 = vadd.f32 %v3472, %v3733
    %v3780 = vadd.f32 %v3473, %v3738
    %v3781 = vadd.f32 %v3474, %v3743
    %v3782 = vadd.f32 %v3475, %v3748
    %v3783 = vadd.f32 %v3476, %v3753
    %v3784 = vadd.f32 %v3477, %v3758
    %v3785 = vadd.f32 %v3478, %v3763
    %v3786 = vadd.f32 %v3479, %v3768
    %v3787 = vld [vmem:[#allocation2 + $0x17] sm:$0xff]
    %v3788 = vld [vmem:[#allocation2 + $0x1f] sm:$0xff]
    %v3789 = vld [vmem:[#allocation2 + $0x27] sm:$0xff]
    %v3790 = vld [vmem:[#allocation2 + $0x2f] sm:$0xff]
    %v3791 = vld [vmem:[#allocation2 + $0x37] sm:$0xff]
    %v3792 = vld [vmem:[#allocation2 + $0x3f] sm:$0xff]
    %v3793 = vld [vmem:[#allocation2 + $0x47] sm:$0xff]
    %v3794 = vld [vmem:[#allocation2 + $0x4f] sm:$0xff]
    %v3795 = vld [vmem:[#allocation2 + $0x57] sm:$0xff]
    %v3796 = vld [vmem:[#allocation2 + $0x5f] sm:$0xff]
    %v3797 = vld [vmem:[#allocation2 + $0x67] sm:$0xff]
    %v3798 = vld [vmem:[#allocation2 + $0x6f] sm:$0xff]
    %v3799 = vld [vmem:[#allocation2 + $0x77] sm:$0xff]
    %v3800 = vld [vmem:[#allocation2 + $0x7f] sm:$0xff]
    %v3801 = vld [vmem:[#allocation2 + $0x87] sm:$0xff]
    %v3802 = vld [vmem:[#allocation2 + $0x8f] sm:$0xff]
    %3803 = vset.pattern.permute.xlu0 6
    %3804 = vperm.xlu0 %3803, %v2042
    %v3805 = vpop.permute.xlu0 %3804
    %3807 = vset.pattern.permute.xlu0 6
    %3808 = vperm.xlu0 %3807, %v2043
    %v3809 = vpop.permute.xlu0 %3808
    %3811 = vset.pattern.permute.xlu0 6
    %3812 = vperm.xlu0 %3811, %v2044
    %v3813 = vpop.permute.xlu0 %3812
    %3815 = vset.pattern.permute.xlu0 6
    %3816 = vperm.xlu0 %3815, %v2045
    %v3817 = vpop.permute.xlu0 %3816
    %3819 = vset.pattern.permute.xlu0 6
    %3820 = vperm.xlu0 %3819, %v2046
    %v3821 = vpop.permute.xlu0 %3820
    %3823 = vset.pattern.permute.xlu0 6
    %3824 = vperm.xlu0 %3823, %v2047
    %v3825 = vpop.permute.xlu0 %3824
    %3827 = vset.pattern.permute.xlu0 6
    %3828 = vperm.xlu0 %3827, %v2048
    %v3829 = vpop.permute.xlu0 %3828
    %3831 = vset.pattern.permute.xlu0 6
    %3832 = vperm.xlu0 %3831, %v2049
    %v3833 = vpop.permute.xlu0 %3832
    %3835 = vset.pattern.permute.xlu0 6
    %3836 = vperm.xlu0 %3835, %v2050
    %v3837 = vpop.permute.xlu0 %3836
    %3839 = vset.pattern.permute.xlu0 6
    %3840 = vperm.xlu0 %3839, %v2051
    %v3841 = vpop.permute.xlu0 %3840
    %3843 = vset.pattern.permute.xlu0 6
    %3844 = vperm.xlu0 %3843, %v2052
    %v3845 = vpop.permute.xlu0 %3844
    %3847 = vset.pattern.permute.xlu0 6
    %3848 = vperm.xlu0 %3847, %v2053
    %v3849 = vpop.permute.xlu0 %3848
    %3851 = vset.pattern.permute.xlu0 6
    %3852 = vperm.xlu0 %3851, %v2054
    %v3853 = vpop.permute.xlu0 %3852
    %3855 = vset.pattern.permute.xlu0 6
    %3856 = vperm.xlu0 %3855, %v2055
    %v3857 = vpop.permute.xlu0 %3856
    %3859 = vset.pattern.permute.xlu0 6
    %3860 = vperm.xlu0 %3859, %v2056
    %v3861 = vpop.permute.xlu0 %3860
    %3863 = vset.pattern.permute.xlu0 6
    %3864 = vperm.xlu0 %3863, %v2057
    %v3865 = vpop.permute.xlu0 %3864
    %v3867 = vmul.f32 %v3787, %v3805
    %v3868 = vmul.f32 %v3788, %v3809
    %v3869 = vmul.f32 %v3789, %v3813
    %v3870 = vmul.f32 %v3790, %v3817
    %v3871 = vmul.f32 %v3791, %v3821
    %v3872 = vmul.f32 %v3792, %v3825
    %v3873 = vmul.f32 %v3793, %v3829
    %v3874 = vmul.f32 %v3794, %v3833
    %v3875 = vmul.f32 %v3795, %v3837
    %v3876 = vmul.f32 %v3796, %v3841
    %v3877 = vmul.f32 %v3797, %v3845
    %v3878 = vmul.f32 %v3798, %v3849
    %v3879 = vmul.f32 %v3799, %v3853
    %v3880 = vmul.f32 %v3800, %v3857
    %v3881 = vmul.f32 %v3801, %v3861
    %v3882 = vmul.f32 %v3802, %v3865
    %s3883 = scalar_lea.vmem [#allocation9], 48
    %v3884 = vld [vmem:[%s3883] sm:$0xff]
    %v3886 = vsel %vm2009, %v3867, 0
    %v3889 = vsel %vm2009, %v3868, 0
    %v3892 = vsel %vm2009, %v3869, 0
    %v3895 = vsel %vm2009, %v3870, 0
    %v3898 = vsel %vm2009, %v3871, 0
    %v3901 = vsel %vm2009, %v3872, 0
    %v3904 = vsel %vm2009, %v3873, 0
    %v3907 = vsel %vm2009, %v3874, 0
    %v3910 = vsel %vm2009, %v3875, 0
    %v3913 = vsel %vm2009, %v3876, 0
    %v3916 = vsel %vm2009, %v3877, 0
    %v3919 = vsel %vm2009, %v3878, 0
    %v3922 = vsel %vm2009, %v3879, 0
    %v3925 = vsel %vm2009, %v3880, 0
    %v3928 = vsel %vm2009, %v3881, 0
    %v3931 = vsel %vm2009, %v3882, 0
    %3933 = vmatprep.subr.mxu0 0.0
    %3934 = vmatpush1.msra.mxu0 %v3884
    %3935 = vmatprep.subr.mxu0 0.0
    %3936 = vmatpush1.msra.mxu0 0.0
    %3937 = vmatprep.subr.mxu0 0.0
    %3938 = vmatpush1.msra.mxu0 0.0
    %3939 = vmatprep.subr.mxu0 0.0
    %3940 = vmatpush1.msra.mxu0 0.0
    %3941 = vmatprep.subr.mxu0 0.0
    %3942 = vmatpush1.msra.mxu0 0.0
    %3943 = vmatprep.subr.mxu0 0.0
    %3944 = vmatpush1.msra.mxu0 0.0
    %3945 = vmatprep.subr.mxu0 0.0
    %3946 = vmatpush1.msra.mxu0 0.0
    %3947 = vmatprep.subr.mxu0 0.0
    %3948 = vmatpush1.msra.mxu0 0.0
    %3949 = vmatprep.subr.mxu0 0.0
    %3950 = vmatpush1.msra.mxu0 0.0
    %3951 = vmatprep.subr.mxu0 0.0
    %3952 = vmatpush1.msra.mxu0 0.0
    %3953 = vmatprep.subr.mxu0 0.0
    %3954 = vmatpush1.msra.mxu0 0.0
    %3955 = vmatprep.subr.mxu0 0.0
    %3956 = vmatpush1.msra.mxu0 0.0
    %3957 = vmatprep.subr.mxu0 0.0
    %3958 = vmatpush1.msra.mxu0 0.0
    %3959 = vmatprep.subr.mxu0 0.0
    %3960 = vmatpush1.msra.mxu0 0.0
    %3961 = vmatprep.subr.mxu0 0.0
    %3962 = vmatpush1.msra.mxu0 0.0
    %3963 = vmatprep.subr.mxu0 0.0
    %3964 = vmatpush1.msra.mxu0 0.0
    %3965 = vmatprep.subr.mxu0 0.0
    %3966 = vmatpush1.msra.mxu0 0.0
    %3967 = vmatprep.subr.mxu0 0.0
    %3968 = vmatpush1.msra.mxu0 0.0
    %3969 = vmatprep.subr.mxu0 0.0
    %3970 = vmatpush1.msra.mxu0 0.0
    %3971 = vmatprep.subr.mxu0 0.0
    %3972 = vmatpush1.msra.mxu0 0.0
    %3973 = vmatprep.subr.mxu0 0.0
    %3974 = vmatpush1.msra.mxu0 0.0
    %3975 = vmatprep.subr.mxu0 0.0
    %3976 = vmatpush1.msra.mxu0 0.0
    %3977 = vmatprep.subr.mxu0 0.0
    %3978 = vmatpush1.msra.mxu0 0.0
    %3979 = vmatprep.subr.mxu0 0.0
    %3980 = vmatpush1.msra.mxu0 0.0
    %3981 = vmatprep.subr.mxu0 0.0
    %3982 = vmatpush1.msra.mxu0 0.0
    %3983 = vmatprep.subr.mxu0 0.0
    %3984 = vmatpush1.msra.mxu0 0.0
    %3985 = vmatprep.subr.mxu0 0.0
    %3986 = vmatpush1.msra.mxu0 0.0
    %3987 = vmatprep.subr.mxu0 0.0
    %3988 = vmatpush1.msra.mxu0 0.0
    %3989 = vmatprep.subr.mxu0 0.0
    %3990 = vmatpush1.msra.mxu0 0.0
    %3991 = vmatprep.subr.mxu0 0.0
    %3992 = vmatpush1.msra.mxu0 0.0
    %3993 = vmatprep.subr.mxu0 0.0
    %3994 = vmatpush1.msra.mxu0 0.0
    %3995 = vmatprep.subr.mxu0 0.0
    %3996 = vmatpush1.msra.mxu0 0.0
    %3997 = vmatprep.mubr.f32.mxu0 0.0
    %3998 = vmatmul.mubr.f32.gmra.mrb[0].mxu0 %v3886
    %v3999 = vpop.f32.mrb[0].mxu0
    %v4000 = vadd.f32 0.0, %v3999
    %v4001 = vpop.f32.mrb[0].mxu0
    %4002 = vmatprep.mubr.f32.mxu0 0.0
    %4003 = vmatmul.mubr.f32.gmra.mrb[0].mxu0 %v3889
    %v4004 = vpop.f32.mrb[0].mxu0
    %v4005 = vadd.f32 0.0, %v4004
    %v4006 = vpop.f32.mrb[0].mxu0
    %4007 = vmatprep.mubr.f32.mxu0 0.0
    %4008 = vmatmul.mubr.f32.gmra.mrb[0].mxu0 %v3892
    %v4009 = vpop.f32.mrb[0].mxu0
    %v4010 = vadd.f32 0.0, %v4009
    %v4011 = vpop.f32.mrb[0].mxu0
    %4012 = vmatprep.mubr.f32.mxu0 0.0
    %4013 = vmatmul.mubr.f32.gmra.mrb[0].mxu0 %v3895
    %v4014 = vpop.f32.mrb[0].mxu0
    %v4015 = vadd.f32 0.0, %v4014
    %v4016 = vpop.f32.mrb[0].mxu0
    %4017 = vmatprep.mubr.f32.mxu0 0.0
    %4018 = vmatmul.mubr.f32.gmra.mrb[0].mxu0 %v3898
    %v4019 = vpop.f32.mrb[0].mxu0
    %v4020 = vadd.f32 0.0, %v4019
    %v4021 = vpop.f32.mrb[0].mxu0
    %4022 = vmatprep.mubr.f32.mxu0 0.0
    %4023 = vmatmul.mubr.f32.gmra.mrb[0].mxu0 %v3901
    %v4024 = vpop.f32.mrb[0].mxu0
    %v4025 = vadd.f32 0.0, %v4024
    %v4026 = vpop.f32.mrb[0].mxu0
    %4027 = vmatprep.mubr.f32.mxu0 0.0
    %4028 = vmatmul.mubr.f32.gmra.mrb[0].mxu0 %v3904
    %v4029 = vpop.f32.mrb[0].mxu0
    %v4030 = vadd.f32 0.0, %v4029
    %v4031 = vpop.f32.mrb[0].mxu0
    %4032 = vmatprep.mubr.f32.mxu0 0.0
    %4033 = vmatmul.mubr.f32.gmra.mrb[0].mxu0 %v3907
    %v4034 = vpop.f32.mrb[0].mxu0
    %v4035 = vadd.f32 0.0, %v4034
    %v4036 = vpop.f32.mrb[0].mxu0
    %4037 = vmatprep.mubr.f32.mxu0 0.0
    %4038 = vmatmul.mubr.f32.gmra.mrb[0].mxu0 %v3910
    %v4039 = vpop.f32.mrb[0].mxu0
    %v4040 = vadd.f32 0.0, %v4039
    %v4041 = vpop.f32.mrb[0].mxu0
    %4042 = vmatprep.mubr.f32.mxu0 0.0
    %4043 = vmatmul.mubr.f32.gmra.mrb[0].mxu0 %v3913
    %v4044 = vpop.f32.mrb[0].mxu0
    %v4045 = vadd.f32 0.0, %v4044
    %v4046 = vpop.f32.mrb[0].mxu0
    %4047 = vmatprep.mubr.f32.mxu0 0.0
    %4048 = vmatmul.mubr.f32.gmra.mrb[0].mxu0 %v3916
    %v4049 = vpop.f32.mrb[0].mxu0
    %v4050 = vadd.f32 0.0, %v4049
    %v4051 = vpop.f32.mrb[0].mxu0
    %4052 = vmatprep.mubr.f32.mxu0 0.0
    %4053 = vmatmul.mubr.f32.gmra.mrb[0].mxu0 %v3919
    %v4054 = vpop.f32.mrb[0].mxu0
    %v4055 = vadd.f32 0.0, %v4054
    %v4056 = vpop.f32.mrb[0].mxu0
    %4057 = vmatprep.mubr.f32.mxu0 0.0
    %4058 = vmatmul.mubr.f32.gmra.mrb[0].mxu0 %v3922
    %v4059 = vpop.f32.mrb[0].mxu0
    %v4060 = vadd.f32 0.0, %v4059
    %v4061 = vpop.f32.mrb[0].mxu0
    %4062 = vmatprep.mubr.f32.mxu0 0.0
    %4063 = vmatmul.mubr.f32.gmra.mrb[0].mxu0 %v3925
    %v4064 = vpop.f32.mrb[0].mxu0
    %v4065 = vadd.f32 0.0, %v4064
    %v4066 = vpop.f32.mrb[0].mxu0
    %4067 = vmatprep.mubr.f32.mxu0 0.0
    %4068 = vmatmul.mubr.f32.gmra.mrb[0].mxu0 %v3928
    %v4069 = vpop.f32.mrb[0].mxu0
    %v4070 = vadd.f32 0.0, %v4069
    %v4071 = vpop.f32.mrb[0].mxu0
    %4072 = vmatprep.mubr.f32.mxu0 0.0
    %4073 = vmatmul.mubr.f32.gmra.mrb[0].mxu0 %v3931
    %v4074 = vpop.f32.mrb[0].mxu0
    %v4075 = vadd.f32 0.0, %v4074
    %v4076 = vpop.f32.mrb[0].mxu0
    %4077 = vdwg.mxu0
    %v4078 = vadd.f32 %v3771, %v4000
    %v4079 = vadd.f32 %v3772, %v4005
    %v4080 = vadd.f32 %v3773, %v4010
    %v4081 = vadd.f32 %v3774, %v4015
    %v4082 = vadd.f32 %v3775, %v4020
    %v4083 = vadd.f32 %v3776, %v4025
    %v4084 = vadd.f32 %v3777, %v4030
    %v4085 = vadd.f32 %v3778, %v4035
    %v4086 = vadd.f32 %v3779, %v4040
    %v4087 = vadd.f32 %v3780, %v4045
    %v4088 = vadd.f32 %v3781, %v4050
    %v4089 = vadd.f32 %v3782, %v4055
    %v4090 = vadd.f32 %v3783, %v4060
    %v4091 = vadd.f32 %v3784, %v4065
    %v4092 = vadd.f32 %v3785, %v4070
    %v4093 = vadd.f32 %v3786, %v4075
    %v4094 = vld [vmem:[#allocation2 + $0x18] sm:$0xff]
    %v4095 = vld [vmem:[#allocation2 + $0x20] sm:$0xff]
    %v4096 = vld [vmem:[#allocation2 + $0x28] sm:$0xff]
    %v4097 = vld [vmem:[#allocation2 + $0x30] sm:$0xff]
    %v4098 = vld [vmem:[#allocation2 + $0x38] sm:$0xff]
    %v4099 = vld [vmem:[#allocation2 + $0x40] sm:$0xff]
    %v4100 = vld [vmem:[#allocation2 + $0x48] sm:$0xff]
    %v4101 = vld [vmem:[#allocation2 + $0x50] sm:$0xff]
    %v4102 = vld [vmem:[#allocation2 + $0x58] sm:$0xff]
    %v4103 = vld [vmem:[#allocation2 + $0x60] sm:$0xff]
    %v4104 = vld [vmem:[#allocation2 + $0x68] sm:$0xff]
    %v4105 = vld [vmem:[#allocation2 + $0x70] sm:$0xff]
    %v4106 = vld [vmem:[#allocation2 + $0x78] sm:$0xff]
    %v4107 = vld [vmem:[#allocation2 + $0x80] sm:$0xff]
    %v4108 = vld [vmem:[#allocation2 + $0x88] sm:$0xff]
    %v4109 = vld [vmem:[#allocation2 + $0x90] sm:$0xff]
    %4110 = vset.pattern.permute.xlu0 7
    %4111 = vperm.xlu0 %4110, %v2042
    %v4112 = vpop.permute.xlu0 %4111
    %4114 = vset.pattern.permute.xlu0 7
    %4115 = vperm.xlu0 %4114, %v2043
    %v4116 = vpop.permute.xlu0 %4115
    %4118 = vset.pattern.permute.xlu0 7
    %4119 = vperm.xlu0 %4118, %v2044
    %v4120 = vpop.permute.xlu0 %4119
    %4122 = vset.pattern.permute.xlu0 7
    %4123 = vperm.xlu0 %4122, %v2045
    %v4124 = vpop.permute.xlu0 %4123
    %4126 = vset.pattern.permute.xlu0 7
    %4127 = vperm.xlu0 %4126, %v2046
    %v4128 = vpop.permute.xlu0 %4127
    %4130 = vset.pattern.permute.xlu0 7
    %4131 = vperm.xlu0 %4130, %v2047
    %v4132 = vpop.permute.xlu0 %4131
    %4134 = vset.pattern.permute.xlu0 7
    %4135 = vperm.xlu0 %4134, %v2048
    %v4136 = vpop.permute.xlu0 %4135
    %4138 = vset.pattern.permute.xlu0 7
    %4139 = vperm.xlu0 %4138, %v2049
    %v4140 = vpop.permute.xlu0 %4139
    %4142 = vset.pattern.permute.xlu0 7
    %4143 = vperm.xlu0 %4142, %v2050
    %v4144 = vpop.permute.xlu0 %4143
    %4146 = vset.pattern.permute.xlu0 7
    %4147 = vperm.xlu0 %4146, %v2051
    %v4148 = vpop.permute.xlu0 %4147
    %4150 = vset.pattern.permute.xlu0 7
    %4151 = vperm.xlu0 %4150, %v2052
    %v4152 = vpop.permute.xlu0 %4151
    %4154 = vset.pattern.permute.xlu0 7
    %4155 = vperm.xlu0 %4154, %v2053
    %v4156 = vpop.permute.xlu0 %4155
    %4158 = vset.pattern.permute.xlu0 7
    %4159 = vperm.xlu0 %4158, %v2054
    %v4160 = vpop.permute.xlu0 %4159
    %4162 = vset.pattern.permute.xlu0 7
    %4163 = vperm.xlu0 %4162, %v2055
    %v4164 = vpop.permute.xlu0 %4163
    %4166 = vset.pattern.permute.xlu0 7
    %4167 = vperm.xlu0 %4166, %v2056
    %v4168 = vpop.permute.xlu0 %4167
    %4170 = vset.pattern.permute.xlu0 7
    %4171 = vperm.xlu0 %4170, %v2057
    %v4172 = vpop.permute.xlu0 %4171
    %v4174 = vmul.f32 %v4094, %v4112
    %v4175 = vmul.f32 %v4095, %v4116
    %v4176 = vmul.f32 %v4096, %v4120
    %v4177 = vmul.f32 %v4097, %v4124
    %v4178 = vmul.f32 %v4098, %v4128
    %v4179 = vmul.f32 %v4099, %v4132
    %v4180 = vmul.f32 %v4100, %v4136
    %v4181 = vmul.f32 %v4101, %v4140
    %v4182 = vmul.f32 %v4102, %v4144
    %v4183 = vmul.f32 %v4103, %v4148
    %v4184 = vmul.f32 %v4104, %v4152
    %v4185 = vmul.f32 %v4105, %v4156
    %v4186 = vmul.f32 %v4106, %v4160
    %v4187 = vmul.f32 %v4107, %v4164
    %v4188 = vmul.f32 %v4108, %v4168
    %v4189 = vmul.f32 %v4109, %v4172
    %s4190 = scalar_lea.vmem [#allocation9], 56
    %v4191 = vld [vmem:[%s4190] sm:$0xff]
    %v4193 = vsel %vm2009, %v4174, 0
    %v4196 = vsel %vm2009, %v4175, 0
    %v4199 = vsel %vm2009, %v4176, 0
    %v4202 = vsel %vm2009, %v4177, 0
    %v4205 = vsel %vm2009, %v4178, 0
    %v4208 = vsel %vm2009, %v4179, 0
    %v4211 = vsel %vm2009, %v4180, 0
    %v4214 = vsel %vm2009, %v4181, 0
    %v4217 = vsel %vm2009, %v4182, 0
    %v4220 = vsel %vm2009, %v4183, 0
    %v4223 = vsel %vm2009, %v4184, 0
    %v4226 = vsel %vm2009, %v4185, 0
    %v4229 = vsel %vm2009, %v4186, 0
    %v4232 = vsel %vm2009, %v4187, 0
    %v4235 = vsel %vm2009, %v4188, 0
    %v4238 = vsel %vm2009, %v4189, 0
    %4240 = vmatprep.subr.mxu0 0.0
    %4241 = vmatpush1.msra.mxu0 %v4191
    %4242 = vmatprep.subr.mxu0 0.0
    %4243 = vmatpush1.msra.mxu0 0.0
    %4244 = vmatprep.subr.mxu0 0.0
    %4245 = vmatpush1.msra.mxu0 0.0
    %4246 = vmatprep.subr.mxu0 0.0
    %4247 = vmatpush1.msra.mxu0 0.0
    %4248 = vmatprep.subr.mxu0 0.0
    %4249 = vmatpush1.msra.mxu0 0.0
    %4250 = vmatprep.subr.mxu0 0.0
    %4251 = vmatpush1.msra.mxu0 0.0
    %4252 = vmatprep.subr.mxu0 0.0
    %4253 = vmatpush1.msra.mxu0 0.0
    %4254 = vmatprep.subr.mxu0 0.0
    %4255 = vmatpush1.msra.mxu0 0.0
    %4256 = vmatprep.subr.mxu0 0.0
    %4257 = vmatpush1.msra.mxu0 0.0
    %4258 = vmatprep.subr.mxu0 0.0
    %4259 = vmatpush1.msra.mxu0 0.0
    %4260 = vmatprep.subr.mxu0 0.0
    %4261 = vmatpush1.msra.mxu0 0.0
    %4262 = vmatprep.subr.mxu0 0.0
    %4263 = vmatpush1.msra.mxu0 0.0
    %4264 = vmatprep.subr.mxu0 0.0
    %4265 = vmatpush1.msra.mxu0 0.0
    %4266 = vmatprep.subr.mxu0 0.0
    %4267 = vmatpush1.msra.mxu0 0.0
    %4268 = vmatprep.subr.mxu0 0.0
    %4269 = vmatpush1.msra.mxu0 0.0
    %4270 = vmatprep.subr.mxu0 0.0
    %4271 = vmatpush1.msra.mxu0 0.0
    %4272 = vmatprep.subr.mxu0 0.0
    %4273 = vmatpush1.msra.mxu0 0.0
    %4274 = vmatprep.subr.mxu0 0.0
    %4275 = vmatpush1.msra.mxu0 0.0
    %4276 = vmatprep.subr.mxu0 0.0
    %4277 = vmatpush1.msra.mxu0 0.0
    %4278 = vmatprep.subr.mxu0 0.0
    %4279 = vmatpush1.msra.mxu0 0.0
    %4280 = vmatprep.subr.mxu0 0.0
    %4281 = vmatpush1.msra.mxu0 0.0
    %4282 = vmatprep.subr.mxu0 0.0
    %4283 = vmatpush1.msra.mxu0 0.0
    %4284 = vmatprep.subr.mxu0 0.0
    %4285 = vmatpush1.msra.mxu0 0.0
    %4286 = vmatprep.subr.mxu0 0.0
    %4287 = vmatpush1.msra.mxu0 0.0
    %4288 = vmatprep.subr.mxu0 0.0
    %4289 = vmatpush1.msra.mxu0 0.0
    %4290 = vmatprep.subr.mxu0 0.0
    %4291 = vmatpush1.msra.mxu0 0.0
    %4292 = vmatprep.subr.mxu0 0.0
    %4293 = vmatpush1.msra.mxu0 0.0
    %4294 = vmatprep.subr.mxu0 0.0
    %4295 = vmatpush1.msra.mxu0 0.0
    %4296 = vmatprep.subr.mxu0 0.0
    %4297 = vmatpush1.msra.mxu0 0.0
    %4298 = vmatprep.subr.mxu0 0.0
    %4299 = vmatpush1.msra.mxu0 0.0
    %4300 = vmatprep.subr.mxu0 0.0
    %4301 = vmatpush1.msra.mxu0 0.0
    %4302 = vmatprep.subr.mxu0 0.0
    %4303 = vmatpush1.msra.mxu0 0.0
    %4304 = vmatprep.mubr.f32.mxu0 0.0
    %4305 = vmatmul.mubr.f32.gmra.mrb[0].mxu0 %v4193
    %v4306 = vpop.f32.mrb[0].mxu0
    %v4307 = vadd.f32 0.0, %v4306
    %v4308 = vpop.f32.mrb[0].mxu0
    %4309 = vmatprep.mubr.f32.mxu0 0.0
    %4310 = vmatmul.mubr.f32.gmra.mrb[0].mxu0 %v4196
    %v4311 = vpop.f32.mrb[0].mxu0
    %v4312 = vadd.f32 0.0, %v4311
    %v4313 = vpop.f32.mrb[0].mxu0
    %4314 = vmatprep.mubr.f32.mxu0 0.0
    %4315 = vmatmul.mubr.f32.gmra.mrb[0].mxu0 %v4199
    %v4316 = vpop.f32.mrb[0].mxu0
    %v4317 = vadd.f32 0.0, %v4316
    %v4318 = vpop.f32.mrb[0].mxu0
    %4319 = vmatprep.mubr.f32.mxu0 0.0
    %4320 = vmatmul.mubr.f32.gmra.mrb[0].mxu0 %v4202
    %v4321 = vpop.f32.mrb[0].mxu0
    %v4322 = vadd.f32 0.0, %v4321
    %v4323 = vpop.f32.mrb[0].mxu0
    %4324 = vmatprep.mubr.f32.mxu0 0.0
    %4325 = vmatmul.mubr.f32.gmra.mrb[0].mxu0 %v4205
    %v4326 = vpop.f32.mrb[0].mxu0
    %v4327 = vadd.f32 0.0, %v4326
    %v4328 = vpop.f32.mrb[0].mxu0
    %4329 = vmatprep.mubr.f32.mxu0 0.0
    %4330 = vmatmul.mubr.f32.gmra.mrb[0].mxu0 %v4208
    %v4331 = vpop.f32.mrb[0].mxu0
    %v4332 = vadd.f32 0.0, %v4331
    %v4333 = vpop.f32.mrb[0].mxu0
    %4334 = vmatprep.mubr.f32.mxu0 0.0
    %4335 = vmatmul.mubr.f32.gmra.mrb[0].mxu0 %v4211
    %v4336 = vpop.f32.mrb[0].mxu0
    %v4337 = vadd.f32 0.0, %v4336
    %v4338 = vpop.f32.mrb[0].mxu0
    %4339 = vmatprep.mubr.f32.mxu0 0.0
    %4340 = vmatmul.mubr.f32.gmra.mrb[0].mxu0 %v4214
    %v4341 = vpop.f32.mrb[0].mxu0
    %v4342 = vadd.f32 0.0, %v4341
    %v4343 = vpop.f32.mrb[0].mxu0
    %4344 = vmatprep.mubr.f32.mxu0 0.0
    %4345 = vmatmul.mubr.f32.gmra.mrb[0].mxu0 %v4217
    %v4346 = vpop.f32.mrb[0].mxu0
    %v4347 = vadd.f32 0.0, %v4346
    %v4348 = vpop.f32.mrb[0].mxu0
    %4349 = vmatprep.mubr.f32.mxu0 0.0
    %4350 = vmatmul.mubr.f32.gmra.mrb[0].mxu0 %v4220
    %v4351 = vpop.f32.mrb[0].mxu0
    %v4352 = vadd.f32 0.0, %v4351
    %v4353 = vpop.f32.mrb[0].mxu0
    %4354 = vmatprep.mubr.f32.mxu0 0.0
    %4355 = vmatmul.mubr.f32.gmra.mrb[0].mxu0 %v4223
    %v4356 = vpop.f32.mrb[0].mxu0
    %v4357 = vadd.f32 0.0, %v4356
    %v4358 = vpop.f32.mrb[0].mxu0
    %4359 = vmatprep.mubr.f32.mxu0 0.0
    %4360 = vmatmul.mubr.f32.gmra.mrb[0].mxu0 %v4226
    %v4361 = vpop.f32.mrb[0].mxu0
    %v4362 = vadd.f32 0.0, %v4361
    %v4363 = vpop.f32.mrb[0].mxu0
    %4364 = vmatprep.mubr.f32.mxu0 0.0
    %4365 = vmatmul.mubr.f32.gmra.mrb[0].mxu0 %v4229
    %v4366 = vpop.f32.mrb[0].mxu0
    %v4367 = vadd.f32 0.0, %v4366
    %v4368 = vpop.f32.mrb[0].mxu0
    %4369 = vmatprep.mubr.f32.mxu0 0.0
    %4370 = vmatmul.mubr.f32.gmra.mrb[0].mxu0 %v4232
    %v4371 = vpop.f32.mrb[0].mxu0
    %v4372 = vadd.f32 0.0, %v4371
    %v4373 = vpop.f32.mrb[0].mxu0
    %4374 = vmatprep.mubr.f32.mxu0 0.0
    %4375 = vmatmul.mubr.f32.gmra.mrb[0].mxu0 %v4235
    %v4376 = vpop.f32.mrb[0].mxu0
    %v4377 = vadd.f32 0.0, %v4376
    %v4378 = vpop.f32.mrb[0].mxu0
    %4379 = vmatprep.mubr.f32.mxu0 0.0
    %4380 = vmatmul.mubr.f32.gmra.mrb[0].mxu0 %v4238
    %v4381 = vpop.f32.mrb[0].mxu0
    %v4382 = vadd.f32 0.0, %v4381
    %v4383 = vpop.f32.mrb[0].mxu0
    %4384 = vdwg.mxu0
    %v4385 = vadd.f32 %v4078, %v4307
    %v4386 = vadd.f32 %v4079, %v4312
    %v4387 = vadd.f32 %v4080, %v4317
    %v4388 = vadd.f32 %v4081, %v4322
    %v4389 = vadd.f32 %v4082, %v4327
    %v4390 = vadd.f32 %v4083, %v4332
    %v4391 = vadd.f32 %v4084, %v4337
    %v4392 = vadd.f32 %v4085, %v4342
    %v4393 = vadd.f32 %v4086, %v4347
    %v4394 = vadd.f32 %v4087, %v4352
    %v4395 = vadd.f32 %v4088, %v4357
    %v4396 = vadd.f32 %v4089, %v4362
    %v4397 = vadd.f32 %v4090, %v4367
    %v4398 = vadd.f32 %v4091, %v4372
    %v4399 = vadd.f32 %v4092, %v4377
    %v4400 = vadd.f32 %v4093, %v4382
    %v4401 = vld [vmem:[#allocation2 + $0x19] sm:$0xff]
    %v4402 = vld [vmem:[#allocation2 + $0x21] sm:$0xff]
    %v4403 = vld [vmem:[#allocation2 + $0x29] sm:$0xff]
    %v4404 = vld [vmem:[#allocation2 + $0x31] sm:$0xff]
    %v4405 = vld [vmem:[#allocation2 + $0x39] sm:$0xff]
    %v4406 = vld [vmem:[#allocation2 + $0x41] sm:$0xff]
    %v4407 = vld [vmem:[#allocation2 + $0x49] sm:$0xff]
    %v4408 = vld [vmem:[#allocation2 + $0x51] sm:$0xff]
    %v4409 = vld [vmem:[#allocation2 + $0x59] sm:$0xff]
    %v4410 = vld [vmem:[#allocation2 + $0x61] sm:$0xff]
    %v4411 = vld [vmem:[#allocation2 + $0x69] sm:$0xff]
    %v4412 = vld [vmem:[#allocation2 + $0x71] sm:$0xff]
    %v4413 = vld [vmem:[#allocation2 + $0x79] sm:$0xff]
    %v4414 = vld [vmem:[#allocation2 + $0x81] sm:$0xff]
    %v4415 = vld [vmem:[#allocation2 + $0x89] sm:$0xff]
    %v4416 = vld [vmem:[#allocation2 + $0x91] sm:$0xff]
    %4417 = vset.pattern.permute.xlu0 8
    %4418 = vperm.xlu0 %4417, %v2042
    %v4419 = vpop.permute.xlu0 %4418
    %4421 = vset.pattern.permute.xlu0 8
    %4422 = vperm.xlu0 %4421, %v2043
    %v4423 = vpop.permute.xlu0 %4422
    %4425 = vset.pattern.permute.xlu0 8
    %4426 = vperm.xlu0 %4425, %v2044
    %v4427 = vpop.permute.xlu0 %4426
    %4429 = vset.pattern.permute.xlu0 8
    %4430 = vperm.xlu0 %4429, %v2045
    %v4431 = vpop.permute.xlu0 %4430
    %4433 = vset.pattern.permute.xlu0 8
    %4434 = vperm.xlu0 %4433, %v2046
    %v4435 = vpop.permute.xlu0 %4434
    %4437 = vset.pattern.permute.xlu0 8
    %4438 = vperm.xlu0 %4437, %v2047
    %v4439 = vpop.permute.xlu0 %4438
    %4441 = vset.pattern.permute.xlu0 8
    %4442 = vperm.xlu0 %4441, %v2048
    %v4443 = vpop.permute.xlu0 %4442
    %4445 = vset.pattern.permute.xlu0 8
    %4446 = vperm.xlu0 %4445, %v2049
    %v4447 = vpop.permute.xlu0 %4446
    %4449 = vset.pattern.permute.xlu0 8
    %4450 = vperm.xlu0 %4449, %v2050
    %v4451 = vpop.permute.xlu0 %4450
    %4453 = vset.pattern.permute.xlu0 8
    %4454 = vperm.xlu0 %4453, %v2051
    %v4455 = vpop.permute.xlu0 %4454
    %4457 = vset.pattern.permute.xlu0 8
    %4458 = vperm.xlu0 %4457, %v2052
    %v4459 = vpop.permute.xlu0 %4458
    %4461 = vset.pattern.permute.xlu0 8
    %4462 = vperm.xlu0 %4461, %v2053
    %v4463 = vpop.permute.xlu0 %4462
    %4465 = vset.pattern.permute.xlu0 8
    %4466 = vperm.xlu0 %4465, %v2054
    %v4467 = vpop.permute.xlu0 %4466
    %4469 = vset.pattern.permute.xlu0 8
    %4470 = vperm.xlu0 %4469, %v2055
    %v4471 = vpop.permute.xlu0 %4470
    %4473 = vset.pattern.permute.xlu0 8
    %4474 = vperm.xlu0 %4473, %v2056
    %v4475 = vpop.permute.xlu0 %4474
    %4477 = vset.pattern.permute.xlu0 8
    %4478 = vperm.xlu0 %4477, %v2057
    %v4479 = vpop.permute.xlu0 %4478
    %v4481 = vmul.f32 %v4401, %v4419
    %v4482 = vmul.f32 %v4402, %v4423
    %v4483 = vmul.f32 %v4403, %v4427
    %v4484 = vmul.f32 %v4404, %v4431
    %v4485 = vmul.f32 %v4405, %v4435
    %v4486 = vmul.f32 %v4406, %v4439
    %v4487 = vmul.f32 %v4407, %v4443
    %v4488 = vmul.f32 %v4408, %v4447
    %v4489 = vmul.f32 %v4409, %v4451
    %v4490 = vmul.f32 %v4410, %v4455
    %v4491 = vmul.f32 %v4411, %v4459
    %v4492 = vmul.f32 %v4412, %v4463
    %v4493 = vmul.f32 %v4413, %v4467
    %v4494 = vmul.f32 %v4414, %v4471
    %v4495 = vmul.f32 %v4415, %v4475
    %v4496 = vmul.f32 %v4416, %v4479
    %s4497 = scalar_lea.vmem [#allocation9], 64
    %v4498 = vld [vmem:[%s4497] sm:$0xff]
    %v4500 = vsel %vm2009, %v4481, 0
    %v4503 = vsel %vm2009, %v4482, 0
    %v4506 = vsel %vm2009, %v4483, 0
    %v4509 = vsel %vm2009, %v4484, 0
    %v4512 = vsel %vm2009, %v4485, 0
    %v4515 = vsel %vm2009, %v4486, 0
    %v4518 = vsel %vm2009, %v4487, 0
    %v4521 = vsel %vm2009, %v4488, 0
    %v4524 = vsel %vm2009, %v4489, 0
    %v4527 = vsel %vm2009, %v4490, 0
    %v4530 = vsel %vm2009, %v4491, 0
    %v4533 = vsel %vm2009, %v4492, 0
    %v4536 = vsel %vm2009, %v4493, 0
    %v4539 = vsel %vm2009, %v4494, 0
    %v4542 = vsel %vm2009, %v4495, 0
    %v4545 = vsel %vm2009, %v4496, 0
    %4547 = vmatprep.subr.mxu0 0.0
    %4548 = vmatpush1.msra.mxu0 %v4498
    %4549 = vmatprep.subr.mxu0 0.0
    %4550 = vmatpush1.msra.mxu0 0.0
    %4551 = vmatprep.subr.mxu0 0.0
    %4552 = vmatpush1.msra.mxu0 0.0
    %4553 = vmatprep.subr.mxu0 0.0
    %4554 = vmatpush1.msra.mxu0 0.0
    %4555 = vmatprep.subr.mxu0 0.0
    %4556 = vmatpush1.msra.mxu0 0.0
    %4557 = vmatprep.subr.mxu0 0.0
    %4558 = vmatpush1.msra.mxu0 0.0
    %4559 = vmatprep.subr.mxu0 0.0
    %4560 = vmatpush1.msra.mxu0 0.0
    %4561 = vmatprep.subr.mxu0 0.0
    %4562 = vmatpush1.msra.mxu0 0.0
    %4563 = vmatprep.subr.mxu0 0.0
    %4564 = vmatpush1.msra.mxu0 0.0
    %4565 = vmatprep.subr.mxu0 0.0
    %4566 = vmatpush1.msra.mxu0 0.0
    %4567 = vmatprep.subr.mxu0 0.0
    %4568 = vmatpush1.msra.mxu0 0.0
    %4569 = vmatprep.subr.mxu0 0.0
    %4570 = vmatpush1.msra.mxu0 0.0
    %4571 = vmatprep.subr.mxu0 0.0
    %4572 = vmatpush1.msra.mxu0 0.0
    %4573 = vmatprep.subr.mxu0 0.0
    %4574 = vmatpush1.msra.mxu0 0.0
    %4575 = vmatprep.subr.mxu0 0.0
    %4576 = vmatpush1.msra.mxu0 0.0
    %4577 = vmatprep.subr.mxu0 0.0
    %4578 = vmatpush1.msra.mxu0 0.0
    %4579 = vmatprep.subr.mxu0 0.0
    %4580 = vmatpush1.msra.mxu0 0.0
    %4581 = vmatprep.subr.mxu0 0.0
    %4582 = vmatpush1.msra.mxu0 0.0
    %4583 = vmatprep.subr.mxu0 0.0
    %4584 = vmatpush1.msra.mxu0 0.0
    %4585 = vmatprep.subr.mxu0 0.0
    %4586 = vmatpush1.msra.mxu0 0.0
    %4587 = vmatprep.subr.mxu0 0.0
    %4588 = vmatpush1.msra.mxu0 0.0
    %4589 = vmatprep.subr.mxu0 0.0
    %4590 = vmatpush1.msra.mxu0 0.0
    %4591 = vmatprep.subr.mxu0 0.0
    %4592 = vmatpush1.msra.mxu0 0.0
    %4593 = vmatprep.subr.mxu0 0.0
    %4594 = vmatpush1.msra.mxu0 0.0
    %4595 = vmatprep.subr.mxu0 0.0
    %4596 = vmatpush1.msra.mxu0 0.0
    %4597 = vmatprep.subr.mxu0 0.0
    %4598 = vmatpush1.msra.mxu0 0.0
    %4599 = vmatprep.subr.mxu0 0.0
    %4600 = vmatpush1.msra.mxu0 0.0
    %4601 = vmatprep.subr.mxu0 0.0
    %4602 = vmatpush1.msra.mxu0 0.0
    %4603 = vmatprep.subr.mxu0 0.0
    %4604 = vmatpush1.msra.mxu0 0.0
    %4605 = vmatprep.subr.mxu0 0.0
    %4606 = vmatpush1.msra.mxu0 0.0
    %4607 = vmatprep.subr.mxu0 0.0
    %4608 = vmatpush1.msra.mxu0 0.0
    %4609 = vmatprep.subr.mxu0 0.0
    %4610 = vmatpush1.msra.mxu0 0.0
    %4611 = vmatprep.mubr.f32.mxu0 0.0
    %4612 = vmatmul.mubr.f32.gmra.mrb[0].mxu0 %v4500
    %v4613 = vpop.f32.mrb[0].mxu0
    %v4614 = vadd.f32 0.0, %v4613
    %v4615 = vpop.f32.mrb[0].mxu0
    %4616 = vmatprep.mubr.f32.mxu0 0.0
    %4617 = vmatmul.mubr.f32.gmra.mrb[0].mxu0 %v4503
    %v4618 = vpop.f32.mrb[0].mxu0
    %v4619 = vadd.f32 0.0, %v4618
    %v4620 = vpop.f32.mrb[0].mxu0
    %4621 = vmatprep.mubr.f32.mxu0 0.0
    %4622 = vmatmul.mubr.f32.gmra.mrb[0].mxu0 %v4506
    %v4623 = vpop.f32.mrb[0].mxu0
    %v4624 = vadd.f32 0.0, %v4623
    %v4625 = vpop.f32.mrb[0].mxu0
    %4626 = vmatprep.mubr.f32.mxu0 0.0
    %4627 = vmatmul.mubr.f32.gmra.mrb[0].mxu0 %v4509
    %v4628 = vpop.f32.mrb[0].mxu0
    %v4629 = vadd.f32 0.0, %v4628
    %v4630 = vpop.f32.mrb[0].mxu0
    %4631 = vmatprep.mubr.f32.mxu0 0.0
    %4632 = vmatmul.mubr.f32.gmra.mrb[0].mxu0 %v4512
    %v4633 = vpop.f32.mrb[0].mxu0
    %v4634 = vadd.f32 0.0, %v4633
    %v4635 = vpop.f32.mrb[0].mxu0
    %4636 = vmatprep.mubr.f32.mxu0 0.0
    %4637 = vmatmul.mubr.f32.gmra.mrb[0].mxu0 %v4515
    %v4638 = vpop.f32.mrb[0].mxu0
    %v4639 = vadd.f32 0.0, %v4638
    %v4640 = vpop.f32.mrb[0].mxu0
    %4641 = vmatprep.mubr.f32.mxu0 0.0
    %4642 = vmatmul.mubr.f32.gmra.mrb[0].mxu0 %v4518
    %v4643 = vpop.f32.mrb[0].mxu0
    %v4644 = vadd.f32 0.0, %v4643
    %v4645 = vpop.f32.mrb[0].mxu0
    %4646 = vmatprep.mubr.f32.mxu0 0.0
    %4647 = vmatmul.mubr.f32.gmra.mrb[0].mxu0 %v4521
    %v4648 = vpop.f32.mrb[0].mxu0
    %v4649 = vadd.f32 0.0, %v4648
    %v4650 = vpop.f32.mrb[0].mxu0
    %4651 = vmatprep.mubr.f32.mxu0 0.0
    %4652 = vmatmul.mubr.f32.gmra.mrb[0].mxu0 %v4524
    %v4653 = vpop.f32.mrb[0].mxu0
    %v4654 = vadd.f32 0.0, %v4653
    %v4655 = vpop.f32.mrb[0].mxu0
    %4656 = vmatprep.mubr.f32.mxu0 0.0
    %4657 = vmatmul.mubr.f32.gmra.mrb[0].mxu0 %v4527
    %v4658 = vpop.f32.mrb[0].mxu0
    %v4659 = vadd.f32 0.0, %v4658
    %v4660 = vpop.f32.mrb[0].mxu0
    %4661 = vmatprep.mubr.f32.mxu0 0.0
    %4662 = vmatmul.mubr.f32.gmra.mrb[0].mxu0 %v4530
    %v4663 = vpop.f32.mrb[0].mxu0
    %v4664 = vadd.f32 0.0, %v4663
    %v4665 = vpop.f32.mrb[0].mxu0
    %4666 = vmatprep.mubr.f32.mxu0 0.0
    %4667 = vmatmul.mubr.f32.gmra.mrb[0].mxu0 %v4533
    %v4668 = vpop.f32.mrb[0].mxu0
    %v4669 = vadd.f32 0.0, %v4668
    %v4670 = vpop.f32.mrb[0].mxu0
    %4671 = vmatprep.mubr.f32.mxu0 0.0
    %4672 = vmatmul.mubr.f32.gmra.mrb[0].mxu0 %v4536
    %v4673 = vpop.f32.mrb[0].mxu0
    %v4674 = vadd.f32 0.0, %v4673
    %v4675 = vpop.f32.mrb[0].mxu0
    %4676 = vmatprep.mubr.f32.mxu0 0.0
    %4677 = vmatmul.mubr.f32.gmra.mrb[0].mxu0 %v4539
    %v4678 = vpop.f32.mrb[0].mxu0
    %v4679 = vadd.f32 0.0, %v4678
    %v4680 = vpop.f32.mrb[0].mxu0
    %4681 = vmatprep.mubr.f32.mxu0 0.0
    %4682 = vmatmul.mubr.f32.gmra.mrb[0].mxu0 %v4542
    %v4683 = vpop.f32.mrb[0].mxu0
    %v4684 = vadd.f32 0.0, %v4683
    %v4685 = vpop.f32.mrb[0].mxu0
    %4686 = vmatprep.mubr.f32.mxu0 0.0
    %4687 = vmatmul.mubr.f32.gmra.mrb[0].mxu0 %v4545
    %v4688 = vpop.f32.mrb[0].mxu0
    %v4689 = vadd.f32 0.0, %v4688
    %v4690 = vpop.f32.mrb[0].mxu0
    %4691 = vdwg.mxu0
    %v4692 = vadd.f32 %v4385, %v4614
    %v4693 = vadd.f32 %v4386, %v4619
    %v4694 = vadd.f32 %v4387, %v4624
    %v4695 = vadd.f32 %v4388, %v4629
    %v4696 = vadd.f32 %v4389, %v4634
    %v4697 = vadd.f32 %v4390, %v4639
    %v4698 = vadd.f32 %v4391, %v4644
    %v4699 = vadd.f32 %v4392, %v4649
    %v4700 = vadd.f32 %v4393, %v4654
    %v4701 = vadd.f32 %v4394, %v4659
    %v4702 = vadd.f32 %v4395, %v4664
    %v4703 = vadd.f32 %v4396, %v4669
    %v4704 = vadd.f32 %v4397, %v4674
    %v4705 = vadd.f32 %v4398, %v4679
    %v4706 = vadd.f32 %v4399, %v4684
    %v4707 = vadd.f32 %v4400, %v4689
    %v4708 = vld [vmem:[#allocation10] sm:$0x1]
    %v4710 = vlaneseq
    %v4711 = vshrl.u32 %v4710, 7
    %v4712 = vsub.s32 0, %v4711
    %v4713 = vrot.slane %v4708, %v4712
    %v4715 = vadd.f32 %v4692, %v4713
    %v4716 = vadd.f32 %v4693, %v4713
    %v4717 = vadd.f32 %v4694, %v4713
    %v4718 = vadd.f32 %v4695, %v4713
    %v4719 = vadd.f32 %v4696, %v4713
    %v4720 = vadd.f32 %v4697, %v4713
    %v4721 = vadd.f32 %v4698, %v4713
    %v4722 = vadd.f32 %v4699, %v4713
    %v4723 = vadd.f32 %v4700, %v4713
    %v4724 = vadd.f32 %v4701, %v4713
    %v4725 = vadd.f32 %v4702, %v4713
    %v4726 = vadd.f32 %v4703, %v4713
    %v4727 = vadd.f32 %v4704, %v4713
    %v4728 = vadd.f32 %v4705, %v4713
    %v4729 = vadd.f32 %v4706, %v4713
    %v4730 = vadd.f32 %v4707, %v4713
    %v4731 = vmax.f32 %v4715, 0.0
    %v4732 = vmax.f32 %v4716, 0.0
    %v4733 = vmax.f32 %v4717, 0.0
    %v4734 = vmax.f32 %v4718, 0.0
    %v4735 = vmax.f32 %v4719, 0.0
    %v4736 = vmax.f32 %v4720, 0.0
    %v4737 = vmax.f32 %v4721, 0.0
    %v4738 = vmax.f32 %v4722, 0.0
    %v4739 = vmax.f32 %v4723, 0.0
    %v4740 = vmax.f32 %v4724, 0.0
    %v4741 = vmax.f32 %v4725, 0.0
    %v4742 = vmax.f32 %v4726, 0.0
    %v4743 = vmax.f32 %v4727, 0.0
    %v4744 = vmax.f32 %v4728, 0.0
    %v4745 = vmax.f32 %v4729, 0.0
    %v4746 = vmax.f32 %v4730, 0.0
    %4747 = vst.msk [vmem:[#allocation2 + $0x10] sm:$0xff] %vm2009, %v4731
    %4748 = vst.msk [vmem:[#allocation2 + $0x18] sm:$0xff] %vm2009, %v4732
    %4749 = vst.msk [vmem:[#allocation2 + $0x20] sm:$0xff] %vm2009, %v4733
    %4750 = vst.msk [vmem:[#allocation2 + $0x28] sm:$0xff] %vm2009, %v4734
    %4751 = vst.msk [vmem:[#allocation2 + $0x30] sm:$0xff] %vm2009, %v4735
    %4752 = vst.msk [vmem:[#allocation2 + $0x38] sm:$0xff] %vm2009, %v4736
    %4753 = vst.msk [vmem:[#allocation2 + $0x40] sm:$0xff] %vm2009, %v4737
    %4754 = vst.msk [vmem:[#allocation2 + $0x48] sm:$0xff] %vm2009, %v4738
    %4755 = vst.msk [vmem:[#allocation2 + $0x50] sm:$0xff] %vm2009, %v4739
    %4756 = vst.msk [vmem:[#allocation2 + $0x58] sm:$0xff] %vm2009, %v4740
    %4757 = vst.msk [vmem:[#allocation2 + $0x60] sm:$0xff] %vm2009, %v4741
    %4758 = vst.msk [vmem:[#allocation2 + $0x68] sm:$0xff] %vm2009, %v4742
    %4759 = vst.msk [vmem:[#allocation2 + $0x70] sm:$0xff] %vm2009, %v4743
    %4760 = vst.msk [vmem:[#allocation2 + $0x78] sm:$0xff] %vm2009, %v4744
    %4761 = vst.msk [vmem:[#allocation2 + $0x80] sm:$0xff] %vm2009, %v4745
    %4762 = vst.msk [vmem:[#allocation2 + $0x88] sm:$0xff] %vm2009, %v4746
    %v4763 = vld [vmem:[#allocation2 + $0x11] sm:$0xff]
    %v4764 = vld [vmem:[#allocation2 + $0x19] sm:$0xff]
    %v4765 = vld [vmem:[#allocation2 + $0x21] sm:$0xff]
    %v4766 = vld [vmem:[#allocation2 + $0x29] sm:$0xff]
    %v4767 = vld [vmem:[#allocation2 + $0x31] sm:$0xff]
    %v4768 = vld [vmem:[#allocation2 + $0x39] sm:$0xff]
    %v4769 = vld [vmem:[#allocation2 + $0x41] sm:$0xff]
    %v4770 = vld [vmem:[#allocation2 + $0x49] sm:$0xff]
    %v4771 = vld [vmem:[#allocation2 + $0x51] sm:$0xff]
    %v4772 = vld [vmem:[#allocation2 + $0x59] sm:$0xff]
    %v4773 = vld [vmem:[#allocation2 + $0x61] sm:$0xff]
    %v4774 = vld [vmem:[#allocation2 + $0x69] sm:$0xff]
    %v4775 = vld [vmem:[#allocation2 + $0x71] sm:$0xff]
    %v4776 = vld [vmem:[#allocation2 + $0x79] sm:$0xff]
    %v4777 = vld [vmem:[#allocation2 + $0x81] sm:$0xff]
    %v4778 = vld [vmem:[#allocation2 + $0x89] sm:$0xff]
    %v4779 = vmax.f32 %v4731, %v4763
    %v4780 = vmax.f32 %v4732, %v4764
    %v4781 = vmax.f32 %v4733, %v4765
    %v4782 = vmax.f32 %v4734, %v4766
    %v4783 = vmax.f32 %v4735, %v4767
    %v4784 = vmax.f32 %v4736, %v4768
    %v4785 = vmax.f32 %v4737, %v4769
    %v4786 = vmax.f32 %v4738, %v4770
    %v4787 = vmax.f32 %v4739, %v4771
    %v4788 = vmax.f32 %v4740, %v4772
    %v4789 = vmax.f32 %v4741, %v4773
    %v4790 = vmax.f32 %v4742, %v4774
    %v4791 = vmax.f32 %v4743, %v4775
    %v4792 = vmax.f32 %v4744, %v4776
    %v4793 = vmax.f32 %v4745, %v4777
    %v4794 = vmax.f32 %v4746, %v4778
    %v4795 = vld [vmem:[#allocation2 + $0x18] sm:$0xff]
    %v4796 = vld [vmem:[#allocation2 + $0x20] sm:$0xff]
    %v4797 = vld [vmem:[#allocation2 + $0x28] sm:$0xff]
    %v4798 = vld [vmem:[#allocation2 + $0x30] sm:$0xff]
    %v4799 = vld [vmem:[#allocation2 + $0x38] sm:$0xff]
    %v4800 = vld [vmem:[#allocation2 + $0x40] sm:$0xff]
    %v4801 = vld [vmem:[#allocation2 + $0x48] sm:$0xff]
    %v4802 = vld [vmem:[#allocation2 + $0x50] sm:$0xff]
    %v4803 = vld [vmem:[#allocation2 + $0x58] sm:$0xff]
    %v4804 = vld [vmem:[#allocation2 + $0x60] sm:$0xff]
    %v4805 = vld [vmem:[#allocation2 + $0x68] sm:$0xff]
    %v4806 = vld [vmem:[#allocation2 + $0x70] sm:$0xff]
    %v4807 = vld [vmem:[#allocation2 + $0x78] sm:$0xff]
    %v4808 = vld [vmem:[#allocation2 + $0x80] sm:$0xff]
    %v4809 = vld [vmem:[#allocation2 + $0x88] sm:$0xff]
    %v4810 = vld [vmem:[#allocation2 + $0x90] sm:$0xff]
    %v4811 = vmax.f32 %v4779, %v4795
    %v4812 = vmax.f32 %v4780, %v4796
    %v4813 = vmax.f32 %v4781, %v4797
    %v4814 = vmax.f32 %v4782, %v4798
    %v4815 = vmax.f32 %v4783, %v4799
    %v4816 = vmax.f32 %v4784, %v4800
    %v4817 = vmax.f32 %v4785, %v4801
    %v4818 = vmax.f32 %v4786, %v4802
    %v4819 = vmax.f32 %v4787, %v4803
    %v4820 = vmax.f32 %v4788, %v4804
    %v4821 = vmax.f32 %v4789, %v4805
    %v4822 = vmax.f32 %v4790, %v4806
    %v4823 = vmax.f32 %v4791, %v4807
    %v4824 = vmax.f32 %v4792, %v4808
    %v4825 = vmax.f32 %v4793, %v4809
    %v4826 = vmax.f32 %v4794, %v4810
    %v4827 = vld [vmem:[#allocation2 + $0x91] sm:$0xff]
    %v4828 = vmax.f32 %v4811, %v4764
    %v4829 = vmax.f32 %v4812, %v4765
    %v4830 = vmax.f32 %v4813, %v4766
    %v4831 = vmax.f32 %v4814, %v4767
    %v4832 = vmax.f32 %v4815, %v4768
    %v4833 = vmax.f32 %v4816, %v4769
    %v4834 = vmax.f32 %v4817, %v4770
    %v4835 = vmax.f32 %v4818, %v4771
    %v4836 = vmax.f32 %v4819, %v4772
    %v4837 = vmax.f32 %v4820, %v4773
    %v4838 = vmax.f32 %v4821, %v4774
    %v4839 = vmax.f32 %v4822, %v4775
    %v4840 = vmax.f32 %v4823, %v4776
    %v4841 = vmax.f32 %v4824, %v4777
    %v4842 = vmax.f32 %v4825, %v4778
    %v4843 = vmax.f32 %v4826, %v4827
    %v4844 = vld [vmem:[%s13] sm:$0xff]
    %v4845 = vld [vmem:[%s13 + $0x8] sm:$0xff]
    %vm4846 = vcmask 523264
    %v4848 = vsel %vm4846, %v4844, 0
    %v4851 = vsel %vm4846, %v4845, 0
    %4853 = vmatprep.subr.mxu0 0.0
    %4854 = vmatpush1.msra.mxu0 %v4828
    %4855 = vmatprep.subr.mxu0 0.0
    %4856 = vmatpush1.msra.mxu0 %v4829
    %4857 = vmatprep.subr.mxu0 0.0
    %4858 = vmatpush1.msra.mxu0 %v4830
    %4859 = vmatprep.subr.mxu0 0.0
    %4860 = vmatpush1.msra.mxu0 %v4831
    %4861 = vmatprep.subr.mxu0 0.0
    %4862 = vmatpush1.msra.mxu0 %v4832
    %4863 = vmatprep.subr.mxu0 0.0
    %4864 = vmatpush1.msra.mxu0 %v4833
    %4865 = vmatprep.subr.mxu0 0.0
    %4866 = vmatpush1.msra.mxu0 %v4834
    %4867 = vmatprep.subr.mxu0 0.0
    %4868 = vmatpush1.msra.mxu0 %v4835
    %4869 = vmatprep.subr.mxu0 0.0
    %4870 = vmatpush1.msra.mxu0 0.0
    %4871 = vmatprep.subr.mxu0 0.0
    %4872 = vmatpush1.msra.mxu0 0.0
    %4873 = vmatprep.subr.mxu0 0.0
    %4874 = vmatpush1.msra.mxu0 0.0
    %4875 = vmatprep.subr.mxu0 0.0
    %4876 = vmatpush1.msra.mxu0 0.0
    %4877 = vmatprep.subr.mxu0 0.0
    %4878 = vmatpush1.msra.mxu0 0.0
    %4879 = vmatprep.subr.mxu0 0.0
    %4880 = vmatpush1.msra.mxu0 0.0
    %4881 = vmatprep.subr.mxu0 0.0
    %4882 = vmatpush1.msra.mxu0 0.0
    %4883 = vmatprep.subr.mxu0 0.0
    %4884 = vmatpush1.msra.mxu0 0.0
    %4885 = vmatprep.subr.mxu0 0.0
    %4886 = vmatpush1.msra.mxu0 0.0
    %4887 = vmatprep.subr.mxu0 0.0
    %4888 = vmatpush1.msra.mxu0 0.0
    %4889 = vmatprep.subr.mxu0 0.0
    %4890 = vmatpush1.msra.mxu0 0.0
    %4891 = vmatprep.subr.mxu0 0.0
    %4892 = vmatpush1.msra.mxu0 0.0
    %4893 = vmatprep.subr.mxu0 0.0
    %4894 = vmatpush1.msra.mxu0 0.0
    %4895 = vmatprep.subr.mxu0 0.0
    %4896 = vmatpush1.msra.mxu0 0.0
    %4897 = vmatprep.subr.mxu0 0.0
    %4898 = vmatpush1.msra.mxu0 0.0
    %4899 = vmatprep.subr.mxu0 0.0
    %4900 = vmatpush1.msra.mxu0 0.0
    %4901 = vmatprep.subr.mxu0 0.0
    %4902 = vmatpush1.msra.mxu0 0.0
    %4903 = vmatprep.subr.mxu0 0.0
    %4904 = vmatpush1.msra.mxu0 0.0
    %4905 = vmatprep.subr.mxu0 0.0
    %4906 = vmatpush1.msra.mxu0 0.0
    %4907 = vmatprep.subr.mxu0 0.0
    %4908 = vmatpush1.msra.mxu0 0.0
    %4909 = vmatprep.subr.mxu0 0.0
    %4910 = vmatpush1.msra.mxu0 0.0
    %4911 = vmatprep.subr.mxu0 0.0
    %4912 = vmatpush1.msra.mxu0 0.0
    %4913 = vmatprep.subr.mxu0 0.0
    %4914 = vmatpush1.msra.mxu0 0.0
    %4915 = vmatprep.subr.mxu0 0.0
    %4916 = vmatpush1.msra.mxu0 0.0
    %4917 = vmatprep.mubr.f32.mxu0 0.0
    %4918 = vmatmul.mubr.f32.gmra.mrb[0].mxu0 %v4848
    %v4919 = vpop.f32.mrb[0].mxu0
    %v4920 = vadd.f32 0.0, %v4919
    %v4921 = vpop.f32.mrb[0].mxu0
    %4922 = vmatprep.mubr.f32.mxu0 0.0
    %4923 = vmatmul.mubr.f32.gmra.mrb[0].mxu0 %v4851
    %v4924 = vpop.f32.mrb[0].mxu0
    %v4925 = vadd.f32 0.0, %v4924
    %v4926 = vpop.f32.mrb[0].mxu0
    %4927 = vdwg.mxu0
    %4928 = vst.msk [vmem:[#allocation2 + $0x10] sm:$0xff] %vm2009, %v4920
    %4929 = vst.msk [vmem:[#allocation2 + $0x18] sm:$0xff] %vm2009, %v4925
    %v4930 = vld [vmem:[%s13] sm:$0xff]
    %v4931 = vld [vmem:[%s13 + $0x8] sm:$0xff]
    %v4933 = vsel %vm4846, %v4930, 0
    %v4936 = vsel %vm4846, %v4931, 0
    %4938 = vmatprep.subr.mxu0 0.0
    %4939 = vmatpush1.msra.mxu0 %v4836
    %4940 = vmatprep.subr.mxu0 0.0
    %4941 = vmatpush1.msra.mxu0 %v4837
    %4942 = vmatprep.subr.mxu0 0.0
    %4943 = vmatpush1.msra.mxu0 %v4838
    %4944 = vmatprep.subr.mxu0 0.0
    %4945 = vmatpush1.msra.mxu0 %v4839
    %4946 = vmatprep.subr.mxu0 0.0
    %4947 = vmatpush1.msra.mxu0 %v4840
    %4948 = vmatprep.subr.mxu0 0.0
    %4949 = vmatpush1.msra.mxu0 %v4841
    %4950 = vmatprep.subr.mxu0 0.0
    %4951 = vmatpush1.msra.mxu0 %v4842
    %4952 = vmatprep.subr.mxu0 0.0
    %4953 = vmatpush1.msra.mxu0 %v4843
    %4954 = vmatprep.subr.mxu0 0.0
    %4955 = vmatpush1.msra.mxu0 0.0
    %4956 = vmatprep.subr.mxu0 0.0
    %4957 = vmatpush1.msra.mxu0 0.0
    %4958 = vmatprep.subr.mxu0 0.0
    %4959 = vmatpush1.msra.mxu0 0.0
    %4960 = vmatprep.subr.mxu0 0.0
    %4961 = vmatpush1.msra.mxu0 0.0
    %4962 = vmatprep.subr.mxu0 0.0
    %4963 = vmatpush1.msra.mxu0 0.0
    %4964 = vmatprep.subr.mxu0 0.0
    %4965 = vmatpush1.msra.mxu0 0.0
    %4966 = vmatprep.subr.mxu0 0.0
    %4967 = vmatpush1.msra.mxu0 0.0
    %4968 = vmatprep.subr.mxu0 0.0
    %4969 = vmatpush1.msra.mxu0 0.0
    %4970 = vmatprep.subr.mxu0 0.0
    %4971 = vmatpush1.msra.mxu0 0.0
    %4972 = vmatprep.subr.mxu0 0.0
    %4973 = vmatpush1.msra.mxu0 0.0
    %4974 = vmatprep.subr.mxu0 0.0
    %4975 = vmatpush1.msra.mxu0 0.0
    %4976 = vmatprep.subr.mxu0 0.0
    %4977 = vmatpush1.msra.mxu0 0.0
    %4978 = vmatprep.subr.mxu0 0.0
    %4979 = vmatpush1.msra.mxu0 0.0
    %4980 = vmatprep.subr.mxu0 0.0
    %4981 = vmatpush1.msra.mxu0 0.0
    %4982 = vmatprep.subr.mxu0 0.0
    %4983 = vmatpush1.msra.mxu0 0.0
    %4984 = vmatprep.subr.mxu0 0.0
    %4985 = vmatpush1.msra.mxu0 0.0
    %4986 = vmatprep.subr.mxu0 0.0
    %4987 = vmatpush1.msra.mxu0 0.0
    %4988 = vmatprep.subr.mxu0 0.0
    %4989 = vmatpush1.msra.mxu0 0.0
    %4990 = vmatprep.subr.mxu0 0.0
    %4991 = vmatpush1.msra.mxu0 0.0
    %4992 = vmatprep.subr.mxu0 0.0
    %4993 = vmatpush1.msra.mxu0 0.0
    %4994 = vmatprep.subr.mxu0 0.0
    %4995 = vmatpush1.msra.mxu0 0.0
    %4996 = vmatprep.subr.mxu0 0.0
    %4997 = vmatpush1.msra.mxu0 0.0
    %4998 = vmatprep.subr.mxu0 0.0
    %4999 = vmatpush1.msra.mxu0 0.0
    %5000 = vmatprep.subr.mxu0 0.0
    %5001 = vmatpush1.msra.mxu0 0.0
    %5002 = vmatprep.mubr.f32.mxu0 0.0
    %5003 = vmatmul.mubr.f32.gmra.mrb[0].mxu0 %v4933
    %v5004 = vpop.f32.mrb[0].mxu0
    %v5005 = vadd.f32 0.0, %v5004
    %v5006 = vpop.f32.mrb[0].mxu0
    %5007 = vmatprep.mubr.f32.mxu0 0.0
    %5008 = vmatmul.mubr.f32.gmra.mrb[0].mxu0 %v4936
    %v5009 = vpop.f32.mrb[0].mxu0
    %v5010 = vadd.f32 0.0, %v5009
    %v5011 = vpop.f32.mrb[0].mxu0
    %5012 = vdwg.mxu0
    %5013 = vst.msk [vmem:[#allocation2 + $0x20] sm:$0xff] %vm2009, %v5005
    %5014 = vst.msk [vmem:[#allocation2 + $0x28] sm:$0xff] %vm2009, %v5010
    %v5015 = vld [vmem:[#allocation2 + $0xb] sm:$0xff]
    %v5016 = vld [vmem:[#allocation2 + $0x13] sm:$0xff]
    %v5017 = vld [vmem:[#allocation2 + $0x1b] sm:$0xff]
    %v5018 = vld [vmem:[#allocation2 + $0x23] sm:$0xff]
    %v5019 = vld [vmem:[%s12] sm:$0xff]
    %v5020 = vld [vmem:[%s12 + $0x8] sm:$0xff]
    %v5021 = vld [vmem:[%s12 + $0x10] sm:$0xff]
    %v5022 = vld [vmem:[%s12 + $0x18] sm:$0xff]
    %5024 = vset.pattern.permute.xlu0 0
    %5025 = vperm.xlu0 %5024, %v5019
    %v5026 = vpop.permute.xlu0 %5025
    %5029 = vset.pattern.permute.xlu0 0
    %5030 = vperm.xlu0 %5029, %v5020
    %v5031 = vpop.permute.xlu0 %5030
    %5034 = vset.pattern.permute.xlu0 0
    %5035 = vperm.xlu0 %5034, %v5021
    %v5036 = vpop.permute.xlu0 %5035
    %5039 = vset.pattern.permute.xlu0 0
    %5040 = vperm.xlu0 %5039, %v5022
    %v5041 = vpop.permute.xlu0 %5040
    %v5043 = vmul.f32 %v5015, %v5026
    %v5044 = vmul.f32 %v5016, %v5031
    %v5045 = vmul.f32 %v5017, %v5036
    %v5046 = vmul.f32 %v5018, %v5041
    %v5047 = vld [vmem:[#allocation12] sm:$0xff]
    %v5048 = vld [vmem:[#allocation2 + $0xc] sm:$0xff]
    %v5049 = vld [vmem:[#allocation2 + $0x14] sm:$0xff]
    %v5050 = vld [vmem:[#allocation2 + $0x1c] sm:$0xff]
    %v5051 = vld [vmem:[#allocation2 + $0x24] sm:$0xff]
    %5052 = vset.pattern.permute.xlu0 1
    %5053 = vperm.xlu0 %5052, %v5019
    %v5054 = vpop.permute.xlu0 %5053
    %5056 = vset.pattern.permute.xlu0 1
    %5057 = vperm.xlu0 %5056, %v5020
    %v5058 = vpop.permute.xlu0 %5057
    %5060 = vset.pattern.permute.xlu0 1
    %5061 = vperm.xlu0 %5060, %v5021
    %v5062 = vpop.permute.xlu0 %5061
    %5064 = vset.pattern.permute.xlu0 1
    %5065 = vperm.xlu0 %5064, %v5022
    %v5066 = vpop.permute.xlu0 %5065
    %v5068 = vmul.f32 %v5048, %v5054
    %v5069 = vmul.f32 %v5049, %v5058
    %v5070 = vmul.f32 %v5050, %v5062
    %v5071 = vmul.f32 %v5051, %v5066
    %s5072 = scalar_lea.vmem [#allocation12], 8
    %v5073 = vld [vmem:[%s5072] sm:$0xff]
    %v5075 = vsel %vm2009, %v5068, 0
    %v5078 = vsel %vm2009, %v5069, 0
    %v5081 = vsel %vm2009, %v5070, 0
    %v5084 = vsel %vm2009, %v5071, 0
    %5086 = vmatprep.subr.mxu0 0.0
    %5087 = vmatpush1.msra.mxu0 %v5073
    %5088 = vmatprep.subr.mxu0 0.0
    %5089 = vmatpush1.msra.mxu0 0.0
    %5090 = vmatprep.subr.mxu0 0.0
    %5091 = vmatpush1.msra.mxu0 0.0
    %5092 = vmatprep.subr.mxu0 0.0
    %5093 = vmatpush1.msra.mxu0 0.0
    %5094 = vmatprep.subr.mxu0 0.0
    %5095 = vmatpush1.msra.mxu0 0.0
    %5096 = vmatprep.subr.mxu0 0.0
    %5097 = vmatpush1.msra.mxu0 0.0
    %5098 = vmatprep.subr.mxu0 0.0
    %5099 = vmatpush1.msra.mxu0 0.0
    %5100 = vmatprep.subr.mxu0 0.0
    %5101 = vmatpush1.msra.mxu0 0.0
    %5102 = vmatprep.subr.mxu0 0.0
    %5103 = vmatpush1.msra.mxu0 0.0
    %5104 = vmatprep.subr.mxu0 0.0
    %5105 = vmatpush1.msra.mxu0 0.0
    %5106 = vmatprep.subr.mxu0 0.0
    %5107 = vmatpush1.msra.mxu0 0.0
    %5108 = vmatprep.subr.mxu0 0.0
    %5109 = vmatpush1.msra.mxu0 0.0
    %5110 = vmatprep.subr.mxu0 0.0
    %5111 = vmatpush1.msra.mxu0 0.0
    %5112 = vmatprep.subr.mxu0 0.0
    %5113 = vmatpush1.msra.mxu0 0.0
    %5114 = vmatprep.subr.mxu0 0.0
    %5115 = vmatpush1.msra.mxu0 0.0
    %5116 = vmatprep.subr.mxu0 0.0
    %5117 = vmatpush1.msra.mxu0 0.0
    %5118 = vmatprep.subr.mxu0 0.0
    %5119 = vmatpush1.msra.mxu0 0.0
    %5120 = vmatprep.subr.mxu0 0.0
    %5121 = vmatpush1.msra.mxu0 0.0
    %5122 = vmatprep.subr.mxu0 0.0
    %5123 = vmatpush1.msra.mxu0 0.0
    %5124 = vmatprep.subr.mxu0 0.0
    %5125 = vmatpush1.msra.mxu0 0.0
    %5126 = vmatprep.subr.mxu0 0.0
    %5127 = vmatpush1.msra.mxu0 0.0
    %5128 = vmatprep.subr.mxu0 0.0
    %5129 = vmatpush1.msra.mxu0 0.0
    %5130 = vmatprep.subr.mxu0 0.0
    %5131 = vmatpush1.msra.mxu0 0.0
    %5132 = vmatprep.subr.mxu0 0.0
    %5133 = vmatpush1.msra.mxu0 0.0
    %5134 = vmatprep.subr.mxu0 0.0
    %5135 = vmatpush1.msra.mxu0 0.0
    %5136 = vmatprep.subr.mxu0 0.0
    %5137 = vmatpush1.msra.mxu0 0.0
    %5138 = vmatprep.subr.mxu0 0.0
    %5139 = vmatpush1.msra.mxu0 0.0
    %5140 = vmatprep.subr.mxu0 0.0
    %5141 = vmatpush1.msra.mxu0 0.0
    %5142 = vmatprep.subr.mxu0 0.0
    %5143 = vmatpush1.msra.mxu0 0.0
    %5144 = vmatprep.subr.mxu0 0.0
    %5145 = vmatpush1.msra.mxu0 0.0
    %5146 = vmatprep.subr.mxu0 0.0
    %5147 = vmatpush1.msra.mxu0 0.0
    %5148 = vmatprep.subr.mxu0 0.0
    %5149 = vmatpush1.msra.mxu0 0.0
    %5150 = vmatprep.mubr.f32.mxu0 0.0
    %5151 = vmatmul.mubr.f32.gmra.mrb[0].mxu0 %v5075
    %v5152 = vpop.f32.mrb[0].mxu0
    %v5153 = vadd.f32 0.0, %v5152
    %v5154 = vpop.f32.mrb[0].mxu0
    %5155 = vmatprep.mubr.f32.mxu0 0.0
    %5156 = vmatmul.mubr.f32.gmra.mrb[0].mxu0 %v5078
    %v5157 = vpop.f32.mrb[0].mxu0
    %v5158 = vadd.f32 0.0, %v5157
    %v5159 = vpop.f32.mrb[0].mxu0
    %5160 = vmatprep.mubr.f32.mxu0 0.0
    %5161 = vmatmul.mubr.f32.gmra.mrb[0].mxu0 %v5081
    %v5162 = vpop.f32.mrb[0].mxu0
    %v5163 = vadd.f32 0.0, %v5162
    %v5164 = vpop.f32.mrb[0].mxu0
    %5165 = vmatprep.mubr.f32.mxu0 0.0
    %5166 = vmatmul.mubr.f32.gmra.mrb[0].mxu0 %v5084
    %v5167 = vpop.f32.mrb[0].mxu0
    %v5168 = vadd.f32 0.0, %v5167
    %v5169 = vpop.f32.mrb[0].mxu0
    %5170 = vdwg.mxu0
    %v5172 = vsel %vm2009, %v5043, 0
    %v5175 = vsel %vm2009, %v5044, 0
    %v5178 = vsel %vm2009, %v5045, 0
    %v5181 = vsel %vm2009, %v5046, 0
    %5183 = vmatprep.subr.mxu0 0.0
    %5184 = vmatpush1.msra.mxu0 %v5047
    %5185 = vmatprep.subr.mxu0 0.0
    %5186 = vmatpush1.msra.mxu0 0.0
    %5187 = vmatprep.subr.mxu0 0.0
    %5188 = vmatpush1.msra.mxu0 0.0
    %5189 = vmatprep.subr.mxu0 0.0
    %5190 = vmatpush1.msra.mxu0 0.0
    %5191 = vmatprep.subr.mxu0 0.0
    %5192 = vmatpush1.msra.mxu0 0.0
    %5193 = vmatprep.subr.mxu0 0.0
    %5194 = vmatpush1.msra.mxu0 0.0
    %5195 = vmatprep.subr.mxu0 0.0
    %5196 = vmatpush1.msra.mxu0 0.0
    %5197 = vmatprep.subr.mxu0 0.0
    %5198 = vmatpush1.msra.mxu0 0.0
    %5199 = vmatprep.subr.mxu0 0.0
    %5200 = vmatpush1.msra.mxu0 0.0
    %5201 = vmatprep.subr.mxu0 0.0
    %5202 = vmatpush1.msra.mxu0 0.0
    %5203 = vmatprep.subr.mxu0 0.0
    %5204 = vmatpush1.msra.mxu0 0.0
    %5205 = vmatprep.subr.mxu0 0.0
    %5206 = vmatpush1.msra.mxu0 0.0
    %5207 = vmatprep.subr.mxu0 0.0
    %5208 = vmatpush1.msra.mxu0 0.0
    %5209 = vmatprep.subr.mxu0 0.0
    %5210 = vmatpush1.msra.mxu0 0.0
    %5211 = vmatprep.subr.mxu0 0.0
    %5212 = vmatpush1.msra.mxu0 0.0
    %5213 = vmatprep.subr.mxu0 0.0
    %5214 = vmatpush1.msra.mxu0 0.0
    %5215 = vmatprep.subr.mxu0 0.0
    %5216 = vmatpush1.msra.mxu0 0.0
    %5217 = vmatprep.subr.mxu0 0.0
    %5218 = vmatpush1.msra.mxu0 0.0
    %5219 = vmatprep.subr.mxu0 0.0
    %5220 = vmatpush1.msra.mxu0 0.0
    %5221 = vmatprep.subr.mxu0 0.0
    %5222 = vmatpush1.msra.mxu0 0.0
    %5223 = vmatprep.subr.mxu0 0.0
    %5224 = vmatpush1.msra.mxu0 0.0
    %5225 = vmatprep.subr.mxu0 0.0
    %5226 = vmatpush1.msra.mxu0 0.0
    %5227 = vmatprep.subr.mxu0 0.0
    %5228 = vmatpush1.msra.mxu0 0.0
    %5229 = vmatprep.subr.mxu0 0.0
    %5230 = vmatpush1.msra.mxu0 0.0
    %5231 = vmatprep.subr.mxu0 0.0
    %5232 = vmatpush1.msra.mxu0 0.0
    %5233 = vmatprep.subr.mxu0 0.0
    %5234 = vmatpush1.msra.mxu0 0.0
    %5235 = vmatprep.subr.mxu0 0.0
    %5236 = vmatpush1.msra.mxu0 0.0
    %5237 = vmatprep.subr.mxu0 0.0
    %5238 = vmatpush1.msra.mxu0 0.0
    %5239 = vmatprep.subr.mxu0 0.0
    %5240 = vmatpush1.msra.mxu0 0.0
    %5241 = vmatprep.subr.mxu0 0.0
    %5242 = vmatpush1.msra.mxu0 0.0
    %5243 = vmatprep.subr.mxu0 0.0
    %5244 = vmatpush1.msra.mxu0 0.0
    %5245 = vmatprep.subr.mxu0 0.0
    %5246 = vmatpush1.msra.mxu0 0.0
    %5247 = vmatprep.mubr.f32.mxu0 0.0
    %5248 = vmatmul.mubr.f32.gmra.mrb[0].mxu0 %v5172
    %v5249 = vpop.f32.mrb[0].mxu0
    %v5250 = vadd.f32 %v5153, %v5249
    %v5251 = vpop.f32.mrb[0].mxu0
    %5252 = vmatprep.mubr.f32.mxu0 0.0
    %5253 = vmatmul.mubr.f32.gmra.mrb[0].mxu0 %v5175
    %v5254 = vpop.f32.mrb[0].mxu0
    %v5255 = vadd.f32 %v5158, %v5254
    %v5256 = vpop.f32.mrb[0].mxu0
    %5257 = vmatprep.mubr.f32.mxu0 0.0
    %5258 = vmatmul.mubr.f32.gmra.mrb[0].mxu0 %v5178
    %v5259 = vpop.f32.mrb[0].mxu0
    %v5260 = vadd.f32 %v5163, %v5259
    %v5261 = vpop.f32.mrb[0].mxu0
    %5262 = vmatprep.mubr.f32.mxu0 0.0
    %5263 = vmatmul.mubr.f32.gmra.mrb[0].mxu0 %v5181
    %v5264 = vpop.f32.mrb[0].mxu0
    %v5265 = vadd.f32 %v5168, %v5264
    %v5266 = vpop.f32.mrb[0].mxu0
    %5267 = vdwg.mxu0
    %v5268 = vld [vmem:[#allocation2 + $0xd] sm:$0xff]
    %v5269 = vld [vmem:[#allocation2 + $0x15] sm:$0xff]
    %v5270 = vld [vmem:[#allocation2 + $0x1d] sm:$0xff]
    %v5271 = vld [vmem:[#allocation2 + $0x25] sm:$0xff]
    %5272 = vset.pattern.permute.xlu0 2
    %5273 = vperm.xlu0 %5272, %v5019
    %v5274 = vpop.permute.xlu0 %5273
    %5276 = vset.pattern.permute.xlu0 2
    %5277 = vperm.xlu0 %5276, %v5020
    %v5278 = vpop.permute.xlu0 %5277
    %5280 = vset.pattern.permute.xlu0 2
    %5281 = vperm.xlu0 %5280, %v5021
    %v5282 = vpop.permute.xlu0 %5281
    %5284 = vset.pattern.permute.xlu0 2
    %5285 = vperm.xlu0 %5284, %v5022
    %v5286 = vpop.permute.xlu0 %5285
    %v5288 = vmul.f32 %v5268, %v5274
    %v5289 = vmul.f32 %v5269, %v5278
    %v5290 = vmul.f32 %v5270, %v5282
    %v5291 = vmul.f32 %v5271, %v5286
    %s5292 = scalar_lea.vmem [#allocation12], 16
    %v5293 = vld [vmem:[%s5292] sm:$0xff]
    %v5295 = vsel %vm2009, %v5288, 0
    %v5298 = vsel %vm2009, %v5289, 0
    %v5301 = vsel %vm2009, %v5290, 0
    %v5304 = vsel %vm2009, %v5291, 0
    %5306 = vmatprep.subr.mxu0 0.0
    %5307 = vmatpush1.msra.mxu0 %v5293
    %5308 = vmatprep.subr.mxu0 0.0
    %5309 = vmatpush1.msra.mxu0 0.0
    %5310 = vmatprep.subr.mxu0 0.0
    %5311 = vmatpush1.msra.mxu0 0.0
    %5312 = vmatprep.subr.mxu0 0.0
    %5313 = vmatpush1.msra.mxu0 0.0
    %5314 = vmatprep.subr.mxu0 0.0
    %5315 = vmatpush1.msra.mxu0 0.0
    %5316 = vmatprep.subr.mxu0 0.0
    %5317 = vmatpush1.msra.mxu0 0.0
    %5318 = vmatprep.subr.mxu0 0.0
    %5319 = vmatpush1.msra.mxu0 0.0
    %5320 = vmatprep.subr.mxu0 0.0
    %5321 = vmatpush1.msra.mxu0 0.0
    %5322 = vmatprep.subr.mxu0 0.0
    %5323 = vmatpush1.msra.mxu0 0.0
    %5324 = vmatprep.subr.mxu0 0.0
    %5325 = vmatpush1.msra.mxu0 0.0
    %5326 = vmatprep.subr.mxu0 0.0
    %5327 = vmatpush1.msra.mxu0 0.0
    %5328 = vmatprep.subr.mxu0 0.0
    %5329 = vmatpush1.msra.mxu0 0.0
    %5330 = vmatprep.subr.mxu0 0.0
    %5331 = vmatpush1.msra.mxu0 0.0
    %5332 = vmatprep.subr.mxu0 0.0
    %5333 = vmatpush1.msra.mxu0 0.0
    %5334 = vmatprep.subr.mxu0 0.0
    %5335 = vmatpush1.msra.mxu0 0.0
    %5336 = vmatprep.subr.mxu0 0.0
    %5337 = vmatpush1.msra.mxu0 0.0
    %5338 = vmatprep.subr.mxu0 0.0
    %5339 = vmatpush1.msra.mxu0 0.0
    %5340 = vmatprep.subr.mxu0 0.0
    %5341 = vmatpush1.msra.mxu0 0.0
    %5342 = vmatprep.subr.mxu0 0.0
    %5343 = vmatpush1.msra.mxu0 0.0
    %5344 = vmatprep.subr.mxu0 0.0
    %5345 = vmatpush1.msra.mxu0 0.0
    %5346 = vmatprep.subr.mxu0 0.0
    %5347 = vmatpush1.msra.mxu0 0.0
    %5348 = vmatprep.subr.mxu0 0.0
    %5349 = vmatpush1.msra.mxu0 0.0
    %5350 = vmatprep.subr.mxu0 0.0
    %5351 = vmatpush1.msra.mxu0 0.0
    %5352 = vmatprep.subr.mxu0 0.0
    %5353 = vmatpush1.msra.mxu0 0.0
    %5354 = vmatprep.subr.mxu0 0.0
    %5355 = vmatpush1.msra.mxu0 0.0
    %5356 = vmatprep.subr.mxu0 0.0
    %5357 = vmatpush1.msra.mxu0 0.0
    %5358 = vmatprep.subr.mxu0 0.0
    %5359 = vmatpush1.msra.mxu0 0.0
    %5360 = vmatprep.subr.mxu0 0.0
    %5361 = vmatpush1.msra.mxu0 0.0
    %5362 = vmatprep.subr.mxu0 0.0
    %5363 = vmatpush1.msra.mxu0 0.0
    %5364 = vmatprep.subr.mxu0 0.0
    %5365 = vmatpush1.msra.mxu0 0.0
    %5366 = vmatprep.subr.mxu0 0.0
    %5367 = vmatpush1.msra.mxu0 0.0
    %5368 = vmatprep.subr.mxu0 0.0
    %5369 = vmatpush1.msra.mxu0 0.0
    %5370 = vmatprep.mubr.f32.mxu0 0.0
    %5371 = vmatmul.mubr.f32.gmra.mrb[0].mxu0 %v5295
    %v5372 = vpop.f32.mrb[0].mxu0
    %v5373 = vadd.f32 0.0, %v5372
    %v5374 = vpop.f32.mrb[0].mxu0
    %5375 = vmatprep.mubr.f32.mxu0 0.0
    %5376 = vmatmul.mubr.f32.gmra.mrb[0].mxu0 %v5298
    %v5377 = vpop.f32.mrb[0].mxu0
    %v5378 = vadd.f32 0.0, %v5377
    %v5379 = vpop.f32.mrb[0].mxu0
    %5380 = vmatprep.mubr.f32.mxu0 0.0
    %5381 = vmatmul.mubr.f32.gmra.mrb[0].mxu0 %v5301
    %v5382 = vpop.f32.mrb[0].mxu0
    %v5383 = vadd.f32 0.0, %v5382
    %v5384 = vpop.f32.mrb[0].mxu0
    %5385 = vmatprep.mubr.f32.mxu0 0.0
    %5386 = vmatmul.mubr.f32.gmra.mrb[0].mxu0 %v5304
    %v5387 = vpop.f32.mrb[0].mxu0
    %v5388 = vadd.f32 0.0, %v5387
    %v5389 = vpop.f32.mrb[0].mxu0
    %5390 = vdwg.mxu0
    %v5391 = vadd.f32 %v5250, %v5373
    %v5392 = vadd.f32 %v5255, %v5378
    %v5393 = vadd.f32 %v5260, %v5383
    %v5394 = vadd.f32 %v5265, %v5388
    %v5395 = vld [vmem:[#allocation2 + $0xf] sm:$0xff]
    %v5396 = vld [vmem:[#allocation2 + $0x17] sm:$0xff]
    %v5397 = vld [vmem:[#allocation2 + $0x1f] sm:$0xff]
    %v5398 = vld [vmem:[#allocation2 + $0x27] sm:$0xff]
    %5399 = vset.pattern.permute.xlu0 3
    %5400 = vperm.xlu0 %5399, %v5019
    %v5401 = vpop.permute.xlu0 %5400
    %5403 = vset.pattern.permute.xlu0 3
    %5404 = vperm.xlu0 %5403, %v5020
    %v5405 = vpop.permute.xlu0 %5404
    %5407 = vset.pattern.permute.xlu0 3
    %5408 = vperm.xlu0 %5407, %v5021
    %v5409 = vpop.permute.xlu0 %5408
    %5411 = vset.pattern.permute.xlu0 3
    %5412 = vperm.xlu0 %5411, %v5022
    %v5413 = vpop.permute.xlu0 %5412
    %v5415 = vmul.f32 %v5395, %v5401
    %v5416 = vmul.f32 %v5396, %v5405
    %v5417 = vmul.f32 %v5397, %v5409
    %v5418 = vmul.f32 %v5398, %v5413
    %s5419 = scalar_lea.vmem [#allocation12], 24
    %v5420 = vld [vmem:[%s5419] sm:$0xff]
    %v5422 = vsel %vm2009, %v5415, 0
    %v5425 = vsel %vm2009, %v5416, 0
    %v5428 = vsel %vm2009, %v5417, 0
    %v5431 = vsel %vm2009, %v5418, 0
    %5433 = vmatprep.subr.mxu0 0.0
    %5434 = vmatpush1.msra.mxu0 %v5420
    %5435 = vmatprep.subr.mxu0 0.0
    %5436 = vmatpush1.msra.mxu0 0.0
    %5437 = vmatprep.subr.mxu0 0.0
    %5438 = vmatpush1.msra.mxu0 0.0
    %5439 = vmatprep.subr.mxu0 0.0
    %5440 = vmatpush1.msra.mxu0 0.0
    %5441 = vmatprep.subr.mxu0 0.0
    %5442 = vmatpush1.msra.mxu0 0.0
    %5443 = vmatprep.subr.mxu0 0.0
    %5444 = vmatpush1.msra.mxu0 0.0
    %5445 = vmatprep.subr.mxu0 0.0
    %5446 = vmatpush1.msra.mxu0 0.0
    %5447 = vmatprep.subr.mxu0 0.0
    %5448 = vmatpush1.msra.mxu0 0.0
    %5449 = vmatprep.subr.mxu0 0.0
    %5450 = vmatpush1.msra.mxu0 0.0
    %5451 = vmatprep.subr.mxu0 0.0
    %5452 = vmatpush1.msra.mxu0 0.0
    %5453 = vmatprep.subr.mxu0 0.0
    %5454 = vmatpush1.msra.mxu0 0.0
    %5455 = vmatprep.subr.mxu0 0.0
    %5456 = vmatpush1.msra.mxu0 0.0
    %5457 = vmatprep.subr.mxu0 0.0
    %5458 = vmatpush1.msra.mxu0 0.0
    %5459 = vmatprep.subr.mxu0 0.0
    %5460 = vmatpush1.msra.mxu0 0.0
    %5461 = vmatprep.subr.mxu0 0.0
    %5462 = vmatpush1.msra.mxu0 0.0
    %5463 = vmatprep.subr.mxu0 0.0
    %5464 = vmatpush1.msra.mxu0 0.0
    %5465 = vmatprep.subr.mxu0 0.0
    %5466 = vmatpush1.msra.mxu0 0.0
    %5467 = vmatprep.subr.mxu0 0.0
    %5468 = vmatpush1.msra.mxu0 0.0
    %5469 = vmatprep.subr.mxu0 0.0
    %5470 = vmatpush1.msra.mxu0 0.0
    %5471 = vmatprep.subr.mxu0 0.0
    %5472 = vmatpush1.msra.mxu0 0.0
    %5473 = vmatprep.subr.mxu0 0.0
    %5474 = vmatpush1.msra.mxu0 0.0
    %5475 = vmatprep.subr.mxu0 0.0
    %5476 = vmatpush1.msra.mxu0 0.0
    %5477 = vmatprep.subr.mxu0 0.0
    %5478 = vmatpush1.msra.mxu0 0.0
    %5479 = vmatprep.subr.mxu0 0.0
    %5480 = vmatpush1.msra.mxu0 0.0
    %5481 = vmatprep.subr.mxu0 0.0
    %5482 = vmatpush1.msra.mxu0 0.0
    %5483 = vmatprep.subr.mxu0 0.0
    %5484 = vmatpush1.msra.mxu0 0.0
    %5485 = vmatprep.subr.mxu0 0.0
    %5486 = vmatpush1.msra.mxu0 0.0
    %5487 = vmatprep.subr.mxu0 0.0
    %5488 = vmatpush1.msra.mxu0 0.0
    %5489 = vmatprep.subr.mxu0 0.0
    %5490 = vmatpush1.msra.mxu0 0.0
    %5491 = vmatprep.subr.mxu0 0.0
    %5492 = vmatpush1.msra.mxu0 0.0
    %5493 = vmatprep.subr.mxu0 0.0
    %5494 = vmatpush1.msra.mxu0 0.0
    %5495 = vmatprep.subr.mxu0 0.0
    %5496 = vmatpush1.msra.mxu0 0.0
    %5497 = vmatprep.mubr.f32.mxu0 0.0
    %5498 = vmatmul.mubr.f32.gmra.mrb[0].mxu0 %v5422
    %v5499 = vpop.f32.mrb[0].mxu0
    %v5500 = vadd.f32 0.0, %v5499
    %v5501 = vpop.f32.mrb[0].mxu0
    %5502 = vmatprep.mubr.f32.mxu0 0.0
    %5503 = vmatmul.mubr.f32.gmra.mrb[0].mxu0 %v5425
    %v5504 = vpop.f32.mrb[0].mxu0
    %v5505 = vadd.f32 0.0, %v5504
    %v5506 = vpop.f32.mrb[0].mxu0
    %5507 = vmatprep.mubr.f32.mxu0 0.0
    %5508 = vmatmul.mubr.f32.gmra.mrb[0].mxu0 %v5428
    %v5509 = vpop.f32.mrb[0].mxu0
    %v5510 = vadd.f32 0.0, %v5509
    %v5511 = vpop.f32.mrb[0].mxu0
    %5512 = vmatprep.mubr.f32.mxu0 0.0
    %5513 = vmatmul.mubr.f32.gmra.mrb[0].mxu0 %v5431
    %v5514 = vpop.f32.mrb[0].mxu0
    %v5515 = vadd.f32 0.0, %v5514
    %v5516 = vpop.f32.mrb[0].mxu0
    %5517 = vdwg.mxu0
    %v5518 = vadd.f32 %v5391, %v5500
    %v5519 = vadd.f32 %v5392, %v5505
    %v5520 = vadd.f32 %v5393, %v5510
    %v5521 = vadd.f32 %v5394, %v5515
    %v5522 = vld [vmem:[#allocation2 + $0x10] sm:$0xff]
    %v5523 = vld [vmem:[#allocation2 + $0x18] sm:$0xff]
    %v5524 = vld [vmem:[#allocation2 + $0x20] sm:$0xff]
    %v5525 = vld [vmem:[#allocation2 + $0x28] sm:$0xff]
    %s5526 = scalar_lea.vmem [#allocation12], 32
    %v5527 = vld [vmem:[%s5526] sm:$0xff]
    %v5529 = vsel %vm2009, %v5522, 0
    %v5532 = vsel %vm2009, %v5523, 0
    %v5535 = vsel %vm2009, %v5524, 0
    %v5538 = vsel %vm2009, %v5525, 0
    %5540 = vmatprep.subr.mxu0 0.0
    %5541 = vmatpush1.msra.mxu0 %v5527
    %5542 = vmatprep.subr.mxu0 0.0
    %5543 = vmatpush1.msra.mxu0 0.0
    %5544 = vmatprep.subr.mxu0 0.0
    %5545 = vmatpush1.msra.mxu0 0.0
    %5546 = vmatprep.subr.mxu0 0.0
    %5547 = vmatpush1.msra.mxu0 0.0
    %5548 = vmatprep.subr.mxu0 0.0
    %5549 = vmatpush1.msra.mxu0 0.0
    %5550 = vmatprep.subr.mxu0 0.0
    %5551 = vmatpush1.msra.mxu0 0.0
    %5552 = vmatprep.subr.mxu0 0.0
    %5553 = vmatpush1.msra.mxu0 0.0
    %5554 = vmatprep.subr.mxu0 0.0
    %5555 = vmatpush1.msra.mxu0 0.0
    %5556 = vmatprep.subr.mxu0 0.0
    %5557 = vmatpush1.msra.mxu0 0.0
    %5558 = vmatprep.subr.mxu0 0.0
    %5559 = vmatpush1.msra.mxu0 0.0
    %5560 = vmatprep.subr.mxu0 0.0
    %5561 = vmatpush1.msra.mxu0 0.0
    %5562 = vmatprep.subr.mxu0 0.0
    %5563 = vmatpush1.msra.mxu0 0.0
    %5564 = vmatprep.subr.mxu0 0.0
    %5565 = vmatpush1.msra.mxu0 0.0
    %5566 = vmatprep.subr.mxu0 0.0
    %5567 = vmatpush1.msra.mxu0 0.0
    %5568 = vmatprep.subr.mxu0 0.0
    %5569 = vmatpush1.msra.mxu0 0.0
    %5570 = vmatprep.subr.mxu0 0.0
    %5571 = vmatpush1.msra.mxu0 0.0
    %5572 = vmatprep.subr.mxu0 0.0
    %5573 = vmatpush1.msra.mxu0 0.0
    %5574 = vmatprep.subr.mxu0 0.0
    %5575 = vmatpush1.msra.mxu0 0.0
    %5576 = vmatprep.subr.mxu0 0.0
    %5577 = vmatpush1.msra.mxu0 0.0
    %5578 = vmatprep.subr.mxu0 0.0
    %5579 = vmatpush1.msra.mxu0 0.0
    %5580 = vmatprep.subr.mxu0 0.0
    %5581 = vmatpush1.msra.mxu0 0.0
    %5582 = vmatprep.subr.mxu0 0.0
    %5583 = vmatpush1.msra.mxu0 0.0
    %5584 = vmatprep.subr.mxu0 0.0
    %5585 = vmatpush1.msra.mxu0 0.0
    %5586 = vmatprep.subr.mxu0 0.0
    %5587 = vmatpush1.msra.mxu0 0.0
    %5588 = vmatprep.subr.mxu0 0.0
    %5589 = vmatpush1.msra.mxu0 0.0
    %5590 = vmatprep.subr.mxu0 0.0
    %5591 = vmatpush1.msra.mxu0 0.0
    %5592 = vmatprep.subr.mxu0 0.0
    %5593 = vmatpush1.msra.mxu0 0.0
    %5594 = vmatprep.subr.mxu0 0.0
    %5595 = vmatpush1.msra.mxu0 0.0
    %5596 = vmatprep.subr.mxu0 0.0
    %5597 = vmatpush1.msra.mxu0 0.0
    %5598 = vmatprep.subr.mxu0 0.0
    %5599 = vmatpush1.msra.mxu0 0.0
    %5600 = vmatprep.subr.mxu0 0.0
    %5601 = vmatpush1.msra.mxu0 0.0
    %5602 = vmatprep.subr.mxu0 0.0
    %5603 = vmatpush1.msra.mxu0 0.0
    %5604 = vmatprep.mubr.f32.mxu0 0.0
    %5605 = vmatmul.mubr.f32.gmra.mrb[0].mxu0 %v5529
    %v5606 = vpop.f32.mrb[0].mxu0
    %v5607 = vadd.f32 0.0, %v5606
    %v5608 = vpop.f32.mrb[0].mxu0
    %5609 = vmatprep.mubr.f32.mxu0 0.0
    %5610 = vmatmul.mubr.f32.gmra.mrb[0].mxu0 %v5532
    %v5611 = vpop.f32.mrb[0].mxu0
    %v5612 = vadd.f32 0.0, %v5611
    %v5613 = vpop.f32.mrb[0].mxu0
    %5614 = vmatprep.mubr.f32.mxu0 0.0
    %5615 = vmatmul.mubr.f32.gmra.mrb[0].mxu0 %v5535
    %v5616 = vpop.f32.mrb[0].mxu0
    %v5617 = vadd.f32 0.0, %v5616
    %v5618 = vpop.f32.mrb[0].mxu0
    %5619 = vmatprep.mubr.f32.mxu0 0.0
    %5620 = vmatmul.mubr.f32.gmra.mrb[0].mxu0 %v5538
    %v5621 = vpop.f32.mrb[0].mxu0
    %v5622 = vadd.f32 0.0, %v5621
    %v5623 = vpop.f32.mrb[0].mxu0
    %5624 = vdwg.mxu0
    %v5625 = vadd.f32 %v5518, %v5607
    %v5626 = vadd.f32 %v5519, %v5612
    %v5627 = vadd.f32 %v5520, %v5617
    %v5628 = vadd.f32 %v5521, %v5622
    %v5629 = vld [vmem:[#allocation2 + $0x11] sm:$0xff]
    %v5630 = vld [vmem:[#allocation2 + $0x19] sm:$0xff]
    %v5631 = vld [vmem:[#allocation2 + $0x21] sm:$0xff]
    %v5632 = vld [vmem:[#allocation2 + $0x29] sm:$0xff]
    %5633 = vset.pattern.permute.xlu0 5
    %5634 = vperm.xlu0 %5633, %v5019
    %v5635 = vpop.permute.xlu0 %5634
    %5637 = vset.pattern.permute.xlu0 5
    %5638 = vperm.xlu0 %5637, %v5020
    %v5639 = vpop.permute.xlu0 %5638
    %5641 = vset.pattern.permute.xlu0 5
    %5642 = vperm.xlu0 %5641, %v5021
    %v5643 = vpop.permute.xlu0 %5642
    %5645 = vset.pattern.permute.xlu0 5
    %5646 = vperm.xlu0 %5645, %v5022
    %v5647 = vpop.permute.xlu0 %5646
    %v5649 = vmul.f32 %v5629, %v5635
    %v5650 = vmul.f32 %v5630, %v5639
    %v5651 = vmul.f32 %v5631, %v5643
    %v5652 = vmul.f32 %v5632, %v5647
    %s5653 = scalar_lea.vmem [#allocation12], 40
    %v5654 = vld [vmem:[%s5653] sm:$0xff]
    %v5656 = vsel %vm2009, %v5649, 0
    %v5659 = vsel %vm2009, %v5650, 0
    %v5662 = vsel %vm2009, %v5651, 0
    %v5665 = vsel %vm2009, %v5652, 0
    %5667 = vmatprep.subr.mxu0 0.0
    %5668 = vmatpush1.msra.mxu0 %v5654
    %5669 = vmatprep.subr.mxu0 0.0
    %5670 = vmatpush1.msra.mxu0 0.0
    %5671 = vmatprep.subr.mxu0 0.0
    %5672 = vmatpush1.msra.mxu0 0.0
    %5673 = vmatprep.subr.mxu0 0.0
    %5674 = vmatpush1.msra.mxu0 0.0
    %5675 = vmatprep.subr.mxu0 0.0
    %5676 = vmatpush1.msra.mxu0 0.0
    %5677 = vmatprep.subr.mxu0 0.0
    %5678 = vmatpush1.msra.mxu0 0.0
    %5679 = vmatprep.subr.mxu0 0.0
    %5680 = vmatpush1.msra.mxu0 0.0
    %5681 = vmatprep.subr.mxu0 0.0
    %5682 = vmatpush1.msra.mxu0 0.0
    %5683 = vmatprep.subr.mxu0 0.0
    %5684 = vmatpush1.msra.mxu0 0.0
    %5685 = vmatprep.subr.mxu0 0.0
    %5686 = vmatpush1.msra.mxu0 0.0
    %5687 = vmatprep.subr.mxu0 0.0
    %5688 = vmatpush1.msra.mxu0 0.0
    %5689 = vmatprep.subr.mxu0 0.0
    %5690 = vmatpush1.msra.mxu0 0.0
    %5691 = vmatprep.subr.mxu0 0.0
    %5692 = vmatpush1.msra.mxu0 0.0
    %5693 = vmatprep.subr.mxu0 0.0
    %5694 = vmatpush1.msra.mxu0 0.0
    %5695 = vmatprep.subr.mxu0 0.0
    %5696 = vmatpush1.msra.mxu0 0.0
    %5697 = vmatprep.subr.mxu0 0.0
    %5698 = vmatpush1.msra.mxu0 0.0
    %5699 = vmatprep.subr.mxu0 0.0
    %5700 = vmatpush1.msra.mxu0 0.0
    %5701 = vmatprep.subr.mxu0 0.0
    %5702 = vmatpush1.msra.mxu0 0.0
    %5703 = vmatprep.subr.mxu0 0.0
    %5704 = vmatpush1.msra.mxu0 0.0
    %5705 = vmatprep.subr.mxu0 0.0
    %5706 = vmatpush1.msra.mxu0 0.0
    %5707 = vmatprep.subr.mxu0 0.0
    %5708 = vmatpush1.msra.mxu0 0.0
    %5709 = vmatprep.subr.mxu0 0.0
    %5710 = vmatpush1.msra.mxu0 0.0
    %5711 = vmatprep.subr.mxu0 0.0
    %5712 = vmatpush1.msra.mxu0 0.0
    %5713 = vmatprep.subr.mxu0 0.0
    %5714 = vmatpush1.msra.mxu0 0.0
    %5715 = vmatprep.subr.mxu0 0.0
    %5716 = vmatpush1.msra.mxu0 0.0
    %5717 = vmatprep.subr.mxu0 0.0
    %5718 = vmatpush1.msra.mxu0 0.0
    %5719 = vmatprep.subr.mxu0 0.0
    %5720 = vmatpush1.msra.mxu0 0.0
    %5721 = vmatprep.subr.mxu0 0.0
    %5722 = vmatpush1.msra.mxu0 0.0
    %5723 = vmatprep.subr.mxu0 0.0
    %5724 = vmatpush1.msra.mxu0 0.0
    %5725 = vmatprep.subr.mxu0 0.0
    %5726 = vmatpush1.msra.mxu0 0.0
    %5727 = vmatprep.subr.mxu0 0.0
    %5728 = vmatpush1.msra.mxu0 0.0
    %5729 = vmatprep.subr.mxu0 0.0
    %5730 = vmatpush1.msra.mxu0 0.0
    %5731 = vmatprep.mubr.f32.mxu0 0.0
    %5732 = vmatmul.mubr.f32.gmra.mrb[0].mxu0 %v5656
    %v5733 = vpop.f32.mrb[0].mxu0
    %v5734 = vadd.f32 0.0, %v5733
    %v5735 = vpop.f32.mrb[0].mxu0
    %5736 = vmatprep.mubr.f32.mxu0 0.0
    %5737 = vmatmul.mubr.f32.gmra.mrb[0].mxu0 %v5659
    %v5738 = vpop.f32.mrb[0].mxu0
    %v5739 = vadd.f32 0.0, %v5738
    %v5740 = vpop.f32.mrb[0].mxu0
    %5741 = vmatprep.mubr.f32.mxu0 0.0
    %5742 = vmatmul.mubr.f32.gmra.mrb[0].mxu0 %v5662
    %v5743 = vpop.f32.mrb[0].mxu0
    %v5744 = vadd.f32 0.0, %v5743
    %v5745 = vpop.f32.mrb[0].mxu0
    %5746 = vmatprep.mubr.f32.mxu0 0.0
    %5747 = vmatmul.mubr.f32.gmra.mrb[0].mxu0 %v5665
    %v5748 = vpop.f32.mrb[0].mxu0
    %v5749 = vadd.f32 0.0, %v5748
    %v5750 = vpop.f32.mrb[0].mxu0
    %5751 = vdwg.mxu0
    %v5752 = vadd.f32 %v5625, %v5734
    %v5753 = vadd.f32 %v5626, %v5739
    %v5754 = vadd.f32 %v5627, %v5744
    %v5755 = vadd.f32 %v5628, %v5749
    %v5756 = vld [vmem:[#allocation2 + $0x13] sm:$0xff]
    %v5757 = vld [vmem:[#allocation2 + $0x1b] sm:$0xff]
    %v5758 = vld [vmem:[#allocation2 + $0x23] sm:$0xff]
    %v5759 = vld [vmem:[#allocation2 + $0x2b] sm:$0xff]
    %5760 = vset.pattern.permute.xlu0 6
    %5761 = vperm.xlu0 %5760, %v5019
    %v5762 = vpop.permute.xlu0 %5761
    %5764 = vset.pattern.permute.xlu0 6
    %5765 = vperm.xlu0 %5764, %v5020
    %v5766 = vpop.permute.xlu0 %5765
    %5768 = vset.pattern.permute.xlu0 6
    %5769 = vperm.xlu0 %5768, %v5021
    %v5770 = vpop.permute.xlu0 %5769
    %5772 = vset.pattern.permute.xlu0 6
    %5773 = vperm.xlu0 %5772, %v5022
    %v5774 = vpop.permute.xlu0 %5773
    %v5776 = vmul.f32 %v5756, %v5762
    %v5777 = vmul.f32 %v5757, %v5766
    %v5778 = vmul.f32 %v5758, %v5770
    %v5779 = vmul.f32 %v5759, %v5774
    %s5780 = scalar_lea.vmem [#allocation12], 48
    %v5781 = vld [vmem:[%s5780] sm:$0xff]
    %v5783 = vsel %vm2009, %v5776, 0
    %v5786 = vsel %vm2009, %v5777, 0
    %v5789 = vsel %vm2009, %v5778, 0
    %v5792 = vsel %vm2009, %v5779, 0
    %5794 = vmatprep.subr.mxu0 0.0
    %5795 = vmatpush1.msra.mxu0 %v5781
    %5796 = vmatprep.subr.mxu0 0.0
    %5797 = vmatpush1.msra.mxu0 0.0
    %5798 = vmatprep.subr.mxu0 0.0
    %5799 = vmatpush1.msra.mxu0 0.0
    %5800 = vmatprep.subr.mxu0 0.0
    %5801 = vmatpush1.msra.mxu0 0.0
    %5802 = vmatprep.subr.mxu0 0.0
    %5803 = vmatpush1.msra.mxu0 0.0
    %5804 = vmatprep.subr.mxu0 0.0
    %5805 = vmatpush1.msra.mxu0 0.0
    %5806 = vmatprep.subr.mxu0 0.0
    %5807 = vmatpush1.msra.mxu0 0.0
    %5808 = vmatprep.subr.mxu0 0.0
    %5809 = vmatpush1.msra.mxu0 0.0
    %5810 = vmatprep.subr.mxu0 0.0
    %5811 = vmatpush1.msra.mxu0 0.0
    %5812 = vmatprep.subr.mxu0 0.0
    %5813 = vmatpush1.msra.mxu0 0.0
    %5814 = vmatprep.subr.mxu0 0.0
    %5815 = vmatpush1.msra.mxu0 0.0
    %5816 = vmatprep.subr.mxu0 0.0
    %5817 = vmatpush1.msra.mxu0 0.0
    %5818 = vmatprep.subr.mxu0 0.0
    %5819 = vmatpush1.msra.mxu0 0.0
    %5820 = vmatprep.subr.mxu0 0.0
    %5821 = vmatpush1.msra.mxu0 0.0
    %5822 = vmatprep.subr.mxu0 0.0
    %5823 = vmatpush1.msra.mxu0 0.0
    %5824 = vmatprep.subr.mxu0 0.0
    %5825 = vmatpush1.msra.mxu0 0.0
    %5826 = vmatprep.subr.mxu0 0.0
    %5827 = vmatpush1.msra.mxu0 0.0
    %5828 = vmatprep.subr.mxu0 0.0
    %5829 = vmatpush1.msra.mxu0 0.0
    %5830 = vmatprep.subr.mxu0 0.0
    %5831 = vmatpush1.msra.mxu0 0.0
    %5832 = vmatprep.subr.mxu0 0.0
    %5833 = vmatpush1.msra.mxu0 0.0
    %5834 = vmatprep.subr.mxu0 0.0
    %5835 = vmatpush1.msra.mxu0 0.0
    %5836 = vmatprep.subr.mxu0 0.0
    %5837 = vmatpush1.msra.mxu0 0.0
    %5838 = vmatprep.subr.mxu0 0.0
    %5839 = vmatpush1.msra.mxu0 0.0
    %5840 = vmatprep.subr.mxu0 0.0
    %5841 = vmatpush1.msra.mxu0 0.0
    %5842 = vmatprep.subr.mxu0 0.0
    %5843 = vmatpush1.msra.mxu0 0.0
    %5844 = vmatprep.subr.mxu0 0.0
    %5845 = vmatpush1.msra.mxu0 0.0
    %5846 = vmatprep.subr.mxu0 0.0
    %5847 = vmatpush1.msra.mxu0 0.0
    %5848 = vmatprep.subr.mxu0 0.0
    %5849 = vmatpush1.msra.mxu0 0.0
    %5850 = vmatprep.subr.mxu0 0.0
    %5851 = vmatpush1.msra.mxu0 0.0
    %5852 = vmatprep.subr.mxu0 0.0
    %5853 = vmatpush1.msra.mxu0 0.0
    %5854 = vmatprep.subr.mxu0 0.0
    %5855 = vmatpush1.msra.mxu0 0.0
    %5856 = vmatprep.subr.mxu0 0.0
    %5857 = vmatpush1.msra.mxu0 0.0
    %5858 = vmatprep.mubr.f32.mxu0 0.0
    %5859 = vmatmul.mubr.f32.gmra.mrb[0].mxu0 %v5783
    %v5860 = vpop.f32.mrb[0].mxu0
    %v5861 = vadd.f32 0.0, %v5860
    %v5862 = vpop.f32.mrb[0].mxu0
    %5863 = vmatprep.mubr.f32.mxu0 0.0
    %5864 = vmatmul.mubr.f32.gmra.mrb[0].mxu0 %v5786
    %v5865 = vpop.f32.mrb[0].mxu0
    %v5866 = vadd.f32 0.0, %v5865
    %v5867 = vpop.f32.mrb[0].mxu0
    %5868 = vmatprep.mubr.f32.mxu0 0.0
    %5869 = vmatmul.mubr.f32.gmra.mrb[0].mxu0 %v5789
    %v5870 = vpop.f32.mrb[0].mxu0
    %v5871 = vadd.f32 0.0, %v5870
    %v5872 = vpop.f32.mrb[0].mxu0
    %5873 = vmatprep.mubr.f32.mxu0 0.0
    %5874 = vmatmul.mubr.f32.gmra.mrb[0].mxu0 %v5792
    %v5875 = vpop.f32.mrb[0].mxu0
    %v5876 = vadd.f32 0.0, %v5875
    %v5877 = vpop.f32.mrb[0].mxu0
    %5878 = vdwg.mxu0
    %v5879 = vadd.f32 %v5752, %v5861
    %v5880 = vadd.f32 %v5753, %v5866
    %v5881 = vadd.f32 %v5754, %v5871
    %v5882 = vadd.f32 %v5755, %v5876
    %v5883 = vld [vmem:[#allocation2 + $0x14] sm:$0xff]
    %v5884 = vld [vmem:[#allocation2 + $0x1c] sm:$0xff]
    %v5885 = vld [vmem:[#allocation2 + $0x24] sm:$0xff]
    %v5886 = vld [vmem:[#allocation2 + $0x2c] sm:$0xff]
    %5887 = vset.pattern.permute.xlu0 7
    %5888 = vperm.xlu0 %5887, %v5019
    %v5889 = vpop.permute.xlu0 %5888
    %5891 = vset.pattern.permute.xlu0 7
    %5892 = vperm.xlu0 %5891, %v5020
    %v5893 = vpop.permute.xlu0 %5892
    %5895 = vset.pattern.permute.xlu0 7
    %5896 = vperm.xlu0 %5895, %v5021
    %v5897 = vpop.permute.xlu0 %5896
    %5899 = vset.pattern.permute.xlu0 7
    %5900 = vperm.xlu0 %5899, %v5022
    %v5901 = vpop.permute.xlu0 %5900
    %v5903 = vmul.f32 %v5883, %v5889
    %v5904 = vmul.f32 %v5884, %v5893
    %v5905 = vmul.f32 %v5885, %v5897
    %v5906 = vmul.f32 %v5886, %v5901
    %s5907 = scalar_lea.vmem [#allocation12], 56
    %v5908 = vld [vmem:[%s5907] sm:$0xff]
    %v5910 = vsel %vm2009, %v5903, 0
    %v5913 = vsel %vm2009, %v5904, 0
    %v5916 = vsel %vm2009, %v5905, 0
    %v5919 = vsel %vm2009, %v5906, 0
    %5921 = vmatprep.subr.mxu0 0.0
    %5922 = vmatpush1.msra.mxu0 %v5908
    %5923 = vmatprep.subr.mxu0 0.0
    %5924 = vmatpush1.msra.mxu0 0.0
    %5925 = vmatprep.subr.mxu0 0.0
    %5926 = vmatpush1.msra.mxu0 0.0
    %5927 = vmatprep.subr.mxu0 0.0
    %5928 = vmatpush1.msra.mxu0 0.0
    %5929 = vmatprep.subr.mxu0 0.0
    %5930 = vmatpush1.msra.mxu0 0.0
    %5931 = vmatprep.subr.mxu0 0.0
    %5932 = vmatpush1.msra.mxu0 0.0
    %5933 = vmatprep.subr.mxu0 0.0
    %5934 = vmatpush1.msra.mxu0 0.0
    %5935 = vmatprep.subr.mxu0 0.0
    %5936 = vmatpush1.msra.mxu0 0.0
    %5937 = vmatprep.subr.mxu0 0.0
    %5938 = vmatpush1.msra.mxu0 0.0
    %5939 = vmatprep.subr.mxu0 0.0
    %5940 = vmatpush1.msra.mxu0 0.0
    %5941 = vmatprep.subr.mxu0 0.0
    %5942 = vmatpush1.msra.mxu0 0.0
    %5943 = vmatprep.subr.mxu0 0.0
    %5944 = vmatpush1.msra.mxu0 0.0
    %5945 = vmatprep.subr.mxu0 0.0
    %5946 = vmatpush1.msra.mxu0 0.0
    %5947 = vmatprep.subr.mxu0 0.0
    %5948 = vmatpush1.msra.mxu0 0.0
    %5949 = vmatprep.subr.mxu0 0.0
    %5950 = vmatpush1.msra.mxu0 0.0
    %5951 = vmatprep.subr.mxu0 0.0
    %5952 = vmatpush1.msra.mxu0 0.0
    %5953 = vmatprep.subr.mxu0 0.0
    %5954 = vmatpush1.msra.mxu0 0.0
    %5955 = vmatprep.subr.mxu0 0.0
    %5956 = vmatpush1.msra.mxu0 0.0
    %5957 = vmatprep.subr.mxu0 0.0
    %5958 = vmatpush1.msra.mxu0 0.0
    %5959 = vmatprep.subr.mxu0 0.0
    %5960 = vmatpush1.msra.mxu0 0.0
    %5961 = vmatprep.subr.mxu0 0.0
    %5962 = vmatpush1.msra.mxu0 0.0
    %5963 = vmatprep.subr.mxu0 0.0
    %5964 = vmatpush1.msra.mxu0 0.0
    %5965 = vmatprep.subr.mxu0 0.0
    %5966 = vmatpush1.msra.mxu0 0.0
    %5967 = vmatprep.subr.mxu0 0.0
    %5968 = vmatpush1.msra.mxu0 0.0
    %5969 = vmatprep.subr.mxu0 0.0
    %5970 = vmatpush1.msra.mxu0 0.0
    %5971 = vmatprep.subr.mxu0 0.0
    %5972 = vmatpush1.msra.mxu0 0.0
    %5973 = vmatprep.subr.mxu0 0.0
    %5974 = vmatpush1.msra.mxu0 0.0
    %5975 = vmatprep.subr.mxu0 0.0
    %5976 = vmatpush1.msra.mxu0 0.0
    %5977 = vmatprep.subr.mxu0 0.0
    %5978 = vmatpush1.msra.mxu0 0.0
    %5979 = vmatprep.subr.mxu0 0.0
    %5980 = vmatpush1.msra.mxu0 0.0
    %5981 = vmatprep.subr.mxu0 0.0
    %5982 = vmatpush1.msra.mxu0 0.0
    %5983 = vmatprep.subr.mxu0 0.0
    %5984 = vmatpush1.msra.mxu0 0.0
    %5985 = vmatprep.mubr.f32.mxu0 0.0
    %5986 = vmatmul.mubr.f32.gmra.mrb[0].mxu0 %v5910
    %v5987 = vpop.f32.mrb[0].mxu0
    %v5988 = vadd.f32 0.0, %v5987
    %v5989 = vpop.f32.mrb[0].mxu0
    %5990 = vmatprep.mubr.f32.mxu0 0.0
    %5991 = vmatmul.mubr.f32.gmra.mrb[0].mxu0 %v5913
    %v5992 = vpop.f32.mrb[0].mxu0
    %v5993 = vadd.f32 0.0, %v5992
    %v5994 = vpop.f32.mrb[0].mxu0
    %5995 = vmatprep.mubr.f32.mxu0 0.0
    %5996 = vmatmul.mubr.f32.gmra.mrb[0].mxu0 %v5916
    %v5997 = vpop.f32.mrb[0].mxu0
    %v5998 = vadd.f32 0.0, %v5997
    %v5999 = vpop.f32.mrb[0].mxu0
    %6000 = vmatprep.mubr.f32.mxu0 0.0
    %6001 = vmatmul.mubr.f32.gmra.mrb[0].mxu0 %v5919
    %v6002 = vpop.f32.mrb[0].mxu0
    %v6003 = vadd.f32 0.0, %v6002
    %v6004 = vpop.f32.mrb[0].mxu0
    %6005 = vdwg.mxu0
    %v6006 = vadd.f32 %v5879, %v5988
    %v6007 = vadd.f32 %v5880, %v5993
    %v6008 = vadd.f32 %v5881, %v5998
    %v6009 = vadd.f32 %v5882, %v6003
    %v6010 = vld [vmem:[#allocation2 + $0x15] sm:$0xff]
    %v6011 = vld [vmem:[#allocation2 + $0x1d] sm:$0xff]
    %v6012 = vld [vmem:[#allocation2 + $0x25] sm:$0xff]
    %v6013 = vld [vmem:[#allocation2 + $0x2d] sm:$0xff]
    %6014 = vset.pattern.permute.xlu0 8
    %6015 = vperm.xlu0 %6014, %v5019
    %v6016 = vpop.permute.xlu0 %6015
    %6018 = vset.pattern.permute.xlu0 8
    %6019 = vperm.xlu0 %6018, %v5020
    %v6020 = vpop.permute.xlu0 %6019
    %6022 = vset.pattern.permute.xlu0 8
    %6023 = vperm.xlu0 %6022, %v5021
    %v6024 = vpop.permute.xlu0 %6023
    %6026 = vset.pattern.permute.xlu0 8
    %6027 = vperm.xlu0 %6026, %v5022
    %v6028 = vpop.permute.xlu0 %6027
    %v6030 = vmul.f32 %v6010, %v6016
    %v6031 = vmul.f32 %v6011, %v6020
    %v6032 = vmul.f32 %v6012, %v6024
    %v6033 = vmul.f32 %v6013, %v6028
    %s6034 = scalar_lea.vmem [#allocation12], 64
    %v6035 = vld [vmem:[%s6034] sm:$0xff]
    %v6037 = vsel %vm2009, %v6030, 0
    %v6040 = vsel %vm2009, %v6031, 0
    %v6043 = vsel %vm2009, %v6032, 0
    %v6046 = vsel %vm2009, %v6033, 0
    %6048 = vmatprep.subr.mxu0 0.0
    %6049 = vmatpush1.msra.mxu0 %v6035
    %6050 = vmatprep.subr.mxu0 0.0
    %6051 = vmatpush1.msra.mxu0 0.0
    %6052 = vmatprep.subr.mxu0 0.0
    %6053 = vmatpush1.msra.mxu0 0.0
    %6054 = vmatprep.subr.mxu0 0.0
    %6055 = vmatpush1.msra.mxu0 0.0
    %6056 = vmatprep.subr.mxu0 0.0
    %6057 = vmatpush1.msra.mxu0 0.0
    %6058 = vmatprep.subr.mxu0 0.0
    %6059 = vmatpush1.msra.mxu0 0.0
    %6060 = vmatprep.subr.mxu0 0.0
    %6061 = vmatpush1.msra.mxu0 0.0
    %6062 = vmatprep.subr.mxu0 0.0
    %6063 = vmatpush1.msra.mxu0 0.0
    %6064 = vmatprep.subr.mxu0 0.0
    %6065 = vmatpush1.msra.mxu0 0.0
    %6066 = vmatprep.subr.mxu0 0.0
    %6067 = vmatpush1.msra.mxu0 0.0
    %6068 = vmatprep.subr.mxu0 0.0
    %6069 = vmatpush1.msra.mxu0 0.0
    %6070 = vmatprep.subr.mxu0 0.0
    %6071 = vmatpush1.msra.mxu0 0.0
    %6072 = vmatprep.subr.mxu0 0.0
    %6073 = vmatpush1.msra.mxu0 0.0
    %6074 = vmatprep.subr.mxu0 0.0
    %6075 = vmatpush1.msra.mxu0 0.0
    %6076 = vmatprep.subr.mxu0 0.0
    %6077 = vmatpush1.msra.mxu0 0.0
    %6078 = vmatprep.subr.mxu0 0.0
    %6079 = vmatpush1.msra.mxu0 0.0
    %6080 = vmatprep.subr.mxu0 0.0
    %6081 = vmatpush1.msra.mxu0 0.0
    %6082 = vmatprep.subr.mxu0 0.0
    %6083 = vmatpush1.msra.mxu0 0.0
    %6084 = vmatprep.subr.mxu0 0.0
    %6085 = vmatpush1.msra.mxu0 0.0
    %6086 = vmatprep.subr.mxu0 0.0
    %6087 = vmatpush1.msra.mxu0 0.0
    %6088 = vmatprep.subr.mxu0 0.0
    %6089 = vmatpush1.msra.mxu0 0.0
    %6090 = vmatprep.subr.mxu0 0.0
    %6091 = vmatpush1.msra.mxu0 0.0
    %6092 = vmatprep.subr.mxu0 0.0
    %6093 = vmatpush1.msra.mxu0 0.0
    %6094 = vmatprep.subr.mxu0 0.0
    %6095 = vmatpush1.msra.mxu0 0.0
    %6096 = vmatprep.subr.mxu0 0.0
    %6097 = vmatpush1.msra.mxu0 0.0
    %6098 = vmatprep.subr.mxu0 0.0
    %6099 = vmatpush1.msra.mxu0 0.0
    %6100 = vmatprep.subr.mxu0 0.0
    %6101 = vmatpush1.msra.mxu0 0.0
    %6102 = vmatprep.subr.mxu0 0.0
    %6103 = vmatpush1.msra.mxu0 0.0
    %6104 = vmatprep.subr.mxu0 0.0
    %6105 = vmatpush1.msra.mxu0 0.0
    %6106 = vmatprep.subr.mxu0 0.0
    %6107 = vmatpush1.msra.mxu0 0.0
    %6108 = vmatprep.subr.mxu0 0.0
    %6109 = vmatpush1.msra.mxu0 0.0
    %6110 = vmatprep.subr.mxu0 0.0
    %6111 = vmatpush1.msra.mxu0 0.0
    %6112 = vmatprep.mubr.f32.mxu0 0.0
    %6113 = vmatmul.mubr.f32.gmra.mrb[0].mxu0 %v6037
    %v6114 = vpop.f32.mrb[0].mxu0
    %v6115 = vadd.f32 0.0, %v6114
    %v6116 = vpop.f32.mrb[0].mxu0
    %6117 = vmatprep.mubr.f32.mxu0 0.0
    %6118 = vmatmul.mubr.f32.gmra.mrb[0].mxu0 %v6040
    %v6119 = vpop.f32.mrb[0].mxu0
    %v6120 = vadd.f32 0.0, %v6119
    %v6121 = vpop.f32.mrb[0].mxu0
    %6122 = vmatprep.mubr.f32.mxu0 0.0
    %6123 = vmatmul.mubr.f32.gmra.mrb[0].mxu0 %v6043
    %v6124 = vpop.f32.mrb[0].mxu0
    %v6125 = vadd.f32 0.0, %v6124
    %v6126 = vpop.f32.mrb[0].mxu0
    %6127 = vmatprep.mubr.f32.mxu0 0.0
    %6128 = vmatmul.mubr.f32.gmra.mrb[0].mxu0 %v6046
    %v6129 = vpop.f32.mrb[0].mxu0
    %v6130 = vadd.f32 0.0, %v6129
    %v6131 = vpop.f32.mrb[0].mxu0
    %6132 = vdwg.mxu0
    %v6133 = vadd.f32 %v6006, %v6115
    %v6134 = vadd.f32 %v6007, %v6120
    %v6135 = vadd.f32 %v6008, %v6125
    %v6136 = vadd.f32 %v6009, %v6130
    %v6137 = vld [vmem:[#allocation13] sm:$0x1]
    %v6139 = vlaneseq
    %v6140 = vshrl.u32 %v6139, 7
    %v6141 = vsub.s32 0, %v6140
    %v6142 = vrot.slane %v6137, %v6141
    %v6144 = vadd.f32 %v6133, %v6142
    %v6145 = vadd.f32 %v6134, %v6142
    %v6146 = vadd.f32 %v6135, %v6142
    %v6147 = vadd.f32 %v6136, %v6142
    %v6148 = vmax.f32 %v6144, 0.0
    %v6149 = vmax.f32 %v6145, 0.0
    %v6150 = vmax.f32 %v6146, 0.0
    %v6151 = vmax.f32 %v6147, 0.0
    %vm6152 = vcmask 80896
    %6153 = vst.msk [vmem:[#allocation2 + $0x10] sm:$0xff] %vm6152, %v6148
    %6154 = vst.msk [vmem:[#allocation2 + $0x18] sm:$0xff] %vm6152, %v6149
    %6155 = vst.msk [vmem:[#allocation2 + $0x20] sm:$0xff] %vm6152, %v6150
    %6156 = vst.msk [vmem:[#allocation2 + $0x28] sm:$0xff] %vm6152, %v6151
    %v6157 = vld [vmem:[#allocation2 + $0xb] sm:$0xff]
    %v6158 = vld [vmem:[#allocation2 + $0x13] sm:$0xff]
    %v6159 = vld [vmem:[#allocation2 + $0x1b] sm:$0xff]
    %v6160 = vld [vmem:[#allocation2 + $0x23] sm:$0xff]
    %v6161 = vld [vmem:[%s12] sm:$0xff]
    %v6162 = vld [vmem:[%s12 + $0x8] sm:$0xff]
    %v6163 = vld [vmem:[%s12 + $0x10] sm:$0xff]
    %v6164 = vld [vmem:[%s12 + $0x18] sm:$0xff]
    %6166 = vset.pattern.permute.xlu0 0
    %6167 = vperm.xlu0 %6166, %v6161
    %v6168 = vpop.permute.xlu0 %6167
    %6171 = vset.pattern.permute.xlu0 0
    %6172 = vperm.xlu0 %6171, %v6162
    %v6173 = vpop.permute.xlu0 %6172
    %6176 = vset.pattern.permute.xlu0 0
    %6177 = vperm.xlu0 %6176, %v6163
    %v6178 = vpop.permute.xlu0 %6177
    %6181 = vset.pattern.permute.xlu0 0
    %6182 = vperm.xlu0 %6181, %v6164
    %v6183 = vpop.permute.xlu0 %6182
    %v6185 = vmul.f32 %v6157, %v6168
    %v6186 = vmul.f32 %v6158, %v6173
    %v6187 = vmul.f32 %v6159, %v6178
    %v6188 = vmul.f32 %v6160, %v6183
    %v6189 = vld [vmem:[#allocation15] sm:$0xff]
    %v6190 = vld [vmem:[#allocation15 + $0x8] sm:$0x3]
    %v6191 = vld [vmem:[#allocation2 + $0xc] sm:$0xff]
    %v6192 = vld [vmem:[#allocation2 + $0x14] sm:$0xff]
    %v6193 = vld [vmem:[#allocation2 + $0x1c] sm:$0xff]
    %v6194 = vld [vmem:[#allocation2 + $0x24] sm:$0xff]
    %6195 = vset.pattern.permute.xlu0 1
    %6196 = vperm.xlu0 %6195, %v6161
    %v6197 = vpop.permute.xlu0 %6196
    %6199 = vset.pattern.permute.xlu0 1
    %6200 = vperm.xlu0 %6199, %v6162
    %v6201 = vpop.permute.xlu0 %6200
    %6203 = vset.pattern.permute.xlu0 1
    %6204 = vperm.xlu0 %6203, %v6163
    %v6205 = vpop.permute.xlu0 %6204
    %6207 = vset.pattern.permute.xlu0 1
    %6208 = vperm.xlu0 %6207, %v6164
    %v6209 = vpop.permute.xlu0 %6208
    %v6211 = vmul.f32 %v6191, %v6197
    %v6212 = vmul.f32 %v6192, %v6201
    %v6213 = vmul.f32 %v6193, %v6205
    %v6214 = vmul.f32 %v6194, %v6209
    %s6215 = scalar_lea.vmem [#allocation15], 16
    %v6216 = vld [vmem:[%s6215] sm:$0xff]
    %v6217 = vld [vmem:[%s6215 + $0x8] sm:$0x3]
    %v6219 = vsel %vm6152, %v6211, 0
    %v6222 = vsel %vm6152, %v6212, 0
    %v6225 = vsel %vm6152, %v6213, 0
    %v6228 = vsel %vm6152, %v6214, 0
    %vm6230 = vcmask 1041408
    %v6232 = vsel %vm6230, %v6217, 0
    %6234 = vmatprep.subr.mxu0 0.0
    %6235 = vmatpush1.msra.mxu0 %v6216
    %6236 = vmatprep.subr.mxu0 0.0
    %6237 = vmatpush1.msra.mxu0 %v6232
    %6238 = vmatprep.subr.mxu0 0.0
    %6239 = vmatpush1.msra.mxu0 0.0
    %6240 = vmatprep.subr.mxu0 0.0
    %6241 = vmatpush1.msra.mxu0 0.0
    %6242 = vmatprep.subr.mxu0 0.0
    %6243 = vmatpush1.msra.mxu0 0.0
    %6244 = vmatprep.subr.mxu0 0.0
    %6245 = vmatpush1.msra.mxu0 0.0
    %6246 = vmatprep.subr.mxu0 0.0
    %6247 = vmatpush1.msra.mxu0 0.0
    %6248 = vmatprep.subr.mxu0 0.0
    %6249 = vmatpush1.msra.mxu0 0.0
    %6250 = vmatprep.subr.mxu0 0.0
    %6251 = vmatpush1.msra.mxu0 0.0
    %6252 = vmatprep.subr.mxu0 0.0
    %6253 = vmatpush1.msra.mxu0 0.0
    %6254 = vmatprep.subr.mxu0 0.0
    %6255 = vmatpush1.msra.mxu0 0.0
    %6256 = vmatprep.subr.mxu0 0.0
    %6257 = vmatpush1.msra.mxu0 0.0
    %6258 = vmatprep.subr.mxu0 0.0
    %6259 = vmatpush1.msra.mxu0 0.0
    %6260 = vmatprep.subr.mxu0 0.0
    %6261 = vmatpush1.msra.mxu0 0.0
    %6262 = vmatprep.subr.mxu0 0.0
    %6263 = vmatpush1.msra.mxu0 0.0
    %6264 = vmatprep.subr.mxu0 0.0
    %6265 = vmatpush1.msra.mxu0 0.0
    %6266 = vmatprep.subr.mxu0 0.0
    %6267 = vmatpush1.msra.mxu0 0.0
    %6268 = vmatprep.subr.mxu0 0.0
    %6269 = vmatpush1.msra.mxu0 0.0
    %6270 = vmatprep.subr.mxu0 0.0
    %6271 = vmatpush1.msra.mxu0 0.0
    %6272 = vmatprep.subr.mxu0 0.0
    %6273 = vmatpush1.msra.mxu0 0.0
    %6274 = vmatprep.subr.mxu0 0.0
    %6275 = vmatpush1.msra.mxu0 0.0
    %6276 = vmatprep.subr.mxu0 0.0
    %6277 = vmatpush1.msra.mxu0 0.0
    %6278 = vmatprep.subr.mxu0 0.0
    %6279 = vmatpush1.msra.mxu0 0.0
    %6280 = vmatprep.subr.mxu0 0.0
    %6281 = vmatpush1.msra.mxu0 0.0
    %6282 = vmatprep.subr.mxu0 0.0
    %6283 = vmatpush1.msra.mxu0 0.0
    %6284 = vmatprep.subr.mxu0 0.0
    %6285 = vmatpush1.msra.mxu0 0.0
    %6286 = vmatprep.subr.mxu0 0.0
    %6287 = vmatpush1.msra.mxu0 0.0
    %6288 = vmatprep.subr.mxu0 0.0
    %6289 = vmatpush1.msra.mxu0 0.0
    %6290 = vmatprep.subr.mxu0 0.0
    %6291 = vmatpush1.msra.mxu0 0.0
    %6292 = vmatprep.subr.mxu0 0.0
    %6293 = vmatpush1.msra.mxu0 0.0
    %6294 = vmatprep.subr.mxu0 0.0
    %6295 = vmatpush1.msra.mxu0 0.0
    %6296 = vmatprep.subr.mxu0 0.0
    %6297 = vmatpush1.msra.mxu0 0.0
    %6298 = vmatprep.mubr.f32.mxu0 0.0
    %6299 = vmatmul.mubr.f32.gmra.mrb[0].mxu0 %v6219
    %v6300 = vpop.f32.mrb[0].mxu0
    %v6301 = vadd.f32 0.0, %v6300
    %v6302 = vpop.f32.mrb[0].mxu0
    %6303 = vmatprep.mubr.f32.mxu0 0.0
    %6304 = vmatmul.mubr.f32.gmra.mrb[0].mxu0 %v6222
    %v6305 = vpop.f32.mrb[0].mxu0
    %v6306 = vadd.f32 0.0, %v6305
    %v6307 = vpop.f32.mrb[0].mxu0
    %6308 = vmatprep.mubr.f32.mxu0 0.0
    %6309 = vmatmul.mubr.f32.gmra.mrb[0].mxu0 %v6225
    %v6310 = vpop.f32.mrb[0].mxu0
    %v6311 = vadd.f32 0.0, %v6310
    %v6312 = vpop.f32.mrb[0].mxu0
    %6313 = vmatprep.mubr.f32.mxu0 0.0
    %6314 = vmatmul.mubr.f32.gmra.mrb[0].mxu0 %v6228
    %v6315 = vpop.f32.mrb[0].mxu0
    %v6316 = vadd.f32 0.0, %v6315
    %v6317 = vpop.f32.mrb[0].mxu0
    %6318 = vdwg.mxu0
    %v6320 = vsel %vm6152, %v6185, 0
    %v6323 = vsel %vm6152, %v6186, 0
    %v6326 = vsel %vm6152, %v6187, 0
    %v6329 = vsel %vm6152, %v6188, 0
    %v6332 = vsel %vm6230, %v6190, 0
    %6334 = vmatprep.subr.mxu0 0.0
    %6335 = vmatpush1.msra.mxu0 %v6189
    %6336 = vmatprep.subr.mxu0 0.0
    %6337 = vmatpush1.msra.mxu0 %v6332
    %6338 = vmatprep.subr.mxu0 0.0
    %6339 = vmatpush1.msra.mxu0 0.0
    %6340 = vmatprep.subr.mxu0 0.0
    %6341 = vmatpush1.msra.mxu0 0.0
    %6342 = vmatprep.subr.mxu0 0.0
    %6343 = vmatpush1.msra.mxu0 0.0
    %6344 = vmatprep.subr.mxu0 0.0
    %6345 = vmatpush1.msra.mxu0 0.0
    %6346 = vmatprep.subr.mxu0 0.0
    %6347 = vmatpush1.msra.mxu0 0.0
    %6348 = vmatprep.subr.mxu0 0.0
    %6349 = vmatpush1.msra.mxu0 0.0
    %6350 = vmatprep.subr.mxu0 0.0
    %6351 = vmatpush1.msra.mxu0 0.0
    %6352 = vmatprep.subr.mxu0 0.0
    %6353 = vmatpush1.msra.mxu0 0.0
    %6354 = vmatprep.subr.mxu0 0.0
    %6355 = vmatpush1.msra.mxu0 0.0
    %6356 = vmatprep.subr.mxu0 0.0
    %6357 = vmatpush1.msra.mxu0 0.0
    %6358 = vmatprep.subr.mxu0 0.0
    %6359 = vmatpush1.msra.mxu0 0.0
    %6360 = vmatprep.subr.mxu0 0.0
    %6361 = vmatpush1.msra.mxu0 0.0
    %6362 = vmatprep.subr.mxu0 0.0
    %6363 = vmatpush1.msra.mxu0 0.0
    %6364 = vmatprep.subr.mxu0 0.0
    %6365 = vmatpush1.msra.mxu0 0.0
    %6366 = vmatprep.subr.mxu0 0.0
    %6367 = vmatpush1.msra.mxu0 0.0
    %6368 = vmatprep.subr.mxu0 0.0
    %6369 = vmatpush1.msra.mxu0 0.0
    %6370 = vmatprep.subr.mxu0 0.0
    %6371 = vmatpush1.msra.mxu0 0.0
    %6372 = vmatprep.subr.mxu0 0.0
    %6373 = vmatpush1.msra.mxu0 0.0
    %6374 = vmatprep.subr.mxu0 0.0
    %6375 = vmatpush1.msra.mxu0 0.0
    %6376 = vmatprep.subr.mxu0 0.0
    %6377 = vmatpush1.msra.mxu0 0.0
    %6378 = vmatprep.subr.mxu0 0.0
    %6379 = vmatpush1.msra.mxu0 0.0
    %6380 = vmatprep.subr.mxu0 0.0
    %6381 = vmatpush1.msra.mxu0 0.0
    %6382 = vmatprep.subr.mxu0 0.0
    %6383 = vmatpush1.msra.mxu0 0.0
    %6384 = vmatprep.subr.mxu0 0.0
    %6385 = vmatpush1.msra.mxu0 0.0
    %6386 = vmatprep.subr.mxu0 0.0
    %6387 = vmatpush1.msra.mxu0 0.0
    %6388 = vmatprep.subr.mxu0 0.0
    %6389 = vmatpush1.msra.mxu0 0.0
    %6390 = vmatprep.subr.mxu0 0.0
    %6391 = vmatpush1.msra.mxu0 0.0
    %6392 = vmatprep.subr.mxu0 0.0
    %6393 = vmatpush1.msra.mxu0 0.0
    %6394 = vmatprep.subr.mxu0 0.0
    %6395 = vmatpush1.msra.mxu0 0.0
    %6396 = vmatprep.subr.mxu0 0.0
    %6397 = vmatpush1.msra.mxu0 0.0
    %6398 = vmatprep.mubr.f32.mxu0 0.0
    %6399 = vmatmul.mubr.f32.gmra.mrb[0].mxu0 %v6320
    %v6400 = vpop.f32.mrb[0].mxu0
    %v6401 = vadd.f32 %v6301, %v6400
    %v6402 = vpop.f32.mrb[0].mxu0
    %6403 = vmatprep.mubr.f32.mxu0 0.0
    %6404 = vmatmul.mubr.f32.gmra.mrb[0].mxu0 %v6323
    %v6405 = vpop.f32.mrb[0].mxu0
    %v6406 = vadd.f32 %v6306, %v6405
    %v6407 = vpop.f32.mrb[0].mxu0
    %6408 = vmatprep.mubr.f32.mxu0 0.0
    %6409 = vmatmul.mubr.f32.gmra.mrb[0].mxu0 %v6326
    %v6410 = vpop.f32.mrb[0].mxu0
    %v6411 = vadd.f32 %v6311, %v6410
    %v6412 = vpop.f32.mrb[0].mxu0
    %6413 = vmatprep.mubr.f32.mxu0 0.0
    %6414 = vmatmul.mubr.f32.gmra.mrb[0].mxu0 %v6329
    %v6415 = vpop.f32.mrb[0].mxu0
    %v6416 = vadd.f32 %v6316, %v6415
    %v6417 = vpop.f32.mrb[0].mxu0
    %6418 = vdwg.mxu0
    %v6419 = vld [vmem:[#allocation2 + $0xd] sm:$0xff]
    %v6420 = vld [vmem:[#allocation2 + $0x15] sm:$0xff]
    %v6421 = vld [vmem:[#allocation2 + $0x1d] sm:$0xff]
    %v6422 = vld [vmem:[#allocation2 + $0x25] sm:$0xff]
    %6423 = vset.pattern.permute.xlu0 2
    %6424 = vperm.xlu0 %6423, %v6161
    %v6425 = vpop.permute.xlu0 %6424
    %6427 = vset.pattern.permute.xlu0 2
    %6428 = vperm.xlu0 %6427, %v6162
    %v6429 = vpop.permute.xlu0 %6428
    %6431 = vset.pattern.permute.xlu0 2
    %6432 = vperm.xlu0 %6431, %v6163
    %v6433 = vpop.permute.xlu0 %6432
    %6435 = vset.pattern.permute.xlu0 2
    %6436 = vperm.xlu0 %6435, %v6164
    %v6437 = vpop.permute.xlu0 %6436
    %v6439 = vmul.f32 %v6419, %v6425
    %v6440 = vmul.f32 %v6420, %v6429
    %v6441 = vmul.f32 %v6421, %v6433
    %v6442 = vmul.f32 %v6422, %v6437
    %s6443 = scalar_lea.vmem [#allocation15], 32
    %v6444 = vld [vmem:[%s6443] sm:$0xff]
    %v6445 = vld [vmem:[%s6443 + $0x8] sm:$0x3]
    %v6447 = vsel %vm6152, %v6439, 0
    %v6450 = vsel %vm6152, %v6440, 0
    %v6453 = vsel %vm6152, %v6441, 0
    %v6456 = vsel %vm6152, %v6442, 0
    %v6459 = vsel %vm6230, %v6445, 0
    %6461 = vmatprep.subr.mxu0 0.0
    %6462 = vmatpush1.msra.mxu0 %v6444
    %6463 = vmatprep.subr.mxu0 0.0
    %6464 = vmatpush1.msra.mxu0 %v6459
    %6465 = vmatprep.subr.mxu0 0.0
    %6466 = vmatpush1.msra.mxu0 0.0
    %6467 = vmatprep.subr.mxu0 0.0
    %6468 = vmatpush1.msra.mxu0 0.0
    %6469 = vmatprep.subr.mxu0 0.0
    %6470 = vmatpush1.msra.mxu0 0.0
    %6471 = vmatprep.subr.mxu0 0.0
    %6472 = vmatpush1.msra.mxu0 0.0
    %6473 = vmatprep.subr.mxu0 0.0
    %6474 = vmatpush1.msra.mxu0 0.0
    %6475 = vmatprep.subr.mxu0 0.0
    %6476 = vmatpush1.msra.mxu0 0.0
    %6477 = vmatprep.subr.mxu0 0.0
    %6478 = vmatpush1.msra.mxu0 0.0
    %6479 = vmatprep.subr.mxu0 0.0
    %6480 = vmatpush1.msra.mxu0 0.0
    %6481 = vmatprep.subr.mxu0 0.0
    %6482 = vmatpush1.msra.mxu0 0.0
    %6483 = vmatprep.subr.mxu0 0.0
    %6484 = vmatpush1.msra.mxu0 0.0
    %6485 = vmatprep.subr.mxu0 0.0
    %6486 = vmatpush1.msra.mxu0 0.0
    %6487 = vmatprep.subr.mxu0 0.0
    %6488 = vmatpush1.msra.mxu0 0.0
    %6489 = vmatprep.subr.mxu0 0.0
    %6490 = vmatpush1.msra.mxu0 0.0
    %6491 = vmatprep.subr.mxu0 0.0
    %6492 = vmatpush1.msra.mxu0 0.0
    %6493 = vmatprep.subr.mxu0 0.0
    %6494 = vmatpush1.msra.mxu0 0.0
    %6495 = vmatprep.subr.mxu0 0.0
    %6496 = vmatpush1.msra.mxu0 0.0
    %6497 = vmatprep.subr.mxu0 0.0
    %6498 = vmatpush1.msra.mxu0 0.0
    %6499 = vmatprep.subr.mxu0 0.0
    %6500 = vmatpush1.msra.mxu0 0.0
    %6501 = vmatprep.subr.mxu0 0.0
    %6502 = vmatpush1.msra.mxu0 0.0
    %6503 = vmatprep.subr.mxu0 0.0
    %6504 = vmatpush1.msra.mxu0 0.0
    %6505 = vmatprep.subr.mxu0 0.0
    %6506 = vmatpush1.msra.mxu0 0.0
    %6507 = vmatprep.subr.mxu0 0.0
    %6508 = vmatpush1.msra.mxu0 0.0
    %6509 = vmatprep.subr.mxu0 0.0
    %6510 = vmatpush1.msra.mxu0 0.0
    %6511 = vmatprep.subr.mxu0 0.0
    %6512 = vmatpush1.msra.mxu0 0.0
    %6513 = vmatprep.subr.mxu0 0.0
    %6514 = vmatpush1.msra.mxu0 0.0
    %6515 = vmatprep.subr.mxu0 0.0
    %6516 = vmatpush1.msra.mxu0 0.0
    %6517 = vmatprep.subr.mxu0 0.0
    %6518 = vmatpush1.msra.mxu0 0.0
    %6519 = vmatprep.subr.mxu0 0.0
    %6520 = vmatpush1.msra.mxu0 0.0
    %6521 = vmatprep.subr.mxu0 0.0
    %6522 = vmatpush1.msra.mxu0 0.0
    %6523 = vmatprep.subr.mxu0 0.0
    %6524 = vmatpush1.msra.mxu0 0.0
    %6525 = vmatprep.mubr.f32.mxu0 0.0
    %6526 = vmatmul.mubr.f32.gmra.mrb[0].mxu0 %v6447
    %v6527 = vpop.f32.mrb[0].mxu0
    %v6528 = vadd.f32 0.0, %v6527
    %v6529 = vpop.f32.mrb[0].mxu0
    %6530 = vmatprep.mubr.f32.mxu0 0.0
    %6531 = vmatmul.mubr.f32.gmra.mrb[0].mxu0 %v6450
    %v6532 = vpop.f32.mrb[0].mxu0
    %v6533 = vadd.f32 0.0, %v6532
    %v6534 = vpop.f32.mrb[0].mxu0
    %6535 = vmatprep.mubr.f32.mxu0 0.0
    %6536 = vmatmul.mubr.f32.gmra.mrb[0].mxu0 %v6453
    %v6537 = vpop.f32.mrb[0].mxu0
    %v6538 = vadd.f32 0.0, %v6537
    %v6539 = vpop.f32.mrb[0].mxu0
    %6540 = vmatprep.mubr.f32.mxu0 0.0
    %6541 = vmatmul.mubr.f32.gmra.mrb[0].mxu0 %v6456
    %v6542 = vpop.f32.mrb[0].mxu0
    %v6543 = vadd.f32 0.0, %v6542
    %v6544 = vpop.f32.mrb[0].mxu0
    %6545 = vdwg.mxu0
    %v6546 = vadd.f32 %v6401, %v6528
    %v6547 = vadd.f32 %v6406, %v6533
    %v6548 = vadd.f32 %v6411, %v6538
    %v6549 = vadd.f32 %v6416, %v6543
    %v6550 = vld [vmem:[#allocation2 + $0xf] sm:$0xff]
    %v6551 = vld [vmem:[#allocation2 + $0x17] sm:$0xff]
    %v6552 = vld [vmem:[#allocation2 + $0x1f] sm:$0xff]
    %v6553 = vld [vmem:[#allocation2 + $0x27] sm:$0xff]
    %6554 = vset.pattern.permute.xlu0 3
    %6555 = vperm.xlu0 %6554, %v6161
    %v6556 = vpop.permute.xlu0 %6555
    %6558 = vset.pattern.permute.xlu0 3
    %6559 = vperm.xlu0 %6558, %v6162
    %v6560 = vpop.permute.xlu0 %6559
    %6562 = vset.pattern.permute.xlu0 3
    %6563 = vperm.xlu0 %6562, %v6163
    %v6564 = vpop.permute.xlu0 %6563
    %6566 = vset.pattern.permute.xlu0 3
    %6567 = vperm.xlu0 %6566, %v6164
    %v6568 = vpop.permute.xlu0 %6567
    %v6570 = vmul.f32 %v6550, %v6556
    %v6571 = vmul.f32 %v6551, %v6560
    %v6572 = vmul.f32 %v6552, %v6564
    %v6573 = vmul.f32 %v6553, %v6568
    %s6574 = scalar_lea.vmem [#allocation15], 48
    %v6575 = vld [vmem:[%s6574] sm:$0xff]
    %v6576 = vld [vmem:[%s6574 + $0x8] sm:$0x3]
    %v6578 = vsel %vm6152, %v6570, 0
    %v6581 = vsel %vm6152, %v6571, 0
    %v6584 = vsel %vm6152, %v6572, 0
    %v6587 = vsel %vm6152, %v6573, 0
    %v6590 = vsel %vm6230, %v6576, 0
    %6592 = vmatprep.subr.mxu0 0.0
    %6593 = vmatpush1.msra.mxu0 %v6575
    %6594 = vmatprep.subr.mxu0 0.0
    %6595 = vmatpush1.msra.mxu0 %v6590
    %6596 = vmatprep.subr.mxu0 0.0
    %6597 = vmatpush1.msra.mxu0 0.0
    %6598 = vmatprep.subr.mxu0 0.0
    %6599 = vmatpush1.msra.mxu0 0.0
    %6600 = vmatprep.subr.mxu0 0.0
    %6601 = vmatpush1.msra.mxu0 0.0
    %6602 = vmatprep.subr.mxu0 0.0
    %6603 = vmatpush1.msra.mxu0 0.0
    %6604 = vmatprep.subr.mxu0 0.0
    %6605 = vmatpush1.msra.mxu0 0.0
    %6606 = vmatprep.subr.mxu0 0.0
    %6607 = vmatpush1.msra.mxu0 0.0
    %6608 = vmatprep.subr.mxu0 0.0
    %6609 = vmatpush1.msra.mxu0 0.0
    %6610 = vmatprep.subr.mxu0 0.0
    %6611 = vmatpush1.msra.mxu0 0.0
    %6612 = vmatprep.subr.mxu0 0.0
    %6613 = vmatpush1.msra.mxu0 0.0
    %6614 = vmatprep.subr.mxu0 0.0
    %6615 = vmatpush1.msra.mxu0 0.0
    %6616 = vmatprep.subr.mxu0 0.0
    %6617 = vmatpush1.msra.mxu0 0.0
    %6618 = vmatprep.subr.mxu0 0.0
    %6619 = vmatpush1.msra.mxu0 0.0
    %6620 = vmatprep.subr.mxu0 0.0
    %6621 = vmatpush1.msra.mxu0 0.0
    %6622 = vmatprep.subr.mxu0 0.0
    %6623 = vmatpush1.msra.mxu0 0.0
    %6624 = vmatprep.subr.mxu0 0.0
    %6625 = vmatpush1.msra.mxu0 0.0
    %6626 = vmatprep.subr.mxu0 0.0
    %6627 = vmatpush1.msra.mxu0 0.0
    %6628 = vmatprep.subr.mxu0 0.0
    %6629 = vmatpush1.msra.mxu0 0.0
    %6630 = vmatprep.subr.mxu0 0.0
    %6631 = vmatpush1.msra.mxu0 0.0
    %6632 = vmatprep.subr.mxu0 0.0
    %6633 = vmatpush1.msra.mxu0 0.0
    %6634 = vmatprep.subr.mxu0 0.0
    %6635 = vmatpush1.msra.mxu0 0.0
    %6636 = vmatprep.subr.mxu0 0.0
    %6637 = vmatpush1.msra.mxu0 0.0
    %6638 = vmatprep.subr.mxu0 0.0
    %6639 = vmatpush1.msra.mxu0 0.0
    %6640 = vmatprep.subr.mxu0 0.0
    %6641 = vmatpush1.msra.mxu0 0.0
    %6642 = vmatprep.subr.mxu0 0.0
    %6643 = vmatpush1.msra.mxu0 0.0
    %6644 = vmatprep.subr.mxu0 0.0
    %6645 = vmatpush1.msra.mxu0 0.0
    %6646 = vmatprep.subr.mxu0 0.0
    %6647 = vmatpush1.msra.mxu0 0.0
    %6648 = vmatprep.subr.mxu0 0.0
    %6649 = vmatpush1.msra.mxu0 0.0
    %6650 = vmatprep.subr.mxu0 0.0
    %6651 = vmatpush1.msra.mxu0 0.0
    %6652 = vmatprep.subr.mxu0 0.0
    %6653 = vmatpush1.msra.mxu0 0.0
    %6654 = vmatprep.subr.mxu0 0.0
    %6655 = vmatpush1.msra.mxu0 0.0
    %6656 = vmatprep.mubr.f32.mxu0 0.0
    %6657 = vmatmul.mubr.f32.gmra.mrb[0].mxu0 %v6578
    %v6658 = vpop.f32.mrb[0].mxu0
    %v6659 = vadd.f32 0.0, %v6658
    %v6660 = vpop.f32.mrb[0].mxu0
    %6661 = vmatprep.mubr.f32.mxu0 0.0
    %6662 = vmatmul.mubr.f32.gmra.mrb[0].mxu0 %v6581
    %v6663 = vpop.f32.mrb[0].mxu0
    %v6664 = vadd.f32 0.0, %v6663
    %v6665 = vpop.f32.mrb[0].mxu0
    %6666 = vmatprep.mubr.f32.mxu0 0.0
    %6667 = vmatmul.mubr.f32.gmra.mrb[0].mxu0 %v6584
    %v6668 = vpop.f32.mrb[0].mxu0
    %v6669 = vadd.f32 0.0, %v6668
    %v6670 = vpop.f32.mrb[0].mxu0
    %6671 = vmatprep.mubr.f32.mxu0 0.0
    %6672 = vmatmul.mubr.f32.gmra.mrb[0].mxu0 %v6587
    %v6673 = vpop.f32.mrb[0].mxu0
    %v6674 = vadd.f32 0.0, %v6673
    %v6675 = vpop.f32.mrb[0].mxu0
    %6676 = vdwg.mxu0
    %v6677 = vadd.f32 %v6546, %v6659
    %v6678 = vadd.f32 %v6547, %v6664
    %v6679 = vadd.f32 %v6548, %v6669
    %v6680 = vadd.f32 %v6549, %v6674
    %v6681 = vld [vmem:[#allocation2 + $0x10] sm:$0xff]
    %v6682 = vld [vmem:[#allocation2 + $0x18] sm:$0xff]
    %v6683 = vld [vmem:[#allocation2 + $0x20] sm:$0xff]
    %v6684 = vld [vmem:[#allocation2 + $0x28] sm:$0xff]
    %s6685 = scalar_lea.vmem [#allocation15], 64
    %v6686 = vld [vmem:[%s6685] sm:$0xff]
    %v6687 = vld [vmem:[%s6685 + $0x8] sm:$0x3]
    %v6689 = vsel %vm6152, %v6681, 0
    %v6692 = vsel %vm6152, %v6682, 0
    %v6695 = vsel %vm6152, %v6683, 0
    %v6698 = vsel %vm6152, %v6684, 0
    %v6701 = vsel %vm6230, %v6687, 0
    %6703 = vmatprep.subr.mxu0 0.0
    %6704 = vmatpush1.msra.mxu0 %v6686
    %6705 = vmatprep.subr.mxu0 0.0
    %6706 = vmatpush1.msra.mxu0 %v6701
    %6707 = vmatprep.subr.mxu0 0.0
    %6708 = vmatpush1.msra.mxu0 0.0
    %6709 = vmatprep.subr.mxu0 0.0
    %6710 = vmatpush1.msra.mxu0 0.0
    %6711 = vmatprep.subr.mxu0 0.0
    %6712 = vmatpush1.msra.mxu0 0.0
    %6713 = vmatprep.subr.mxu0 0.0
    %6714 = vmatpush1.msra.mxu0 0.0
    %6715 = vmatprep.subr.mxu0 0.0
    %6716 = vmatpush1.msra.mxu0 0.0
    %6717 = vmatprep.subr.mxu0 0.0
    %6718 = vmatpush1.msra.mxu0 0.0
    %6719 = vmatprep.subr.mxu0 0.0
    %6720 = vmatpush1.msra.mxu0 0.0
    %6721 = vmatprep.subr.mxu0 0.0
    %6722 = vmatpush1.msra.mxu0 0.0
    %6723 = vmatprep.subr.mxu0 0.0
    %6724 = vmatpush1.msra.mxu0 0.0
    %6725 = vmatprep.subr.mxu0 0.0
    %6726 = vmatpush1.msra.mxu0 0.0
    %6727 = vmatprep.subr.mxu0 0.0
    %6728 = vmatpush1.msra.mxu0 0.0
    %6729 = vmatprep.subr.mxu0 0.0
    %6730 = vmatpush1.msra.mxu0 0.0
    %6731 = vmatprep.subr.mxu0 0.0
    %6732 = vmatpush1.msra.mxu0 0.0
    %6733 = vmatprep.subr.mxu0 0.0
    %6734 = vmatpush1.msra.mxu0 0.0
    %6735 = vmatprep.subr.mxu0 0.0
    %6736 = vmatpush1.msra.mxu0 0.0
    %6737 = vmatprep.subr.mxu0 0.0
    %6738 = vmatpush1.msra.mxu0 0.0
    %6739 = vmatprep.subr.mxu0 0.0
    %6740 = vmatpush1.msra.mxu0 0.0
    %6741 = vmatprep.subr.mxu0 0.0
    %6742 = vmatpush1.msra.mxu0 0.0
    %6743 = vmatprep.subr.mxu0 0.0
    %6744 = vmatpush1.msra.mxu0 0.0
    %6745 = vmatprep.subr.mxu0 0.0
    %6746 = vmatpush1.msra.mxu0 0.0
    %6747 = vmatprep.subr.mxu0 0.0
    %6748 = vmatpush1.msra.mxu0 0.0
    %6749 = vmatprep.subr.mxu0 0.0
    %6750 = vmatpush1.msra.mxu0 0.0
    %6751 = vmatprep.subr.mxu0 0.0
    %6752 = vmatpush1.msra.mxu0 0.0
    %6753 = vmatprep.subr.mxu0 0.0
    %6754 = vmatpush1.msra.mxu0 0.0
    %6755 = vmatprep.subr.mxu0 0.0
    %6756 = vmatpush1.msra.mxu0 0.0
    %6757 = vmatprep.subr.mxu0 0.0
    %6758 = vmatpush1.msra.mxu0 0.0
    %6759 = vmatprep.subr.mxu0 0.0
    %6760 = vmatpush1.msra.mxu0 0.0
    %6761 = vmatprep.subr.mxu0 0.0
    %6762 = vmatpush1.msra.mxu0 0.0
    %6763 = vmatprep.subr.mxu0 0.0
    %6764 = vmatpush1.msra.mxu0 0.0
    %6765 = vmatprep.subr.mxu0 0.0
    %6766 = vmatpush1.msra.mxu0 0.0
    %6767 = vmatprep.mubr.f32.mxu0 0.0
    %6768 = vmatmul.mubr.f32.gmra.mrb[0].mxu0 %v6689
    %v6769 = vpop.f32.mrb[0].mxu0
    %v6770 = vadd.f32 0.0, %v6769
    %v6771 = vpop.f32.mrb[0].mxu0
    %6772 = vmatprep.mubr.f32.mxu0 0.0
    %6773 = vmatmul.mubr.f32.gmra.mrb[0].mxu0 %v6692
    %v6774 = vpop.f32.mrb[0].mxu0
    %v6775 = vadd.f32 0.0, %v6774
    %v6776 = vpop.f32.mrb[0].mxu0
    %6777 = vmatprep.mubr.f32.mxu0 0.0
    %6778 = vmatmul.mubr.f32.gmra.mrb[0].mxu0 %v6695
    %v6779 = vpop.f32.mrb[0].mxu0
    %v6780 = vadd.f32 0.0, %v6779
    %v6781 = vpop.f32.mrb[0].mxu0
    %6782 = vmatprep.mubr.f32.mxu0 0.0
    %6783 = vmatmul.mubr.f32.gmra.mrb[0].mxu0 %v6698
    %v6784 = vpop.f32.mrb[0].mxu0
    %v6785 = vadd.f32 0.0, %v6784
    %v6786 = vpop.f32.mrb[0].mxu0
    %6787 = vdwg.mxu0
    %v6788 = vadd.f32 %v6677, %v6770
    %v6789 = vadd.f32 %v6678, %v6775
    %v6790 = vadd.f32 %v6679, %v6780
    %v6791 = vadd.f32 %v6680, %v6785
    %v6792 = vld [vmem:[#allocation2 + $0x11] sm:$0xff]
    %v6793 = vld [vmem:[#allocation2 + $0x19] sm:$0xff]
    %v6794 = vld [vmem:[#allocation2 + $0x21] sm:$0xff]
    %v6795 = vld [vmem:[#allocation2 + $0x29] sm:$0xff]
    %6796 = vset.pattern.permute.xlu0 5
    %6797 = vperm.xlu0 %6796, %v6161
    %v6798 = vpop.permute.xlu0 %6797
    %6800 = vset.pattern.permute.xlu0 5
    %6801 = vperm.xlu0 %6800, %v6162
    %v6802 = vpop.permute.xlu0 %6801
    %6804 = vset.pattern.permute.xlu0 5
    %6805 = vperm.xlu0 %6804, %v6163
    %v6806 = vpop.permute.xlu0 %6805
    %6808 = vset.pattern.permute.xlu0 5
    %6809 = vperm.xlu0 %6808, %v6164
    %v6810 = vpop.permute.xlu0 %6809
    %v6812 = vmul.f32 %v6792, %v6798
    %v6813 = vmul.f32 %v6793, %v6802
    %v6814 = vmul.f32 %v6794, %v6806
    %v6815 = vmul.f32 %v6795, %v6810
    %s6816 = scalar_lea.vmem [#allocation15], 80
    %v6817 = vld [vmem:[%s6816] sm:$0xff]
    %v6818 = vld [vmem:[%s6816 + $0x8] sm:$0x3]
    %v6820 = vsel %vm6152, %v6812, 0
    %v6823 = vsel %vm6152, %v6813, 0
    %v6826 = vsel %vm6152, %v6814, 0
    %v6829 = vsel %vm6152, %v6815, 0
    %v6832 = vsel %vm6230, %v6818, 0
    %6834 = vmatprep.subr.mxu0 0.0
    %6835 = vmatpush1.msra.mxu0 %v6817
    %6836 = vmatprep.subr.mxu0 0.0
    %6837 = vmatpush1.msra.mxu0 %v6832
    %6838 = vmatprep.subr.mxu0 0.0
    %6839 = vmatpush1.msra.mxu0 0.0
    %6840 = vmatprep.subr.mxu0 0.0
    %6841 = vmatpush1.msra.mxu0 0.0
    %6842 = vmatprep.subr.mxu0 0.0
    %6843 = vmatpush1.msra.mxu0 0.0
    %6844 = vmatprep.subr.mxu0 0.0
    %6845 = vmatpush1.msra.mxu0 0.0
    %6846 = vmatprep.subr.mxu0 0.0
    %6847 = vmatpush1.msra.mxu0 0.0
    %6848 = vmatprep.subr.mxu0 0.0
    %6849 = vmatpush1.msra.mxu0 0.0
    %6850 = vmatprep.subr.mxu0 0.0
    %6851 = vmatpush1.msra.mxu0 0.0
    %6852 = vmatprep.subr.mxu0 0.0
    %6853 = vmatpush1.msra.mxu0 0.0
    %6854 = vmatprep.subr.mxu0 0.0
    %6855 = vmatpush1.msra.mxu0 0.0
    %6856 = vmatprep.subr.mxu0 0.0
    %6857 = vmatpush1.msra.mxu0 0.0
    %6858 = vmatprep.subr.mxu0 0.0
    %6859 = vmatpush1.msra.mxu0 0.0
    %6860 = vmatprep.subr.mxu0 0.0
    %6861 = vmatpush1.msra.mxu0 0.0
    %6862 = vmatprep.subr.mxu0 0.0
    %6863 = vmatpush1.msra.mxu0 0.0
    %6864 = vmatprep.subr.mxu0 0.0
    %6865 = vmatpush1.msra.mxu0 0.0
    %6866 = vmatprep.subr.mxu0 0.0
    %6867 = vmatpush1.msra.mxu0 0.0
    %6868 = vmatprep.subr.mxu0 0.0
    %6869 = vmatpush1.msra.mxu0 0.0
    %6870 = vmatprep.subr.mxu0 0.0
    %6871 = vmatpush1.msra.mxu0 0.0
    %6872 = vmatprep.subr.mxu0 0.0
    %6873 = vmatpush1.msra.mxu0 0.0
    %6874 = vmatprep.subr.mxu0 0.0
    %6875 = vmatpush1.msra.mxu0 0.0
    %6876 = vmatprep.subr.mxu0 0.0
    %6877 = vmatpush1.msra.mxu0 0.0
    %6878 = vmatprep.subr.mxu0 0.0
    %6879 = vmatpush1.msra.mxu0 0.0
    %6880 = vmatprep.subr.mxu0 0.0
    %6881 = vmatpush1.msra.mxu0 0.0
    %6882 = vmatprep.subr.mxu0 0.0
    %6883 = vmatpush1.msra.mxu0 0.0
    %6884 = vmatprep.subr.mxu0 0.0
    %6885 = vmatpush1.msra.mxu0 0.0
    %6886 = vmatprep.subr.mxu0 0.0
    %6887 = vmatpush1.msra.mxu0 0.0
    %6888 = vmatprep.subr.mxu0 0.0
    %6889 = vmatpush1.msra.mxu0 0.0
    %6890 = vmatprep.subr.mxu0 0.0
    %6891 = vmatpush1.msra.mxu0 0.0
    %6892 = vmatprep.subr.mxu0 0.0
    %6893 = vmatpush1.msra.mxu0 0.0
    %6894 = vmatprep.subr.mxu0 0.0
    %6895 = vmatpush1.msra.mxu0 0.0
    %6896 = vmatprep.subr.mxu0 0.0
    %6897 = vmatpush1.msra.mxu0 0.0
    %6898 = vmatprep.mubr.f32.mxu0 0.0
    %6899 = vmatmul.mubr.f32.gmra.mrb[0].mxu0 %v6820
    %v6900 = vpop.f32.mrb[0].mxu0
    %v6901 = vadd.f32 0.0, %v6900
    %v6902 = vpop.f32.mrb[0].mxu0
    %6903 = vmatprep.mubr.f32.mxu0 0.0
    %6904 = vmatmul.mubr.f32.gmra.mrb[0].mxu0 %v6823
    %v6905 = vpop.f32.mrb[0].mxu0
    %v6906 = vadd.f32 0.0, %v6905
    %v6907 = vpop.f32.mrb[0].mxu0
    %6908 = vmatprep.mubr.f32.mxu0 0.0
    %6909 = vmatmul.mubr.f32.gmra.mrb[0].mxu0 %v6826
    %v6910 = vpop.f32.mrb[0].mxu0
    %v6911 = vadd.f32 0.0, %v6910
    %v6912 = vpop.f32.mrb[0].mxu0
    %6913 = vmatprep.mubr.f32.mxu0 0.0
    %6914 = vmatmul.mubr.f32.gmra.mrb[0].mxu0 %v6829
    %v6915 = vpop.f32.mrb[0].mxu0
    %v6916 = vadd.f32 0.0, %v6915
    %v6917 = vpop.f32.mrb[0].mxu0
    %6918 = vdwg.mxu0
    %v6919 = vadd.f32 %v6788, %v6901
    %v6920 = vadd.f32 %v6789, %v6906
    %v6921 = vadd.f32 %v6790, %v6911
    %v6922 = vadd.f32 %v6791, %v6916
    %v6923 = vld [vmem:[#allocation2 + $0x13] sm:$0xff]
    %v6924 = vld [vmem:[#allocation2 + $0x1b] sm:$0xff]
    %v6925 = vld [vmem:[#allocation2 + $0x23] sm:$0xff]
    %v6926 = vld [vmem:[#allocation2 + $0x2b] sm:$0xff]
    %6927 = vset.pattern.permute.xlu0 6
    %6928 = vperm.xlu0 %6927, %v6161
    %v6929 = vpop.permute.xlu0 %6928
    %6931 = vset.pattern.permute.xlu0 6
    %6932 = vperm.xlu0 %6931, %v6162
    %v6933 = vpop.permute.xlu0 %6932
    %6935 = vset.pattern.permute.xlu0 6
    %6936 = vperm.xlu0 %6935, %v6163
    %v6937 = vpop.permute.xlu0 %6936
    %6939 = vset.pattern.permute.xlu0 6
    %6940 = vperm.xlu0 %6939, %v6164
    %v6941 = vpop.permute.xlu0 %6940
    %v6943 = vmul.f32 %v6923, %v6929
    %v6944 = vmul.f32 %v6924, %v6933
    %v6945 = vmul.f32 %v6925, %v6937
    %v6946 = vmul.f32 %v6926, %v6941
    %s6947 = scalar_lea.vmem [#allocation15], 96
    %v6948 = vld [vmem:[%s6947] sm:$0xff]
    %v6949 = vld [vmem:[%s6947 + $0x8] sm:$0x3]
    %v6951 = vsel %vm6152, %v6943, 0
    %v6954 = vsel %vm6152, %v6944, 0
    %v6957 = vsel %vm6152, %v6945, 0
    %v6960 = vsel %vm6152, %v6946, 0
    %v6963 = vsel %vm6230, %v6949, 0
    %6965 = vmatprep.subr.mxu0 0.0
    %6966 = vmatpush1.msra.mxu0 %v6948
    %6967 = vmatprep.subr.mxu0 0.0
    %6968 = vmatpush1.msra.mxu0 %v6963
    %6969 = vmatprep.subr.mxu0 0.0
    %6970 = vmatpush1.msra.mxu0 0.0
    %6971 = vmatprep.subr.mxu0 0.0
    %6972 = vmatpush1.msra.mxu0 0.0
    %6973 = vmatprep.subr.mxu0 0.0
    %6974 = vmatpush1.msra.mxu0 0.0
    %6975 = vmatprep.subr.mxu0 0.0
    %6976 = vmatpush1.msra.mxu0 0.0
    %6977 = vmatprep.subr.mxu0 0.0
    %6978 = vmatpush1.msra.mxu0 0.0
    %6979 = vmatprep.subr.mxu0 0.0
    %6980 = vmatpush1.msra.mxu0 0.0
    %6981 = vmatprep.subr.mxu0 0.0
    %6982 = vmatpush1.msra.mxu0 0.0
    %6983 = vmatprep.subr.mxu0 0.0
    %6984 = vmatpush1.msra.mxu0 0.0
    %6985 = vmatprep.subr.mxu0 0.0
    %6986 = vmatpush1.msra.mxu0 0.0
    %6987 = vmatprep.subr.mxu0 0.0
    %6988 = vmatpush1.msra.mxu0 0.0
    %6989 = vmatprep.subr.mxu0 0.0
    %6990 = vmatpush1.msra.mxu0 0.0
    %6991 = vmatprep.subr.mxu0 0.0
    %6992 = vmatpush1.msra.mxu0 0.0
    %6993 = vmatprep.subr.mxu0 0.0
    %6994 = vmatpush1.msra.mxu0 0.0
    %6995 = vmatprep.subr.mxu0 0.0
    %6996 = vmatpush1.msra.mxu0 0.0
    %6997 = vmatprep.subr.mxu0 0.0
    %6998 = vmatpush1.msra.mxu0 0.0
    %6999 = vmatprep.subr.mxu0 0.0
    %7000 = vmatpush1.msra.mxu0 0.0
    %7001 = vmatprep.subr.mxu0 0.0
    %7002 = vmatpush1.msra.mxu0 0.0
    %7003 = vmatprep.subr.mxu0 0.0
    %7004 = vmatpush1.msra.mxu0 0.0
    %7005 = vmatprep.subr.mxu0 0.0
    %7006 = vmatpush1.msra.mxu0 0.0
    %7007 = vmatprep.subr.mxu0 0.0
    %7008 = vmatpush1.msra.mxu0 0.0
    %7009 = vmatprep.subr.mxu0 0.0
    %7010 = vmatpush1.msra.mxu0 0.0
    %7011 = vmatprep.subr.mxu0 0.0
    %7012 = vmatpush1.msra.mxu0 0.0
    %7013 = vmatprep.subr.mxu0 0.0
    %7014 = vmatpush1.msra.mxu0 0.0
    %7015 = vmatprep.subr.mxu0 0.0
    %7016 = vmatpush1.msra.mxu0 0.0
    %7017 = vmatprep.subr.mxu0 0.0
    %7018 = vmatpush1.msra.mxu0 0.0
    %7019 = vmatprep.subr.mxu0 0.0
    %7020 = vmatpush1.msra.mxu0 0.0
    %7021 = vmatprep.subr.mxu0 0.0
    %7022 = vmatpush1.msra.mxu0 0.0
    %7023 = vmatprep.subr.mxu0 0.0
    %7024 = vmatpush1.msra.mxu0 0.0
    %7025 = vmatprep.subr.mxu0 0.0
    %7026 = vmatpush1.msra.mxu0 0.0
    %7027 = vmatprep.subr.mxu0 0.0
    %7028 = vmatpush1.msra.mxu0 0.0
    %7029 = vmatprep.mubr.f32.mxu0 0.0
    %7030 = vmatmul.mubr.f32.gmra.mrb[0].mxu0 %v6951
    %v7031 = vpop.f32.mrb[0].mxu0
    %v7032 = vadd.f32 0.0, %v7031
    %v7033 = vpop.f32.mrb[0].mxu0
    %7034 = vmatprep.mubr.f32.mxu0 0.0
    %7035 = vmatmul.mubr.f32.gmra.mrb[0].mxu0 %v6954
    %v7036 = vpop.f32.mrb[0].mxu0
    %v7037 = vadd.f32 0.0, %v7036
    %v7038 = vpop.f32.mrb[0].mxu0
    %7039 = vmatprep.mubr.f32.mxu0 0.0
    %7040 = vmatmul.mubr.f32.gmra.mrb[0].mxu0 %v6957
    %v7041 = vpop.f32.mrb[0].mxu0
    %v7042 = vadd.f32 0.0, %v7041
    %v7043 = vpop.f32.mrb[0].mxu0
    %7044 = vmatprep.mubr.f32.mxu0 0.0
    %7045 = vmatmul.mubr.f32.gmra.mrb[0].mxu0 %v6960
    %v7046 = vpop.f32.mrb[0].mxu0
    %v7047 = vadd.f32 0.0, %v7046
    %v7048 = vpop.f32.mrb[0].mxu0
    %7049 = vdwg.mxu0
    %v7050 = vadd.f32 %v6919, %v7032
    %v7051 = vadd.f32 %v6920, %v7037
    %v7052 = vadd.f32 %v6921, %v7042
    %v7053 = vadd.f32 %v6922, %v7047
    %v7054 = vld [vmem:[#allocation2 + $0x14] sm:$0xff]
    %v7055 = vld [vmem:[#allocation2 + $0x1c] sm:$0xff]
    %v7056 = vld [vmem:[#allocation2 + $0x24] sm:$0xff]
    %v7057 = vld [vmem:[#allocation2 + $0x2c] sm:$0xff]
    %7058 = vset.pattern.permute.xlu0 7
    %7059 = vperm.xlu0 %7058, %v6161
    %v7060 = vpop.permute.xlu0 %7059
    %7062 = vset.pattern.permute.xlu0 7
    %7063 = vperm.xlu0 %7062, %v6162
    %v7064 = vpop.permute.xlu0 %7063
    %7066 = vset.pattern.permute.xlu0 7
    %7067 = vperm.xlu0 %7066, %v6163
    %v7068 = vpop.permute.xlu0 %7067
    %7070 = vset.pattern.permute.xlu0 7
    %7071 = vperm.xlu0 %7070, %v6164
    %v7072 = vpop.permute.xlu0 %7071
    %v7074 = vmul.f32 %v7054, %v7060
    %v7075 = vmul.f32 %v7055, %v7064
    %v7076 = vmul.f32 %v7056, %v7068
    %v7077 = vmul.f32 %v7057, %v7072
    %s7078 = scalar_lea.vmem [#allocation15], 112
    %v7079 = vld [vmem:[%s7078] sm:$0xff]
    %v7080 = vld [vmem:[%s7078 + $0x8] sm:$0x3]
    %v7082 = vsel %vm6152, %v7074, 0
    %v7085 = vsel %vm6152, %v7075, 0
    %v7088 = vsel %vm6152, %v7076, 0
    %v7091 = vsel %vm6152, %v7077, 0
    %v7094 = vsel %vm6230, %v7080, 0
    %7096 = vmatprep.subr.mxu0 0.0
    %7097 = vmatpush1.msra.mxu0 %v7079
    %7098 = vmatprep.subr.mxu0 0.0
    %7099 = vmatpush1.msra.mxu0 %v7094
    %7100 = vmatprep.subr.mxu0 0.0
    %7101 = vmatpush1.msra.mxu0 0.0
    %7102 = vmatprep.subr.mxu0 0.0
    %7103 = vmatpush1.msra.mxu0 0.0
    %7104 = vmatprep.subr.mxu0 0.0
    %7105 = vmatpush1.msra.mxu0 0.0
    %7106 = vmatprep.subr.mxu0 0.0
    %7107 = vmatpush1.msra.mxu0 0.0
    %7108 = vmatprep.subr.mxu0 0.0
    %7109 = vmatpush1.msra.mxu0 0.0
    %7110 = vmatprep.subr.mxu0 0.0
    %7111 = vmatpush1.msra.mxu0 0.0
    %7112 = vmatprep.subr.mxu0 0.0
    %7113 = vmatpush1.msra.mxu0 0.0
    %7114 = vmatprep.subr.mxu0 0.0
    %7115 = vmatpush1.msra.mxu0 0.0
    %7116 = vmatprep.subr.mxu0 0.0
    %7117 = vmatpush1.msra.mxu0 0.0
    %7118 = vmatprep.subr.mxu0 0.0
    %7119 = vmatpush1.msra.mxu0 0.0
    %7120 = vmatprep.subr.mxu0 0.0
    %7121 = vmatpush1.msra.mxu0 0.0
    %7122 = vmatprep.subr.mxu0 0.0
    %7123 = vmatpush1.msra.mxu0 0.0
    %7124 = vmatprep.subr.mxu0 0.0
    %7125 = vmatpush1.msra.mxu0 0.0
    %7126 = vmatprep.subr.mxu0 0.0
    %7127 = vmatpush1.msra.mxu0 0.0
    %7128 = vmatprep.subr.mxu0 0.0
    %7129 = vmatpush1.msra.mxu0 0.0
    %7130 = vmatprep.subr.mxu0 0.0
    %7131 = vmatpush1.msra.mxu0 0.0
    %7132 = vmatprep.subr.mxu0 0.0
    %7133 = vmatpush1.msra.mxu0 0.0
    %7134 = vmatprep.subr.mxu0 0.0
    %7135 = vmatpush1.msra.mxu0 0.0
    %7136 = vmatprep.subr.mxu0 0.0
    %7137 = vmatpush1.msra.mxu0 0.0
    %7138 = vmatprep.subr.mxu0 0.0
    %7139 = vmatpush1.msra.mxu0 0.0
    %7140 = vmatprep.subr.mxu0 0.0
    %7141 = vmatpush1.msra.mxu0 0.0
    %7142 = vmatprep.subr.mxu0 0.0
    %7143 = vmatpush1.msra.mxu0 0.0
    %7144 = vmatprep.subr.mxu0 0.0
    %7145 = vmatpush1.msra.mxu0 0.0
    %7146 = vmatprep.subr.mxu0 0.0
    %7147 = vmatpush1.msra.mxu0 0.0
    %7148 = vmatprep.subr.mxu0 0.0
    %7149 = vmatpush1.msra.mxu0 0.0
    %7150 = vmatprep.subr.mxu0 0.0
    %7151 = vmatpush1.msra.mxu0 0.0
    %7152 = vmatprep.subr.mxu0 0.0
    %7153 = vmatpush1.msra.mxu0 0.0
    %7154 = vmatprep.subr.mxu0 0.0
    %7155 = vmatpush1.msra.mxu0 0.0
    %7156 = vmatprep.subr.mxu0 0.0
    %7157 = vmatpush1.msra.mxu0 0.0
    %7158 = vmatprep.subr.mxu0 0.0
    %7159 = vmatpush1.msra.mxu0 0.0
    %7160 = vmatprep.mubr.f32.mxu0 0.0
    %7161 = vmatmul.mubr.f32.gmra.mrb[0].mxu0 %v7082
    %v7162 = vpop.f32.mrb[0].mxu0
    %v7163 = vadd.f32 0.0, %v7162
    %v7164 = vpop.f32.mrb[0].mxu0
    %7165 = vmatprep.mubr.f32.mxu0 0.0
    %7166 = vmatmul.mubr.f32.gmra.mrb[0].mxu0 %v7085
    %v7167 = vpop.f32.mrb[0].mxu0
    %v7168 = vadd.f32 0.0, %v7167
    %v7169 = vpop.f32.mrb[0].mxu0
    %7170 = vmatprep.mubr.f32.mxu0 0.0
    %7171 = vmatmul.mubr.f32.gmra.mrb[0].mxu0 %v7088
    %v7172 = vpop.f32.mrb[0].mxu0
    %v7173 = vadd.f32 0.0, %v7172
    %v7174 = vpop.f32.mrb[0].mxu0
    %7175 = vmatprep.mubr.f32.mxu0 0.0
    %7176 = vmatmul.mubr.f32.gmra.mrb[0].mxu0 %v7091
    %v7177 = vpop.f32.mrb[0].mxu0
    %v7178 = vadd.f32 0.0, %v7177
    %v7179 = vpop.f32.mrb[0].mxu0
    %7180 = vdwg.mxu0
    %v7181 = vadd.f32 %v7050, %v7163
    %v7182 = vadd.f32 %v7051, %v7168
    %v7183 = vadd.f32 %v7052, %v7173
    %v7184 = vadd.f32 %v7053, %v7178
    %v7185 = vld [vmem:[#allocation2 + $0x15] sm:$0xff]
    %v7186 = vld [vmem:[#allocation2 + $0x1d] sm:$0xff]
    %v7187 = vld [vmem:[#allocation2 + $0x25] sm:$0xff]
    %v7188 = vld [vmem:[#allocation2 + $0x2d] sm:$0xff]
    %7189 = vset.pattern.permute.xlu0 8
    %7190 = vperm.xlu0 %7189, %v6161
    %v7191 = vpop.permute.xlu0 %7190
    %7193 = vset.pattern.permute.xlu0 8
    %7194 = vperm.xlu0 %7193, %v6162
    %v7195 = vpop.permute.xlu0 %7194
    %7197 = vset.pattern.permute.xlu0 8
    %7198 = vperm.xlu0 %7197, %v6163
    %v7199 = vpop.permute.xlu0 %7198
    %7201 = vset.pattern.permute.xlu0 8
    %7202 = vperm.xlu0 %7201, %v6164
    %v7203 = vpop.permute.xlu0 %7202
    %v7205 = vmul.f32 %v7185, %v7191
    %v7206 = vmul.f32 %v7186, %v7195
    %v7207 = vmul.f32 %v7187, %v7199
    %v7208 = vmul.f32 %v7188, %v7203
    %s7209 = scalar_lea.vmem [#allocation15], 128
    %v7210 = vld [vmem:[%s7209] sm:$0xff]
    %v7211 = vld [vmem:[%s7209 + $0x8] sm:$0x3]
    %v7213 = vsel %vm6152, %v7205, 0
    %v7216 = vsel %vm6152, %v7206, 0
    %v7219 = vsel %vm6152, %v7207, 0
    %v7222 = vsel %vm6152, %v7208, 0
    %v7225 = vsel %vm6230, %v7211, 0
    %7227 = vmatprep.subr.mxu0 0.0
    %7228 = vmatpush1.msra.mxu0 %v7210
    %7229 = vmatprep.subr.mxu0 0.0
    %7230 = vmatpush1.msra.mxu0 %v7225
    %7231 = vmatprep.subr.mxu0 0.0
    %7232 = vmatpush1.msra.mxu0 0.0
    %7233 = vmatprep.subr.mxu0 0.0
    %7234 = vmatpush1.msra.mxu0 0.0
    %7235 = vmatprep.subr.mxu0 0.0
    %7236 = vmatpush1.msra.mxu0 0.0
    %7237 = vmatprep.subr.mxu0 0.0
    %7238 = vmatpush1.msra.mxu0 0.0
    %7239 = vmatprep.subr.mxu0 0.0
    %7240 = vmatpush1.msra.mxu0 0.0
    %7241 = vmatprep.subr.mxu0 0.0
    %7242 = vmatpush1.msra.mxu0 0.0
    %7243 = vmatprep.subr.mxu0 0.0
    %7244 = vmatpush1.msra.mxu0 0.0
    %7245 = vmatprep.subr.mxu0 0.0
    %7246 = vmatpush1.msra.mxu0 0.0
    %7247 = vmatprep.subr.mxu0 0.0
    %7248 = vmatpush1.msra.mxu0 0.0
    %7249 = vmatprep.subr.mxu0 0.0
    %7250 = vmatpush1.msra.mxu0 0.0
    %7251 = vmatprep.subr.mxu0 0.0
    %7252 = vmatpush1.msra.mxu0 0.0
    %7253 = vmatprep.subr.mxu0 0.0
    %7254 = vmatpush1.msra.mxu0 0.0
    %7255 = vmatprep.subr.mxu0 0.0
    %7256 = vmatpush1.msra.mxu0 0.0
    %7257 = vmatprep.subr.mxu0 0.0
    %7258 = vmatpush1.msra.mxu0 0.0
    %7259 = vmatprep.subr.mxu0 0.0
    %7260 = vmatpush1.msra.mxu0 0.0
    %7261 = vmatprep.subr.mxu0 0.0
    %7262 = vmatpush1.msra.mxu0 0.0
    %7263 = vmatprep.subr.mxu0 0.0
    %7264 = vmatpush1.msra.mxu0 0.0
    %7265 = vmatprep.subr.mxu0 0.0
    %7266 = vmatpush1.msra.mxu0 0.0
    %7267 = vmatprep.subr.mxu0 0.0
    %7268 = vmatpush1.msra.mxu0 0.0
    %7269 = vmatprep.subr.mxu0 0.0
    %7270 = vmatpush1.msra.mxu0 0.0
    %7271 = vmatprep.subr.mxu0 0.0
    %7272 = vmatpush1.msra.mxu0 0.0
    %7273 = vmatprep.subr.mxu0 0.0
    %7274 = vmatpush1.msra.mxu0 0.0
    %7275 = vmatprep.subr.mxu0 0.0
    %7276 = vmatpush1.msra.mxu0 0.0
    %7277 = vmatprep.subr.mxu0 0.0
    %7278 = vmatpush1.msra.mxu0 0.0
    %7279 = vmatprep.subr.mxu0 0.0
    %7280 = vmatpush1.msra.mxu0 0.0
    %7281 = vmatprep.subr.mxu0 0.0
    %7282 = vmatpush1.msra.mxu0 0.0
    %7283 = vmatprep.subr.mxu0 0.0
    %7284 = vmatpush1.msra.mxu0 0.0
    %7285 = vmatprep.subr.mxu0 0.0
    %7286 = vmatpush1.msra.mxu0 0.0
    %7287 = vmatprep.subr.mxu0 0.0
    %7288 = vmatpush1.msra.mxu0 0.0
    %7289 = vmatprep.subr.mxu0 0.0
    %7290 = vmatpush1.msra.mxu0 0.0
    %7291 = vmatprep.mubr.f32.mxu0 0.0
    %7292 = vmatmul.mubr.f32.gmra.mrb[0].mxu0 %v7213
    %v7293 = vpop.f32.mrb[0].mxu0
    %v7294 = vadd.f32 0.0, %v7293
    %v7295 = vpop.f32.mrb[0].mxu0
    %7296 = vmatprep.mubr.f32.mxu0 0.0
    %7297 = vmatmul.mubr.f32.gmra.mrb[0].mxu0 %v7216
    %v7298 = vpop.f32.mrb[0].mxu0
    %v7299 = vadd.f32 0.0, %v7298
    %v7300 = vpop.f32.mrb[0].mxu0
    %7301 = vmatprep.mubr.f32.mxu0 0.0
    %7302 = vmatmul.mubr.f32.gmra.mrb[0].mxu0 %v7219
    %v7303 = vpop.f32.mrb[0].mxu0
    %v7304 = vadd.f32 0.0, %v7303
    %v7305 = vpop.f32.mrb[0].mxu0
    %7306 = vmatprep.mubr.f32.mxu0 0.0
    %7307 = vmatmul.mubr.f32.gmra.mrb[0].mxu0 %v7222
    %v7308 = vpop.f32.mrb[0].mxu0
    %v7309 = vadd.f32 0.0, %v7308
    %v7310 = vpop.f32.mrb[0].mxu0
    %7311 = vdwg.mxu0
    %v7312 = vadd.f32 %v7181, %v7294
    %v7313 = vadd.f32 %v7182, %v7299
    %v7314 = vadd.f32 %v7183, %v7304
    %v7315 = vadd.f32 %v7184, %v7309
    %v7316 = vld [vmem:[#allocation16] sm:$0x1]
    %v7318 = vlaneseq
    %v7319 = vshrl.u32 %v7318, 7
    %v7320 = vsub.s32 0, %v7319
    %v7321 = vrot.slane %v7316, %v7320
    %v7323 = vadd.f32 %v7312, %v7321
    %v7324 = vadd.f32 %v7313, %v7321
    %v7325 = vadd.f32 %v7314, %v7321
    %v7326 = vadd.f32 %v7315, %v7321
    %v7327 = vmax.f32 %v7323, 0.0
    %v7328 = vmax.f32 %v7324, 0.0
    %v7329 = vmax.f32 %v7325, 0.0
    %v7330 = vmax.f32 %v7326, 0.0
    %7331 = vst.msk [vmem:[#allocation2 + $0x10] sm:$0xff] %vm213, %v7327
    %7332 = vst.msk [vmem:[#allocation2 + $0x18] sm:$0xff] %vm213, %v7328
    %7333 = vst.msk [vmem:[#allocation2 + $0x20] sm:$0xff] %vm213, %v7329
    %7334 = vst.msk [vmem:[#allocation2 + $0x28] sm:$0xff] %vm213, %v7330
    %v7335 = vld [vmem:[#allocation2 + $0xb] sm:$0xff]
    %v7336 = vld [vmem:[#allocation2 + $0x13] sm:$0xff]
    %v7337 = vld [vmem:[#allocation2 + $0x1b] sm:$0xff]
    %v7338 = vld [vmem:[#allocation2 + $0x23] sm:$0xff]
    %v7339 = vld [vmem:[%s12] sm:$0xff]
    %v7340 = vld [vmem:[%s12 + $0x8] sm:$0xff]
    %v7341 = vld [vmem:[%s12 + $0x10] sm:$0xff]
    %v7342 = vld [vmem:[%s12 + $0x18] sm:$0xff]
    %7344 = vset.pattern.permute.xlu0 0
    %7345 = vperm.xlu0 %7344, %v7339
    %v7346 = vpop.permute.xlu0 %7345
    %7349 = vset.pattern.permute.xlu0 0
    %7350 = vperm.xlu0 %7349, %v7340
    %v7351 = vpop.permute.xlu0 %7350
    %7354 = vset.pattern.permute.xlu0 0
    %7355 = vperm.xlu0 %7354, %v7341
    %v7356 = vpop.permute.xlu0 %7355
    %7359 = vset.pattern.permute.xlu0 0
    %7360 = vperm.xlu0 %7359, %v7342
    %v7361 = vpop.permute.xlu0 %7360
    %v7363 = vmul.f32 %v7335, %v7346
    %v7364 = vmul.f32 %v7336, %v7351
    %v7365 = vmul.f32 %v7337, %v7356
    %v7366 = vmul.f32 %v7338, %v7361
    %v7367 = vld [vmem:[%s9] sm:$0xff]
    %v7368 = vld [vmem:[%s9 + $0x8] sm:$0xff]
    %v7369 = vld [vmem:[#allocation2 + $0xc] sm:$0xff]
    %v7370 = vld [vmem:[#allocation2 + $0x14] sm:$0xff]
    %v7371 = vld [vmem:[#allocation2 + $0x1c] sm:$0xff]
    %v7372 = vld [vmem:[#allocation2 + $0x24] sm:$0xff]
    %7373 = vset.pattern.permute.xlu0 1
    %7374 = vperm.xlu0 %7373, %v7339
    %v7375 = vpop.permute.xlu0 %7374
    %7377 = vset.pattern.permute.xlu0 1
    %7378 = vperm.xlu0 %7377, %v7340
    %v7379 = vpop.permute.xlu0 %7378
    %7381 = vset.pattern.permute.xlu0 1
    %7382 = vperm.xlu0 %7381, %v7341
    %v7383 = vpop.permute.xlu0 %7382
    %7385 = vset.pattern.permute.xlu0 1
    %7386 = vperm.xlu0 %7385, %v7342
    %v7387 = vpop.permute.xlu0 %7386
    %v7389 = vmul.f32 %v7369, %v7375
    %v7390 = vmul.f32 %v7370, %v7379
    %v7391 = vmul.f32 %v7371, %v7383
    %v7392 = vmul.f32 %v7372, %v7387
    %s7393 = scalar_lea.vmem %s9, 16
    %v7394 = vld [vmem:[%s7393] sm:$0xff]
    %v7395 = vld [vmem:[%s7393 + $0x8] sm:$0xff]
    %v7397 = vsel %vm213, %v7389, 0
    %v7400 = vsel %vm213, %v7390, 0
    %v7403 = vsel %vm213, %v7391, 0
    %v7406 = vsel %vm213, %v7392, 0
    %7408 = vmatprep.subr.mxu0 0.0
    %7409 = vmatpush1.msra.mxu0 %v7394
    %7410 = vmatprep.subr.mxu0 0.0
    %7411 = vmatpush1.msra.mxu0 %v7395
    %7412 = vmatprep.subr.mxu0 0.0
    %7413 = vmatpush1.msra.mxu0 0.0
    %7414 = vmatprep.subr.mxu0 0.0
    %7415 = vmatpush1.msra.mxu0 0.0
    %7416 = vmatprep.subr.mxu0 0.0
    %7417 = vmatpush1.msra.mxu0 0.0
    %7418 = vmatprep.subr.mxu0 0.0
    %7419 = vmatpush1.msra.mxu0 0.0
    %7420 = vmatprep.subr.mxu0 0.0
    %7421 = vmatpush1.msra.mxu0 0.0
    %7422 = vmatprep.subr.mxu0 0.0
    %7423 = vmatpush1.msra.mxu0 0.0
    %7424 = vmatprep.subr.mxu0 0.0
    %7425 = vmatpush1.msra.mxu0 0.0
    %7426 = vmatprep.subr.mxu0 0.0
    %7427 = vmatpush1.msra.mxu0 0.0
    %7428 = vmatprep.subr.mxu0 0.0
    %7429 = vmatpush1.msra.mxu0 0.0
    %7430 = vmatprep.subr.mxu0 0.0
    %7431 = vmatpush1.msra.mxu0 0.0
    %7432 = vmatprep.subr.mxu0 0.0
    %7433 = vmatpush1.msra.mxu0 0.0
    %7434 = vmatprep.subr.mxu0 0.0
    %7435 = vmatpush1.msra.mxu0 0.0
    %7436 = vmatprep.subr.mxu0 0.0
    %7437 = vmatpush1.msra.mxu0 0.0
    %7438 = vmatprep.subr.mxu0 0.0
    %7439 = vmatpush1.msra.mxu0 0.0
    %7440 = vmatprep.subr.mxu0 0.0
    %7441 = vmatpush1.msra.mxu0 0.0
    %7442 = vmatprep.subr.mxu0 0.0
    %7443 = vmatpush1.msra.mxu0 0.0
    %7444 = vmatprep.subr.mxu0 0.0
    %7445 = vmatpush1.msra.mxu0 0.0
    %7446 = vmatprep.subr.mxu0 0.0
    %7447 = vmatpush1.msra.mxu0 0.0
    %7448 = vmatprep.subr.mxu0 0.0
    %7449 = vmatpush1.msra.mxu0 0.0
    %7450 = vmatprep.subr.mxu0 0.0
    %7451 = vmatpush1.msra.mxu0 0.0
    %7452 = vmatprep.subr.mxu0 0.0
    %7453 = vmatpush1.msra.mxu0 0.0
    %7454 = vmatprep.subr.mxu0 0.0
    %7455 = vmatpush1.msra.mxu0 0.0
    %7456 = vmatprep.subr.mxu0 0.0
    %7457 = vmatpush1.msra.mxu0 0.0
    %7458 = vmatprep.subr.mxu0 0.0
    %7459 = vmatpush1.msra.mxu0 0.0
    %7460 = vmatprep.subr.mxu0 0.0
    %7461 = vmatpush1.msra.mxu0 0.0
    %7462 = vmatprep.subr.mxu0 0.0
    %7463 = vmatpush1.msra.mxu0 0.0
    %7464 = vmatprep.subr.mxu0 0.0
    %7465 = vmatpush1.msra.mxu0 0.0
    %7466 = vmatprep.subr.mxu0 0.0
    %7467 = vmatpush1.msra.mxu0 0.0
    %7468 = vmatprep.subr.mxu0 0.0
    %7469 = vmatpush1.msra.mxu0 0.0
    %7470 = vmatprep.subr.mxu0 0.0
    %7471 = vmatpush1.msra.mxu0 0.0
    %7472 = vmatprep.mubr.f32.mxu0 0.0
    %7473 = vmatmul.mubr.f32.gmra.mrb[0].mxu0 %v7397
    %v7474 = vpop.f32.mrb[0].mxu0
    %v7475 = vadd.f32 0.0, %v7474
    %v7476 = vpop.f32.mrb[0].mxu0
    %7477 = vmatprep.mubr.f32.mxu0 0.0
    %7478 = vmatmul.mubr.f32.gmra.mrb[0].mxu0 %v7400
    %v7479 = vpop.f32.mrb[0].mxu0
    %v7480 = vadd.f32 0.0, %v7479
    %v7481 = vpop.f32.mrb[0].mxu0
    %7482 = vmatprep.mubr.f32.mxu0 0.0
    %7483 = vmatmul.mubr.f32.gmra.mrb[0].mxu0 %v7403
    %v7484 = vpop.f32.mrb[0].mxu0
    %v7485 = vadd.f32 0.0, %v7484
    %v7486 = vpop.f32.mrb[0].mxu0
    %7487 = vmatprep.mubr.f32.mxu0 0.0
    %7488 = vmatmul.mubr.f32.gmra.mrb[0].mxu0 %v7406
    %v7489 = vpop.f32.mrb[0].mxu0
    %v7490 = vadd.f32 0.0, %v7489
    %v7491 = vpop.f32.mrb[0].mxu0
    %7492 = vdwg.mxu0
    %v7494 = vsel %vm213, %v7363, 0
    %v7497 = vsel %vm213, %v7364, 0
    %v7500 = vsel %vm213, %v7365, 0
    %v7503 = vsel %vm213, %v7366, 0
    %7505 = vmatprep.subr.mxu0 0.0
    %7506 = vmatpush1.msra.mxu0 %v7367
    %7507 = vmatprep.subr.mxu0 0.0
    %7508 = vmatpush1.msra.mxu0 %v7368
    %7509 = vmatprep.subr.mxu0 0.0
    %7510 = vmatpush1.msra.mxu0 0.0
    %7511 = vmatprep.subr.mxu0 0.0
    %7512 = vmatpush1.msra.mxu0 0.0
    %7513 = vmatprep.subr.mxu0 0.0
    %7514 = vmatpush1.msra.mxu0 0.0
    %7515 = vmatprep.subr.mxu0 0.0
    %7516 = vmatpush1.msra.mxu0 0.0
    %7517 = vmatprep.subr.mxu0 0.0
    %7518 = vmatpush1.msra.mxu0 0.0
    %7519 = vmatprep.subr.mxu0 0.0
    %7520 = vmatpush1.msra.mxu0 0.0
    %7521 = vmatprep.subr.mxu0 0.0
    %7522 = vmatpush1.msra.mxu0 0.0
    %7523 = vmatprep.subr.mxu0 0.0
    %7524 = vmatpush1.msra.mxu0 0.0
    %7525 = vmatprep.subr.mxu0 0.0
    %7526 = vmatpush1.msra.mxu0 0.0
    %7527 = vmatprep.subr.mxu0 0.0
    %7528 = vmatpush1.msra.mxu0 0.0
    %7529 = vmatprep.subr.mxu0 0.0
    %7530 = vmatpush1.msra.mxu0 0.0
    %7531 = vmatprep.subr.mxu0 0.0
    %7532 = vmatpush1.msra.mxu0 0.0
    %7533 = vmatprep.subr.mxu0 0.0
    %7534 = vmatpush1.msra.mxu0 0.0
    %7535 = vmatprep.subr.mxu0 0.0
    %7536 = vmatpush1.msra.mxu0 0.0
    %7537 = vmatprep.subr.mxu0 0.0
    %7538 = vmatpush1.msra.mxu0 0.0
    %7539 = vmatprep.subr.mxu0 0.0
    %7540 = vmatpush1.msra.mxu0 0.0
    %7541 = vmatprep.subr.mxu0 0.0
    %7542 = vmatpush1.msra.mxu0 0.0
    %7543 = vmatprep.subr.mxu0 0.0
    %7544 = vmatpush1.msra.mxu0 0.0
    %7545 = vmatprep.subr.mxu0 0.0
    %7546 = vmatpush1.msra.mxu0 0.0
    %7547 = vmatprep.subr.mxu0 0.0
    %7548 = vmatpush1.msra.mxu0 0.0
    %7549 = vmatprep.subr.mxu0 0.0
    %7550 = vmatpush1.msra.mxu0 0.0
    %7551 = vmatprep.subr.mxu0 0.0
    %7552 = vmatpush1.msra.mxu0 0.0
    %7553 = vmatprep.subr.mxu0 0.0
    %7554 = vmatpush1.msra.mxu0 0.0
    %7555 = vmatprep.subr.mxu0 0.0
    %7556 = vmatpush1.msra.mxu0 0.0
    %7557 = vmatprep.subr.mxu0 0.0
    %7558 = vmatpush1.msra.mxu0 0.0
    %7559 = vmatprep.subr.mxu0 0.0
    %7560 = vmatpush1.msra.mxu0 0.0
    %7561 = vmatprep.subr.mxu0 0.0
    %7562 = vmatpush1.msra.mxu0 0.0
    %7563 = vmatprep.subr.mxu0 0.0
    %7564 = vmatpush1.msra.mxu0 0.0
    %7565 = vmatprep.subr.mxu0 0.0
    %7566 = vmatpush1.msra.mxu0 0.0
    %7567 = vmatprep.subr.mxu0 0.0
    %7568 = vmatpush1.msra.mxu0 0.0
    %7569 = vmatprep.mubr.f32.mxu0 0.0
    %7570 = vmatmul.mubr.f32.gmra.mrb[0].mxu0 %v7494
    %v7571 = vpop.f32.mrb[0].mxu0
    %v7572 = vadd.f32 %v7475, %v7571
    %v7573 = vpop.f32.mrb[0].mxu0
    %7574 = vmatprep.mubr.f32.mxu0 0.0
    %7575 = vmatmul.mubr.f32.gmra.mrb[0].mxu0 %v7497
    %v7576 = vpop.f32.mrb[0].mxu0
    %v7577 = vadd.f32 %v7480, %v7576
    %v7578 = vpop.f32.mrb[0].mxu0
    %7579 = vmatprep.mubr.f32.mxu0 0.0
    %7580 = vmatmul.mubr.f32.gmra.mrb[0].mxu0 %v7500
    %v7581 = vpop.f32.mrb[0].mxu0
    %v7582 = vadd.f32 %v7485, %v7581
    %v7583 = vpop.f32.mrb[0].mxu0
    %7584 = vmatprep.mubr.f32.mxu0 0.0
    %7585 = vmatmul.mubr.f32.gmra.mrb[0].mxu0 %v7503
    %v7586 = vpop.f32.mrb[0].mxu0
    %v7587 = vadd.f32 %v7490, %v7586
    %v7588 = vpop.f32.mrb[0].mxu0
    %7589 = vdwg.mxu0
    %v7590 = vld [vmem:[#allocation2 + $0xd] sm:$0xff]
    %v7591 = vld [vmem:[#allocation2 + $0x15] sm:$0xff]
    %v7592 = vld [vmem:[#allocation2 + $0x1d] sm:$0xff]
    %v7593 = vld [vmem:[#allocation2 + $0x25] sm:$0xff]
    %7594 = vset.pattern.permute.xlu0 2
    %7595 = vperm.xlu0 %7594, %v7339
    %v7596 = vpop.permute.xlu0 %7595
    %7598 = vset.pattern.permute.xlu0 2
    %7599 = vperm.xlu0 %7598, %v7340
    %v7600 = vpop.permute.xlu0 %7599
    %7602 = vset.pattern.permute.xlu0 2
    %7603 = vperm.xlu0 %7602, %v7341
    %v7604 = vpop.permute.xlu0 %7603
    %7606 = vset.pattern.permute.xlu0 2
    %7607 = vperm.xlu0 %7606, %v7342
    %v7608 = vpop.permute.xlu0 %7607
    %v7610 = vmul.f32 %v7590, %v7596
    %v7611 = vmul.f32 %v7591, %v7600
    %v7612 = vmul.f32 %v7592, %v7604
    %v7613 = vmul.f32 %v7593, %v7608
    %s7614 = scalar_lea.vmem %s9, 32
    %v7615 = vld [vmem:[%s7614] sm:$0xff]
    %v7616 = vld [vmem:[%s7614 + $0x8] sm:$0xff]
    %v7618 = vsel %vm213, %v7610, 0
    %v7621 = vsel %vm213, %v7611, 0
    %v7624 = vsel %vm213, %v7612, 0
    %v7627 = vsel %vm213, %v7613, 0
    %7629 = vmatprep.subr.mxu0 0.0
    %7630 = vmatpush1.msra.mxu0 %v7615
    %7631 = vmatprep.subr.mxu0 0.0
    %7632 = vmatpush1.msra.mxu0 %v7616
    %7633 = vmatprep.subr.mxu0 0.0
    %7634 = vmatpush1.msra.mxu0 0.0
    %7635 = vmatprep.subr.mxu0 0.0
    %7636 = vmatpush1.msra.mxu0 0.0
    %7637 = vmatprep.subr.mxu0 0.0
    %7638 = vmatpush1.msra.mxu0 0.0
    %7639 = vmatprep.subr.mxu0 0.0
    %7640 = vmatpush1.msra.mxu0 0.0
    %7641 = vmatprep.subr.mxu0 0.0
    %7642 = vmatpush1.msra.mxu0 0.0
    %7643 = vmatprep.subr.mxu0 0.0
    %7644 = vmatpush1.msra.mxu0 0.0
    %7645 = vmatprep.subr.mxu0 0.0
    %7646 = vmatpush1.msra.mxu0 0.0
    %7647 = vmatprep.subr.mxu0 0.0
    %7648 = vmatpush1.msra.mxu0 0.0
    %7649 = vmatprep.subr.mxu0 0.0
    %7650 = vmatpush1.msra.mxu0 0.0
    %7651 = vmatprep.subr.mxu0 0.0
    %7652 = vmatpush1.msra.mxu0 0.0
    %7653 = vmatprep.subr.mxu0 0.0
    %7654 = vmatpush1.msra.mxu0 0.0
    %7655 = vmatprep.subr.mxu0 0.0
    %7656 = vmatpush1.msra.mxu0 0.0
    %7657 = vmatprep.subr.mxu0 0.0
    %7658 = vmatpush1.msra.mxu0 0.0
    %7659 = vmatprep.subr.mxu0 0.0
    %7660 = vmatpush1.msra.mxu0 0.0
    %7661 = vmatprep.subr.mxu0 0.0
    %7662 = vmatpush1.msra.mxu0 0.0
    %7663 = vmatprep.subr.mxu0 0.0
    %7664 = vmatpush1.msra.mxu0 0.0
    %7665 = vmatprep.subr.mxu0 0.0
    %7666 = vmatpush1.msra.mxu0 0.0
    %7667 = vmatprep.subr.mxu0 0.0
    %7668 = vmatpush1.msra.mxu0 0.0
    %7669 = vmatprep.subr.mxu0 0.0
    %7670 = vmatpush1.msra.mxu0 0.0
    %7671 = vmatprep.subr.mxu0 0.0
    %7672 = vmatpush1.msra.mxu0 0.0
    %7673 = vmatprep.subr.mxu0 0.0
    %7674 = vmatpush1.msra.mxu0 0.0
    %7675 = vmatprep.subr.mxu0 0.0
    %7676 = vmatpush1.msra.mxu0 0.0
    %7677 = vmatprep.subr.mxu0 0.0
    %7678 = vmatpush1.msra.mxu0 0.0
    %7679 = vmatprep.subr.mxu0 0.0
    %7680 = vmatpush1.msra.mxu0 0.0
    %7681 = vmatprep.subr.mxu0 0.0
    %7682 = vmatpush1.msra.mxu0 0.0
    %7683 = vmatprep.subr.mxu0 0.0
    %7684 = vmatpush1.msra.mxu0 0.0
    %7685 = vmatprep.subr.mxu0 0.0
    %7686 = vmatpush1.msra.mxu0 0.0
    %7687 = vmatprep.subr.mxu0 0.0
    %7688 = vmatpush1.msra.mxu0 0.0
    %7689 = vmatprep.subr.mxu0 0.0
    %7690 = vmatpush1.msra.mxu0 0.0
    %7691 = vmatprep.subr.mxu0 0.0
    %7692 = vmatpush1.msra.mxu0 0.0
    %7693 = vmatprep.mubr.f32.mxu0 0.0
    %7694 = vmatmul.mubr.f32.gmra.mrb[0].mxu0 %v7618
    %v7695 = vpop.f32.mrb[0].mxu0
    %v7696 = vadd.f32 0.0, %v7695
    %v7697 = vpop.f32.mrb[0].mxu0
    %7698 = vmatprep.mubr.f32.mxu0 0.0
    %7699 = vmatmul.mubr.f32.gmra.mrb[0].mxu0 %v7621
    %v7700 = vpop.f32.mrb[0].mxu0
    %v7701 = vadd.f32 0.0, %v7700
    %v7702 = vpop.f32.mrb[0].mxu0
    %7703 = vmatprep.mubr.f32.mxu0 0.0
    %7704 = vmatmul.mubr.f32.gmra.mrb[0].mxu0 %v7624
    %v7705 = vpop.f32.mrb[0].mxu0
    %v7706 = vadd.f32 0.0, %v7705
    %v7707 = vpop.f32.mrb[0].mxu0
    %7708 = vmatprep.mubr.f32.mxu0 0.0
    %7709 = vmatmul.mubr.f32.gmra.mrb[0].mxu0 %v7627
    %v7710 = vpop.f32.mrb[0].mxu0
    %v7711 = vadd.f32 0.0, %v7710
    %v7712 = vpop.f32.mrb[0].mxu0
    %7713 = vdwg.mxu0
    %v7714 = vadd.f32 %v7572, %v7696
    %v7715 = vadd.f32 %v7577, %v7701
    %v7716 = vadd.f32 %v7582, %v7706
    %v7717 = vadd.f32 %v7587, %v7711
    %v7718 = vld [vmem:[#allocation2 + $0xf] sm:$0xff]
    %v7719 = vld [vmem:[#allocation2 + $0x17] sm:$0xff]
    %v7720 = vld [vmem:[#allocation2 + $0x1f] sm:$0xff]
    %v7721 = vld [vmem:[#allocation2 + $0x27] sm:$0xff]
    %7722 = vset.pattern.permute.xlu0 3
    %7723 = vperm.xlu0 %7722, %v7339
    %v7724 = vpop.permute.xlu0 %7723
    %7726 = vset.pattern.permute.xlu0 3
    %7727 = vperm.xlu0 %7726, %v7340
    %v7728 = vpop.permute.xlu0 %7727
    %7730 = vset.pattern.permute.xlu0 3
    %7731 = vperm.xlu0 %7730, %v7341
    %v7732 = vpop.permute.xlu0 %7731
    %7734 = vset.pattern.permute.xlu0 3
    %7735 = vperm.xlu0 %7734, %v7342
    %v7736 = vpop.permute.xlu0 %7735
    %v7738 = vmul.f32 %v7718, %v7724
    %v7739 = vmul.f32 %v7719, %v7728
    %v7740 = vmul.f32 %v7720, %v7732
    %v7741 = vmul.f32 %v7721, %v7736
    %s7742 = scalar_lea.vmem %s9, 48
    %v7743 = vld [vmem:[%s7742] sm:$0xff]
    %v7744 = vld [vmem:[%s7742 + $0x8] sm:$0xff]
    %v7746 = vsel %vm213, %v7738, 0
    %v7749 = vsel %vm213, %v7739, 0
    %v7752 = vsel %vm213, %v7740, 0
    %v7755 = vsel %vm213, %v7741, 0
    %7757 = vmatprep.subr.mxu0 0.0
    %7758 = vmatpush1.msra.mxu0 %v7743
    %7759 = vmatprep.subr.mxu0 0.0
    %7760 = vmatpush1.msra.mxu0 %v7744
    %7761 = vmatprep.subr.mxu0 0.0
    %7762 = vmatpush1.msra.mxu0 0.0
    %7763 = vmatprep.subr.mxu0 0.0
    %7764 = vmatpush1.msra.mxu0 0.0
    %7765 = vmatprep.subr.mxu0 0.0
    %7766 = vmatpush1.msra.mxu0 0.0
    %7767 = vmatprep.subr.mxu0 0.0
    %7768 = vmatpush1.msra.mxu0 0.0
    %7769 = vmatprep.subr.mxu0 0.0
    %7770 = vmatpush1.msra.mxu0 0.0
    %7771 = vmatprep.subr.mxu0 0.0
    %7772 = vmatpush1.msra.mxu0 0.0
    %7773 = vmatprep.subr.mxu0 0.0
    %7774 = vmatpush1.msra.mxu0 0.0
    %7775 = vmatprep.subr.mxu0 0.0
    %7776 = vmatpush1.msra.mxu0 0.0
    %7777 = vmatprep.subr.mxu0 0.0
    %7778 = vmatpush1.msra.mxu0 0.0
    %7779 = vmatprep.subr.mxu0 0.0
    %7780 = vmatpush1.msra.mxu0 0.0
    %7781 = vmatprep.subr.mxu0 0.0
    %7782 = vmatpush1.msra.mxu0 0.0
    %7783 = vmatprep.subr.mxu0 0.0
    %7784 = vmatpush1.msra.mxu0 0.0
    %7785 = vmatprep.subr.mxu0 0.0
    %7786 = vmatpush1.msra.mxu0 0.0
    %7787 = vmatprep.subr.mxu0 0.0
    %7788 = vmatpush1.msra.mxu0 0.0
    %7789 = vmatprep.subr.mxu0 0.0
    %7790 = vmatpush1.msra.mxu0 0.0
    %7791 = vmatprep.subr.mxu0 0.0
    %7792 = vmatpush1.msra.mxu0 0.0
    %7793 = vmatprep.subr.mxu0 0.0
    %7794 = vmatpush1.msra.mxu0 0.0
    %7795 = vmatprep.subr.mxu0 0.0
    %7796 = vmatpush1.msra.mxu0 0.0
    %7797 = vmatprep.subr.mxu0 0.0
    %7798 = vmatpush1.msra.mxu0 0.0
    %7799 = vmatprep.subr.mxu0 0.0
    %7800 = vmatpush1.msra.mxu0 0.0
    %7801 = vmatprep.subr.mxu0 0.0
    %7802 = vmatpush1.msra.mxu0 0.0
    %7803 = vmatprep.subr.mxu0 0.0
    %7804 = vmatpush1.msra.mxu0 0.0
    %7805 = vmatprep.subr.mxu0 0.0
    %7806 = vmatpush1.msra.mxu0 0.0
    %7807 = vmatprep.subr.mxu0 0.0
    %7808 = vmatpush1.msra.mxu0 0.0
    %7809 = vmatprep.subr.mxu0 0.0
    %7810 = vmatpush1.msra.mxu0 0.0
    %7811 = vmatprep.subr.mxu0 0.0
    %7812 = vmatpush1.msra.mxu0 0.0
    %7813 = vmatprep.subr.mxu0 0.0
    %7814 = vmatpush1.msra.mxu0 0.0
    %7815 = vmatprep.subr.mxu0 0.0
    %7816 = vmatpush1.msra.mxu0 0.0
    %7817 = vmatprep.subr.mxu0 0.0
    %7818 = vmatpush1.msra.mxu0 0.0
    %7819 = vmatprep.subr.mxu0 0.0
    %7820 = vmatpush1.msra.mxu0 0.0
    %7821 = vmatprep.mubr.f32.mxu0 0.0
    %7822 = vmatmul.mubr.f32.gmra.mrb[0].mxu0 %v7746
    %v7823 = vpop.f32.mrb[0].mxu0
    %v7824 = vadd.f32 0.0, %v7823
    %v7825 = vpop.f32.mrb[0].mxu0
    %7826 = vmatprep.mubr.f32.mxu0 0.0
    %7827 = vmatmul.mubr.f32.gmra.mrb[0].mxu0 %v7749
    %v7828 = vpop.f32.mrb[0].mxu0
    %v7829 = vadd.f32 0.0, %v7828
    %v7830 = vpop.f32.mrb[0].mxu0
    %7831 = vmatprep.mubr.f32.mxu0 0.0
    %7832 = vmatmul.mubr.f32.gmra.mrb[0].mxu0 %v7752
    %v7833 = vpop.f32.mrb[0].mxu0
    %v7834 = vadd.f32 0.0, %v7833
    %v7835 = vpop.f32.mrb[0].mxu0
    %7836 = vmatprep.mubr.f32.mxu0 0.0
    %7837 = vmatmul.mubr.f32.gmra.mrb[0].mxu0 %v7755
    %v7838 = vpop.f32.mrb[0].mxu0
    %v7839 = vadd.f32 0.0, %v7838
    %v7840 = vpop.f32.mrb[0].mxu0
    %7841 = vdwg.mxu0
    %v7842 = vadd.f32 %v7714, %v7824
    %v7843 = vadd.f32 %v7715, %v7829
    %v7844 = vadd.f32 %v7716, %v7834
    %v7845 = vadd.f32 %v7717, %v7839
    %v7846 = vld [vmem:[#allocation2 + $0x10] sm:$0xff]
    %v7847 = vld [vmem:[#allocation2 + $0x18] sm:$0xff]
    %v7848 = vld [vmem:[#allocation2 + $0x20] sm:$0xff]
    %v7849 = vld [vmem:[#allocation2 + $0x28] sm:$0xff]
    %s7850 = scalar_lea.vmem %s9, 64
    %v7851 = vld [vmem:[%s7850] sm:$0xff]
    %v7852 = vld [vmem:[%s7850 + $0x8] sm:$0xff]
    %v7854 = vsel %vm213, %v7846, 0
    %v7857 = vsel %vm213, %v7847, 0
    %v7860 = vsel %vm213, %v7848, 0
    %v7863 = vsel %vm213, %v7849, 0
    %7865 = vmatprep.subr.mxu0 0.0
    %7866 = vmatpush1.msra.mxu0 %v7851
    %7867 = vmatprep.subr.mxu0 0.0
    %7868 = vmatpush1.msra.mxu0 %v7852
    %7869 = vmatprep.subr.mxu0 0.0
    %7870 = vmatpush1.msra.mxu0 0.0
    %7871 = vmatprep.subr.mxu0 0.0
    %7872 = vmatpush1.msra.mxu0 0.0
    %7873 = vmatprep.subr.mxu0 0.0
    %7874 = vmatpush1.msra.mxu0 0.0
    %7875 = vmatprep.subr.mxu0 0.0
    %7876 = vmatpush1.msra.mxu0 0.0
    %7877 = vmatprep.subr.mxu0 0.0
    %7878 = vmatpush1.msra.mxu0 0.0
    %7879 = vmatprep.subr.mxu0 0.0
    %7880 = vmatpush1.msra.mxu0 0.0
    %7881 = vmatprep.subr.mxu0 0.0
    %7882 = vmatpush1.msra.mxu0 0.0
    %7883 = vmatprep.subr.mxu0 0.0
    %7884 = vmatpush1.msra.mxu0 0.0
    %7885 = vmatprep.subr.mxu0 0.0
    %7886 = vmatpush1.msra.mxu0 0.0
    %7887 = vmatprep.subr.mxu0 0.0
    %7888 = vmatpush1.msra.mxu0 0.0
    %7889 = vmatprep.subr.mxu0 0.0
    %7890 = vmatpush1.msra.mxu0 0.0
    %7891 = vmatprep.subr.mxu0 0.0
    %7892 = vmatpush1.msra.mxu0 0.0
    %7893 = vmatprep.subr.mxu0 0.0
    %7894 = vmatpush1.msra.mxu0 0.0
    %7895 = vmatprep.subr.mxu0 0.0
    %7896 = vmatpush1.msra.mxu0 0.0
    %7897 = vmatprep.subr.mxu0 0.0
    %7898 = vmatpush1.msra.mxu0 0.0
    %7899 = vmatprep.subr.mxu0 0.0
    %7900 = vmatpush1.msra.mxu0 0.0
    %7901 = vmatprep.subr.mxu0 0.0
    %7902 = vmatpush1.msra.mxu0 0.0
    %7903 = vmatprep.subr.mxu0 0.0
    %7904 = vmatpush1.msra.mxu0 0.0
    %7905 = vmatprep.subr.mxu0 0.0
    %7906 = vmatpush1.msra.mxu0 0.0
    %7907 = vmatprep.subr.mxu0 0.0
    %7908 = vmatpush1.msra.mxu0 0.0
    %7909 = vmatprep.subr.mxu0 0.0
    %7910 = vmatpush1.msra.mxu0 0.0
    %7911 = vmatprep.subr.mxu0 0.0
    %7912 = vmatpush1.msra.mxu0 0.0
    %7913 = vmatprep.subr.mxu0 0.0
    %7914 = vmatpush1.msra.mxu0 0.0
    %7915 = vmatprep.subr.mxu0 0.0
    %7916 = vmatpush1.msra.mxu0 0.0
    %7917 = vmatprep.subr.mxu0 0.0
    %7918 = vmatpush1.msra.mxu0 0.0
    %7919 = vmatprep.subr.mxu0 0.0
    %7920 = vmatpush1.msra.mxu0 0.0
    %7921 = vmatprep.subr.mxu0 0.0
    %7922 = vmatpush1.msra.mxu0 0.0
    %7923 = vmatprep.subr.mxu0 0.0
    %7924 = vmatpush1.msra.mxu0 0.0
    %7925 = vmatprep.subr.mxu0 0.0
    %7926 = vmatpush1.msra.mxu0 0.0
    %7927 = vmatprep.subr.mxu0 0.0
    %7928 = vmatpush1.msra.mxu0 0.0
    %7929 = vmatprep.mubr.f32.mxu0 0.0
    %7930 = vmatmul.mubr.f32.gmra.mrb[0].mxu0 %v7854
    %v7931 = vpop.f32.mrb[0].mxu0
    %v7932 = vadd.f32 0.0, %v7931
    %v7933 = vpop.f32.mrb[0].mxu0
    %7934 = vmatprep.mubr.f32.mxu0 0.0
    %7935 = vmatmul.mubr.f32.gmra.mrb[0].mxu0 %v7857
    %v7936 = vpop.f32.mrb[0].mxu0
    %v7937 = vadd.f32 0.0, %v7936
    %v7938 = vpop.f32.mrb[0].mxu0
    %7939 = vmatprep.mubr.f32.mxu0 0.0
    %7940 = vmatmul.mubr.f32.gmra.mrb[0].mxu0 %v7860
    %v7941 = vpop.f32.mrb[0].mxu0
    %v7942 = vadd.f32 0.0, %v7941
    %v7943 = vpop.f32.mrb[0].mxu0
    %7944 = vmatprep.mubr.f32.mxu0 0.0
    %7945 = vmatmul.mubr.f32.gmra.mrb[0].mxu0 %v7863
    %v7946 = vpop.f32.mrb[0].mxu0
    %v7947 = vadd.f32 0.0, %v7946
    %v7948 = vpop.f32.mrb[0].mxu0
    %7949 = vdwg.mxu0
    %v7950 = vadd.f32 %v7842, %v7932
    %v7951 = vadd.f32 %v7843, %v7937
    %v7952 = vadd.f32 %v7844, %v7942
    %v7953 = vadd.f32 %v7845, %v7947
    %v7954 = vld [vmem:[#allocation2 + $0x11] sm:$0xff]
    %v7955 = vld [vmem:[#allocation2 + $0x19] sm:$0xff]
    %v7956 = vld [vmem:[#allocation2 + $0x21] sm:$0xff]
    %v7957 = vld [vmem:[#allocation2 + $0x29] sm:$0xff]
    %7958 = vset.pattern.permute.xlu0 5
    %7959 = vperm.xlu0 %7958, %v7339
    %v7960 = vpop.permute.xlu0 %7959
    %7962 = vset.pattern.permute.xlu0 5
    %7963 = vperm.xlu0 %7962, %v7340
    %v7964 = vpop.permute.xlu0 %7963
    %7966 = vset.pattern.permute.xlu0 5
    %7967 = vperm.xlu0 %7966, %v7341
    %v7968 = vpop.permute.xlu0 %7967
    %7970 = vset.pattern.permute.xlu0 5
    %7971 = vperm.xlu0 %7970, %v7342
    %v7972 = vpop.permute.xlu0 %7971
    %v7974 = vmul.f32 %v7954, %v7960
    %v7975 = vmul.f32 %v7955, %v7964
    %v7976 = vmul.f32 %v7956, %v7968
    %v7977 = vmul.f32 %v7957, %v7972
    %s7978 = scalar_lea.vmem %s9, 80
    %v7979 = vld [vmem:[%s7978] sm:$0xff]
    %v7980 = vld [vmem:[%s7978 + $0x8] sm:$0xff]
    %v7982 = vsel %vm213, %v7974, 0
    %v7985 = vsel %vm213, %v7975, 0
    %v7988 = vsel %vm213, %v7976, 0
    %v7991 = vsel %vm213, %v7977, 0
    %7993 = vmatprep.subr.mxu0 0.0
    %7994 = vmatpush1.msra.mxu0 %v7979
    %7995 = vmatprep.subr.mxu0 0.0
    %7996 = vmatpush1.msra.mxu0 %v7980
    %7997 = vmatprep.subr.mxu0 0.0
    %7998 = vmatpush1.msra.mxu0 0.0
    %7999 = vmatprep.subr.mxu0 0.0
    %8000 = vmatpush1.msra.mxu0 0.0
    %8001 = vmatprep.subr.mxu0 0.0
    %8002 = vmatpush1.msra.mxu0 0.0
    %8003 = vmatprep.subr.mxu0 0.0
    %8004 = vmatpush1.msra.mxu0 0.0
    %8005 = vmatprep.subr.mxu0 0.0
    %8006 = vmatpush1.msra.mxu0 0.0
    %8007 = vmatprep.subr.mxu0 0.0
    %8008 = vmatpush1.msra.mxu0 0.0
    %8009 = vmatprep.subr.mxu0 0.0
    %8010 = vmatpush1.msra.mxu0 0.0
    %8011 = vmatprep.subr.mxu0 0.0
    %8012 = vmatpush1.msra.mxu0 0.0
    %8013 = vmatprep.subr.mxu0 0.0
    %8014 = vmatpush1.msra.mxu0 0.0
    %8015 = vmatprep.subr.mxu0 0.0
    %8016 = vmatpush1.msra.mxu0 0.0
    %8017 = vmatprep.subr.mxu0 0.0
    %8018 = vmatpush1.msra.mxu0 0.0
    %8019 = vmatprep.subr.mxu0 0.0
    %8020 = vmatpush1.msra.mxu0 0.0
    %8021 = vmatprep.subr.mxu0 0.0
    %8022 = vmatpush1.msra.mxu0 0.0
    %8023 = vmatprep.subr.mxu0 0.0
    %8024 = vmatpush1.msra.mxu0 0.0
    %8025 = vmatprep.subr.mxu0 0.0
    %8026 = vmatpush1.msra.mxu0 0.0
    %8027 = vmatprep.subr.mxu0 0.0
    %8028 = vmatpush1.msra.mxu0 0.0
    %8029 = vmatprep.subr.mxu0 0.0
    %8030 = vmatpush1.msra.mxu0 0.0
    %8031 = vmatprep.subr.mxu0 0.0
    %8032 = vmatpush1.msra.mxu0 0.0
    %8033 = vmatprep.subr.mxu0 0.0
    %8034 = vmatpush1.msra.mxu0 0.0
    %8035 = vmatprep.subr.mxu0 0.0
    %8036 = vmatpush1.msra.mxu0 0.0
    %8037 = vmatprep.subr.mxu0 0.0
    %8038 = vmatpush1.msra.mxu0 0.0
    %8039 = vmatprep.subr.mxu0 0.0
    %8040 = vmatpush1.msra.mxu0 0.0
    %8041 = vmatprep.subr.mxu0 0.0
    %8042 = vmatpush1.msra.mxu0 0.0
    %8043 = vmatprep.subr.mxu0 0.0
    %8044 = vmatpush1.msra.mxu0 0.0
    %8045 = vmatprep.subr.mxu0 0.0
    %8046 = vmatpush1.msra.mxu0 0.0
    %8047 = vmatprep.subr.mxu0 0.0
    %8048 = vmatpush1.msra.mxu0 0.0
    %8049 = vmatprep.subr.mxu0 0.0
    %8050 = vmatpush1.msra.mxu0 0.0
    %8051 = vmatprep.subr.mxu0 0.0
    %8052 = vmatpush1.msra.mxu0 0.0
    %8053 = vmatprep.subr.mxu0 0.0
    %8054 = vmatpush1.msra.mxu0 0.0
    %8055 = vmatprep.subr.mxu0 0.0
    %8056 = vmatpush1.msra.mxu0 0.0
    %8057 = vmatprep.mubr.f32.mxu0 0.0
    %8058 = vmatmul.mubr.f32.gmra.mrb[0].mxu0 %v7982
    %v8059 = vpop.f32.mrb[0].mxu0
    %v8060 = vadd.f32 0.0, %v8059
    %v8061 = vpop.f32.mrb[0].mxu0
    %8062 = vmatprep.mubr.f32.mxu0 0.0
    %8063 = vmatmul.mubr.f32.gmra.mrb[0].mxu0 %v7985
    %v8064 = vpop.f32.mrb[0].mxu0
    %v8065 = vadd.f32 0.0, %v8064
    %v8066 = vpop.f32.mrb[0].mxu0
    %8067 = vmatprep.mubr.f32.mxu0 0.0
    %8068 = vmatmul.mubr.f32.gmra.mrb[0].mxu0 %v7988
    %v8069 = vpop.f32.mrb[0].mxu0
    %v8070 = vadd.f32 0.0, %v8069
    %v8071 = vpop.f32.mrb[0].mxu0
    %8072 = vmatprep.mubr.f32.mxu0 0.0
    %8073 = vmatmul.mubr.f32.gmra.mrb[0].mxu0 %v7991
    %v8074 = vpop.f32.mrb[0].mxu0
    %v8075 = vadd.f32 0.0, %v8074
    %v8076 = vpop.f32.mrb[0].mxu0
    %8077 = vdwg.mxu0
    %v8078 = vadd.f32 %v7950, %v8060
    %v8079 = vadd.f32 %v7951, %v8065
    %v8080 = vadd.f32 %v7952, %v8070
    %v8081 = vadd.f32 %v7953, %v8075
    %v8082 = vld [vmem:[#allocation2 + $0x13] sm:$0xff]
    %v8083 = vld [vmem:[#allocation2 + $0x1b] sm:$0xff]
    %v8084 = vld [vmem:[#allocation2 + $0x23] sm:$0xff]
    %v8085 = vld [vmem:[#allocation2 + $0x2b] sm:$0xff]
    %8086 = vset.pattern.permute.xlu0 6
    %8087 = vperm.xlu0 %8086, %v7339
    %v8088 = vpop.permute.xlu0 %8087
    %8090 = vset.pattern.permute.xlu0 6
    %8091 = vperm.xlu0 %8090, %v7340
    %v8092 = vpop.permute.xlu0 %8091
    %8094 = vset.pattern.permute.xlu0 6
    %8095 = vperm.xlu0 %8094, %v7341
    %v8096 = vpop.permute.xlu0 %8095
    %8098 = vset.pattern.permute.xlu0 6
    %8099 = vperm.xlu0 %8098, %v7342
    %v8100 = vpop.permute.xlu0 %8099
    %v8102 = vmul.f32 %v8082, %v8088
    %v8103 = vmul.f32 %v8083, %v8092
    %v8104 = vmul.f32 %v8084, %v8096
    %v8105 = vmul.f32 %v8085, %v8100
    %s8106 = scalar_lea.vmem %s9, 96
    %v8107 = vld [vmem:[%s8106] sm:$0xff]
    %v8108 = vld [vmem:[%s8106 + $0x8] sm:$0xff]
    %v8110 = vsel %vm213, %v8102, 0
    %v8113 = vsel %vm213, %v8103, 0
    %v8116 = vsel %vm213, %v8104, 0
    %v8119 = vsel %vm213, %v8105, 0
    %8121 = vmatprep.subr.mxu0 0.0
    %8122 = vmatpush1.msra.mxu0 %v8107
    %8123 = vmatprep.subr.mxu0 0.0
    %8124 = vmatpush1.msra.mxu0 %v8108
    %8125 = vmatprep.subr.mxu0 0.0
    %8126 = vmatpush1.msra.mxu0 0.0
    %8127 = vmatprep.subr.mxu0 0.0
    %8128 = vmatpush1.msra.mxu0 0.0
    %8129 = vmatprep.subr.mxu0 0.0
    %8130 = vmatpush1.msra.mxu0 0.0
    %8131 = vmatprep.subr.mxu0 0.0
    %8132 = vmatpush1.msra.mxu0 0.0
    %8133 = vmatprep.subr.mxu0 0.0
    %8134 = vmatpush1.msra.mxu0 0.0
    %8135 = vmatprep.subr.mxu0 0.0
    %8136 = vmatpush1.msra.mxu0 0.0
    %8137 = vmatprep.subr.mxu0 0.0
    %8138 = vmatpush1.msra.mxu0 0.0
    %8139 = vmatprep.subr.mxu0 0.0
    %8140 = vmatpush1.msra.mxu0 0.0
    %8141 = vmatprep.subr.mxu0 0.0
    %8142 = vmatpush1.msra.mxu0 0.0
    %8143 = vmatprep.subr.mxu0 0.0
    %8144 = vmatpush1.msra.mxu0 0.0
    %8145 = vmatprep.subr.mxu0 0.0
    %8146 = vmatpush1.msra.mxu0 0.0
    %8147 = vmatprep.subr.mxu0 0.0
    %8148 = vmatpush1.msra.mxu0 0.0
    %8149 = vmatprep.subr.mxu0 0.0
    %8150 = vmatpush1.msra.mxu0 0.0
    %8151 = vmatprep.subr.mxu0 0.0
    %8152 = vmatpush1.msra.mxu0 0.0
    %8153 = vmatprep.subr.mxu0 0.0
    %8154 = vmatpush1.msra.mxu0 0.0
    %8155 = vmatprep.subr.mxu0 0.0
    %8156 = vmatpush1.msra.mxu0 0.0
    %8157 = vmatprep.subr.mxu0 0.0
    %8158 = vmatpush1.msra.mxu0 0.0
    %8159 = vmatprep.subr.mxu0 0.0
    %8160 = vmatpush1.msra.mxu0 0.0
    %8161 = vmatprep.subr.mxu0 0.0
    %8162 = vmatpush1.msra.mxu0 0.0
    %8163 = vmatprep.subr.mxu0 0.0
    %8164 = vmatpush1.msra.mxu0 0.0
    %8165 = vmatprep.subr.mxu0 0.0
    %8166 = vmatpush1.msra.mxu0 0.0
    %8167 = vmatprep.subr.mxu0 0.0
    %8168 = vmatpush1.msra.mxu0 0.0
    %8169 = vmatprep.subr.mxu0 0.0
    %8170 = vmatpush1.msra.mxu0 0.0
    %8171 = vmatprep.subr.mxu0 0.0
    %8172 = vmatpush1.msra.mxu0 0.0
    %8173 = vmatprep.subr.mxu0 0.0
    %8174 = vmatpush1.msra.mxu0 0.0
    %8175 = vmatprep.subr.mxu0 0.0
    %8176 = vmatpush1.msra.mxu0 0.0
    %8177 = vmatprep.subr.mxu0 0.0
    %8178 = vmatpush1.msra.mxu0 0.0
    %8179 = vmatprep.subr.mxu0 0.0
    %8180 = vmatpush1.msra.mxu0 0.0
    %8181 = vmatprep.subr.mxu0 0.0
    %8182 = vmatpush1.msra.mxu0 0.0
    %8183 = vmatprep.subr.mxu0 0.0
    %8184 = vmatpush1.msra.mxu0 0.0
    %8185 = vmatprep.mubr.f32.mxu0 0.0
    %8186 = vmatmul.mubr.f32.gmra.mrb[0].mxu0 %v8110
    %v8187 = vpop.f32.mrb[0].mxu0
    %v8188 = vadd.f32 0.0, %v8187
    %v8189 = vpop.f32.mrb[0].mxu0
    %8190 = vmatprep.mubr.f32.mxu0 0.0
    %8191 = vmatmul.mubr.f32.gmra.mrb[0].mxu0 %v8113
    %v8192 = vpop.f32.mrb[0].mxu0
    %v8193 = vadd.f32 0.0, %v8192
    %v8194 = vpop.f32.mrb[0].mxu0
    %8195 = vmatprep.mubr.f32.mxu0 0.0
    %8196 = vmatmul.mubr.f32.gmra.mrb[0].mxu0 %v8116
    %v8197 = vpop.f32.mrb[0].mxu0
    %v8198 = vadd.f32 0.0, %v8197
    %v8199 = vpop.f32.mrb[0].mxu0
    %8200 = vmatprep.mubr.f32.mxu0 0.0
    %8201 = vmatmul.mubr.f32.gmra.mrb[0].mxu0 %v8119
    %v8202 = vpop.f32.mrb[0].mxu0
    %v8203 = vadd.f32 0.0, %v8202
    %v8204 = vpop.f32.mrb[0].mxu0
    %8205 = vdwg.mxu0
    %v8206 = vadd.f32 %v8078, %v8188
    %v8207 = vadd.f32 %v8079, %v8193
    %v8208 = vadd.f32 %v8080, %v8198
    %v8209 = vadd.f32 %v8081, %v8203
    %v8210 = vld [vmem:[#allocation2 + $0x14] sm:$0xff]
    %v8211 = vld [vmem:[#allocation2 + $0x1c] sm:$0xff]
    %v8212 = vld [vmem:[#allocation2 + $0x24] sm:$0xff]
    %v8213 = vld [vmem:[#allocation2 + $0x2c] sm:$0xff]
    %8214 = vset.pattern.permute.xlu0 7
    %8215 = vperm.xlu0 %8214, %v7339
    %v8216 = vpop.permute.xlu0 %8215
    %8218 = vset.pattern.permute.xlu0 7
    %8219 = vperm.xlu0 %8218, %v7340
    %v8220 = vpop.permute.xlu0 %8219
    %8222 = vset.pattern.permute.xlu0 7
    %8223 = vperm.xlu0 %8222, %v7341
    %v8224 = vpop.permute.xlu0 %8223
    %8226 = vset.pattern.permute.xlu0 7
    %8227 = vperm.xlu0 %8226, %v7342
    %v8228 = vpop.permute.xlu0 %8227
    %v8230 = vmul.f32 %v8210, %v8216
    %v8231 = vmul.f32 %v8211, %v8220
    %v8232 = vmul.f32 %v8212, %v8224
    %v8233 = vmul.f32 %v8213, %v8228
    %s8234 = scalar_lea.vmem %s9, 112
    %v8235 = vld [vmem:[%s8234] sm:$0xff]
    %v8236 = vld [vmem:[%s8234 + $0x8] sm:$0xff]
    %v8238 = vsel %vm213, %v8230, 0
    %v8241 = vsel %vm213, %v8231, 0
    %v8244 = vsel %vm213, %v8232, 0
    %v8247 = vsel %vm213, %v8233, 0
    %8249 = vmatprep.subr.mxu0 0.0
    %8250 = vmatpush1.msra.mxu0 %v8235
    %8251 = vmatprep.subr.mxu0 0.0
    %8252 = vmatpush1.msra.mxu0 %v8236
    %8253 = vmatprep.subr.mxu0 0.0
    %8254 = vmatpush1.msra.mxu0 0.0
    %8255 = vmatprep.subr.mxu0 0.0
    %8256 = vmatpush1.msra.mxu0 0.0
    %8257 = vmatprep.subr.mxu0 0.0
    %8258 = vmatpush1.msra.mxu0 0.0
    %8259 = vmatprep.subr.mxu0 0.0
    %8260 = vmatpush1.msra.mxu0 0.0
    %8261 = vmatprep.subr.mxu0 0.0
    %8262 = vmatpush1.msra.mxu0 0.0
    %8263 = vmatprep.subr.mxu0 0.0
    %8264 = vmatpush1.msra.mxu0 0.0
    %8265 = vmatprep.subr.mxu0 0.0
    %8266 = vmatpush1.msra.mxu0 0.0
    %8267 = vmatprep.subr.mxu0 0.0
    %8268 = vmatpush1.msra.mxu0 0.0
    %8269 = vmatprep.subr.mxu0 0.0
    %8270 = vmatpush1.msra.mxu0 0.0
    %8271 = vmatprep.subr.mxu0 0.0
    %8272 = vmatpush1.msra.mxu0 0.0
    %8273 = vmatprep.subr.mxu0 0.0
    %8274 = vmatpush1.msra.mxu0 0.0
    %8275 = vmatprep.subr.mxu0 0.0
    %8276 = vmatpush1.msra.mxu0 0.0
    %8277 = vmatprep.subr.mxu0 0.0
    %8278 = vmatpush1.msra.mxu0 0.0
    %8279 = vmatprep.subr.mxu0 0.0
    %8280 = vmatpush1.msra.mxu0 0.0
    %8281 = vmatprep.subr.mxu0 0.0
    %8282 = vmatpush1.msra.mxu0 0.0
    %8283 = vmatprep.subr.mxu0 0.0
    %8284 = vmatpush1.msra.mxu0 0.0
    %8285 = vmatprep.subr.mxu0 0.0
    %8286 = vmatpush1.msra.mxu0 0.0
    %8287 = vmatprep.subr.mxu0 0.0
    %8288 = vmatpush1.msra.mxu0 0.0
    %8289 = vmatprep.subr.mxu0 0.0
    %8290 = vmatpush1.msra.mxu0 0.0
    %8291 = vmatprep.subr.mxu0 0.0
    %8292 = vmatpush1.msra.mxu0 0.0
    %8293 = vmatprep.subr.mxu0 0.0
    %8294 = vmatpush1.msra.mxu0 0.0
    %8295 = vmatprep.subr.mxu0 0.0
    %8296 = vmatpush1.msra.mxu0 0.0
    %8297 = vmatprep.subr.mxu0 0.0
    %8298 = vmatpush1.msra.mxu0 0.0
    %8299 = vmatprep.subr.mxu0 0.0
    %8300 = vmatpush1.msra.mxu0 0.0
    %8301 = vmatprep.subr.mxu0 0.0
    %8302 = vmatpush1.msra.mxu0 0.0
    %8303 = vmatprep.subr.mxu0 0.0
    %8304 = vmatpush1.msra.mxu0 0.0
    %8305 = vmatprep.subr.mxu0 0.0
    %8306 = vmatpush1.msra.mxu0 0.0
    %8307 = vmatprep.subr.mxu0 0.0
    %8308 = vmatpush1.msra.mxu0 0.0
    %8309 = vmatprep.subr.mxu0 0.0
    %8310 = vmatpush1.msra.mxu0 0.0
    %8311 = vmatprep.subr.mxu0 0.0
    %8312 = vmatpush1.msra.mxu0 0.0
    %8313 = vmatprep.mubr.f32.mxu0 0.0
    %8314 = vmatmul.mubr.f32.gmra.mrb[0].mxu0 %v8238
    %v8315 = vpop.f32.mrb[0].mxu0
    %v8316 = vadd.f32 0.0, %v8315
    %v8317 = vpop.f32.mrb[0].mxu0
    %8318 = vmatprep.mubr.f32.mxu0 0.0
    %8319 = vmatmul.mubr.f32.gmra.mrb[0].mxu0 %v8241
    %v8320 = vpop.f32.mrb[0].mxu0
    %v8321 = vadd.f32 0.0, %v8320
    %v8322 = vpop.f32.mrb[0].mxu0
    %8323 = vmatprep.mubr.f32.mxu0 0.0
    %8324 = vmatmul.mubr.f32.gmra.mrb[0].mxu0 %v8244
    %v8325 = vpop.f32.mrb[0].mxu0
    %v8326 = vadd.f32 0.0, %v8325
    %v8327 = vpop.f32.mrb[0].mxu0
    %8328 = vmatprep.mubr.f32.mxu0 0.0
    %8329 = vmatmul.mubr.f32.gmra.mrb[0].mxu0 %v8247
    %v8330 = vpop.f32.mrb[0].mxu0
    %v8331 = vadd.f32 0.0, %v8330
    %v8332 = vpop.f32.mrb[0].mxu0
    %8333 = vdwg.mxu0
    %v8334 = vadd.f32 %v8206, %v8316
    %v8335 = vadd.f32 %v8207, %v8321
    %v8336 = vadd.f32 %v8208, %v8326
    %v8337 = vadd.f32 %v8209, %v8331
    %v8338 = vld [vmem:[#allocation2 + $0x15] sm:$0xff]
    %v8339 = vld [vmem:[#allocation2 + $0x1d] sm:$0xff]
    %v8340 = vld [vmem:[#allocation2 + $0x25] sm:$0xff]
    %v8341 = vld [vmem:[#allocation2 + $0x2d] sm:$0xff]
    %8342 = vset.pattern.permute.xlu0 8
    %8343 = vperm.xlu0 %8342, %v7339
    %v8344 = vpop.permute.xlu0 %8343
    %8346 = vset.pattern.permute.xlu0 8
    %8347 = vperm.xlu0 %8346, %v7340
    %v8348 = vpop.permute.xlu0 %8347
    %8350 = vset.pattern.permute.xlu0 8
    %8351 = vperm.xlu0 %8350, %v7341
    %v8352 = vpop.permute.xlu0 %8351
    %8354 = vset.pattern.permute.xlu0 8
    %8355 = vperm.xlu0 %8354, %v7342
    %v8356 = vpop.permute.xlu0 %8355
    %v8358 = vmul.f32 %v8338, %v8344
    %v8359 = vmul.f32 %v8339, %v8348
    %v8360 = vmul.f32 %v8340, %v8352
    %v8361 = vmul.f32 %v8341, %v8356
    %s8362 = scalar_lea.vmem %s9, 128
    %v8363 = vld [vmem:[%s8362] sm:$0xff]
    %v8364 = vld [vmem:[%s8362 + $0x8] sm:$0xff]
    %v8366 = vsel %vm213, %v8358, 0
    %v8369 = vsel %vm213, %v8359, 0
    %v8372 = vsel %vm213, %v8360, 0
    %v8375 = vsel %vm213, %v8361, 0
    %8377 = vmatprep.subr.mxu0 0.0
    %8378 = vmatpush1.msra.mxu0 %v8363
    %8379 = vmatprep.subr.mxu0 0.0
    %8380 = vmatpush1.msra.mxu0 %v8364
    %8381 = vmatprep.subr.mxu0 0.0
    %8382 = vmatpush1.msra.mxu0 0.0
    %8383 = vmatprep.subr.mxu0 0.0
    %8384 = vmatpush1.msra.mxu0 0.0
    %8385 = vmatprep.subr.mxu0 0.0
    %8386 = vmatpush1.msra.mxu0 0.0
    %8387 = vmatprep.subr.mxu0 0.0
    %8388 = vmatpush1.msra.mxu0 0.0
    %8389 = vmatprep.subr.mxu0 0.0
    %8390 = vmatpush1.msra.mxu0 0.0
    %8391 = vmatprep.subr.mxu0 0.0
    %8392 = vmatpush1.msra.mxu0 0.0
    %8393 = vmatprep.subr.mxu0 0.0
    %8394 = vmatpush1.msra.mxu0 0.0
    %8395 = vmatprep.subr.mxu0 0.0
    %8396 = vmatpush1.msra.mxu0 0.0
    %8397 = vmatprep.subr.mxu0 0.0
    %8398 = vmatpush1.msra.mxu0 0.0
    %8399 = vmatprep.subr.mxu0 0.0
    %8400 = vmatpush1.msra.mxu0 0.0
    %8401 = vmatprep.subr.mxu0 0.0
    %8402 = vmatpush1.msra.mxu0 0.0
    %8403 = vmatprep.subr.mxu0 0.0
    %8404 = vmatpush1.msra.mxu0 0.0
    %8405 = vmatprep.subr.mxu0 0.0
    %8406 = vmatpush1.msra.mxu0 0.0
    %8407 = vmatprep.subr.mxu0 0.0
    %8408 = vmatpush1.msra.mxu0 0.0
    %8409 = vmatprep.subr.mxu0 0.0
    %8410 = vmatpush1.msra.mxu0 0.0
    %8411 = vmatprep.subr.mxu0 0.0
    %8412 = vmatpush1.msra.mxu0 0.0
    %8413 = vmatprep.subr.mxu0 0.0
    %8414 = vmatpush1.msra.mxu0 0.0
    %8415 = vmatprep.subr.mxu0 0.0
    %8416 = vmatpush1.msra.mxu0 0.0
    %8417 = vmatprep.subr.mxu0 0.0
    %8418 = vmatpush1.msra.mxu0 0.0
    %8419 = vmatprep.subr.mxu0 0.0
    %8420 = vmatpush1.msra.mxu0 0.0
    %8421 = vmatprep.subr.mxu0 0.0
    %8422 = vmatpush1.msra.mxu0 0.0
    %8423 = vmatprep.subr.mxu0 0.0
    %8424 = vmatpush1.msra.mxu0 0.0
    %8425 = vmatprep.subr.mxu0 0.0
    %8426 = vmatpush1.msra.mxu0 0.0
    %8427 = vmatprep.subr.mxu0 0.0
    %8428 = vmatpush1.msra.mxu0 0.0
    %8429 = vmatprep.subr.mxu0 0.0
    %8430 = vmatpush1.msra.mxu0 0.0
    %8431 = vmatprep.subr.mxu0 0.0
    %8432 = vmatpush1.msra.mxu0 0.0
    %8433 = vmatprep.subr.mxu0 0.0
    %8434 = vmatpush1.msra.mxu0 0.0
    %8435 = vmatprep.subr.mxu0 0.0
    %8436 = vmatpush1.msra.mxu0 0.0
    %8437 = vmatprep.subr.mxu0 0.0
    %8438 = vmatpush1.msra.mxu0 0.0
    %8439 = vmatprep.subr.mxu0 0.0
    %8440 = vmatpush1.msra.mxu0 0.0
    %8441 = vmatprep.mubr.f32.mxu0 0.0
    %8442 = vmatmul.mubr.f32.gmra.mrb[0].mxu0 %v8366
    %v8443 = vpop.f32.mrb[0].mxu0
    %v8444 = vadd.f32 0.0, %v8443
    %v8445 = vpop.f32.mrb[0].mxu0
    %8446 = vmatprep.mubr.f32.mxu0 0.0
    %8447 = vmatmul.mubr.f32.gmra.mrb[0].mxu0 %v8369
    %v8448 = vpop.f32.mrb[0].mxu0
    %v8449 = vadd.f32 0.0, %v8448
    %v8450 = vpop.f32.mrb[0].mxu0
    %8451 = vmatprep.mubr.f32.mxu0 0.0
    %8452 = vmatmul.mubr.f32.gmra.mrb[0].mxu0 %v8372
    %v8453 = vpop.f32.mrb[0].mxu0
    %v8454 = vadd.f32 0.0, %v8453
    %v8455 = vpop.f32.mrb[0].mxu0
    %8456 = vmatprep.mubr.f32.mxu0 0.0
    %8457 = vmatmul.mubr.f32.gmra.mrb[0].mxu0 %v8375
    %v8458 = vpop.f32.mrb[0].mxu0
    %v8459 = vadd.f32 0.0, %v8458
    %v8460 = vpop.f32.mrb[0].mxu0
    %8461 = vdwg.mxu0
    %v8462 = vadd.f32 %v8334, %v8444
    %v8463 = vadd.f32 %v8335, %v8449
    %v8464 = vadd.f32 %v8336, %v8454
    %v8465 = vadd.f32 %v8337, %v8459
    %v8466 = vld [vmem:[#allocation18] sm:$0x1]
    %v8468 = vlaneseq
    %v8469 = vshrl.u32 %v8468, 7
    %v8470 = vsub.s32 0, %v8469
    %v8471 = vrot.slane %v8466, %v8470
    %v8473 = vadd.f32 %v8462, %v8471
    %v8474 = vadd.f32 %v8463, %v8471
    %v8475 = vadd.f32 %v8464, %v8471
    %v8476 = vadd.f32 %v8465, %v8471
    %v8477 = vmax.f32 %v8473, 0.0
    %v8478 = vmax.f32 %v8474, 0.0
    %v8479 = vmax.f32 %v8475, 0.0
    %v8480 = vmax.f32 %v8476, 0.0
    %8481 = vst.msk [vmem:[#allocation2 + $0x10] sm:$0xff] %vm213, %v8477
    %8482 = vst.msk [vmem:[#allocation2 + $0x18] sm:$0xff] %vm213, %v8478
    %8483 = vst.msk [vmem:[#allocation2 + $0x20] sm:$0xff] %vm213, %v8479
    %8484 = vst.msk [vmem:[#allocation2 + $0x28] sm:$0xff] %vm213, %v8480
    %v8485 = vld [vmem:[#allocation2 + $0x11] sm:$0xff]
    %v8486 = vld [vmem:[#allocation2 + $0x19] sm:$0xff]
    %v8487 = vld [vmem:[#allocation2 + $0x21] sm:$0xff]
    %v8488 = vld [vmem:[#allocation2 + $0x29] sm:$0xff]
    %v8489 = vmax.f32 %v8477, %v8485
    %v8490 = vmax.f32 %v8478, %v8486
    %v8491 = vmax.f32 %v8479, %v8487
    %v8492 = vmax.f32 %v8480, %v8488
    %v8493 = vld [vmem:[#allocation2 + $0x14] sm:$0xff]
    %v8494 = vld [vmem:[#allocation2 + $0x1c] sm:$0xff]
    %v8495 = vld [vmem:[#allocation2 + $0x24] sm:$0xff]
    %v8496 = vld [vmem:[#allocation2 + $0x2c] sm:$0xff]
    %v8497 = vmax.f32 %v8489, %v8493
    %v8498 = vmax.f32 %v8490, %v8494
    %v8499 = vmax.f32 %v8491, %v8495
    %v8500 = vmax.f32 %v8492, %v8496
    %v8501 = vld [vmem:[#allocation2 + $0x15] sm:$0xff]
    %v8502 = vld [vmem:[#allocation2 + $0x1d] sm:$0xff]
    %v8503 = vld [vmem:[#allocation2 + $0x25] sm:$0xff]
    %v8504 = vld [vmem:[#allocation2 + $0x2d] sm:$0xff]
    %v8505 = vmax.f32 %v8497, %v8501
    %v8506 = vmax.f32 %v8498, %v8502
    %v8507 = vmax.f32 %v8499, %v8503
    %v8508 = vmax.f32 %v8500, %v8504
    %vm8509 = vcmask 122880
    %8510 = vst.msk [vmem:[#allocation3] sm:$0x1] %vm8509, %v8505
    %8511 = vst.msk [vmem:[#allocation3 + $0x1] sm:$0x1] %vm8509, %v8507
    %8513 = vrot.lane.b32.xlu0 %v8505, 16
    %v8514 = vpop.permute.xlu0 %8513
    %vm8516 = vcmask 256130
    %8517 = vst.msk [vmem:[#allocation3 - $0x2] sm:$0x4] %vm8516, %v8514
    %8519 = vrot.lane.b32.xlu0 %v8507, 16
    %v8520 = vpop.permute.xlu0 %8519
    %8522 = vst.msk [vmem:[#allocation3 - $0x1] sm:$0x4] %vm8516, %v8520
    %8524 = vrot.lane.b32.xlu0 %v8506, 32
    %v8525 = vpop.permute.xlu0 %8524
    %vm8527 = vcmask 385280
    %8528 = vst.msk [vmem:[#allocation3] sm:$0x1] %vm8527, %v8525
    %8530 = vrot.lane.b32.xlu0 %v8508, 32
    %v8531 = vpop.permute.xlu0 %8530
    %8533 = vst.msk [vmem:[#allocation3 + $0x1] sm:$0x1] %vm8527, %v8531
    %8534 = vrot.lane.b32.xlu0 %v8506, 48
    %v8535 = vpop.permute.xlu0 %8534
    %vm8537 = vcmask 518530
    %8538 = vst.msk [vmem:[#allocation3 - $0x2] sm:$0x4] %vm8537, %v8535
    %8539 = vrot.lane.b32.xlu0 %v8508, 48
    %v8540 = vpop.permute.xlu0 %8539
    %8542 = vst.msk [vmem:[#allocation3 - $0x1] sm:$0x4] %vm8537, %v8540
    %v8543 = vld [vmem:[#allocation3] sm:$0x3]
    %v8544 = vld [vmem:[#allocation21] sm:$0xff]
    %v8545 = vld [vmem:[#allocation21 + $0x8] sm:$0xff]
    %v8546 = vld [vmem:[#allocation21 + $0x10] sm:$0xff]
    %v8547 = vld [vmem:[#allocation21 + $0x18] sm:$0xff]
    %v8548 = vld [vmem:[#allocation21 + $0x20] sm:$0xff]
    %v8549 = vld [vmem:[#allocation21 + $0x28] sm:$0xff]
    %v8550 = vld [vmem:[#allocation21 + $0x30] sm:$0xff]
    %v8551 = vld [vmem:[#allocation21 + $0x38] sm:$0xff]
    %v8552 = vld [vmem:[%s15] sm:$0x1]
    %v8554 = vlaneseq
    %v8555 = vshrl.u32 %v8554, 7
    %v8556 = vsub.s32 0, %v8555
    %v8557 = vrot.slane %v8552, %v8556
    %v8560 = vsel %vm4846, %v8543, 0
    %8562 = vmatprep.subr.mxu0 0.0
    %8563 = vmatpush1.msra.mxu0 %v8544
    %8564 = vmatprep.subr.mxu0 0.0
    %8565 = vmatpush1.msra.mxu0 %v8545
    %8566 = vmatprep.subr.mxu0 0.0
    %8567 = vmatpush1.msra.mxu0 %v8546
    %8568 = vmatprep.subr.mxu0 0.0
    %8569 = vmatpush1.msra.mxu0 %v8547
    %8570 = vmatprep.subr.mxu0 0.0
    %8571 = vmatpush1.msra.mxu0 %v8548
    %8572 = vmatprep.subr.mxu0 0.0
    %8573 = vmatpush1.msra.mxu0 %v8549
    %8574 = vmatprep.subr.mxu0 0.0
    %8575 = vmatpush1.msra.mxu0 %v8550
    %8576 = vmatprep.subr.mxu0 0.0
    %8577 = vmatpush1.msra.mxu0 %v8551
    %8578 = vmatprep.subr.mxu0 0.0
    %8579 = vmatpush1.msra.mxu0 0.0
    %8580 = vmatprep.subr.mxu0 0.0
    %8581 = vmatpush1.msra.mxu0 0.0
    %8582 = vmatprep.subr.mxu0 0.0
    %8583 = vmatpush1.msra.mxu0 0.0
    %8584 = vmatprep.subr.mxu0 0.0
    %8585 = vmatpush1.msra.mxu0 0.0
    %8586 = vmatprep.subr.mxu0 0.0
    %8587 = vmatpush1.msra.mxu0 0.0
    %8588 = vmatprep.subr.mxu0 0.0
    %8589 = vmatpush1.msra.mxu0 0.0
    %8590 = vmatprep.subr.mxu0 0.0
    %8591 = vmatpush1.msra.mxu0 0.0
    %8592 = vmatprep.subr.mxu0 0.0
    %8593 = vmatpush1.msra.mxu0 0.0
    %8594 = vmatprep.subr.mxu0 0.0
    %8595 = vmatpush1.msra.mxu0 0.0
    %8596 = vmatprep.subr.mxu0 0.0
    %8597 = vmatpush1.msra.mxu0 0.0
    %8598 = vmatprep.subr.mxu0 0.0
    %8599 = vmatpush1.msra.mxu0 0.0
    %8600 = vmatprep.subr.mxu0 0.0
    %8601 = vmatpush1.msra.mxu0 0.0
    %8602 = vmatprep.subr.mxu0 0.0
    %8603 = vmatpush1.msra.mxu0 0.0
    %8604 = vmatprep.subr.mxu0 0.0
    %8605 = vmatpush1.msra.mxu0 0.0
    %8606 = vmatprep.subr.mxu0 0.0
    %8607 = vmatpush1.msra.mxu0 0.0
    %8608 = vmatprep.subr.mxu0 0.0
    %8609 = vmatpush1.msra.mxu0 0.0
    %8610 = vmatprep.subr.mxu0 0.0
    %8611 = vmatpush1.msra.mxu0 0.0
    %8612 = vmatprep.subr.mxu0 0.0
    %8613 = vmatpush1.msra.mxu0 0.0
    %8614 = vmatprep.subr.mxu0 0.0
    %8615 = vmatpush1.msra.mxu0 0.0
    %8616 = vmatprep.subr.mxu0 0.0
    %8617 = vmatpush1.msra.mxu0 0.0
    %8618 = vmatprep.subr.mxu0 0.0
    %8619 = vmatpush1.msra.mxu0 0.0
    %8620 = vmatprep.subr.mxu0 0.0
    %8621 = vmatpush1.msra.mxu0 0.0
    %8622 = vmatprep.subr.mxu0 0.0
    %8623 = vmatpush1.msra.mxu0 0.0
    %8624 = vmatprep.subr.mxu0 0.0
    %8625 = vmatpush1.msra.mxu0 0.0
    %8626 = vmatprep.mubr.f32.mxu0 0.0
    %8627 = vmatmul.mubr.f32.gmra.mrb[0].mxu0 %v8560
    %v8628 = vpop.f32.mrb[0].mxu0
    %v8629 = vadd.f32 %v8557, %v8628
    %v8630 = vpop.f32.mrb[0].mxu0
    %8631 = vdwg.mxu0
    %v8632 = vmax.f32 %v8629, 0.0
    %v8633 = vld [vmem:[#allocation22] sm:$0xff]
    %v8634 = vld [vmem:[#allocation22 + $0x8] sm:$0xff]
    %v8635 = vld [vmem:[#allocation22 + $0x10] sm:$0xff]
    %v8636 = vld [vmem:[#allocation22 + $0x18] sm:$0xff]
    %v8637 = vld [vmem:[#allocation22 + $0x20] sm:$0xff]
    %v8638 = vld [vmem:[#allocation22 + $0x28] sm:$0xff]
    %v8639 = vld [vmem:[#allocation22 + $0x30] sm:$0xff]
    %v8640 = vld [vmem:[#allocation22 + $0x38] sm:$0xff]
    %v8641 = vld [vmem:[#allocation22 + $0x40] sm:$0xff]
    %v8642 = vld [vmem:[#allocation22 + $0x48] sm:$0xff]
    %v8643 = vld [vmem:[#allocation22 + $0x50] sm:$0xff]
    %v8644 = vld [vmem:[#allocation22 + $0x58] sm:$0xff]
    %v8645 = vld [vmem:[#allocation22 + $0x60] sm:$0xf]
    %v8646 = vld [vmem:[%s17] sm:$0x1]
    %v8648 = vlaneseq
    %v8649 = vshrl.u32 %v8648, 7
    %v8650 = vsub.s32 0, %v8649
    %v8651 = vrot.slane %v8646, %v8650
    %vm8653 = vcmask 818176
    %v8655 = vsel %vm8653, %v8632, 0
    %vm8657 = vcmask 1043456
    %v8659 = vsel %vm8657, %v8645, 0
    %8661 = vmatprep.subr.mxu0 0.0
    %8662 = vmatpush1.msra.mxu0 %v8633
    %8663 = vmatprep.subr.mxu0 0.0
    %8664 = vmatpush1.msra.mxu0 %v8634
    %8665 = vmatprep.subr.mxu0 0.0
    %8666 = vmatpush1.msra.mxu0 %v8635
    %8667 = vmatprep.subr.mxu0 0.0
    %8668 = vmatpush1.msra.mxu0 %v8636
    %8669 = vmatprep.subr.mxu0 0.0
    %8670 = vmatpush1.msra.mxu0 %v8637
    %8671 = vmatprep.subr.mxu0 0.0
    %8672 = vmatpush1.msra.mxu0 %v8638
    %8673 = vmatprep.subr.mxu0 0.0
    %8674 = vmatpush1.msra.mxu0 %v8639
    %8675 = vmatprep.subr.mxu0 0.0
    %8676 = vmatpush1.msra.mxu0 %v8640
    %8677 = vmatprep.subr.mxu0 0.0
    %8678 = vmatpush1.msra.mxu0 %v8641
    %8679 = vmatprep.subr.mxu0 0.0
    %8680 = vmatpush1.msra.mxu0 %v8642
    %8681 = vmatprep.subr.mxu0 0.0
    %8682 = vmatpush1.msra.mxu0 %v8643
    %8683 = vmatprep.subr.mxu0 0.0
    %8684 = vmatpush1.msra.mxu0 %v8644
    %8685 = vmatprep.subr.mxu0 0.0
    %8686 = vmatpush1.msra.mxu0 %v8659
    %8687 = vmatprep.subr.mxu0 0.0
    %8688 = vmatpush1.msra.mxu0 0.0
    %8689 = vmatprep.subr.mxu0 0.0
    %8690 = vmatpush1.msra.mxu0 0.0
    %8691 = vmatprep.subr.mxu0 0.0
    %8692 = vmatpush1.msra.mxu0 0.0
    %8693 = vmatprep.subr.mxu0 0.0
    %8694 = vmatpush1.msra.mxu0 0.0
    %8695 = vmatprep.subr.mxu0 0.0
    %8696 = vmatpush1.msra.mxu0 0.0
    %8697 = vmatprep.subr.mxu0 0.0
    %8698 = vmatpush1.msra.mxu0 0.0
    %8699 = vmatprep.subr.mxu0 0.0
    %8700 = vmatpush1.msra.mxu0 0.0
    %8701 = vmatprep.subr.mxu0 0.0
    %8702 = vmatpush1.msra.mxu0 0.0
    %8703 = vmatprep.subr.mxu0 0.0
    %8704 = vmatpush1.msra.mxu0 0.0
    %8705 = vmatprep.subr.mxu0 0.0
    %8706 = vmatpush1.msra.mxu0 0.0
    %8707 = vmatprep.subr.mxu0 0.0
    %8708 = vmatpush1.msra.mxu0 0.0
    %8709 = vmatprep.subr.mxu0 0.0
    %8710 = vmatpush1.msra.mxu0 0.0
    %8711 = vmatprep.subr.mxu0 0.0
    %8712 = vmatpush1.msra.mxu0 0.0
    %8713 = vmatprep.subr.mxu0 0.0
    %8714 = vmatpush1.msra.mxu0 0.0
    %8715 = vmatprep.subr.mxu0 0.0
    %8716 = vmatpush1.msra.mxu0 0.0
    %8717 = vmatprep.subr.mxu0 0.0
    %8718 = vmatpush1.msra.mxu0 0.0
    %8719 = vmatprep.subr.mxu0 0.0
    %8720 = vmatpush1.msra.mxu0 0.0
    %8721 = vmatprep.subr.mxu0 0.0
    %8722 = vmatpush1.msra.mxu0 0.0
    %8723 = vmatprep.subr.mxu0 0.0
    %8724 = vmatpush1.msra.mxu0 0.0
    %8725 = vmatprep.mubr.f32.mxu0 0.0
    %8726 = vmatmul.mubr.f32.gmra.mrb[0].mxu0 %v8655
    %v8727 = vpop.f32.mrb[0].mxu0
    %v8728 = vadd.f32 %v8651, %v8727
    %v8729 = vpop.f32.mrb[0].mxu0
    %8730 = vdwg.mxu0
    %vm8731 = vcmask 74752
    %8732 = vst.msk [vmem:[#allocation24] sm:$0x3] %vm8731, %v8728
    // Predicated region
    $region122: #{_lambda_.1} parent=1 // pred_check
      _
    $region123: #{_lambda_.1} parent=1 // pred_check_branch
      %8734 = sbr.rel (0) target = $region125
    $region124: #{_lambda_.1} parent=1 // pred_region
      %s8736 = ssub.s32 32, 32
      %8737 = vsyncadd [#allocation6], %s8736
      %s8739 = sshll.u32 [#allocation24], 4
      %s8740 = int_to_ptr.vmem [resolvable:$true] %s8739
      %8742 = dma.vmem_to_hbm [thread:$0]  %s8740, 32, %s18, [#allocation6]
    $region125: #{_lambda_.1} parent=1 // pred_fallthru
      _
    // Predicated region
    $region126: #{_lambda_.1} parent=1 // pred_check
      _
    $region127: #{_lambda_.1} parent=1 // pred_check_branch
      %8744 = sbr.rel (0) target = $region129
    $region128: #{_lambda_.1} parent=1 // pred_region
      %8745 = dma.done [#allocation6], 32
    $region129: #{_lambda_.1} parent=1 // pred_fallthru
      _
    %8746 = vsyncpa [#allocation5], 1
    %8747 = vsyncpa [#allocation8], 1
    %8748 = vsyncpa [#allocation11], 1
    %8749 = vsyncpa [#allocation14], 1
    %8750 = vsyncpa [#allocation17], 1
    %8751 = vsyncpa [#allocation20], 1
    %8752 = vsyncpa [#allocation23], 1
    %8753 = vsyncpa [#allocation6], 1

</llo_original>
